<compile_context>
chip_gen: v6e
topology: v6e:2x2x1
jax: 0.10.0
libtpu: 0.0.40
codegen_flags: <defaults>
</compile_context>

<pallas_src>
import jax
import jax.numpy as jnp
from jax import lax
from jax.experimental import pallas as pl
from jax.experimental.pallas import tpu as pltpu

_C1P = 56    # conv1 channels padded 50 -> 56 (multiple of 8 sublanes)
_C1S = 64    # a1 scratch row stride (multiple of 16 for bf16 tiling)
_C2P = 128   # conv2 channels padded 100 -> 128 (lane dense)


# --------------------------------------------------------------------------- #
# Fused stage 1 + stage 2 kernel (per image)
# --------------------------------------------------------------------------- #
def _conv12_kernel(xe_ref, xo_ref, wc1_ref, bc1_ref, wc2_ref, bc2_ref, sel_ref,
                   alpha_ref, a2_ref, a1_scr):
    alpha = alpha_ref[0]
    b1 = bc1_ref[...]                    # (56, 1)  f32
    b2 = bc2_ref[...]                    # (128, 1) f32
    sel = sel_ref[...]                   # (95, 48) bf16, sel[2j, j] = 1

    # Clear the a1 scratch (also zeroes the pad rows seen by the matmul K dim).
    a1_scr[...] = jnp.zeros_like(a1_scr)

    # ----------------- stage 1: conv1 + PReLU + 2x2 max-pool (VPU) -----------------
    def s1_body(p, carry):
        be = xe_ref[0, pl.ds(2 * p, 4), :]            # (4, 99) even input columns
        bo = xo_ref[0, pl.ds(2 * p, 4), :]            # (4, 99) odd  input columns
        e0 = [be[r:r + 1, 0:98] for r in range(4)]    # x[.., 2j]
        e1 = [be[r:r + 1, 1:99] for r in range(4)]    # x[.., 2j+2]
        o0 = [bo[r:r + 1, 0:98] for r in range(4)]    # x[.., 2j+1]
        o1 = [bo[r:r + 1, 1:99] for r in range(4)]    # x[.., 2j+3]

        a0e = jnp.zeros((_C1P, 98), jnp.float32)      # conv row 2p,   even cols
        a0o = jnp.zeros((_C1P, 98), jnp.float32)      # conv row 2p,   odd  cols
        a1e = jnp.zeros((_C1P, 98), jnp.float32)      # conv row 2p+1, even cols
        a1o = jnp.zeros((_C1P, 98), jnp.float32)      # conv row 2p+1, odd  cols
        for dy in range(3):
            w0 = wc1_ref[dy, 0]                       # (56, 98) pre-broadcast weights
            w1 = wc1_ref[dy, 1]
            w2 = wc1_ref[dy, 2]
            a0e = a0e + w0 * e0[dy] + w1 * o0[dy] + w2 * e1[dy]
            a0o = a0o + w0 * o0[dy] + w1 * e1[dy] + w2 * o1[dy]
            a1e = a1e + w0 * e0[dy + 1] + w1 * o0[dy + 1] + w2 * e1[dy + 1]
            a1o = a1o + w0 * o0[dy + 1] + w1 * e1[dy + 1] + w2 * o1[dy + 1]

        def act(a):                                   # bias + PReLU, f32 on the VPU
            a = a + b1
            return jnp.where(a > 0.0, a, alpha * a)

        pooled = jnp.maximum(jnp.maximum(act(a0e), act(a0o)),
                             jnp.maximum(act(a1e), act(a1o)))        # (56, 98)
        off = pl.multiple_of(p * _C1S, _C1S)
        a1_scr[pl.ds(off, _C1P), :] = pooled.astype(jnp.bfloat16)
        return carry

    lax.fori_loop(0, 98, s1_body, 0)

    # ------------- stage 2: conv2 + PReLU + 2x2 max-pool (bf16 MXU) ---------------
    def conv2_row(r):
        off = pl.multiple_of(r * _C1S, _C1S)
        t = a1_scr[pl.ds(off, 3 * _C1S), :]                          # (192, 98) bf16
        acc = jnp.dot(wc2_ref[0], t[:, 0:96], preferred_element_type=jnp.float32)
        acc = acc + jnp.dot(wc2_ref[1], t[:, 1:97], preferred_element_type=jnp.float32)
        acc = acc + jnp.dot(wc2_ref[2], t[:, 2:98], preferred_element_type=jnp.float32)
        acc = acc + b2                                                # (128, 96) f32
        return jnp.where(acc > 0.0, acc, alpha * acc)                 # PReLU

    def s2_body(q, carry):
        v = jnp.maximum(conv2_row(2 * q), conv2_row(2 * q + 1))       # vertical max
        hm = jnp.maximum(v[:, 0:95], v[:, 1:96])                      # (128, 95)
        pooled = jnp.dot(hm.astype(jnp.bfloat16), sel,
                         preferred_element_type=jnp.float32)          # (128, 48)
        a2_ref[0, q, :, :] = pooled.astype(jnp.bfloat16)
        return carry

    lax.fori_loop(0, 48, s2_body, 0)


def conv12_stage(x_e, x_o, p):
    B = x_e.shape[0]
    return pl.pallas_call(
        _conv12_kernel,
        out_shape=jax.ShapeDtypeStruct((B, 48, _C2P, 48), jnp.bfloat16),
        grid=(B,),
        in_specs=[
            pl.BlockSpec((1, 198, 99), lambda i: (i, 0, 0)),
            pl.BlockSpec((1, 198, 99), lambda i: (i, 0, 0)),
            pl.BlockSpec((3, 3, _C1P, 98), lambda i: (0, 0, 0, 0)),
            pl.BlockSpec((_C1P, 1), lambda i: (0, 0)),
            pl.BlockSpec((3, _C2P, 3 * _C1S), lambda i: (0, 0, 0)),
            pl.BlockSpec((_C2P, 1), lambda i: (0, 0)),
            pl.BlockSpec((95, 48), lambda i: (0, 0)),
            pl.BlockSpec(memory_space=pltpu.MemorySpace.SMEM),        # alpha (1,)
        ],
        out_specs=pl.BlockSpec((1, 48, _C2P, 48), lambda i: (i, 0, 0, 0)),
        scratch_shapes=[pltpu.VMEM((98 * _C1S, 98), jnp.bfloat16)],
        compiler_params=pltpu.CompilerParams(dimension_semantics=("parallel",)),
    )(x_e, x_o, p["wc1"], p["bc1"], p["wc2"], p["bc2"], p["sel"], p["alpha"])


# --------------------------------------------------------------------------- #
# Tail kernel (per image): conv3 + PReLU + pool + flatten + fc1/fc2/fc3
# --------------------------------------------------------------------------- #
def _tail_kernel(a2_ref, wc3_ref, bc3_ref, alpha_ref, w1p_ref, bfc1_ref,
                 wfc2_ref, bfc2_ref, wfc3_ref, bfc3_ref, o_ref):
    alpha = alpha_ref[0]
    b3 = bc3_ref[0]

    def conv3_row(r):
        band = a2_ref[0, pl.ds(r, 3), :, :].astype(jnp.float32)       # (3, 128, 48)
        acc = jnp.zeros((_C2P, 46), jnp.float32)
        for dy in range(3):
            row = band[dy]
            for dx in range(3):
                acc = acc + row[:, dx:dx + 46] * wc3_ref[dy, dx]       # per-lane FMA
        s = jnp.sum(acc, axis=0, keepdims=True) + b3                   # one reduce/row
        return jnp.where(s > 0.0, s, alpha * s)                        # (1, 46)

    def q_body(q, h1):
        v = jnp.maximum(conv3_row(2 * q), conv3_row(2 * q + 1))        # vertical max
        hmax = jnp.maximum(v[:, 0:45], v[:, 1:46])                     # pooled at even lanes
        return h1 + jnp.dot(hmax, w1p_ref[q], preferred_element_type=jnp.float32)

    h1 = lax.fori_loop(0, 23, q_body, bfc1_ref[...])                    # (1, 128)
    h2 = jnp.dot(h1, wfc2_ref[...], preferred_element_type=jnp.float32) + bfc2_ref[...]
    h3 = jnp.sum(h2 * wfc3_ref[...]) + bfc3_ref[0]                      # per-image logit
    o_ref[...] = jnp.zeros((1, 1, 128), jnp.float32) + h3


def tail_stage(a2, p):
    B = a2.shape[0]
    return pl.pallas_call(
        _tail_kernel,
        out_shape=jax.ShapeDtypeStruct((B, 1, 128), jnp.float32),
        grid=(B,),
        in_specs=[
            pl.BlockSpec((1, 48, _C2P, 48), lambda i: (i, 0, 0, 0)),
            pl.BlockSpec((3, 3, _C2P, 46), lambda i: (0, 0, 0, 0)),
            pl.BlockSpec(memory_space=pltpu.MemorySpace.SMEM),        # conv3 bias (1,)
            pl.BlockSpec(memory_space=pltpu.MemorySpace.SMEM),        # alpha (1,)
            pl.BlockSpec((23, 45, 128), lambda i: (0, 0, 0)),
            pl.BlockSpec((1, 128), lambda i: (0, 0)),
            pl.BlockSpec((128, 32), lambda i: (0, 0)),
            pl.BlockSpec((1, 32), lambda i: (0, 0)),
            pl.BlockSpec((1, 32), lambda i: (0, 0)),
            pl.BlockSpec(memory_space=pltpu.MemorySpace.SMEM),        # fc3 bias (1,)
        ],
        out_specs=pl.BlockSpec((1, 1, 128), lambda i: (i, 0, 0)),
        compiler_params=pltpu.CompilerParams(dimension_semantics=("parallel",)),
    )(a2, p["wc3"], p["bc3"], p["alpha"], p["w1p"], p["bfc1"],
      p["wfc2"], p["bfc2"], p["wfc3"], p["bfc3"])


# --------------------------------------------------------------------------- #
# Forward pass and parameter packing
# --------------------------------------------------------------------------- #
def conv_nn_forward(x_nchw, params):
    B = x_nchw.shape[0]
    x = x_nchw[:, 0, :, :].astype(jnp.float32)                 # (B, 198, 198)
    x_e = x[:, :, 0::2]                                         # even columns (B,198,99)
    x_o = x[:, :, 1::2]                                         # odd  columns (B,198,99)
    a2 = conv12_stage(x_e, x_o, params)                         # (B, 48, 128, 48) bf16
    logits = tail_stage(a2, params)[:, 0, 0]                    # (B,) f32
    # Batch-coupled epilogue (2 scalars): mean over the whole output, *1000, sigmoid.
    y = jax.nn.sigmoid((logits - jnp.mean(logits)) * 1000.0)
    return y.reshape(B, 1)


def pack_params(raw):
    """Pre-pack PyTorch-layout parameters once, outside the jitted forward."""
    f32, bf16 = jnp.float32, jnp.bfloat16
    # conv1 (50,1,3,3) -> (3,3,56,98): channel-padded, pre-broadcast along 98 lanes.
    w1 = jnp.transpose(raw["w_c1"][:, 0], (1, 2, 0))            # (3,3,50)
    w1 = jnp.pad(w1, ((0, 0), (0, 0), (0, _C1P - 50)))
    wc1 = jnp.broadcast_to(w1[..., None], (3, 3, _C1P, 98)).astype(f32)
    bc1 = jnp.pad(raw["b_c1"], (0, _C1P - 50)).reshape(_C1P, 1).astype(f32)
    # conv2 (100,50,3,3) -> per-dx (128, 192) bf16, K index = dy*64 + ci.
    w2 = jnp.transpose(raw["w_c2"], (3, 0, 2, 1))               # (dx, co, dy, ci)
    w2 = jnp.pad(w2, ((0, 0), (0, _C2P - 100), (0, 0), (0, _C1S - 50)))
    wc2 = w2.reshape(3, _C2P, 3 * _C1S).astype(bf16)
    bc2 = jnp.pad(raw["b_c2"], (0, _C2P - 100)).reshape(_C2P, 1).astype(f32)
    # 0/1 selection matrix implementing the stride-2 horizontal pool compaction.
    sel = jnp.zeros((95, 48), f32).at[2 * jnp.arange(48), jnp.arange(48)].set(1.0)
    sel = sel.astype(bf16)
    # conv3 (1,100,3,3) -> (3,3,128,46): channel-padded, pre-broadcast along 46 lanes.
    w3 = jnp.transpose(raw["w_c3"][0], (1, 2, 0))               # (3,3,100)
    w3 = jnp.pad(w3, ((0, 0), (0, 0), (0, _C2P - 100)))
    wc3 = jnp.broadcast_to(w3[..., None], (3, 3, _C2P, 46)).astype(f32)
    bc3 = raw["b_c3"].reshape(1).astype(f32)
    alpha = raw["alpha"].reshape(1).astype(f32)
    # fc1 (128,529) -> (23,45,128): row 2j of block q holds W1[:, q*23+j], odd rows 0,
    # so the zero-interleaved weights absorb the even-lane selection of the pooled row.
    wf1 = jnp.transpose(raw["w_fc1"].reshape(128, 23, 23), (1, 2, 0))   # (q, j, o)
    w1p = jnp.zeros((23, 45, 128), f32).at[:, 0::2, :].set(wf1.astype(f32))
    return {
        "wc1": wc1, "bc1": bc1, "wc2": wc2, "bc2": bc2, "sel": sel,
        "wc3": wc3, "bc3": bc3, "alpha": alpha, "w1p": w1p,
        "bfc1": raw["b_fc1"].reshape(1, 128).astype(f32),
        "wfc2": jnp.transpose(raw["w_fc2"]).astype(f32),        # (128, 32)
        "bfc2": raw["b_fc2"].reshape(1, 32).astype(f32),
        "wfc3": raw["w_fc3"].reshape(1, 32).astype(f32),
        "bfc3": raw["b_fc3"].reshape(1).astype(f32),
    }


# --------------------------------------------------------------------------- #
# Driver
# --------------------------------------------------------------------------- #
if __name__ == "__main__":
    key = jax.random.PRNGKey(0)
    ks = jax.random.split(key, 13)
    f32 = jnp.float32
    raw = {
        "w_c1": 0.20 * jax.random.normal(ks[0], (50, 1, 3, 3), f32),
        "b_c1": 0.10 * jax.random.normal(ks[1], (50,), f32),
        "w_c2": 0.05 * jax.random.normal(ks[2], (100, 50, 3, 3), f32),
        "b_c2": 0.10 * jax.random.normal(ks[3], (100,), f32),
        "w_c3": 0.05 * jax.random.normal(ks[4], (1, 100, 3, 3), f32),
        "b_c3": 0.10 * jax.random.normal(ks[5], (1,), f32),
        "w_fc1": 0.05 * jax.random.normal(ks[6], (128, 529), f32),
        "b_fc1": 0.10 * jax.random.normal(ks[7], (128,), f32),
        "w_fc2": 0.05 * jax.random.normal(ks[8], (32, 128), f32),
        "b_fc2": 0.10 * jax.random.normal(ks[9], (32,), f32),
        "w_fc3": 0.05 * jax.random.normal(ks[10], (1, 32), f32),
        "b_fc3": 0.10 * jax.random.normal(ks[11], (1,), f32),
        "alpha": jnp.full((1,), 0.25, f32),     # nn.PReLU() default shared slope
    }
    params = pack_params(raw)
    # Input spatial size 198 is forced by fc1.in_features == 529 == 23*23.
    x = jax.random.normal(ks[12], (2, 1, 198, 198), f32)

    fwd = jax.jit(conv_nn_forward)
    out = jax.block_until_ready(fwd(x, params))
    assert out.shape == (2, 1) and out.dtype == jnp.float32
    assert bool(jnp.all(jnp.isfinite(out)))
    print("KERNEL_OK")
</pallas_src>

<mosaic_0001>
module attributes {stable_mosaic.version = 11 : i64} {
  func.func @_conv12_kernel(%arg0: i32, %arg1: memref<1x198x99xf32, #tpu.memory_space<vmem>>, %arg2: memref<1x198x99xf32, #tpu.memory_space<vmem>>, %arg3: memref<3x3x56x98xf32, #tpu.memory_space<vmem>>, %arg4: memref<56x1xf32, #tpu.memory_space<vmem>>, %arg5: memref<3x128x192xbf16, #tpu.memory_space<vmem>>, %arg6: memref<128x1xf32, #tpu.memory_space<vmem>>, %arg7: memref<95x48xbf16, #tpu.memory_space<vmem>>, %arg8: memref<1xf32, #tpu.memory_space<smem>>, %arg9: memref<1x48x128x48xbf16, #tpu.memory_space<vmem>>, %arg10: memref<6272x98xbf16, #tpu.memory_space<vmem>>) attributes {dimension_semantics = [#tpu.dimension_semantics<parallel>], iteration_bounds = array<i64: 2>, scalar_prefetch = 0 : i64, scratch_operands = 1 : i64, tpu.core_type = #tpu.core_type<tc>, window_params = [{transform_indices = @transform_0, window_bounds = array<i64: 1, 198, 99>}, {transform_indices = @transform_1, window_bounds = array<i64: 1, 198, 99>}, {pipeline_mode = #tpu.pipeline_mode<synchronous>, transform_indices = @transform_2, window_bounds = array<i64: 3, 3, 56, 98>}, {pipeline_mode = #tpu.pipeline_mode<synchronous>, transform_indices = @transform_3, window_bounds = array<i64: 56, 1>}, {pipeline_mode = #tpu.pipeline_mode<synchronous>, transform_indices = @transform_4, window_bounds = array<i64: 3, 128, 192>}, {pipeline_mode = #tpu.pipeline_mode<synchronous>, transform_indices = @transform_5, window_bounds = array<i64: 128, 1>}, {pipeline_mode = #tpu.pipeline_mode<synchronous>, transform_indices = @transform_6, window_bounds = array<i64: 95, 48>}, {transform_indices = @transform_7, window_bounds = array<i64: 1>}, {transform_indices = @transform_8, window_bounds = array<i64: 1, 48, 128, 48>}]} {
    %c0 = arith.constant 0 : index
    %0 = memref.load %arg8[%c0] : memref<1xf32, #tpu.memory_space<smem>>
    %c0_0 = arith.constant 0 : index
    %c0_1 = arith.constant 0 : index
    %1 = vector.load %arg4[%c0_0, %c0_1] : memref<56x1xf32, #tpu.memory_space<vmem>>, vector<56x1xf32>
    %c0_2 = arith.constant 0 : index
    %c0_3 = arith.constant 0 : index
    %2 = vector.load %arg6[%c0_2, %c0_3] : memref<128x1xf32, #tpu.memory_space<vmem>>, vector<128x1xf32>
    %c0_4 = arith.constant 0 : index
    %c0_5 = arith.constant 0 : index
    %3 = vector.load %arg7[%c0_4, %c0_5] : memref<95x48xbf16, #tpu.memory_space<vmem>>, vector<95x48xbf16>
    %cst = arith.constant 0.000000e+00 : bf16
    %4 = vector.broadcast %cst : bf16 to vector<6272x98xbf16>
    %c0_6 = arith.constant 0 : index
    %c0_7 = arith.constant 0 : index
    %5 = vector.load %arg10[%c0_6, %c0_7] : memref<6272x98xbf16, #tpu.memory_space<vmem>>, vector<6272x98xbf16>
    tpu.vector_store %arg10[%c0_6, %c0_7], %4 {strides = array<i32>} : memref<6272x98xbf16, #tpu.memory_space<vmem>>, vector<6272x98xbf16>,
    %c0_i32 = arith.constant 0 : i32
    %c98_i32 = arith.constant 98 : i32
    %6 = arith.addi %c0_i32, %c98_i32 : i32
    %c1_i32 = arith.constant 1 : i32
    scf.for %arg11 = %c0_i32 to %6 step %c1_i32  : i32 {
      %c2_i32 = arith.constant 2 : i32
      %8 = arith.muli %c2_i32, %arg11 : i32
      %c0_12 = arith.constant 0 : index
      %9 = arith.index_cast %8 : i32 to index
      %c0_13 = arith.constant 0 : index
      %10 = vector.load %arg1[%c0_12, %9, %c0_13] : memref<1x198x99xf32, #tpu.memory_space<vmem>>, vector<1x4x99xf32>
      %11 = vector.shape_cast %10 : vector<1x4x99xf32> to vector<4x99xf32>
      %c2_i32_14 = arith.constant 2 : i32
      %12 = arith.muli %c2_i32_14, %arg11 : i32
      %c0_15 = arith.constant 0 : index
      %13 = arith.index_cast %12 : i32 to index
      %c0_16 = arith.constant 0 : index
      %14 = vector.load %arg2[%c0_15, %13, %c0_16] : memref<1x198x99xf32, #tpu.memory_space<vmem>>, vector<1x4x99xf32>
      %15 = vector.shape_cast %14 : vector<1x4x99xf32> to vector<4x99xf32>
      %16 = vector.extract_strided_slice %11 {offsets = [0, 0], sizes = [1, 98], strides = [1, 1]} : vector<4x99xf32> to vector<1x98xf32>
      %17 = vector.extract_strided_slice %11 {offsets = [1, 0], sizes = [1, 98], strides = [1, 1]} : vector<4x99xf32> to vector<1x98xf32>
      %18 = vector.extract_strided_slice %11 {offsets = [2, 0], sizes = [1, 98], strides = [1, 1]} : vector<4x99xf32> to vector<1x98xf32>
      %19 = vector.extract_strided_slice %11 {offsets = [3, 0], sizes = [1, 98], strides = [1, 1]} : vector<4x99xf32> to vector<1x98xf32>
      %20 = vector.extract_strided_slice %11 {offsets = [0, 1], sizes = [1, 98], strides = [1, 1]} : vector<4x99xf32> to vector<1x98xf32>
      %21 = vector.extract_strided_slice %11 {offsets = [1, 1], sizes = [1, 98], strides = [1, 1]} : vector<4x99xf32> to vector<1x98xf32>
      %22 = vector.extract_strided_slice %11 {offsets = [2, 1], sizes = [1, 98], strides = [1, 1]} : vector<4x99xf32> to vector<1x98xf32>
      %23 = vector.extract_strided_slice %11 {offsets = [3, 1], sizes = [1, 98], strides = [1, 1]} : vector<4x99xf32> to vector<1x98xf32>
      %24 = vector.extract_strided_slice %15 {offsets = [0, 0], sizes = [1, 98], strides = [1, 1]} : vector<4x99xf32> to vector<1x98xf32>
      %25 = vector.extract_strided_slice %15 {offsets = [1, 0], sizes = [1, 98], strides = [1, 1]} : vector<4x99xf32> to vector<1x98xf32>
      %26 = vector.extract_strided_slice %15 {offsets = [2, 0], sizes = [1, 98], strides = [1, 1]} : vector<4x99xf32> to vector<1x98xf32>
      %27 = vector.extract_strided_slice %15 {offsets = [3, 0], sizes = [1, 98], strides = [1, 1]} : vector<4x99xf32> to vector<1x98xf32>
      %28 = vector.extract_strided_slice %15 {offsets = [0, 1], sizes = [1, 98], strides = [1, 1]} : vector<4x99xf32> to vector<1x98xf32>
      %29 = vector.extract_strided_slice %15 {offsets = [1, 1], sizes = [1, 98], strides = [1, 1]} : vector<4x99xf32> to vector<1x98xf32>
      %30 = vector.extract_strided_slice %15 {offsets = [2, 1], sizes = [1, 98], strides = [1, 1]} : vector<4x99xf32> to vector<1x98xf32>
      %31 = vector.extract_strided_slice %15 {offsets = [3, 1], sizes = [1, 98], strides = [1, 1]} : vector<4x99xf32> to vector<1x98xf32>
      %cst_17 = arith.constant 0.000000e+00 : f32
      %32 = vector.broadcast %cst_17 : f32 to vector<56x98xf32>
      %cst_18 = arith.constant 0.000000e+00 : f32
      %33 = vector.broadcast %cst_18 : f32 to vector<56x98xf32>
      %cst_19 = arith.constant 0.000000e+00 : f32
      %34 = vector.broadcast %cst_19 : f32 to vector<56x98xf32>
      %cst_20 = arith.constant 0.000000e+00 : f32
      %35 = vector.broadcast %cst_20 : f32 to vector<56x98xf32>
      %c0_21 = arith.constant 0 : index
      %c0_22 = arith.constant 0 : index
      %c0_23 = arith.constant 0 : index
      %c0_24 = arith.constant 0 : index
      %36 = vector.load %arg3[%c0_21, %c0_22, %c0_23, %c0_24] : memref<3x3x56x98xf32, #tpu.memory_space<vmem>>, vector<1x1x56x98xf32>
      %37 = vector.shape_cast %36 : vector<1x1x56x98xf32> to vector<56x98xf32>
      %c0_25 = arith.constant 0 : index
      %c1 = arith.constant 1 : index
      %c0_26 = arith.constant 0 : index
      %c0_27 = arith.constant 0 : index
      %38 = vector.load %arg3[%c0_25, %c1, %c0_26, %c0_27] : memref<3x3x56x98xf32, #tpu.memory_space<vmem>>, vector<1x1x56x98xf32>
      %39 = vector.shape_cast %38 : vector<1x1x56x98xf32> to vector<56x98xf32>
      %c0_28 = arith.constant 0 : index
      %c2 = arith.constant 2 : index
      %c0_29 = arith.constant 0 : index
      %c0_30 = arith.constant 0 : index
      %40 = vector.load %arg3[%c0_28, %c2, %c0_29, %c0_30] : memref<3x3x56x98xf32, #tpu.memory_space<vmem>>, vector<1x1x56x98xf32>
      %41 = vector.shape_cast %40 : vector<1x1x56x98xf32> to vector<56x98xf32>
      %42 = vector.broadcast %16 : vector<1x98xf32> to vector<56x98xf32>
      %43 = arith.mulf %37, %42 : vector<56x98xf32>
      %44 = arith.addf %32, %43 : vector<56x98xf32>
      %45 = vector.broadcast %24 : vector<1x98xf32> to vector<56x98xf32>
      %46 = arith.mulf %39, %45 : vector<56x98xf32>
      %47 = arith.addf %44, %46 : vector<56x98xf32>
      %48 = vector.broadcast %20 : vector<1x98xf32> to vector<56x98xf32>
      %49 = arith.mulf %41, %48 : vector<56x98xf32>
      %50 = arith.addf %47, %49 : vector<56x98xf32>
      %51 = vector.broadcast %24 : vector<1x98xf32> to vector<56x98xf32>
      %52 = arith.mulf %37, %51 : vector<56x98xf32>
      %53 = arith.addf %33, %52 : vector<56x98xf32>
      %54 = vector.broadcast %20 : vector<1x98xf32> to vector<56x98xf32>
      %55 = arith.mulf %39, %54 : vector<56x98xf32>
      %56 = arith.addf %53, %55 : vector<56x98xf32>
      %57 = vector.broadcast %28 : vector<1x98xf32> to vector<56x98xf32>
      %58 = arith.mulf %41, %57 : vector<56x98xf32>
      %59 = arith.addf %56, %58 : vector<56x98xf32>
      %60 = vector.broadcast %17 : vector<1x98xf32> to vector<56x98xf32>
      %61 = arith.mulf %37, %60 : vector<56x98xf32>
      %62 = arith.addf %34, %61 : vector<56x98xf32>
      %63 = vector.broadcast %25 : vector<1x98xf32> to vector<56x98xf32>
      %64 = arith.mulf %39, %63 : vector<56x98xf32>
      %65 = arith.addf %62, %64 : vector<56x98xf32>
      %66 = vector.broadcast %21 : vector<1x98xf32> to vector<56x98xf32>
      %67 = arith.mulf %41, %66 : vector<56x98xf32>
      %68 = arith.addf %65, %67 : vector<56x98xf32>
      %69 = vector.broadcast %25 : vector<1x98xf32> to vector<56x98xf32>
      %70 = arith.mulf %37, %69 : vector<56x98xf32>
      %71 = arith.addf %35, %70 : vector<56x98xf32>
      %72 = vector.broadcast %21 : vector<1x98xf32> to vector<56x98xf32>
      %73 = arith.mulf %39, %72 : vector<56x98xf32>
      %74 = arith.addf %71, %73 : vector<56x98xf32>
      %75 = vector.broadcast %29 : vector<1x98xf32> to vector<56x98xf32>
      %76 = arith.mulf %41, %75 : vector<56x98xf32>
      %77 = arith.addf %74, %76 : vector<56x98xf32>
      %c1_31 = arith.constant 1 : index
      %c0_32 = arith.constant 0 : index
      %c0_33 = arith.constant 0 : index
      %c0_34 = arith.constant 0 : index
      %78 = vector.load %arg3[%c1_31, %c0_32, %c0_33, %c0_34] : memref<3x3x56x98xf32, #tpu.memory_space<vmem>>, vector<1x1x56x98xf32>
      %79 = vector.shape_cast %78 : vector<1x1x56x98xf32> to vector<56x98xf32>
      %c1_35 = arith.constant 1 : index
      %c1_36 = arith.constant 1 : index
      %c0_37 = arith.constant 0 : index
      %c0_38 = arith.constant 0 : index
      %80 = vector.load %arg3[%c1_35, %c1_36, %c0_37, %c0_38] : memref<3x3x56x98xf32, #tpu.memory_space<vmem>>, vector<1x1x56x98xf32>
      %81 = vector.shape_cast %80 : vector<1x1x56x98xf32> to vector<56x98xf32>
      %c1_39 = arith.constant 1 : index
      %c2_40 = arith.constant 2 : index
      %c0_41 = arith.constant 0 : index
      %c0_42 = arith.constant 0 : index
      %82 = vector.load %arg3[%c1_39, %c2_40, %c0_41, %c0_42] : memref<3x3x56x98xf32, #tpu.memory_space<vmem>>, vector<1x1x56x98xf32>
      %83 = vector.shape_cast %82 : vector<1x1x56x98xf32> to vector<56x98xf32>
      %84 = vector.broadcast %17 : vector<1x98xf32> to vector<56x98xf32>
      %85 = arith.mulf %79, %84 : vector<56x98xf32>
      %86 = arith.addf %50, %85 : vector<56x98xf32>
      %87 = vector.broadcast %25 : vector<1x98xf32> to vector<56x98xf32>
      %88 = arith.mulf %81, %87 : vector<56x98xf32>
      %89 = arith.addf %86, %88 : vector<56x98xf32>
      %90 = vector.broadcast %21 : vector<1x98xf32> to vector<56x98xf32>
      %91 = arith.mulf %83, %90 : vector<56x98xf32>
      %92 = arith.addf %89, %91 : vector<56x98xf32>
      %93 = vector.broadcast %25 : vector<1x98xf32> to vector<56x98xf32>
      %94 = arith.mulf %79, %93 : vector<56x98xf32>
      %95 = arith.addf %59, %94 : vector<56x98xf32>
      %96 = vector.broadcast %21 : vector<1x98xf32> to vector<56x98xf32>
      %97 = arith.mulf %81, %96 : vector<56x98xf32>
      %98 = arith.addf %95, %97 : vector<56x98xf32>
      %99 = vector.broadcast %29 : vector<1x98xf32> to vector<56x98xf32>
      %100 = arith.mulf %83, %99 : vector<56x98xf32>
      %101 = arith.addf %98, %100 : vector<56x98xf32>
      %102 = vector.broadcast %18 : vector<1x98xf32> to vector<56x98xf32>
      %103 = arith.mulf %79, %102 : vector<56x98xf32>
      %104 = arith.addf %68, %103 : vector<56x98xf32>
      %105 = vector.broadcast %26 : vector<1x98xf32> to vector<56x98xf32>
      %106 = arith.mulf %81, %105 : vector<56x98xf32>
      %107 = arith.addf %104, %106 : vector<56x98xf32>
      %108 = vector.broadcast %22 : vector<1x98xf32> to vector<56x98xf32>
      %109 = arith.mulf %83, %108 : vector<56x98xf32>
      %110 = arith.addf %107, %109 : vector<56x98xf32>
      %111 = vector.broadcast %26 : vector<1x98xf32> to vector<56x98xf32>
      %112 = arith.mulf %79, %111 : vector<56x98xf32>
      %113 = arith.addf %77, %112 : vector<56x98xf32>
      %114 = vector.broadcast %22 : vector<1x98xf32> to vector<56x98xf32>
      %115 = arith.mulf %81, %114 : vector<56x98xf32>
      %116 = arith.addf %113, %115 : vector<56x98xf32>
      %117 = vector.broadcast %30 : vector<1x98xf32> to vector<56x98xf32>
      %118 = arith.mulf %83, %117 : vector<56x98xf32>
      %119 = arith.addf %116, %118 : vector<56x98xf32>
      %c2_43 = arith.constant 2 : index
      %c0_44 = arith.constant 0 : index
      %c0_45 = arith.constant 0 : index
      %c0_46 = arith.constant 0 : index
      %120 = vector.load %arg3[%c2_43, %c0_44, %c0_45, %c0_46] : memref<3x3x56x98xf32, #tpu.memory_space<vmem>>, vector<1x1x56x98xf32>
      %121 = vector.shape_cast %120 : vector<1x1x56x98xf32> to vector<56x98xf32>
      %c2_47 = arith.constant 2 : index
      %c1_48 = arith.constant 1 : index
      %c0_49 = arith.constant 0 : index
      %c0_50 = arith.constant 0 : index
      %122 = vector.load %arg3[%c2_47, %c1_48, %c0_49, %c0_50] : memref<3x3x56x98xf32, #tpu.memory_space<vmem>>, vector<1x1x56x98xf32>
      %123 = vector.shape_cast %122 : vector<1x1x56x98xf32> to vector<56x98xf32>
      %c2_51 = arith.constant 2 : index
      %c2_52 = arith.constant 2 : index
      %c0_53 = arith.constant 0 : index
      %c0_54 = arith.constant 0 : index
      %124 = vector.load %arg3[%c2_51, %c2_52, %c0_53, %c0_54] : memref<3x3x56x98xf32, #tpu.memory_space<vmem>>, vector<1x1x56x98xf32>
      %125 = vector.shape_cast %124 : vector<1x1x56x98xf32> to vector<56x98xf32>
      %126 = vector.broadcast %18 : vector<1x98xf32> to vector<56x98xf32>
      %127 = arith.mulf %121, %126 : vector<56x98xf32>
      %128 = arith.addf %92, %127 : vector<56x98xf32>
      %129 = vector.broadcast %26 : vector<1x98xf32> to vector<56x98xf32>
      %130 = arith.mulf %123, %129 : vector<56x98xf32>
      %131 = arith.addf %128, %130 : vector<56x98xf32>
      %132 = vector.broadcast %22 : vector<1x98xf32> to vector<56x98xf32>
      %133 = arith.mulf %125, %132 : vector<56x98xf32>
      %134 = arith.addf %131, %133 : vector<56x98xf32>
      %135 = vector.broadcast %26 : vector<1x98xf32> to vector<56x98xf32>
      %136 = arith.mulf %121, %135 : vector<56x98xf32>
      %137 = arith.addf %101, %136 : vector<56x98xf32>
      %138 = vector.broadcast %22 : vector<1x98xf32> to vector<56x98xf32>
      %139 = arith.mulf %123, %138 : vector<56x98xf32>
      %140 = arith.addf %137, %139 : vector<56x98xf32>
      %141 = vector.broadcast %30 : vector<1x98xf32> to vector<56x98xf32>
      %142 = arith.mulf %125, %141 : vector<56x98xf32>
      %143 = arith.addf %140, %142 : vector<56x98xf32>
      %144 = vector.broadcast %19 : vector<1x98xf32> to vector<56x98xf32>
      %145 = arith.mulf %121, %144 : vector<56x98xf32>
      %146 = arith.addf %110, %145 : vector<56x98xf32>
      %147 = vector.broadcast %27 : vector<1x98xf32> to vector<56x98xf32>
      %148 = arith.mulf %123, %147 : vector<56x98xf32>
      %149 = arith.addf %146, %148 : vector<56x98xf32>
      %150 = vector.broadcast %23 : vector<1x98xf32> to vector<56x98xf32>
      %151 = arith.mulf %125, %150 : vector<56x98xf32>
      %152 = arith.addf %149, %151 : vector<56x98xf32>
      %153 = vector.broadcast %27 : vector<1x98xf32> to vector<56x98xf32>
      %154 = arith.mulf %121, %153 : vector<56x98xf32>
      %155 = arith.addf %119, %154 : vector<56x98xf32>
      %156 = vector.broadcast %23 : vector<1x98xf32> to vector<56x98xf32>
      %157 = arith.mulf %123, %156 : vector<56x98xf32>
      %158 = arith.addf %155, %157 : vector<56x98xf32>
      %159 = vector.broadcast %31 : vector<1x98xf32> to vector<56x98xf32>
      %160 = arith.mulf %125, %159 : vector<56x98xf32>
      %161 = arith.addf %158, %160 : vector<56x98xf32>
      %162 = vector.broadcast %1 : vector<56x1xf32> to vector<56x98xf32>
      %163 = arith.addf %134, %162 : vector<56x98xf32>
      %cst_55 = arith.constant 0.000000e+00 : f32
      %164 = vector.broadcast %cst_55 : f32 to vector<56x98xf32>
      %165 = arith.cmpf ogt, %163, %164 : vector<56x98xf32>
      %166 = vector.broadcast %0 : f32 to vector<56x98xf32>
      %167 = arith.mulf %166, %163 : vector<56x98xf32>
      %168 = arith.select %165, %163, %167 : vector<56x98xi1>, vector<56x98xf32>
      %169 = vector.broadcast %1 : vector<56x1xf32> to vector<56x98xf32>
      %170 = arith.addf %143, %169 : vector<56x98xf32>
      %cst_56 = arith.constant 0.000000e+00 : f32
      %171 = vector.broadcast %cst_56 : f32 to vector<56x98xf32>
      %172 = arith.cmpf ogt, %170, %171 : vector<56x98xf32>
      %173 = vector.broadcast %0 : f32 to vector<56x98xf32>
      %174 = arith.mulf %173, %170 : vector<56x98xf32>
      %175 = arith.select %172, %170, %174 : vector<56x98xi1>, vector<56x98xf32>
      %176 = arith.maximumf %168, %175 : vector<56x98xf32>
      %177 = vector.broadcast %1 : vector<56x1xf32> to vector<56x98xf32>
      %178 = arith.addf %152, %177 : vector<56x98xf32>
      %cst_57 = arith.constant 0.000000e+00 : f32
      %179 = vector.broadcast %cst_57 : f32 to vector<56x98xf32>
      %180 = arith.cmpf ogt, %178, %179 : vector<56x98xf32>
      %181 = vector.broadcast %0 : f32 to vector<56x98xf32>
      %182 = arith.mulf %181, %178 : vector<56x98xf32>
      %183 = arith.select %180, %178, %182 : vector<56x98xi1>, vector<56x98xf32>
      %184 = vector.broadcast %1 : vector<56x1xf32> to vector<56x98xf32>
      %185 = arith.addf %161, %184 : vector<56x98xf32>
      %cst_58 = arith.constant 0.000000e+00 : f32
      %186 = vector.broadcast %cst_58 : f32 to vector<56x98xf32>
      %187 = arith.cmpf ogt, %185, %186 : vector<56x98xf32>
      %188 = vector.broadcast %0 : f32 to vector<56x98xf32>
      %189 = arith.mulf %188, %185 : vector<56x98xf32>
      %190 = arith.select %187, %185, %189 : vector<56x98xi1>, vector<56x98xf32>
      %191 = arith.maximumf %183, %190 : vector<56x98xf32>
      %192 = arith.maximumf %176, %191 : vector<56x98xf32>
      %c64_i32 = arith.constant 64 : i32
      %193 = arith.muli %arg11, %c64_i32 : i32
      %194 = tpu.assume_multiple %193, 64 : i32
      %195 = arith.truncf %192 : vector<56x98xf32> to vector<56x98xbf16>
      %196 = arith.index_cast %194 : i32 to index
      %c0_59 = arith.constant 0 : index
      %197 = vector.load %arg10[%196, %c0_59] : memref<6272x98xbf16, #tpu.memory_space<vmem>>, vector<56x98xbf16>
      tpu.vector_store %arg10[%196, %c0_59], %195 {strides = array<i32>} : memref<6272x98xbf16, #tpu.memory_space<vmem>>, vector<56x98xbf16>,
    }
    %c98_i32_8 = arith.constant 98 : i32
    %c0_i32_9 = arith.constant 0 : i32
    %c48_i32 = arith.constant 48 : i32
    %7 = arith.addi %c0_i32_9, %c48_i32 : i32
    %c1_i32_10 = arith.constant 1 : i32
    scf.for %arg11 = %c0_i32_9 to %7 step %c1_i32_10  : i32 {
      %c2_i32 = arith.constant 2 : i32
      %8 = arith.muli %c2_i32, %arg11 : i32
      %c64_i32 = arith.constant 64 : i32
      %9 = arith.muli %8, %c64_i32 : i32
      %10 = tpu.assume_multiple %9, 64 : i32
      %11 = arith.index_cast %10 : i32 to index
      %c0_12 = arith.constant 0 : index
      %12 = vector.load %arg10[%11, %c0_12] : memref<6272x98xbf16, #tpu.memory_space<vmem>>, vector<192x98xbf16>
      %c0_13 = arith.constant 0 : index
      %c0_14 = arith.constant 0 : index
      %c0_15 = arith.constant 0 : index
      %13 = vector.load %arg5[%c0_13, %c0_14, %c0_15] : memref<3x128x192xbf16, #tpu.memory_space<vmem>>, vector<1x128x192xbf16>
      %14 = vector.shape_cast %13 : vector<1x128x192xbf16> to vector<128x192xbf16>
      %15 = vector.extract_strided_slice %12 {offsets = [0, 0], sizes = [192, 96], strides = [1, 1]} : vector<192x98xbf16> to vector<192x96xbf16>
      %cst_16 = arith.constant dense<0.000000e+00> : vector<128x96xf32>
      %16 = tpu.matmul %14, %15, %cst_16 {dimension_numbers = #tpu.dot_dimension_numbers<[1], [0], [0], [1], [0, 0, 1, 1], [], []>} : vector<128x192xbf16>, vector<192x96xbf16>, vector<128x96xf32> -> vector<128x96xf32>
      %c1 = arith.constant 1 : index
      %c0_17 = arith.constant 0 : index
      %c0_18 = arith.constant 0 : index
      %17 = vector.load %arg5[%c1, %c0_17, %c0_18] : memref<3x128x192xbf16, #tpu.memory_space<vmem>>, vector<1x128x192xbf16>
      %18 = vector.shape_cast %17 : vector<1x128x192xbf16> to vector<128x192xbf16>
      %19 = vector.extract_strided_slice %12 {offsets = [0, 1], sizes = [192, 96], strides = [1, 1]} : vector<192x98xbf16> to vector<192x96xbf16>
      %cst_19 = arith.constant dense<0.000000e+00> : vector<128x96xf32>
      %20 = tpu.matmul %18, %19, %cst_19 {dimension_numbers = #tpu.dot_dimension_numbers<[1], [0], [0], [1], [0, 0, 1, 1], [], []>} : vector<128x192xbf16>, vector<192x96xbf16>, vector<128x96xf32> -> vector<128x96xf32>
      %21 = arith.addf %16, %20 : vector<128x96xf32>
      %c2 = arith.constant 2 : index
      %c0_20 = arith.constant 0 : index
      %c0_21 = arith.constant 0 : index
      %22 = vector.load %arg5[%c2, %c0_20, %c0_21] : memref<3x128x192xbf16, #tpu.memory_space<vmem>>, vector<1x128x192xbf16>
      %23 = vector.shape_cast %22 : vector<1x128x192xbf16> to vector<128x192xbf16>
      %24 = vector.extract_strided_slice %12 {offsets = [0, 2], sizes = [192, 96], strides = [1, 1]} : vector<192x98xbf16> to vector<192x96xbf16>
      %cst_22 = arith.constant dense<0.000000e+00> : vector<128x96xf32>
      %25 = tpu.matmul %23, %24, %cst_22 {dimension_numbers = #tpu.dot_dimension_numbers<[1], [0], [0], [1], [0, 0, 1, 1], [], []>} : vector<128x192xbf16>, vector<192x96xbf16>, vector<128x96xf32> -> vector<128x96xf32>
      %26 = arith.addf %21, %25 : vector<128x96xf32>
      %27 = vector.broadcast %2 : vector<128x1xf32> to vector<128x96xf32>
      %28 = arith.addf %26, %27 : vector<128x96xf32>
      %cst_23 = arith.constant 0.000000e+00 : f32
      %29 = vector.broadcast %cst_23 : f32 to vector<128x96xf32>
      %30 = arith.cmpf ogt, %28, %29 : vector<128x96xf32>
      %31 = vector.broadcast %0 : f32 to vector<128x96xf32>
      %32 = arith.mulf %31, %28 : vector<128x96xf32>
      %33 = arith.select %30, %28, %32 : vector<128x96xi1>, vector<128x96xf32>
      %c2_i32_24 = arith.constant 2 : i32
      %34 = arith.muli %c2_i32_24, %arg11 : i32
      %c1_i32_25 = arith.constant 1 : i32
      %35 = arith.addi %34, %c1_i32_25 : i32
      %c64_i32_26 = arith.constant 64 : i32
      %36 = arith.muli %35, %c64_i32_26 : i32
      %37 = tpu.assume_multiple %36, 64 : i32
      %38 = arith.index_cast %37 : i32 to index
      %c0_27 = arith.constant 0 : index
      %39 = vector.load %arg10[%38, %c0_27] : memref<6272x98xbf16, #tpu.memory_space<vmem>>, vector<192x98xbf16>
      %c0_28 = arith.constant 0 : index
      %c0_29 = arith.constant 0 : index
      %c0_30 = arith.constant 0 : index
      %40 = vector.load %arg5[%c0_28, %c0_29, %c0_30] : memref<3x128x192xbf16, #tpu.memory_space<vmem>>, vector<1x128x192xbf16>
      %41 = vector.shape_cast %40 : vector<1x128x192xbf16> to vector<128x192xbf16>
      %42 = vector.extract_strided_slice %39 {offsets = [0, 0], sizes = [192, 96], strides = [1, 1]} : vector<192x98xbf16> to vector<192x96xbf16>
      %cst_31 = arith.constant dense<0.000000e+00> : vector<128x96xf32>
      %43 = tpu.matmul %41, %42, %cst_31 {dimension_numbers = #tpu.dot_dimension_numbers<[1], [0], [0], [1], [0, 0, 1, 1], [], []>} : vector<128x192xbf16>, vector<192x96xbf16>, vector<128x96xf32> -> vector<128x96xf32>
      %c1_32 = arith.constant 1 : index
      %c0_33 = arith.constant 0 : index
      %c0_34 = arith.constant 0 : index
      %44 = vector.load %arg5[%c1_32, %c0_33, %c0_34] : memref<3x128x192xbf16, #tpu.memory_space<vmem>>, vector<1x128x192xbf16>
      %45 = vector.shape_cast %44 : vector<1x128x192xbf16> to vector<128x192xbf16>
      %46 = vector.extract_strided_slice %39 {offsets = [0, 1], sizes = [192, 96], strides = [1, 1]} : vector<192x98xbf16> to vector<192x96xbf16>
      %cst_35 = arith.constant dense<0.000000e+00> : vector<128x96xf32>
      %47 = tpu.matmul %45, %46, %cst_35 {dimension_numbers = #tpu.dot_dimension_numbers<[1], [0], [0], [1], [0, 0, 1, 1], [], []>} : vector<128x192xbf16>, vector<192x96xbf16>, vector<128x96xf32> -> vector<128x96xf32>
      %48 = arith.addf %43, %47 : vector<128x96xf32>
      %c2_36 = arith.constant 2 : index
      %c0_37 = arith.constant 0 : index
      %c0_38 = arith.constant 0 : index
      %49 = vector.load %arg5[%c2_36, %c0_37, %c0_38] : memref<3x128x192xbf16, #tpu.memory_space<vmem>>, vector<1x128x192xbf16>
      %50 = vector.shape_cast %49 : vector<1x128x192xbf16> to vector<128x192xbf16>
      %51 = vector.extract_strided_slice %39 {offsets = [0, 2], sizes = [192, 96], strides = [1, 1]} : vector<192x98xbf16> to vector<192x96xbf16>
      %cst_39 = arith.constant dense<0.000000e+00> : vector<128x96xf32>
      %52 = tpu.matmul %50, %51, %cst_39 {dimension_numbers = #tpu.dot_dimension_numbers<[1], [0], [0], [1], [0, 0, 1, 1], [], []>} : vector<128x192xbf16>, vector<192x96xbf16>, vector<128x96xf32> -> vector<128x96xf32>
      %53 = arith.addf %48, %52 : vector<128x96xf32>
      %54 = vector.broadcast %2 : vector<128x1xf32> to vector<128x96xf32>
      %55 = arith.addf %53, %54 : vector<128x96xf32>
      %cst_40 = arith.constant 0.000000e+00 : f32
      %56 = vector.broadcast %cst_40 : f32 to vector<128x96xf32>
      %57 = arith.cmpf ogt, %55, %56 : vector<128x96xf32>
      %58 = vector.broadcast %0 : f32 to vector<128x96xf32>
      %59 = arith.mulf %58, %55 : vector<128x96xf32>
      %60 = arith.select %57, %55, %59 : vector<128x96xi1>, vector<128x96xf32>
      %61 = arith.maximumf %33, %60 : vector<128x96xf32>
      %62 = vector.extract_strided_slice %61 {offsets = [0, 0], sizes = [128, 95], strides = [1, 1]} : vector<128x96xf32> to vector<128x95xf32>
      %63 = vector.extract_strided_slice %61 {offsets = [0, 1], sizes = [128, 95], strides = [1, 1]} : vector<128x96xf32> to vector<128x95xf32>
      %64 = arith.maximumf %62, %63 : vector<128x95xf32>
      %65 = arith.truncf %64 : vector<128x95xf32> to vector<128x95xbf16>
      %cst_41 = arith.constant dense<0.000000e+00> : vector<128x48xf32>
      %66 = tpu.matmul %65, %3, %cst_41 {dimension_numbers = #tpu.dot_dimension_numbers<[1], [0], [0], [1], [0, 0, 1, 1], [], []>} : vector<128x95xbf16>, vector<95x48xbf16>, vector<128x48xf32> -> vector<128x48xf32>
      %67 = arith.truncf %66 : vector<128x48xf32> to vector<128x48xbf16>
      %c0_42 = arith.constant 0 : index
      %68 = arith.index_cast %arg11 : i32 to index
      %c0_43 = arith.constant 0 : index
      %c0_44 = arith.constant 0 : index
      %69 = vector.load %arg9[%c0_42, %68, %c0_43, %c0_44] : memref<1x48x128x48xbf16, #tpu.memory_space<vmem>>, vector<1x1x128x48xbf16>
      %70 = vector.shape_cast %69 : vector<1x1x128x48xbf16> to vector<128x48xbf16>
      %71 = vector.shape_cast %67 : vector<128x48xbf16> to vector<1x1x128x48xbf16>
      tpu.vector_store %arg9[%c0_42, %68, %c0_43, %c0_44], %71 {strides = array<i32>} : memref<1x48x128x48xbf16, #tpu.memory_space<vmem>>, vector<1x1x128x48xbf16>,
    }
    %c48_i32_11 = arith.constant 48 : i32
    return
  }
  func.func @transform_0(%arg0: i32) -> (i32, i32, i32) {
    %c0_i32 = arith.constant 0 : i32
    %c0_i32_0 = arith.constant 0 : i32
    %c0_i32_1 = arith.constant 0 : i32
    return %arg0, %c0_i32, %c0_i32_0 : i32, i32, i32
  }
  func.func @transform_1(%arg0: i32) -> (i32, i32, i32) {
    %c0_i32 = arith.constant 0 : i32
    %c0_i32_0 = arith.constant 0 : i32
    %c0_i32_1 = arith.constant 0 : i32
    return %arg0, %c0_i32, %c0_i32_0 : i32, i32, i32
  }
  func.func @transform_2(%arg0: i32) -> (i32, i32, i32, i32) {
    %c0_i32 = arith.constant 0 : i32
    %c0_i32_0 = arith.constant 0 : i32
    %c0_i32_1 = arith.constant 0 : i32
    %c0_i32_2 = arith.constant 0 : i32
    %c0_i32_3 = arith.constant 0 : i32
    return %c0_i32, %c0_i32_0, %c0_i32_1, %c0_i32_2 : i32, i32, i32, i32
  }
  func.func @transform_3(%arg0: i32) -> (i32, i32) {
    %c0_i32 = arith.constant 0 : i32
    %c0_i32_0 = arith.constant 0 : i32
    %c0_i32_1 = arith.constant 0 : i32
    return %c0_i32, %c0_i32_0 : i32, i32
  }
  func.func @transform_4(%arg0: i32) -> (i32, i32, i32) {
    %c0_i32 = arith.constant 0 : i32
    %c0_i32_0 = arith.constant 0 : i32
    %c0_i32_1 = arith.constant 0 : i32
    %c0_i32_2 = arith.constant 0 : i32
    return %c0_i32, %c0_i32_0, %c0_i32_1 : i32, i32, i32
  }
  func.func @transform_5(%arg0: i32) -> (i32, i32) {
    %c0_i32 = arith.constant 0 : i32
    %c0_i32_0 = arith.constant 0 : i32
    %c0_i32_1 = arith.constant 0 : i32
    return %c0_i32, %c0_i32_0 : i32, i32
  }
  func.func @transform_6(%arg0: i32) -> (i32, i32) {
    %c0_i32 = arith.constant 0 : i32
    %c0_i32_0 = arith.constant 0 : i32
    %c0_i32_1 = arith.constant 0 : i32
    return %c0_i32, %c0_i32_0 : i32, i32
  }
  func.func @transform_7(%arg0: i32) -> i32 {
    %c0_i32 = arith.constant 0 : i32
    %c0_i32_0 = arith.constant 0 : i32
    return %c0_i32 : i32
  }
  func.func @transform_8(%arg0: i32) -> (i32, i32, i32, i32) {
    %c0_i32 = arith.constant 0 : i32
    %c0_i32_0 = arith.constant 0 : i32
    %c0_i32_1 = arith.constant 0 : i32
    %c0_i32_2 = arith.constant 0 : i32
    return %arg0, %c0_i32, %c0_i32_0, %c0_i32_1 : i32, i32, i32, i32
  }
}

module attributes {stable_mosaic.version = 11 : i64} {
  func.func @_tail_kernel(%arg0: i32, %arg1: memref<1x48x128x48xbf16, #tpu.memory_space<vmem>>, %arg2: memref<3x3x128x46xf32, #tpu.memory_space<vmem>>, %arg3: memref<1xf32, #tpu.memory_space<smem>>, %arg4: memref<1xf32, #tpu.memory_space<smem>>, %arg5: memref<23x45x128xf32, #tpu.memory_space<vmem>>, %arg6: memref<1x128xf32, #tpu.memory_space<vmem>>, %arg7: memref<128x32xf32, #tpu.memory_space<vmem>>, %arg8: memref<1x32xf32, #tpu.memory_space<vmem>>, %arg9: memref<1x32xf32, #tpu.memory_space<vmem>>, %arg10: memref<1xf32, #tpu.memory_space<smem>>, %arg11: memref<1x1x128xf32, #tpu.memory_space<vmem>>) attributes {dimension_semantics = [#tpu.dimension_semantics<parallel>], iteration_bounds = array<i64: 2>, scalar_prefetch = 0 : i64, scratch_operands = 0 : i64, tpu.core_type = #tpu.core_type<tc>, window_params = [{transform_indices = @transform_0, window_bounds = array<i64: 1, 48, 128, 48>}, {pipeline_mode = #tpu.pipeline_mode<synchronous>, transform_indices = @transform_1, window_bounds = array<i64: 3, 3, 128, 46>}, {transform_indices = @transform_2, window_bounds = array<i64: 1>}, {transform_indices = @transform_3, window_bounds = array<i64: 1>}, {pipeline_mode = #tpu.pipeline_mode<synchronous>, transform_indices = @transform_4, window_bounds = array<i64: 23, 45, 128>}, {pipeline_mode = #tpu.pipeline_mode<synchronous>, transform_indices = @transform_5, window_bounds = array<i64: 1, 128>}, {pipeline_mode = #tpu.pipeline_mode<synchronous>, transform_indices = @transform_6, window_bounds = array<i64: 128, 32>}, {pipeline_mode = #tpu.pipeline_mode<synchronous>, transform_indices = @transform_7, window_bounds = array<i64: 1, 32>}, {pipeline_mode = #tpu.pipeline_mode<synchronous>, transform_indices = @transform_8, window_bounds = array<i64: 1, 32>}, {transform_indices = @transform_9, window_bounds = array<i64: 1>}, {transform_indices = @transform_10, window_bounds = array<i64: 1, 1, 128>}]} {
    %c0 = arith.constant 0 : index
    %0 = memref.load %arg4[%c0] : memref<1xf32, #tpu.memory_space<smem>>
    %c0_0 = arith.constant 0 : index
    %1 = memref.load %arg3[%c0_0] : memref<1xf32, #tpu.memory_space<smem>>
    %c0_1 = arith.constant 0 : index
    %c0_2 = arith.constant 0 : index
    %2 = vector.load %arg6[%c0_1, %c0_2] : memref<1x128xf32, #tpu.memory_space<vmem>>, vector<1x128xf32>
    %c0_i32 = arith.constant 0 : i32
    %c23_i32 = arith.constant 23 : i32
    %3 = arith.addi %c0_i32, %c23_i32 : i32
    %c1_i32 = arith.constant 1 : i32
    %4 = scf.for %arg12 = %c0_i32 to %3 step %c1_i32 iter_args(%arg13 = %2) -> (vector<1x128xf32>)  : i32 {
      %c2_i32 = arith.constant 2 : i32
      %21 = arith.muli %c2_i32, %arg12 : i32
      %c0_16 = arith.constant 0 : index
      %22 = arith.index_cast %21 : i32 to index
      %c0_17 = arith.constant 0 : index
      %c0_18 = arith.constant 0 : index
      %23 = vector.load %arg1[%c0_16, %22, %c0_17, %c0_18] : memref<1x48x128x48xbf16, #tpu.memory_space<vmem>>, vector<1x3x128x48xbf16>
      %24 = vector.shape_cast %23 : vector<1x3x128x48xbf16> to vector<3x128x48xbf16>
      %25 = arith.extf %24 : vector<3x128x48xbf16> to vector<3x128x48xf32>
      %cst_19 = arith.constant 0.000000e+00 : f32
      %26 = vector.broadcast %cst_19 : f32 to vector<128x46xf32>
      %27 = vector.extract_strided_slice %25 {offsets = [0, 0, 0], sizes = [1, 128, 48], strides = [1, 1, 1]} : vector<3x128x48xf32> to vector<1x128x48xf32>
      %28 = vector.shape_cast %27 : vector<1x128x48xf32> to vector<128x48xf32>
      %29 = vector.extract_strided_slice %28 {offsets = [0, 0], sizes = [128, 46], strides = [1, 1]} : vector<128x48xf32> to vector<128x46xf32>
      %c0_20 = arith.constant 0 : index
      %c0_21 = arith.constant 0 : index
      %c0_22 = arith.constant 0 : index
      %c0_23 = arith.constant 0 : index
      %30 = vector.load %arg2[%c0_20, %c0_21, %c0_22, %c0_23] : memref<3x3x128x46xf32, #tpu.memory_space<vmem>>, vector<1x1x128x46xf32>
      %31 = vector.shape_cast %30 : vector<1x1x128x46xf32> to vector<128x46xf32>
      %32 = arith.mulf %29, %31 : vector<128x46xf32>
      %33 = arith.addf %26, %32 : vector<128x46xf32>
      %34 = vector.extract_strided_slice %28 {offsets = [0, 1], sizes = [128, 46], strides = [1, 1]} : vector<128x48xf32> to vector<128x46xf32>
      %c0_24 = arith.constant 0 : index
      %c1 = arith.constant 1 : index
      %c0_25 = arith.constant 0 : index
      %c0_26 = arith.constant 0 : index
      %35 = vector.load %arg2[%c0_24, %c1, %c0_25, %c0_26] : memref<3x3x128x46xf32, #tpu.memory_space<vmem>>, vector<1x1x128x46xf32>
      %36 = vector.shape_cast %35 : vector<1x1x128x46xf32> to vector<128x46xf32>
      %37 = arith.mulf %34, %36 : vector<128x46xf32>
      %38 = arith.addf %33, %37 : vector<128x46xf32>
      %39 = vector.extract_strided_slice %28 {offsets = [0, 2], sizes = [128, 46], strides = [1, 1]} : vector<128x48xf32> to vector<128x46xf32>
      %c0_27 = arith.constant 0 : index
      %c2 = arith.constant 2 : index
      %c0_28 = arith.constant 0 : index
      %c0_29 = arith.constant 0 : index
      %40 = vector.load %arg2[%c0_27, %c2, %c0_28, %c0_29] : memref<3x3x128x46xf32, #tpu.memory_space<vmem>>, vector<1x1x128x46xf32>
      %41 = vector.shape_cast %40 : vector<1x1x128x46xf32> to vector<128x46xf32>
      %42 = arith.mulf %39, %41 : vector<128x46xf32>
      %43 = arith.addf %38, %42 : vector<128x46xf32>
      %44 = vector.extract_strided_slice %25 {offsets = [1, 0, 0], sizes = [1, 128, 48], strides = [1, 1, 1]} : vector<3x128x48xf32> to vector<1x128x48xf32>
      %45 = vector.shape_cast %44 : vector<1x128x48xf32> to vector<128x48xf32>
      %46 = vector.extract_strided_slice %45 {offsets = [0, 0], sizes = [128, 46], strides = [1, 1]} : vector<128x48xf32> to vector<128x46xf32>
      %c1_30 = arith.constant 1 : index
      %c0_31 = arith.constant 0 : index
      %c0_32 = arith.constant 0 : index
      %c0_33 = arith.constant 0 : index
      %47 = vector.load %arg2[%c1_30, %c0_31, %c0_32, %c0_33] : memref<3x3x128x46xf32, #tpu.memory_space<vmem>>, vector<1x1x128x46xf32>
      %48 = vector.shape_cast %47 : vector<1x1x128x46xf32> to vector<128x46xf32>
      %49 = arith.mulf %46, %48 : vector<128x46xf32>
      %50 = arith.addf %43, %49 : vector<128x46xf32>
      %51 = vector.extract_strided_slice %45 {offsets = [0, 1], sizes = [128, 46], strides = [1, 1]} : vector<128x48xf32> to vector<128x46xf32>
      %c1_34 = arith.constant 1 : index
      %c1_35 = arith.constant 1 : index
      %c0_36 = arith.constant 0 : index
      %c0_37 = arith.constant 0 : index
      %52 = vector.load %arg2[%c1_34, %c1_35, %c0_36, %c0_37] : memref<3x3x128x46xf32, #tpu.memory_space<vmem>>, vector<1x1x128x46xf32>
      %53 = vector.shape_cast %52 : vector<1x1x128x46xf32> to vector<128x46xf32>
      %54 = arith.mulf %51, %53 : vector<128x46xf32>
      %55 = arith.addf %50, %54 : vector<128x46xf32>
      %56 = vector.extract_strided_slice %45 {offsets = [0, 2], sizes = [128, 46], strides = [1, 1]} : vector<128x48xf32> to vector<128x46xf32>
      %c1_38 = arith.constant 1 : index
      %c2_39 = arith.constant 2 : index
      %c0_40 = arith.constant 0 : index
      %c0_41 = arith.constant 0 : index
      %57 = vector.load %arg2[%c1_38, %c2_39, %c0_40, %c0_41] : memref<3x3x128x46xf32, #tpu.memory_space<vmem>>, vector<1x1x128x46xf32>
      %58 = vector.shape_cast %57 : vector<1x1x128x46xf32> to vector<128x46xf32>
      %59 = arith.mulf %56, %58 : vector<128x46xf32>
      %60 = arith.addf %55, %59 : vector<128x46xf32>
      %61 = vector.extract_strided_slice %25 {offsets = [2, 0, 0], sizes = [1, 128, 48], strides = [1, 1, 1]} : vector<3x128x48xf32> to vector<1x128x48xf32>
      %62 = vector.shape_cast %61 : vector<1x128x48xf32> to vector<128x48xf32>
      %63 = vector.extract_strided_slice %62 {offsets = [0, 0], sizes = [128, 46], strides = [1, 1]} : vector<128x48xf32> to vector<128x46xf32>
      %c2_42 = arith.constant 2 : index
      %c0_43 = arith.constant 0 : index
      %c0_44 = arith.constant 0 : index
      %c0_45 = arith.constant 0 : index
      %64 = vector.load %arg2[%c2_42, %c0_43, %c0_44, %c0_45] : memref<3x3x128x46xf32, #tpu.memory_space<vmem>>, vector<1x1x128x46xf32>
      %65 = vector.shape_cast %64 : vector<1x1x128x46xf32> to vector<128x46xf32>
      %66 = arith.mulf %63, %65 : vector<128x46xf32>
      %67 = arith.addf %60, %66 : vector<128x46xf32>
      %68 = vector.extract_strided_slice %62 {offsets = [0, 1], sizes = [128, 46], strides = [1, 1]} : vector<128x48xf32> to vector<128x46xf32>
      %c2_46 = arith.constant 2 : index
      %c1_47 = arith.constant 1 : index
      %c0_48 = arith.constant 0 : index
      %c0_49 = arith.constant 0 : index
      %69 = vector.load %arg2[%c2_46, %c1_47, %c0_48, %c0_49] : memref<3x3x128x46xf32, #tpu.memory_space<vmem>>, vector<1x1x128x46xf32>
      %70 = vector.shape_cast %69 : vector<1x1x128x46xf32> to vector<128x46xf32>
      %71 = arith.mulf %68, %70 : vector<128x46xf32>
      %72 = arith.addf %67, %71 : vector<128x46xf32>
      %73 = vector.extract_strided_slice %62 {offsets = [0, 2], sizes = [128, 46], strides = [1, 1]} : vector<128x48xf32> to vector<128x46xf32>
      %c2_50 = arith.constant 2 : index
      %c2_51 = arith.constant 2 : index
      %c0_52 = arith.constant 0 : index
      %c0_53 = arith.constant 0 : index
      %74 = vector.load %arg2[%c2_50, %c2_51, %c0_52, %c0_53] : memref<3x3x128x46xf32, #tpu.memory_space<vmem>>, vector<1x1x128x46xf32>
      %75 = vector.shape_cast %74 : vector<1x1x128x46xf32> to vector<128x46xf32>
      %76 = arith.mulf %73, %75 : vector<128x46xf32>
      %77 = arith.addf %72, %76 : vector<128x46xf32>
      %cst_54 = arith.constant dense<0.000000e+00> : vector<46xf32>
      %78 = vector.multi_reduction <add>, %77, %cst_54 [0] : vector<128x46xf32> to vector<46xf32>
      %79 = vector.shape_cast %78 : vector<46xf32> to vector<1x46xf32>
      %80 = vector.broadcast %1 : f32 to vector<1x46xf32>
      %81 = arith.addf %79, %80 : vector<1x46xf32>
      %cst_55 = arith.constant 0.000000e+00 : f32
      %82 = vector.broadcast %cst_55 : f32 to vector<1x46xf32>
      %83 = arith.cmpf ogt, %81, %82 : vector<1x46xf32>
      %84 = vector.broadcast %0 : f32 to vector<1x46xf32>
      %85 = arith.mulf %84, %81 : vector<1x46xf32>
      %86 = arith.select %83, %81, %85 : vector<1x46xi1>, vector<1x46xf32>
      %c2_i32_56 = arith.constant 2 : i32
      %87 = arith.muli %c2_i32_56, %arg12 : i32
      %c1_i32_57 = arith.constant 1 : i32
      %88 = arith.addi %87, %c1_i32_57 : i32
      %c0_58 = arith.constant 0 : index
      %89 = arith.index_cast %88 : i32 to index
      %c0_59 = arith.constant 0 : index
      %c0_60 = arith.constant 0 : index
      %90 = vector.load %arg1[%c0_58, %89, %c0_59, %c0_60] : memref<1x48x128x48xbf16, #tpu.memory_space<vmem>>, vector<1x3x128x48xbf16>
      %91 = vector.shape_cast %90 : vector<1x3x128x48xbf16> to vector<3x128x48xbf16>
      %92 = arith.extf %91 : vector<3x128x48xbf16> to vector<3x128x48xf32>
      %cst_61 = arith.constant 0.000000e+00 : f32
      %93 = vector.broadcast %cst_61 : f32 to vector<128x46xf32>
      %94 = vector.extract_strided_slice %92 {offsets = [0, 0, 0], sizes = [1, 128, 48], strides = [1, 1, 1]} : vector<3x128x48xf32> to vector<1x128x48xf32>
      %95 = vector.shape_cast %94 : vector<1x128x48xf32> to vector<128x48xf32>
      %96 = vector.extract_strided_slice %95 {offsets = [0, 0], sizes = [128, 46], strides = [1, 1]} : vector<128x48xf32> to vector<128x46xf32>
      %c0_62 = arith.constant 0 : index
      %c0_63 = arith.constant 0 : index
      %c0_64 = arith.constant 0 : index
      %c0_65 = arith.constant 0 : index
      %97 = vector.load %arg2[%c0_62, %c0_63, %c0_64, %c0_65] : memref<3x3x128x46xf32, #tpu.memory_space<vmem>>, vector<1x1x128x46xf32>
      %98 = vector.shape_cast %97 : vector<1x1x128x46xf32> to vector<128x46xf32>
      %99 = arith.mulf %96, %98 : vector<128x46xf32>
      %100 = arith.addf %93, %99 : vector<128x46xf32>
      %101 = vector.extract_strided_slice %95 {offsets = [0, 1], sizes = [128, 46], strides = [1, 1]} : vector<128x48xf32> to vector<128x46xf32>
      %c0_66 = arith.constant 0 : index
      %c1_67 = arith.constant 1 : index
      %c0_68 = arith.constant 0 : index
      %c0_69 = arith.constant 0 : index
      %102 = vector.load %arg2[%c0_66, %c1_67, %c0_68, %c0_69] : memref<3x3x128x46xf32, #tpu.memory_space<vmem>>, vector<1x1x128x46xf32>
      %103 = vector.shape_cast %102 : vector<1x1x128x46xf32> to vector<128x46xf32>
      %104 = arith.mulf %101, %103 : vector<128x46xf32>
      %105 = arith.addf %100, %104 : vector<128x46xf32>
      %106 = vector.extract_strided_slice %95 {offsets = [0, 2], sizes = [128, 46], strides = [1, 1]} : vector<128x48xf32> to vector<128x46xf32>
      %c0_70 = arith.constant 0 : index
      %c2_71 = arith.constant 2 : index
      %c0_72 = arith.constant 0 : index
      %c0_73 = arith.constant 0 : index
      %107 = vector.load %arg2[%c0_70, %c2_71, %c0_72, %c0_73] : memref<3x3x128x46xf32, #tpu.memory_space<vmem>>, vector<1x1x128x46xf32>
      %108 = vector.shape_cast %107 : vector<1x1x128x46xf32> to vector<128x46xf32>
      %109 = arith.mulf %106, %108 : vector<128x46xf32>
      %110 = arith.addf %105, %109 : vector<128x46xf32>
      %111 = vector.extract_strided_slice %92 {offsets = [1, 0, 0], sizes = [1, 128, 48], strides = [1, 1, 1]} : vector<3x128x48xf32> to vector<1x128x48xf32>
      %112 = vector.shape_cast %111 : vector<1x128x48xf32> to vector<128x48xf32>
      %113 = vector.extract_strided_slice %112 {offsets = [0, 0], sizes = [128, 46], strides = [1, 1]} : vector<128x48xf32> to vector<128x46xf32>
      %c1_74 = arith.constant 1 : index
      %c0_75 = arith.constant 0 : index
      %c0_76 = arith.constant 0 : index
      %c0_77 = arith.constant 0 : index
      %114 = vector.load %arg2[%c1_74, %c0_75, %c0_76, %c0_77] : memref<3x3x128x46xf32, #tpu.memory_space<vmem>>, vector<1x1x128x46xf32>
      %115 = vector.shape_cast %114 : vector<1x1x128x46xf32> to vector<128x46xf32>
      %116 = arith.mulf %113, %115 : vector<128x46xf32>
      %117 = arith.addf %110, %116 : vector<128x46xf32>
      %118 = vector.extract_strided_slice %112 {offsets = [0, 1], sizes = [128, 46], strides = [1, 1]} : vector<128x48xf32> to vector<128x46xf32>
      %c1_78 = arith.constant 1 : index
      %c1_79 = arith.constant 1 : index
      %c0_80 = arith.constant 0 : index
      %c0_81 = arith.constant 0 : index
      %119 = vector.load %arg2[%c1_78, %c1_79, %c0_80, %c0_81] : memref<3x3x128x46xf32, #tpu.memory_space<vmem>>, vector<1x1x128x46xf32>
      %120 = vector.shape_cast %119 : vector<1x1x128x46xf32> to vector<128x46xf32>
      %121 = arith.mulf %118, %120 : vector<128x46xf32>
      %122 = arith.addf %117, %121 : vector<128x46xf32>
      %123 = vector.extract_strided_slice %112 {offsets = [0, 2], sizes = [128, 46], strides = [1, 1]} : vector<128x48xf32> to vector<128x46xf32>
      %c1_82 = arith.constant 1 : index
      %c2_83 = arith.constant 2 : index
      %c0_84 = arith.constant 0 : index
      %c0_85 = arith.constant 0 : index
      %124 = vector.load %arg2[%c1_82, %c2_83, %c0_84, %c0_85] : memref<3x3x128x46xf32, #tpu.memory_space<vmem>>, vector<1x1x128x46xf32>
      %125 = vector.shape_cast %124 : vector<1x1x128x46xf32> to vector<128x46xf32>
      %126 = arith.mulf %123, %125 : vector<128x46xf32>
      %127 = arith.addf %122, %126 : vector<128x46xf32>
      %128 = vector.extract_strided_slice %92 {offsets = [2, 0, 0], sizes = [1, 128, 48], strides = [1, 1, 1]} : vector<3x128x48xf32> to vector<1x128x48xf32>
      %129 = vector.shape_cast %128 : vector<1x128x48xf32> to vector<128x48xf32>
      %130 = vector.extract_strided_slice %129 {offsets = [0, 0], sizes = [128, 46], strides = [1, 1]} : vector<128x48xf32> to vector<128x46xf32>
      %c2_86 = arith.constant 2 : index
      %c0_87 = arith.constant 0 : index
      %c0_88 = arith.constant 0 : index
      %c0_89 = arith.constant 0 : index
      %131 = vector.load %arg2[%c2_86, %c0_87, %c0_88, %c0_89] : memref<3x3x128x46xf32, #tpu.memory_space<vmem>>, vector<1x1x128x46xf32>
      %132 = vector.shape_cast %131 : vector<1x1x128x46xf32> to vector<128x46xf32>
      %133 = arith.mulf %130, %132 : vector<128x46xf32>
      %134 = arith.addf %127, %133 : vector<128x46xf32>
      %135 = vector.extract_strided_slice %129 {offsets = [0, 1], sizes = [128, 46], strides = [1, 1]} : vector<128x48xf32> to vector<128x46xf32>
      %c2_90 = arith.constant 2 : index
      %c1_91 = arith.constant 1 : index
      %c0_92 = arith.constant 0 : index
      %c0_93 = arith.constant 0 : index
      %136 = vector.load %arg2[%c2_90, %c1_91, %c0_92, %c0_93] : memref<3x3x128x46xf32, #tpu.memory_space<vmem>>, vector<1x1x128x46xf32>
      %137 = vector.shape_cast %136 : vector<1x1x128x46xf32> to vector<128x46xf32>
      %138 = arith.mulf %135, %137 : vector<128x46xf32>
      %139 = arith.addf %134, %138 : vector<128x46xf32>
      %140 = vector.extract_strided_slice %129 {offsets = [0, 2], sizes = [128, 46], strides = [1, 1]} : vector<128x48xf32> to vector<128x46xf32>
      %c2_94 = arith.constant 2 : index
      %c2_95 = arith.constant 2 : index
      %c0_96 = arith.constant 0 : index
      %c0_97 = arith.constant 0 : index
      %141 = vector.load %arg2[%c2_94, %c2_95, %c0_96, %c0_97] : memref<3x3x128x46xf32, #tpu.memory_space<vmem>>, vector<1x1x128x46xf32>
      %142 = vector.shape_cast %141 : vector<1x1x128x46xf32> to vector<128x46xf32>
      %143 = arith.mulf %140, %142 : vector<128x46xf32>
      %144 = arith.addf %139, %143 : vector<128x46xf32>
      %cst_98 = arith.constant dense<0.000000e+00> : vector<46xf32>
      %145 = vector.multi_reduction <add>, %144, %cst_98 [0] : vector<128x46xf32> to vector<46xf32>
      %146 = vector.shape_cast %145 : vector<46xf32> to vector<1x46xf32>
      %147 = vector.broadcast %1 : f32 to vector<1x46xf32>
      %148 = arith.addf %146, %147 : vector<1x46xf32>
      %cst_99 = arith.constant 0.000000e+00 : f32
      %149 = vector.broadcast %cst_99 : f32 to vector<1x46xf32>
      %150 = arith.cmpf ogt, %148, %149 : vector<1x46xf32>
      %151 = vector.broadcast %0 : f32 to vector<1x46xf32>
      %152 = arith.mulf %151, %148 : vector<1x46xf32>
      %153 = arith.select %150, %148, %152 : vector<1x46xi1>, vector<1x46xf32>
      %154 = arith.maximumf %86, %153 : vector<1x46xf32>
      %155 = vector.extract_strided_slice %154 {offsets = [0, 0], sizes = [1, 45], strides = [1, 1]} : vector<1x46xf32> to vector<1x45xf32>
      %156 = vector.extract_strided_slice %154 {offsets = [0, 1], sizes = [1, 45], strides = [1, 1]} : vector<1x46xf32> to vector<1x45xf32>
      %157 = arith.maximumf %155, %156 : vector<1x45xf32>
      %158 = arith.index_cast %arg12 : i32 to index
      %c0_100 = arith.constant 0 : index
      %c0_101 = arith.constant 0 : index
      %159 = vector.load %arg5[%158, %c0_100, %c0_101] : memref<23x45x128xf32, #tpu.memory_space<vmem>>, vector<1x45x128xf32>
      %160 = vector.shape_cast %159 : vector<1x45x128xf32> to vector<45x128xf32>
      %cst_102 = arith.constant dense<0.000000e+00> : vector<1x128xf32>
      %161 = tpu.matmul %157, %160, %cst_102 {dimension_numbers = #tpu.dot_dimension_numbers<[1], [0], [0], [1], [0, 0, 1, 1], [], []>} : vector<1x45xf32>, vector<45x128xf32>, vector<1x128xf32> -> vector<1x128xf32>
      %162 = arith.addf %arg13, %161 : vector<1x128xf32>
      scf.yield %162 : vector<1x128xf32>
    }
    %c23_i32_3 = arith.constant 23 : i32
    %c0_4 = arith.constant 0 : index
    %c0_5 = arith.constant 0 : index
    %5 = vector.load %arg7[%c0_4, %c0_5] : memref<128x32xf32, #tpu.memory_space<vmem>>, vector<128x32xf32>
    %cst = arith.constant dense<0.000000e+00> : vector<1x32xf32>
    %6 = tpu.matmul %4, %5, %cst {dimension_numbers = #tpu.dot_dimension_numbers<[1], [0], [0], [1], [0, 0, 1, 1], [], []>} : vector<1x128xf32>, vector<128x32xf32>, vector<1x32xf32> -> vector<1x32xf32>
    %c0_6 = arith.constant 0 : index
    %c0_7 = arith.constant 0 : index
    %7 = vector.load %arg8[%c0_6, %c0_7] : memref<1x32xf32, #tpu.memory_space<vmem>>, vector<1x32xf32>
    %8 = arith.addf %6, %7 : vector<1x32xf32>
    %c0_8 = arith.constant 0 : index
    %c0_9 = arith.constant 0 : index
    %9 = vector.load %arg9[%c0_8, %c0_9] : memref<1x32xf32, #tpu.memory_space<vmem>>, vector<1x32xf32>
    %10 = arith.mulf %8, %9 : vector<1x32xf32>
    %11 = vector.shape_cast %10 : vector<1x32xf32> to vector<1x1x32xf32>
    %cst_10 = arith.constant dense<0.000000e+00> : vector<1xf32>
    %12 = vector.multi_reduction <add>, %11, %cst_10 [1, 2] : vector<1x1x32xf32> to vector<1xf32>
    %13 = vector.shape_cast %12 : vector<1xf32> to vector<1x1x1xf32>
    %14 = vector.extract %13[0, 0, 0] : f32 from vector<1x1x1xf32>
    %c0_11 = arith.constant 0 : index
    %15 = memref.load %arg10[%c0_11] : memref<1xf32, #tpu.memory_space<smem>>
    %16 = arith.addf %14, %15 : f32
    %cst_12 = arith.constant 0.000000e+00 : f32
    %17 = vector.broadcast %cst_12 : f32 to vector<1x1x128xf32>
    %18 = vector.broadcast %16 : f32 to vector<1x1x128xf32>
    %19 = arith.addf %17, %18 : vector<1x1x128xf32>
    %c0_13 = arith.constant 0 : index
    %c0_14 = arith.constant 0 : index
    %c0_15 = arith.constant 0 : index
    %20 = vector.load %arg11[%c0_13, %c0_14, %c0_15] : memref<1x1x128xf32, #tpu.memory_space<vmem>>, vector<1x1x128xf32>
    tpu.vector_store %arg11[%c0_13, %c0_14, %c0_15], %19 {strides = array<i32>} : memref<1x1x128xf32, #tpu.memory_space<vmem>>, vector<1x1x128xf32>,
    return
  }
  func.func @transform_0(%arg0: i32) -> (i32, i32, i32, i32) {
    %c0_i32 = arith.constant 0 : i32
    %c0_i32_0 = arith.constant 0 : i32
    %c0_i32_1 = arith.constant 0 : i32
    %c0_i32_2 = arith.constant 0 : i32
    return %arg0, %c0_i32, %c0_i32_0, %c0_i32_1 : i32, i32, i32, i32
  }
  func.func @transform_1(%arg0: i32) -> (i32, i32, i32, i32) {
    %c0_i32 = arith.constant 0 : i32
    %c0_i32_0 = arith.constant 0 : i32
    %c0_i32_1 = arith.constant 0 : i32
    %c0_i32_2 = arith.constant 0 : i32
    %c0_i32_3 = arith.constant 0 : i32
    return %c0_i32, %c0_i32_0, %c0_i32_1, %c0_i32_2 : i32, i32, i32, i32
  }
  func.func @transform_2(%arg0: i32) -> i32 {
    %c0_i32 = arith.constant 0 : i32
    %c0_i32_0 = arith.constant 0 : i32
    return %c0_i32 : i32
  }
  func.func @transform_3(%arg0: i32) -> i32 {
    %c0_i32 = arith.constant 0 : i32
    %c0_i32_0 = arith.constant 0 : i32
    return %c0_i32 : i32
  }
  func.func @transform_4(%arg0: i32) -> (i32, i32, i32) {
    %c0_i32 = arith.constant 0 : i32
    %c0_i32_0 = arith.constant 0 : i32
    %c0_i32_1 = arith.constant 0 : i32
    %c0_i32_2 = arith.constant 0 : i32
    return %c0_i32, %c0_i32_0, %c0_i32_1 : i32, i32, i32
  }
  func.func @transform_5(%arg0: i32) -> (i32, i32) {
    %c0_i32 = arith.constant 0 : i32
    %c0_i32_0 = arith.constant 0 : i32
    %c0_i32_1 = arith.constant 0 : i32
    return %c0_i32, %c0_i32_0 : i32, i32
  }
  func.func @transform_6(%arg0: i32) -> (i32, i32) {
    %c0_i32 = arith.constant 0 : i32
    %c0_i32_0 = arith.constant 0 : i32
    %c0_i32_1 = arith.constant 0 : i32
    return %c0_i32, %c0_i32_0 : i32, i32
  }
  func.func @transform_7(%arg0: i32) -> (i32, i32) {
    %c0_i32 = arith.constant 0 : i32
    %c0_i32_0 = arith.constant 0 : i32
    %c0_i32_1 = arith.constant 0 : i32
    return %c0_i32, %c0_i32_0 : i32, i32
  }
  func.func @transform_8(%arg0: i32) -> (i32, i32) {
    %c0_i32 = arith.constant 0 : i32
    %c0_i32_0 = arith.constant 0 : i32
    %c0_i32_1 = arith.constant 0 : i32
    return %c0_i32, %c0_i32_0 : i32, i32
  }
  func.func @transform_9(%arg0: i32) -> i32 {
    %c0_i32 = arith.constant 0 : i32
    %c0_i32_0 = arith.constant 0 : i32
    return %c0_i32 : i32
  }
  func.func @transform_10(%arg0: i32) -> (i32, i32, i32) {
    %c0_i32 = arith.constant 0 : i32
    %c0_i32_0 = arith.constant 0 : i32
    %c0_i32_1 = arith.constant 0 : i32
    return %arg0, %c0_i32, %c0_i32_0 : i32, i32, i32
  }
}

</mosaic_0001>

<llo_original>
// kernel: conv_nn_forward.3
$region0: #{conv_nn_forward.3}
  #allocation0 [shape = 'u32[]', space=smem, size = 0x4, offset = 0x4, fixed_abs, tag = 'smem constant byte address 0x4 - core index']
  #allocation1 [shape = 'u32[144,128]{1,0:T(1,128)}', space=vmem, size = 0x12000, scoped, tag = 'internal scratch']
  #allocation2 [shape = 'f32[1]{0:T(128)S(6)}', space=smem, size = 0x200, scoped, tag = 'scoped memory for conv_nn_forward.3']
  #allocation3 [shape = 'f32[1]{0:T(128)S(6)}', space=smem, size = 0x200, scoped, tag = 'scoped memory for conv_nn_forward.3']
  #allocation4 [shape = 'f32[1]{0:T(128)S(6)}', space=smem, size = 0x200, scoped, tag = 'scoped memory for conv_nn_forward.3']
  %s0 = inlined_call_operand.vmem [shape: bf16[2,48,128,48], index: 0, kind: input, shape index: {}]
  %s1 = inlined_call_operand.vmem [shape: f32[3,3,128,46], index: 1, kind: input, shape index: {}]
  %s2 = inlined_call_operand.<no memory space> [shape: f32[1], index: 2, kind: input, shape index: {}]
  %s3 = inlined_call_operand.<no memory space> [shape: f32[1], index: 3, kind: input, shape index: {}]
  %s4 = inlined_call_operand.vmem [shape: f32[23,45,128], index: 4, kind: input, shape index: {}]
  %s5 = inlined_call_operand.vmem [shape: f32[1,128], index: 5, kind: input, shape index: {}]
  %s6 = inlined_call_operand.vmem [shape: f32[128,32], index: 6, kind: input, shape index: {}]
  %s7 = inlined_call_operand.vmem [shape: f32[1,32], index: 7, kind: input, shape index: {}]
  %s8 = inlined_call_operand.vmem [shape: f32[1,32], index: 8, kind: input, shape index: {}]
  %s9 = inlined_call_operand.<no memory space> [shape: f32[1], index: 9, kind: input, shape index: {}]
  %s10 = inlined_call_operand.vmem [shape: f32[2,1,128], index: 10, kind: output, shape index: {}]
  %s11 = sld [smem:[#allocation0]]
  $region80: #{conv_nn_forward.3} parent=0
    _
  %s13 = ssub.s32 1, %s11
  %s14 = scalar_select 0, %s13, %s11
  %15 = sst [smem:[#allocation2]] %s2
  %16 = sst [smem:[#allocation3]] %s3
  %17 = sst [smem:[#allocation4]] %s9
  loop: start=0, step=1, limit=4
  $region2: #{conv_nn_forward.3} parent=0 // loop_pre_header
    _
  $region3: #{conv_nn_forward.3} parent=0 // loop_header
    %s19 = sphi 0, %s23
    %p20 = scmp.ge.s32.totalorder %s19, 4
    %s29 = sphi 0, %s31
    %s32 = sphi 0, %s29
    %s33 = sphi 0, %s32
    %s49 = sphi 0, %s33
    %s53 = sphi 0, %s53
    %s55 = sphi 0, %s53
    %s56 = sphi 0, %s55
    %s70 = sphi 0, %s56
    %s74 = sphi 0, %s74
    %s76 = sphi 0, %s74
    %s77 = sphi 0, %s76
    %s91 = sphi 0, %s77
    %s95 = sphi 0, %s95
    %s97 = sphi 0, %s95
    %s98 = sphi 0, %s97
    %s112 = sphi 0, %s98
    %s116 = sphi 0, %s116
    %s118 = sphi 0, %s116
    %s119 = sphi 0, %s118
    %s133 = sphi 0, %s119
    %s137 = sphi 0, %s137
    %s139 = sphi 0, %s137
    %s140 = sphi 0, %s139
    %s154 = sphi 0, %s140
    %s158 = sphi 0, %s158
    %s160 = sphi 0, %s158
    %s161 = sphi 0, %s160
    %s175 = sphi 0, %s161
    %s179 = sphi 0, %s179
    %s181 = sphi 0, %s179
    %s182 = sphi 0, %s181
    %s196 = sphi 0, %s182
    %s200 = sphi 0, %s200
    %s202 = sphi 0, %s200
    %s203 = sphi 0, %s202
    %s217 = sphi 0, %s203
    %s221 = sphi 0, %s221
    %s223 = sphi 0, %s221
    %s224 = sphi 0, %s223
    %s238 = sphi 0, %s224
    %s244 = sphi 0, %s246
    %s247 = sphi 0, %s244
    %s248 = sphi 0, %s247
    %s264 = sphi 0, %s248
  $region4: #{conv_nn_forward.3} parent=0 // loop_header_branch
    %22 = sbr.rel (%p20) target = $region8
  $region5: #{conv_nn_forward.3} parent=0 // loop_body
    %s24 = ssub.s32 %s19, 1
    %s25 = ssub.s32 %s19, 2
    %s26 = sadd.s32 %s19, 1
    %s27 = ssub.s32 %s19, %s26
    %p28 = scmp.eq.s32.totalorder %s27, 0
    %s30 = sadd.s32 %s29, 1
    %s31 = scalar_select %p28, %s29, %s30
    %p34 = pneg %p28
    %p35 = scmp.eq.s32.totalorder %s19, 1
    %p36 = por %p34, %p35
    %p37 = scmp.ne.s32.totalorder %s29, %s32
    %p38 = scmp.eq.s32.totalorder %s19, 0
    %p39 = por %p37, %p38
    %p40 = scmp.ne.s32.totalorder %s29, %s32
    %p41 = scmp.eq.s32.totalorder %s24, 1
    %p42 = por %p40, %p41
    %p43 = scmp.ne.s32.totalorder %s32, %s33
    %p44 = scmp.eq.s32.totalorder %s24, 0
    %p45 = por %p43, %p44
    %p46 = scmp.ne.s32.totalorder %s32, %s33
    %p47 = scmp.eq.s32.totalorder %s25, 1
    %p48 = por %p46, %p47
    %p50 = scmp.ne.s32.totalorder %s33, %s49
    %p51 = scmp.eq.s32.totalorder %s25, 0
    %p52 = por %p50, %p51
    %s54 = sadd.s32 %s53, 1
    %p57 = scmp.eq.s32.totalorder %s19, 1
    %p58 = scmp.ne.s32.totalorder %s53, %s55
    %p59 = scmp.eq.s32.totalorder %s19, 0
    %p60 = por %p58, %p59
    %p61 = scmp.ne.s32.totalorder %s53, %s55
    %p62 = scmp.eq.s32.totalorder %s24, 1
    %p63 = por %p61, %p62
    %p64 = scmp.ne.s32.totalorder %s55, %s56
    %p65 = scmp.eq.s32.totalorder %s24, 0
    %p66 = por %p64, %p65
    %p67 = scmp.ne.s32.totalorder %s55, %s56
    %p68 = scmp.eq.s32.totalorder %s25, 1
    %p69 = por %p67, %p68
    %p71 = scmp.ne.s32.totalorder %s56, %s70
    %p72 = scmp.eq.s32.totalorder %s25, 0
    %p73 = por %p71, %p72
    %s75 = sadd.s32 %s74, 1
    %p78 = scmp.eq.s32.totalorder %s19, 1
    %p79 = scmp.ne.s32.totalorder %s74, %s76
    %p80 = scmp.eq.s32.totalorder %s19, 0
    %p81 = por %p79, %p80
    %p82 = scmp.ne.s32.totalorder %s74, %s76
    %p83 = scmp.eq.s32.totalorder %s24, 1
    %p84 = por %p82, %p83
    %p85 = scmp.ne.s32.totalorder %s76, %s77
    %p86 = scmp.eq.s32.totalorder %s24, 0
    %p87 = por %p85, %p86
    %p88 = scmp.ne.s32.totalorder %s76, %s77
    %p89 = scmp.eq.s32.totalorder %s25, 1
    %p90 = por %p88, %p89
    %p92 = scmp.ne.s32.totalorder %s77, %s91
    %p93 = scmp.eq.s32.totalorder %s25, 0
    %p94 = por %p92, %p93
    %s96 = sadd.s32 %s95, 1
    %p99 = scmp.eq.s32.totalorder %s19, 1
    %p100 = scmp.ne.s32.totalorder %s95, %s97
    %p101 = scmp.eq.s32.totalorder %s19, 0
    %p102 = por %p100, %p101
    %p103 = scmp.ne.s32.totalorder %s95, %s97
    %p104 = scmp.eq.s32.totalorder %s24, 1
    %p105 = por %p103, %p104
    %p106 = scmp.ne.s32.totalorder %s97, %s98
    %p107 = scmp.eq.s32.totalorder %s24, 0
    %p108 = por %p106, %p107
    %p109 = scmp.ne.s32.totalorder %s97, %s98
    %p110 = scmp.eq.s32.totalorder %s25, 1
    %p111 = por %p109, %p110
    %p113 = scmp.ne.s32.totalorder %s98, %s112
    %p114 = scmp.eq.s32.totalorder %s25, 0
    %p115 = por %p113, %p114
    %s117 = sadd.s32 %s116, 1
    %p120 = scmp.eq.s32.totalorder %s19, 1
    %p121 = scmp.ne.s32.totalorder %s116, %s118
    %p122 = scmp.eq.s32.totalorder %s19, 0
    %p123 = por %p121, %p122
    %p124 = scmp.ne.s32.totalorder %s116, %s118
    %p125 = scmp.eq.s32.totalorder %s24, 1
    %p126 = por %p124, %p125
    %p127 = scmp.ne.s32.totalorder %s118, %s119
    %p128 = scmp.eq.s32.totalorder %s24, 0
    %p129 = por %p127, %p128
    %p130 = scmp.ne.s32.totalorder %s118, %s119
    %p131 = scmp.eq.s32.totalorder %s25, 1
    %p132 = por %p130, %p131
    %p134 = scmp.ne.s32.totalorder %s119, %s133
    %p135 = scmp.eq.s32.totalorder %s25, 0
    %p136 = por %p134, %p135
    %s138 = sadd.s32 %s137, 1
    %p141 = scmp.eq.s32.totalorder %s19, 1
    %p142 = scmp.ne.s32.totalorder %s137, %s139
    %p143 = scmp.eq.s32.totalorder %s19, 0
    %p144 = por %p142, %p143
    %p145 = scmp.ne.s32.totalorder %s137, %s139
    %p146 = scmp.eq.s32.totalorder %s24, 1
    %p147 = por %p145, %p146
    %p148 = scmp.ne.s32.totalorder %s139, %s140
    %p149 = scmp.eq.s32.totalorder %s24, 0
    %p150 = por %p148, %p149
    %p151 = scmp.ne.s32.totalorder %s139, %s140
    %p152 = scmp.eq.s32.totalorder %s25, 1
    %p153 = por %p151, %p152
    %p155 = scmp.ne.s32.totalorder %s140, %s154
    %p156 = scmp.eq.s32.totalorder %s25, 0
    %p157 = por %p155, %p156
    %s159 = sadd.s32 %s158, 1
    %p162 = scmp.eq.s32.totalorder %s19, 1
    %p163 = scmp.ne.s32.totalorder %s158, %s160
    %p164 = scmp.eq.s32.totalorder %s19, 0
    %p165 = por %p163, %p164
    %p166 = scmp.ne.s32.totalorder %s158, %s160
    %p167 = scmp.eq.s32.totalorder %s24, 1
    %p168 = por %p166, %p167
    %p169 = scmp.ne.s32.totalorder %s160, %s161
    %p170 = scmp.eq.s32.totalorder %s24, 0
    %p171 = por %p169, %p170
    %p172 = scmp.ne.s32.totalorder %s160, %s161
    %p173 = scmp.eq.s32.totalorder %s25, 1
    %p174 = por %p172, %p173
    %p176 = scmp.ne.s32.totalorder %s161, %s175
    %p177 = scmp.eq.s32.totalorder %s25, 0
    %p178 = por %p176, %p177
    %s180 = sadd.s32 %s179, 1
    %p183 = scmp.eq.s32.totalorder %s19, 1
    %p184 = scmp.ne.s32.totalorder %s179, %s181
    %p185 = scmp.eq.s32.totalorder %s19, 0
    %p186 = por %p184, %p185
    %p187 = scmp.ne.s32.totalorder %s179, %s181
    %p188 = scmp.eq.s32.totalorder %s24, 1
    %p189 = por %p187, %p188
    %p190 = scmp.ne.s32.totalorder %s181, %s182
    %p191 = scmp.eq.s32.totalorder %s24, 0
    %p192 = por %p190, %p191
    %p193 = scmp.ne.s32.totalorder %s181, %s182
    %p194 = scmp.eq.s32.totalorder %s25, 1
    %p195 = por %p193, %p194
    %p197 = scmp.ne.s32.totalorder %s182, %s196
    %p198 = scmp.eq.s32.totalorder %s25, 0
    %p199 = por %p197, %p198
    %s201 = sadd.s32 %s200, 1
    %p204 = scmp.eq.s32.totalorder %s19, 1
    %p205 = scmp.ne.s32.totalorder %s200, %s202
    %p206 = scmp.eq.s32.totalorder %s19, 0
    %p207 = por %p205, %p206
    %p208 = scmp.ne.s32.totalorder %s200, %s202
    %p209 = scmp.eq.s32.totalorder %s24, 1
    %p210 = por %p208, %p209
    %p211 = scmp.ne.s32.totalorder %s202, %s203
    %p212 = scmp.eq.s32.totalorder %s24, 0
    %p213 = por %p211, %p212
    %p214 = scmp.ne.s32.totalorder %s202, %s203
    %p215 = scmp.eq.s32.totalorder %s25, 1
    %p216 = por %p214, %p215
    %p218 = scmp.ne.s32.totalorder %s203, %s217
    %p219 = scmp.eq.s32.totalorder %s25, 0
    %p220 = por %p218, %p219
    %s222 = sadd.s32 %s221, 1
    %p225 = scmp.eq.s32.totalorder %s19, 1
    %p226 = scmp.ne.s32.totalorder %s221, %s223
    %p227 = scmp.eq.s32.totalorder %s19, 0
    %p228 = por %p226, %p227
    %p229 = scmp.ne.s32.totalorder %s221, %s223
    %p230 = scmp.eq.s32.totalorder %s24, 1
    %p231 = por %p229, %p230
    %p232 = scmp.ne.s32.totalorder %s223, %s224
    %p233 = scmp.eq.s32.totalorder %s24, 0
    %p234 = por %p232, %p233
    %p235 = scmp.ne.s32.totalorder %s223, %s224
    %p236 = scmp.eq.s32.totalorder %s25, 1
    %p237 = por %p235, %p236
    %p239 = scmp.ne.s32.totalorder %s224, %s238
    %p240 = scmp.eq.s32.totalorder %s25, 0
    %p241 = por %p239, %p240
    %s242 = ssub.s32 %s19, %s26
    %p243 = scmp.eq.s32.totalorder %s242, 0
    %s245 = sadd.s32 %s244, 1
    %s246 = scalar_select %p243, %s244, %s245
    %p249 = pneg %p243
    %p250 = scmp.eq.s32.totalorder %s19, 1
    %p251 = por %p249, %p250
    %p252 = scmp.ne.s32.totalorder %s244, %s247
    %p253 = scmp.eq.s32.totalorder %s19, 0
    %p254 = por %p252, %p253
    %p255 = scmp.ne.s32.totalorder %s244, %s247
    %p256 = scmp.eq.s32.totalorder %s24, 1
    %p257 = por %p255, %p256
    %p258 = scmp.ne.s32.totalorder %s247, %s248
    %p259 = scmp.eq.s32.totalorder %s24, 0
    %p260 = por %p258, %p259
    %p261 = scmp.ne.s32.totalorder %s247, %s248
    %p262 = scmp.eq.s32.totalorder %s25, 1
    %p263 = por %p261, %p262
    %p265 = scmp.ne.s32.totalorder %s248, %s264
    %p266 = scmp.eq.s32.totalorder %s25, 0
    %p267 = por %p265, %p266
    %p268 = scmp.le.s32.totalorder 1, %s19
    %p269 = scmp.lt.s32.totalorder %s19, 3
    %p270 = pnand %p268, %p269
    %p271 = pneg %p270
    // Predicated region
    $region9: #{conv_nn_forward.3} parent=5 // pred_check
      _
    $region10: #{conv_nn_forward.3} parent=5 // pred_check_branch
      %273 = sbr.rel (%p270) target = $region12
    $region11: #{conv_nn_forward.3} parent=5 // pred_region
      %s274 = ssub.s32 %s19, 1
      // Predicated region
      $region13: #{conv_nn_forward.3} parent=11 // pred_check
        %p275 = pneg %p66
      $region14: #{conv_nn_forward.3} parent=11 // pred_check_branch
        %277 = sbr.rel (%p275) target = $region16
      $region15: #{conv_nn_forward.3} parent=11 // pred_region
        _
      $region16: #{conv_nn_forward.3} parent=11 // pred_fallthru
        _
      // Predicated region
      $region17: #{conv_nn_forward.3} parent=11 // pred_check
        %p278 = pneg %p87
      $region18: #{conv_nn_forward.3} parent=11 // pred_check_branch
        %280 = sbr.rel (%p278) target = $region20
      $region19: #{conv_nn_forward.3} parent=11 // pred_region
        _
      $region20: #{conv_nn_forward.3} parent=11 // pred_fallthru
        _
      // Predicated region
      $region21: #{conv_nn_forward.3} parent=11 // pred_check
        %p281 = pneg %p108
      $region22: #{conv_nn_forward.3} parent=11 // pred_check_branch
        %283 = sbr.rel (%p281) target = $region24
      $region23: #{conv_nn_forward.3} parent=11 // pred_region
        _
      $region24: #{conv_nn_forward.3} parent=11 // pred_fallthru
        _
      // Predicated region
      $region25: #{conv_nn_forward.3} parent=11 // pred_check
        %p284 = pneg %p129
      $region26: #{conv_nn_forward.3} parent=11 // pred_check_branch
        %286 = sbr.rel (%p284) target = $region28
      $region27: #{conv_nn_forward.3} parent=11 // pred_region
        _
      $region28: #{conv_nn_forward.3} parent=11 // pred_fallthru
        _
      // Predicated region
      $region29: #{conv_nn_forward.3} parent=11 // pred_check
        %p287 = pneg %p150
      $region30: #{conv_nn_forward.3} parent=11 // pred_check_branch
        %289 = sbr.rel (%p287) target = $region32
      $region31: #{conv_nn_forward.3} parent=11 // pred_region
        _
      $region32: #{conv_nn_forward.3} parent=11 // pred_fallthru
        _
      // Predicated region
      $region33: #{conv_nn_forward.3} parent=11 // pred_check
        %p290 = pneg %p171
      $region34: #{conv_nn_forward.3} parent=11 // pred_check_branch
        %292 = sbr.rel (%p290) target = $region36
      $region35: #{conv_nn_forward.3} parent=11 // pred_region
        _
      $region36: #{conv_nn_forward.3} parent=11 // pred_fallthru
        _
      // Predicated region
      $region37: #{conv_nn_forward.3} parent=11 // pred_check
        %p293 = pneg %p192
      $region38: #{conv_nn_forward.3} parent=11 // pred_check_branch
        %295 = sbr.rel (%p293) target = $region40
      $region39: #{conv_nn_forward.3} parent=11 // pred_region
        _
      $region40: #{conv_nn_forward.3} parent=11 // pred_fallthru
        _
      // Predicated region
      $region41: #{conv_nn_forward.3} parent=11 // pred_check
        %p296 = pneg %p213
      $region42: #{conv_nn_forward.3} parent=11 // pred_check_branch
        %298 = sbr.rel (%p296) target = $region44
      $region43: #{conv_nn_forward.3} parent=11 // pred_region
        _
      $region44: #{conv_nn_forward.3} parent=11 // pred_fallthru
        _
      // Predicated region
      $region45: #{conv_nn_forward.3} parent=11 // pred_check
        %p299 = pneg %p234
      $region46: #{conv_nn_forward.3} parent=11 // pred_check_branch
        %301 = sbr.rel (%p299) target = $region48
      $region47: #{conv_nn_forward.3} parent=11 // pred_region
        _
      $region48: #{conv_nn_forward.3} parent=11 // pred_fallthru
        _
    $region12: #{conv_nn_forward.3} parent=5 // pred_fallthru
      _
    %p302 = scmp.lt.s32.totalorder %s19, 2
    // Predicated region
    $region49: #{conv_nn_forward.3} parent=5 // pred_check
      %p303 = pneg %p302
    $region50: #{conv_nn_forward.3} parent=5 // pred_check_branch
      %305 = sbr.rel (%p303) target = $region52
    $region51: #{conv_nn_forward.3} parent=5 // pred_region
      // Predicated region
      $region53: #{conv_nn_forward.3} parent=51 // pred_check
        %p306 = pneg %p39
      $region54: #{conv_nn_forward.3} parent=51 // pred_check_branch
        %308 = sbr.rel (%p306) target = $region56
      $region55: #{conv_nn_forward.3} parent=51 // pred_region
        %p309 = scmp.lt.s32.totalorder %s19, 1
        %s310 = scalar_select %p309, %s19, 1
        %s311 = smul.addr %s310, 768
        %s312 = smul.addr %s311, 4
        %s313 = scalar_lea.vmem %s0, %s312
      $region56: #{conv_nn_forward.3} parent=51 // pred_fallthru
        _
    $region52: #{conv_nn_forward.3} parent=5 // pred_fallthru
      _
    %p314 = scmp.le.s32.totalorder 1, %s19
    %p315 = scmp.lt.s32.totalorder %s19, 3
    %p316 = pnand %p314, %p315
    %p317 = pneg %p316
    // Predicated region
    $region57: #{conv_nn_forward.3} parent=5 // pred_check
      _
    $region58: #{conv_nn_forward.3} parent=5 // pred_check_branch
      %319 = sbr.rel (%p316) target = $region60
    $region59: #{conv_nn_forward.3} parent=5 // pred_region
      %s320 = ssub.s32 %s19, 1
      %p321 = scmp.lt.s32.totalorder %s24, 1
      %s322 = scalar_select %p321, %s24, 1
      %s323 = smul.addr %s322, 768
      %s324 = smul.addr %s323, 4
      %s325 = scalar_lea.vmem %s0, %s324
      %p326 = pneg %p45
      %p327 = pneg %p42
      %p328 = pneg %p66
      %p329 = pneg %p63
      %p330 = pneg %p87
      %p331 = pneg %p84
      %p332 = pneg %p108
      %p333 = pneg %p105
      %p334 = pneg %p129
      %p335 = pneg %p126
      %p336 = pneg %p150
      %p337 = pneg %p147
      %p338 = pneg %p171
      %p339 = pneg %p168
      %p340 = pneg %p192
      %p341 = pneg %p189
      %p342 = pneg %p213
      %p343 = pneg %p210
      %p344 = pneg %p234
      %p345 = pneg %p231
      %p346 = pneg %p260
      %p347 = pneg %p257
      %p348 = scmp.lt.s32.totalorder %s24, 1
      %s349 = scalar_select %p348, %s24, 1
      %s350 = scalar_lea.vmem %s10, %s349
      %p351 = scmp.lt.s32.totalorder %s24, 1
      %s352 = scalar_select %p351, %s24, 1
      %s353 = smul.addr %s352, 768
      %s354 = smul.addr %s353, 4
      %s355 = scalar_lea.vmem %s0, %s354
      %p356 = scmp.lt.s32.totalorder %s24, 1
      %s357 = scalar_select %p356, %s24, 1
      %s358 = scalar_lea.vmem %s10, %s357
      %s359 = sld [smem:[#allocation3]]
      %s360 = sld [smem:[#allocation2]]
      %v361 = vld [vmem:[%s5] sm:$0x1]
      loop: start=0, step=1, limit=23
      $region61: #{conv_nn_forward.3} parent=59 // loop_pre_header
        _
      $region62: #{conv_nn_forward.3} parent=59 // loop_header
        %s363 = sphi 0, %s367
        %p364 = scmp.ge.s32.totalorder %s363, 23
        %v368 = vphi %v361, %v2626
      $region63: #{conv_nn_forward.3} parent=59 // loop_header_branch
        %366 = sbr.rel (%p364) target = $region67
      $region64: #{conv_nn_forward.3} parent=59 // loop_body
        %s369 = smul.u32 %s363, 2
        %s370 = smul.u32 %s369, 16
        %s371 = smul.addr %s370, 4
        %s372 = scalar_lea.vmem %s355, %s371
        %v373 = vld [vmem:[%s372] sm:$0xf]
        %v374 = vld [vmem:[%s372 + $0x4] sm:$0xf]
        %v375 = vld [vmem:[%s372 + $0x8] sm:$0xf]
        %v376 = vld [vmem:[%s372 + $0xc] sm:$0xf]
        %v377 = vld [vmem:[%s372 + $0x10] sm:$0xf]
        %v378 = vld [vmem:[%s372 + $0x14] sm:$0xf]
        %v379 = vld [vmem:[%s372 + $0x18] sm:$0xf]
        %v380 = vld [vmem:[%s372 + $0x1c] sm:$0xf]
        %v381 = vld [vmem:[%s372 + $0x20] sm:$0xf]
        %v382 = vld [vmem:[%s372 + $0x24] sm:$0xf]
        %v383 = vld [vmem:[%s372 + $0x28] sm:$0xf]
        %v384 = vld [vmem:[%s372 + $0x2c] sm:$0xf]
        %v385 = vld [vmem:[%s372 + $0x30] sm:$0xf]
        %v386 = vld [vmem:[%s372 + $0x34] sm:$0xf]
        %v387 = vld [vmem:[%s372 + $0x38] sm:$0xf]
        %v388 = vld [vmem:[%s372 + $0x3c] sm:$0xf]
        %v389 = vld [vmem:[%s372 + $0x40] sm:$0xf]
        %v390 = vld [vmem:[%s372 + $0x44] sm:$0xf]
        %v391 = vld [vmem:[%s372 + $0x48] sm:$0xf]
        %v392 = vld [vmem:[%s372 + $0x4c] sm:$0xf]
        %v393 = vld [vmem:[%s372 + $0x50] sm:$0xf]
        %v394 = vld [vmem:[%s372 + $0x54] sm:$0xf]
        %v395 = vld [vmem:[%s372 + $0x58] sm:$0xf]
        %v396 = vld [vmem:[%s372 + $0x5c] sm:$0xf]
        %v397 = vld [vmem:[%s372 + $0x60] sm:$0xf]
        %v398 = vld [vmem:[%s372 + $0x64] sm:$0xf]
        %v399 = vld [vmem:[%s372 + $0x68] sm:$0xf]
        %v400 = vld [vmem:[%s372 + $0x6c] sm:$0xf]
        %v401 = vld [vmem:[%s372 + $0x70] sm:$0xf]
        %v402 = vld [vmem:[%s372 + $0x74] sm:$0xf]
        %v403 = vld [vmem:[%s372 + $0x78] sm:$0xf]
        %v404 = vld [vmem:[%s372 + $0x7c] sm:$0xf]
        %v405 = vld [vmem:[%s372 + $0x80] sm:$0xf]
        %v406 = vld [vmem:[%s372 + $0x84] sm:$0xf]
        %v407 = vld [vmem:[%s372 + $0x88] sm:$0xf]
        %v408 = vld [vmem:[%s372 + $0x8c] sm:$0xf]
        %v409 = vld [vmem:[%s372 + $0x90] sm:$0xf]
        %v410 = vld [vmem:[%s372 + $0x94] sm:$0xf]
        %v411 = vld [vmem:[%s372 + $0x98] sm:$0xf]
        %v412 = vld [vmem:[%s372 + $0x9c] sm:$0xf]
        %v413 = vld [vmem:[%s372 + $0xa0] sm:$0xf]
        %v414 = vld [vmem:[%s372 + $0xa4] sm:$0xf]
        %v415 = vld [vmem:[%s372 + $0xa8] sm:$0xf]
        %v416 = vld [vmem:[%s372 + $0xac] sm:$0xf]
        %v417 = vld [vmem:[%s372 + $0xb0] sm:$0xf]
        %v418 = vld [vmem:[%s372 + $0xb4] sm:$0xf]
        %v419 = vld [vmem:[%s372 + $0xb8] sm:$0xf]
        %v420 = vld [vmem:[%s372 + $0xbc] sm:$0xf]
        %v421 = vunpack.c.l.bf16 %v373
        %v422 = vunpack.c.l.bf16 %v374
        %v423 = vunpack.c.l.bf16 %v375
        %v424 = vunpack.c.l.bf16 %v376
        %v425 = vunpack.c.l.bf16 %v377
        %v426 = vunpack.c.l.bf16 %v378
        %v427 = vunpack.c.l.bf16 %v379
        %v428 = vunpack.c.l.bf16 %v380
        %v429 = vunpack.c.l.bf16 %v381
        %v430 = vunpack.c.l.bf16 %v382
        %v431 = vunpack.c.l.bf16 %v383
        %v432 = vunpack.c.l.bf16 %v384
        %v433 = vunpack.c.l.bf16 %v385
        %v434 = vunpack.c.l.bf16 %v386
        %v435 = vunpack.c.l.bf16 %v387
        %v436 = vunpack.c.l.bf16 %v388
        %v437 = vunpack.c.l.bf16 %v389
        %v438 = vunpack.c.l.bf16 %v390
        %v439 = vunpack.c.l.bf16 %v391
        %v440 = vunpack.c.l.bf16 %v392
        %v441 = vunpack.c.l.bf16 %v393
        %v442 = vunpack.c.l.bf16 %v394
        %v443 = vunpack.c.l.bf16 %v395
        %v444 = vunpack.c.l.bf16 %v396
        %v445 = vunpack.c.l.bf16 %v397
        %v446 = vunpack.c.l.bf16 %v398
        %v447 = vunpack.c.l.bf16 %v399
        %v448 = vunpack.c.l.bf16 %v400
        %v449 = vunpack.c.l.bf16 %v401
        %v450 = vunpack.c.l.bf16 %v402
        %v451 = vunpack.c.l.bf16 %v403
        %v452 = vunpack.c.l.bf16 %v404
        %v453 = vunpack.c.l.bf16 %v405
        %v454 = vunpack.c.l.bf16 %v406
        %v455 = vunpack.c.l.bf16 %v407
        %v456 = vunpack.c.l.bf16 %v408
        %v457 = vunpack.c.l.bf16 %v409
        %v458 = vunpack.c.l.bf16 %v410
        %v459 = vunpack.c.l.bf16 %v411
        %v460 = vunpack.c.l.bf16 %v412
        %v461 = vunpack.c.l.bf16 %v413
        %v462 = vunpack.c.l.bf16 %v414
        %v463 = vunpack.c.l.bf16 %v415
        %v464 = vunpack.c.l.bf16 %v416
        %v465 = vunpack.c.l.bf16 %v417
        %v466 = vunpack.c.l.bf16 %v418
        %v467 = vunpack.c.l.bf16 %v419
        %v468 = vunpack.c.l.bf16 %v420
        %v469 = vld [vmem:[%s1] sm:$0xff]
        %v470 = vld [vmem:[%s1 + $0x8] sm:$0xff]
        %v471 = vld [vmem:[%s1 + $0x10] sm:$0xff]
        %v472 = vld [vmem:[%s1 + $0x18] sm:$0xff]
        %v473 = vld [vmem:[%s1 + $0x20] sm:$0xff]
        %v474 = vld [vmem:[%s1 + $0x28] sm:$0xff]
        %v475 = vld [vmem:[%s1 + $0x30] sm:$0xff]
        %v476 = vld [vmem:[%s1 + $0x38] sm:$0xff]
        %v477 = vld [vmem:[%s1 + $0x40] sm:$0xff]
        %v478 = vld [vmem:[%s1 + $0x48] sm:$0xff]
        %v479 = vld [vmem:[%s1 + $0x50] sm:$0xff]
        %v480 = vld [vmem:[%s1 + $0x58] sm:$0xff]
        %v481 = vld [vmem:[%s1 + $0x60] sm:$0xff]
        %v482 = vld [vmem:[%s1 + $0x68] sm:$0xff]
        %v483 = vld [vmem:[%s1 + $0x70] sm:$0xff]
        %v484 = vld [vmem:[%s1 + $0x78] sm:$0xff]
        %v485 = vmul.f32 %v421, %v469
        %v486 = vmul.f32 %v422, %v470
        %v487 = vmul.f32 %v423, %v471
        %v488 = vmul.f32 %v424, %v472
        %v489 = vmul.f32 %v425, %v473
        %v490 = vmul.f32 %v426, %v474
        %v491 = vmul.f32 %v427, %v475
        %v492 = vmul.f32 %v428, %v476
        %v493 = vmul.f32 %v429, %v477
        %v494 = vmul.f32 %v430, %v478
        %v495 = vmul.f32 %v431, %v479
        %v496 = vmul.f32 %v432, %v480
        %v497 = vmul.f32 %v433, %v481
        %v498 = vmul.f32 %v434, %v482
        %v499 = vmul.f32 %v435, %v483
        %v500 = vmul.f32 %v436, %v484
        %v501 = vadd.f32 %v485, 0.0
        %v502 = vadd.f32 %v486, 0.0
        %v503 = vadd.f32 %v487, 0.0
        %v504 = vadd.f32 %v488, 0.0
        %v505 = vadd.f32 %v489, 0.0
        %v506 = vadd.f32 %v490, 0.0
        %v507 = vadd.f32 %v491, 0.0
        %v508 = vadd.f32 %v492, 0.0
        %v509 = vadd.f32 %v493, 0.0
        %v510 = vadd.f32 %v494, 0.0
        %v511 = vadd.f32 %v495, 0.0
        %v512 = vadd.f32 %v496, 0.0
        %v513 = vadd.f32 %v497, 0.0
        %v514 = vadd.f32 %v498, 0.0
        %v515 = vadd.f32 %v499, 0.0
        %v516 = vadd.f32 %v500, 0.0
        %s517 = scalar_lea.vmem %s1, 128
        %v518 = vld [vmem:[%s517] sm:$0xff]
        %v519 = vld [vmem:[%s517 + $0x8] sm:$0xff]
        %v520 = vld [vmem:[%s517 + $0x10] sm:$0xff]
        %v521 = vld [vmem:[%s517 + $0x18] sm:$0xff]
        %v522 = vld [vmem:[%s517 + $0x20] sm:$0xff]
        %v523 = vld [vmem:[%s517 + $0x28] sm:$0xff]
        %v524 = vld [vmem:[%s517 + $0x30] sm:$0xff]
        %v525 = vld [vmem:[%s517 + $0x38] sm:$0xff]
        %v526 = vld [vmem:[%s517 + $0x40] sm:$0xff]
        %v527 = vld [vmem:[%s517 + $0x48] sm:$0xff]
        %v528 = vld [vmem:[%s517 + $0x50] sm:$0xff]
        %v529 = vld [vmem:[%s517 + $0x58] sm:$0xff]
        %v530 = vld [vmem:[%s517 + $0x60] sm:$0xff]
        %v531 = vld [vmem:[%s517 + $0x68] sm:$0xff]
        %v532 = vld [vmem:[%s517 + $0x70] sm:$0xff]
        %v533 = vld [vmem:[%s517 + $0x78] sm:$0xff]
        %550 = vrot.lane.b32.xlu0 %v518, 1
        %v551 = vpop.permute.xlu0 %550
        %552 = vrot.lane.b32.xlu0 %v519, 1
        %v553 = vpop.permute.xlu0 %552
        %554 = vrot.lane.b32.xlu0 %v520, 1
        %v555 = vpop.permute.xlu0 %554
        %556 = vrot.lane.b32.xlu0 %v521, 1
        %v557 = vpop.permute.xlu0 %556
        %558 = vrot.lane.b32.xlu0 %v522, 1
        %v559 = vpop.permute.xlu0 %558
        %560 = vrot.lane.b32.xlu0 %v523, 1
        %v561 = vpop.permute.xlu0 %560
        %562 = vrot.lane.b32.xlu0 %v524, 1
        %v563 = vpop.permute.xlu0 %562
        %564 = vrot.lane.b32.xlu0 %v525, 1
        %v565 = vpop.permute.xlu0 %564
        %566 = vrot.lane.b32.xlu0 %v526, 1
        %v567 = vpop.permute.xlu0 %566
        %568 = vrot.lane.b32.xlu0 %v527, 1
        %v569 = vpop.permute.xlu0 %568
        %570 = vrot.lane.b32.xlu0 %v528, 1
        %v571 = vpop.permute.xlu0 %570
        %572 = vrot.lane.b32.xlu0 %v529, 1
        %v573 = vpop.permute.xlu0 %572
        %574 = vrot.lane.b32.xlu0 %v530, 1
        %v575 = vpop.permute.xlu0 %574
        %576 = vrot.lane.b32.xlu0 %v531, 1
        %v577 = vpop.permute.xlu0 %576
        %578 = vrot.lane.b32.xlu0 %v532, 1
        %v579 = vpop.permute.xlu0 %578
        %580 = vrot.lane.b32.xlu0 %v533, 1
        %v581 = vpop.permute.xlu0 %580
        %v598 = vmul.f32 %v421, %v551
        %v599 = vmul.f32 %v422, %v553
        %v600 = vmul.f32 %v423, %v555
        %v601 = vmul.f32 %v424, %v557
        %v602 = vmul.f32 %v425, %v559
        %v603 = vmul.f32 %v426, %v561
        %v604 = vmul.f32 %v427, %v563
        %v605 = vmul.f32 %v428, %v565
        %v606 = vmul.f32 %v429, %v567
        %v607 = vmul.f32 %v430, %v569
        %v608 = vmul.f32 %v431, %v571
        %v609 = vmul.f32 %v432, %v573
        %v610 = vmul.f32 %v433, %v575
        %v611 = vmul.f32 %v434, %v577
        %v612 = vmul.f32 %v435, %v579
        %v613 = vmul.f32 %v436, %v581
        %630 = vrot.lane.b32.xlu0 %v598, 127
        %v631 = vpop.permute.xlu0 %630
        %632 = vrot.lane.b32.xlu0 %v599, 127
        %v633 = vpop.permute.xlu0 %632
        %634 = vrot.lane.b32.xlu0 %v600, 127
        %v635 = vpop.permute.xlu0 %634
        %636 = vrot.lane.b32.xlu0 %v601, 127
        %v637 = vpop.permute.xlu0 %636
        %638 = vrot.lane.b32.xlu0 %v602, 127
        %v639 = vpop.permute.xlu0 %638
        %640 = vrot.lane.b32.xlu0 %v603, 127
        %v641 = vpop.permute.xlu0 %640
        %642 = vrot.lane.b32.xlu0 %v604, 127
        %v643 = vpop.permute.xlu0 %642
        %644 = vrot.lane.b32.xlu0 %v605, 127
        %v645 = vpop.permute.xlu0 %644
        %646 = vrot.lane.b32.xlu0 %v606, 127
        %v647 = vpop.permute.xlu0 %646
        %648 = vrot.lane.b32.xlu0 %v607, 127
        %v649 = vpop.permute.xlu0 %648
        %650 = vrot.lane.b32.xlu0 %v608, 127
        %v651 = vpop.permute.xlu0 %650
        %652 = vrot.lane.b32.xlu0 %v609, 127
        %v653 = vpop.permute.xlu0 %652
        %654 = vrot.lane.b32.xlu0 %v610, 127
        %v655 = vpop.permute.xlu0 %654
        %656 = vrot.lane.b32.xlu0 %v611, 127
        %v657 = vpop.permute.xlu0 %656
        %658 = vrot.lane.b32.xlu0 %v612, 127
        %v659 = vpop.permute.xlu0 %658
        %660 = vrot.lane.b32.xlu0 %v613, 127
        %v661 = vpop.permute.xlu0 %660
        %v678 = vadd.f32 %v501, %v631
        %v679 = vadd.f32 %v502, %v633
        %v680 = vadd.f32 %v503, %v635
        %v681 = vadd.f32 %v504, %v637
        %v682 = vadd.f32 %v505, %v639
        %v683 = vadd.f32 %v506, %v641
        %v684 = vadd.f32 %v507, %v643
        %v685 = vadd.f32 %v508, %v645
        %v686 = vadd.f32 %v509, %v647
        %v687 = vadd.f32 %v510, %v649
        %v688 = vadd.f32 %v511, %v651
        %v689 = vadd.f32 %v512, %v653
        %v690 = vadd.f32 %v513, %v655
        %v691 = vadd.f32 %v514, %v657
        %v692 = vadd.f32 %v515, %v659
        %v693 = vadd.f32 %v516, %v661
        %s694 = scalar_lea.vmem %s1, 256
        %v695 = vld [vmem:[%s694] sm:$0xff]
        %v696 = vld [vmem:[%s694 + $0x8] sm:$0xff]
        %v697 = vld [vmem:[%s694 + $0x10] sm:$0xff]
        %v698 = vld [vmem:[%s694 + $0x18] sm:$0xff]
        %v699 = vld [vmem:[%s694 + $0x20] sm:$0xff]
        %v700 = vld [vmem:[%s694 + $0x28] sm:$0xff]
        %v701 = vld [vmem:[%s694 + $0x30] sm:$0xff]
        %v702 = vld [vmem:[%s694 + $0x38] sm:$0xff]
        %v703 = vld [vmem:[%s694 + $0x40] sm:$0xff]
        %v704 = vld [vmem:[%s694 + $0x48] sm:$0xff]
        %v705 = vld [vmem:[%s694 + $0x50] sm:$0xff]
        %v706 = vld [vmem:[%s694 + $0x58] sm:$0xff]
        %v707 = vld [vmem:[%s694 + $0x60] sm:$0xff]
        %v708 = vld [vmem:[%s694 + $0x68] sm:$0xff]
        %v709 = vld [vmem:[%s694 + $0x70] sm:$0xff]
        %v710 = vld [vmem:[%s694 + $0x78] sm:$0xff]
        %727 = vrot.lane.b32.xlu0 %v695, 2
        %v728 = vpop.permute.xlu0 %727
        %729 = vrot.lane.b32.xlu0 %v696, 2
        %v730 = vpop.permute.xlu0 %729
        %731 = vrot.lane.b32.xlu0 %v697, 2
        %v732 = vpop.permute.xlu0 %731
        %733 = vrot.lane.b32.xlu0 %v698, 2
        %v734 = vpop.permute.xlu0 %733
        %735 = vrot.lane.b32.xlu0 %v699, 2
        %v736 = vpop.permute.xlu0 %735
        %737 = vrot.lane.b32.xlu0 %v700, 2
        %v738 = vpop.permute.xlu0 %737
        %739 = vrot.lane.b32.xlu0 %v701, 2
        %v740 = vpop.permute.xlu0 %739
        %741 = vrot.lane.b32.xlu0 %v702, 2
        %v742 = vpop.permute.xlu0 %741
        %743 = vrot.lane.b32.xlu0 %v703, 2
        %v744 = vpop.permute.xlu0 %743
        %745 = vrot.lane.b32.xlu0 %v704, 2
        %v746 = vpop.permute.xlu0 %745
        %747 = vrot.lane.b32.xlu0 %v705, 2
        %v748 = vpop.permute.xlu0 %747
        %749 = vrot.lane.b32.xlu0 %v706, 2
        %v750 = vpop.permute.xlu0 %749
        %751 = vrot.lane.b32.xlu0 %v707, 2
        %v752 = vpop.permute.xlu0 %751
        %753 = vrot.lane.b32.xlu0 %v708, 2
        %v754 = vpop.permute.xlu0 %753
        %755 = vrot.lane.b32.xlu0 %v709, 2
        %v756 = vpop.permute.xlu0 %755
        %757 = vrot.lane.b32.xlu0 %v710, 2
        %v758 = vpop.permute.xlu0 %757
        %v775 = vmul.f32 %v421, %v728
        %v776 = vmul.f32 %v422, %v730
        %v777 = vmul.f32 %v423, %v732
        %v778 = vmul.f32 %v424, %v734
        %v779 = vmul.f32 %v425, %v736
        %v780 = vmul.f32 %v426, %v738
        %v781 = vmul.f32 %v427, %v740
        %v782 = vmul.f32 %v428, %v742
        %v783 = vmul.f32 %v429, %v744
        %v784 = vmul.f32 %v430, %v746
        %v785 = vmul.f32 %v431, %v748
        %v786 = vmul.f32 %v432, %v750
        %v787 = vmul.f32 %v433, %v752
        %v788 = vmul.f32 %v434, %v754
        %v789 = vmul.f32 %v435, %v756
        %v790 = vmul.f32 %v436, %v758
        %807 = vrot.lane.b32.xlu0 %v775, 126
        %v808 = vpop.permute.xlu0 %807
        %809 = vrot.lane.b32.xlu0 %v776, 126
        %v810 = vpop.permute.xlu0 %809
        %811 = vrot.lane.b32.xlu0 %v777, 126
        %v812 = vpop.permute.xlu0 %811
        %813 = vrot.lane.b32.xlu0 %v778, 126
        %v814 = vpop.permute.xlu0 %813
        %815 = vrot.lane.b32.xlu0 %v779, 126
        %v816 = vpop.permute.xlu0 %815
        %817 = vrot.lane.b32.xlu0 %v780, 126
        %v818 = vpop.permute.xlu0 %817
        %819 = vrot.lane.b32.xlu0 %v781, 126
        %v820 = vpop.permute.xlu0 %819
        %821 = vrot.lane.b32.xlu0 %v782, 126
        %v822 = vpop.permute.xlu0 %821
        %823 = vrot.lane.b32.xlu0 %v783, 126
        %v824 = vpop.permute.xlu0 %823
        %825 = vrot.lane.b32.xlu0 %v784, 126
        %v826 = vpop.permute.xlu0 %825
        %827 = vrot.lane.b32.xlu0 %v785, 126
        %v828 = vpop.permute.xlu0 %827
        %829 = vrot.lane.b32.xlu0 %v786, 126
        %v830 = vpop.permute.xlu0 %829
        %831 = vrot.lane.b32.xlu0 %v787, 126
        %v832 = vpop.permute.xlu0 %831
        %833 = vrot.lane.b32.xlu0 %v788, 126
        %v834 = vpop.permute.xlu0 %833
        %835 = vrot.lane.b32.xlu0 %v789, 126
        %v836 = vpop.permute.xlu0 %835
        %837 = vrot.lane.b32.xlu0 %v790, 126
        %v838 = vpop.permute.xlu0 %837
        %v855 = vadd.f32 %v678, %v808
        %v856 = vadd.f32 %v679, %v810
        %v857 = vadd.f32 %v680, %v812
        %v858 = vadd.f32 %v681, %v814
        %v859 = vadd.f32 %v682, %v816
        %v860 = vadd.f32 %v683, %v818
        %v861 = vadd.f32 %v684, %v820
        %v862 = vadd.f32 %v685, %v822
        %v863 = vadd.f32 %v686, %v824
        %v864 = vadd.f32 %v687, %v826
        %v865 = vadd.f32 %v688, %v828
        %v866 = vadd.f32 %v689, %v830
        %v867 = vadd.f32 %v690, %v832
        %v868 = vadd.f32 %v691, %v834
        %v869 = vadd.f32 %v692, %v836
        %v870 = vadd.f32 %v693, %v838
        %s871 = scalar_lea.vmem %s1, 384
        %v872 = vld [vmem:[%s871] sm:$0xff]
        %v873 = vld [vmem:[%s871 + $0x8] sm:$0xff]
        %v874 = vld [vmem:[%s871 + $0x10] sm:$0xff]
        %v875 = vld [vmem:[%s871 + $0x18] sm:$0xff]
        %v876 = vld [vmem:[%s871 + $0x20] sm:$0xff]
        %v877 = vld [vmem:[%s871 + $0x28] sm:$0xff]
        %v878 = vld [vmem:[%s871 + $0x30] sm:$0xff]
        %v879 = vld [vmem:[%s871 + $0x38] sm:$0xff]
        %v880 = vld [vmem:[%s871 + $0x40] sm:$0xff]
        %v881 = vld [vmem:[%s871 + $0x48] sm:$0xff]
        %v882 = vld [vmem:[%s871 + $0x50] sm:$0xff]
        %v883 = vld [vmem:[%s871 + $0x58] sm:$0xff]
        %v884 = vld [vmem:[%s871 + $0x60] sm:$0xff]
        %v885 = vld [vmem:[%s871 + $0x68] sm:$0xff]
        %v886 = vld [vmem:[%s871 + $0x70] sm:$0xff]
        %v887 = vld [vmem:[%s871 + $0x78] sm:$0xff]
        %v888 = vmul.f32 %v437, %v872
        %v889 = vmul.f32 %v438, %v873
        %v890 = vmul.f32 %v439, %v874
        %v891 = vmul.f32 %v440, %v875
        %v892 = vmul.f32 %v441, %v876
        %v893 = vmul.f32 %v442, %v877
        %v894 = vmul.f32 %v443, %v878
        %v895 = vmul.f32 %v444, %v879
        %v896 = vmul.f32 %v445, %v880
        %v897 = vmul.f32 %v446, %v881
        %v898 = vmul.f32 %v447, %v882
        %v899 = vmul.f32 %v448, %v883
        %v900 = vmul.f32 %v449, %v884
        %v901 = vmul.f32 %v450, %v885
        %v902 = vmul.f32 %v451, %v886
        %v903 = vmul.f32 %v452, %v887
        %v904 = vadd.f32 %v855, %v888
        %v905 = vadd.f32 %v856, %v889
        %v906 = vadd.f32 %v857, %v890
        %v907 = vadd.f32 %v858, %v891
        %v908 = vadd.f32 %v859, %v892
        %v909 = vadd.f32 %v860, %v893
        %v910 = vadd.f32 %v861, %v894
        %v911 = vadd.f32 %v862, %v895
        %v912 = vadd.f32 %v863, %v896
        %v913 = vadd.f32 %v864, %v897
        %v914 = vadd.f32 %v865, %v898
        %v915 = vadd.f32 %v866, %v899
        %v916 = vadd.f32 %v867, %v900
        %v917 = vadd.f32 %v868, %v901
        %v918 = vadd.f32 %v869, %v902
        %v919 = vadd.f32 %v870, %v903
        %s920 = scalar_lea.vmem %s1, 512
        %v921 = vld [vmem:[%s920] sm:$0xff]
        %v922 = vld [vmem:[%s920 + $0x8] sm:$0xff]
        %v923 = vld [vmem:[%s920 + $0x10] sm:$0xff]
        %v924 = vld [vmem:[%s920 + $0x18] sm:$0xff]
        %v925 = vld [vmem:[%s920 + $0x20] sm:$0xff]
        %v926 = vld [vmem:[%s920 + $0x28] sm:$0xff]
        %v927 = vld [vmem:[%s920 + $0x30] sm:$0xff]
        %v928 = vld [vmem:[%s920 + $0x38] sm:$0xff]
        %v929 = vld [vmem:[%s920 + $0x40] sm:$0xff]
        %v930 = vld [vmem:[%s920 + $0x48] sm:$0xff]
        %v931 = vld [vmem:[%s920 + $0x50] sm:$0xff]
        %v932 = vld [vmem:[%s920 + $0x58] sm:$0xff]
        %v933 = vld [vmem:[%s920 + $0x60] sm:$0xff]
        %v934 = vld [vmem:[%s920 + $0x68] sm:$0xff]
        %v935 = vld [vmem:[%s920 + $0x70] sm:$0xff]
        %v936 = vld [vmem:[%s920 + $0x78] sm:$0xff]
        %953 = vrot.lane.b32.xlu0 %v921, 1
        %v954 = vpop.permute.xlu0 %953
        %955 = vrot.lane.b32.xlu0 %v922, 1
        %v956 = vpop.permute.xlu0 %955
        %957 = vrot.lane.b32.xlu0 %v923, 1
        %v958 = vpop.permute.xlu0 %957
        %959 = vrot.lane.b32.xlu0 %v924, 1
        %v960 = vpop.permute.xlu0 %959
        %961 = vrot.lane.b32.xlu0 %v925, 1
        %v962 = vpop.permute.xlu0 %961
        %963 = vrot.lane.b32.xlu0 %v926, 1
        %v964 = vpop.permute.xlu0 %963
        %965 = vrot.lane.b32.xlu0 %v927, 1
        %v966 = vpop.permute.xlu0 %965
        %967 = vrot.lane.b32.xlu0 %v928, 1
        %v968 = vpop.permute.xlu0 %967
        %969 = vrot.lane.b32.xlu0 %v929, 1
        %v970 = vpop.permute.xlu0 %969
        %971 = vrot.lane.b32.xlu0 %v930, 1
        %v972 = vpop.permute.xlu0 %971
        %973 = vrot.lane.b32.xlu0 %v931, 1
        %v974 = vpop.permute.xlu0 %973
        %975 = vrot.lane.b32.xlu0 %v932, 1
        %v976 = vpop.permute.xlu0 %975
        %977 = vrot.lane.b32.xlu0 %v933, 1
        %v978 = vpop.permute.xlu0 %977
        %979 = vrot.lane.b32.xlu0 %v934, 1
        %v980 = vpop.permute.xlu0 %979
        %981 = vrot.lane.b32.xlu0 %v935, 1
        %v982 = vpop.permute.xlu0 %981
        %983 = vrot.lane.b32.xlu0 %v936, 1
        %v984 = vpop.permute.xlu0 %983
        %v1001 = vmul.f32 %v437, %v954
        %v1002 = vmul.f32 %v438, %v956
        %v1003 = vmul.f32 %v439, %v958
        %v1004 = vmul.f32 %v440, %v960
        %v1005 = vmul.f32 %v441, %v962
        %v1006 = vmul.f32 %v442, %v964
        %v1007 = vmul.f32 %v443, %v966
        %v1008 = vmul.f32 %v444, %v968
        %v1009 = vmul.f32 %v445, %v970
        %v1010 = vmul.f32 %v446, %v972
        %v1011 = vmul.f32 %v447, %v974
        %v1012 = vmul.f32 %v448, %v976
        %v1013 = vmul.f32 %v449, %v978
        %v1014 = vmul.f32 %v450, %v980
        %v1015 = vmul.f32 %v451, %v982
        %v1016 = vmul.f32 %v452, %v984
        %1033 = vrot.lane.b32.xlu0 %v1001, 127
        %v1034 = vpop.permute.xlu0 %1033
        %1035 = vrot.lane.b32.xlu0 %v1002, 127
        %v1036 = vpop.permute.xlu0 %1035
        %1037 = vrot.lane.b32.xlu0 %v1003, 127
        %v1038 = vpop.permute.xlu0 %1037
        %1039 = vrot.lane.b32.xlu0 %v1004, 127
        %v1040 = vpop.permute.xlu0 %1039
        %1041 = vrot.lane.b32.xlu0 %v1005, 127
        %v1042 = vpop.permute.xlu0 %1041
        %1043 = vrot.lane.b32.xlu0 %v1006, 127
        %v1044 = vpop.permute.xlu0 %1043
        %1045 = vrot.lane.b32.xlu0 %v1007, 127
        %v1046 = vpop.permute.xlu0 %1045
        %1047 = vrot.lane.b32.xlu0 %v1008, 127
        %v1048 = vpop.permute.xlu0 %1047
        %1049 = vrot.lane.b32.xlu0 %v1009, 127
        %v1050 = vpop.permute.xlu0 %1049
        %1051 = vrot.lane.b32.xlu0 %v1010, 127
        %v1052 = vpop.permute.xlu0 %1051
        %1053 = vrot.lane.b32.xlu0 %v1011, 127
        %v1054 = vpop.permute.xlu0 %1053
        %1055 = vrot.lane.b32.xlu0 %v1012, 127
        %v1056 = vpop.permute.xlu0 %1055
        %1057 = vrot.lane.b32.xlu0 %v1013, 127
        %v1058 = vpop.permute.xlu0 %1057
        %1059 = vrot.lane.b32.xlu0 %v1014, 127
        %v1060 = vpop.permute.xlu0 %1059
        %1061 = vrot.lane.b32.xlu0 %v1015, 127
        %v1062 = vpop.permute.xlu0 %1061
        %1063 = vrot.lane.b32.xlu0 %v1016, 127
        %v1064 = vpop.permute.xlu0 %1063
        %v1081 = vadd.f32 %v904, %v1034
        %v1082 = vadd.f32 %v905, %v1036
        %v1083 = vadd.f32 %v906, %v1038
        %v1084 = vadd.f32 %v907, %v1040
        %v1085 = vadd.f32 %v908, %v1042
        %v1086 = vadd.f32 %v909, %v1044
        %v1087 = vadd.f32 %v910, %v1046
        %v1088 = vadd.f32 %v911, %v1048
        %v1089 = vadd.f32 %v912, %v1050
        %v1090 = vadd.f32 %v913, %v1052
        %v1091 = vadd.f32 %v914, %v1054
        %v1092 = vadd.f32 %v915, %v1056
        %v1093 = vadd.f32 %v916, %v1058
        %v1094 = vadd.f32 %v917, %v1060
        %v1095 = vadd.f32 %v918, %v1062
        %v1096 = vadd.f32 %v919, %v1064
        %s1097 = scalar_lea.vmem %s1, 640
        %v1098 = vld [vmem:[%s1097] sm:$0xff]
        %v1099 = vld [vmem:[%s1097 + $0x8] sm:$0xff]
        %v1100 = vld [vmem:[%s1097 + $0x10] sm:$0xff]
        %v1101 = vld [vmem:[%s1097 + $0x18] sm:$0xff]
        %v1102 = vld [vmem:[%s1097 + $0x20] sm:$0xff]
        %v1103 = vld [vmem:[%s1097 + $0x28] sm:$0xff]
        %v1104 = vld [vmem:[%s1097 + $0x30] sm:$0xff]
        %v1105 = vld [vmem:[%s1097 + $0x38] sm:$0xff]
        %v1106 = vld [vmem:[%s1097 + $0x40] sm:$0xff]
        %v1107 = vld [vmem:[%s1097 + $0x48] sm:$0xff]
        %v1108 = vld [vmem:[%s1097 + $0x50] sm:$0xff]
        %v1109 = vld [vmem:[%s1097 + $0x58] sm:$0xff]
        %v1110 = vld [vmem:[%s1097 + $0x60] sm:$0xff]
        %v1111 = vld [vmem:[%s1097 + $0x68] sm:$0xff]
        %v1112 = vld [vmem:[%s1097 + $0x70] sm:$0xff]
        %v1113 = vld [vmem:[%s1097 + $0x78] sm:$0xff]
        %1130 = vrot.lane.b32.xlu0 %v1098, 2
        %v1131 = vpop.permute.xlu0 %1130
        %1132 = vrot.lane.b32.xlu0 %v1099, 2
        %v1133 = vpop.permute.xlu0 %1132
        %1134 = vrot.lane.b32.xlu0 %v1100, 2
        %v1135 = vpop.permute.xlu0 %1134
        %1136 = vrot.lane.b32.xlu0 %v1101, 2
        %v1137 = vpop.permute.xlu0 %1136
        %1138 = vrot.lane.b32.xlu0 %v1102, 2
        %v1139 = vpop.permute.xlu0 %1138
        %1140 = vrot.lane.b32.xlu0 %v1103, 2
        %v1141 = vpop.permute.xlu0 %1140
        %1142 = vrot.lane.b32.xlu0 %v1104, 2
        %v1143 = vpop.permute.xlu0 %1142
        %1144 = vrot.lane.b32.xlu0 %v1105, 2
        %v1145 = vpop.permute.xlu0 %1144
        %1146 = vrot.lane.b32.xlu0 %v1106, 2
        %v1147 = vpop.permute.xlu0 %1146
        %1148 = vrot.lane.b32.xlu0 %v1107, 2
        %v1149 = vpop.permute.xlu0 %1148
        %1150 = vrot.lane.b32.xlu0 %v1108, 2
        %v1151 = vpop.permute.xlu0 %1150
        %1152 = vrot.lane.b32.xlu0 %v1109, 2
        %v1153 = vpop.permute.xlu0 %1152
        %1154 = vrot.lane.b32.xlu0 %v1110, 2
        %v1155 = vpop.permute.xlu0 %1154
        %1156 = vrot.lane.b32.xlu0 %v1111, 2
        %v1157 = vpop.permute.xlu0 %1156
        %1158 = vrot.lane.b32.xlu0 %v1112, 2
        %v1159 = vpop.permute.xlu0 %1158
        %1160 = vrot.lane.b32.xlu0 %v1113, 2
        %v1161 = vpop.permute.xlu0 %1160
        %v1178 = vmul.f32 %v437, %v1131
        %v1179 = vmul.f32 %v438, %v1133
        %v1180 = vmul.f32 %v439, %v1135
        %v1181 = vmul.f32 %v440, %v1137
        %v1182 = vmul.f32 %v441, %v1139
        %v1183 = vmul.f32 %v442, %v1141
        %v1184 = vmul.f32 %v443, %v1143
        %v1185 = vmul.f32 %v444, %v1145
        %v1186 = vmul.f32 %v445, %v1147
        %v1187 = vmul.f32 %v446, %v1149
        %v1188 = vmul.f32 %v447, %v1151
        %v1189 = vmul.f32 %v448, %v1153
        %v1190 = vmul.f32 %v449, %v1155
        %v1191 = vmul.f32 %v450, %v1157
        %v1192 = vmul.f32 %v451, %v1159
        %v1193 = vmul.f32 %v452, %v1161
        %1210 = vrot.lane.b32.xlu0 %v1178, 126
        %v1211 = vpop.permute.xlu0 %1210
        %1212 = vrot.lane.b32.xlu0 %v1179, 126
        %v1213 = vpop.permute.xlu0 %1212
        %1214 = vrot.lane.b32.xlu0 %v1180, 126
        %v1215 = vpop.permute.xlu0 %1214
        %1216 = vrot.lane.b32.xlu0 %v1181, 126
        %v1217 = vpop.permute.xlu0 %1216
        %1218 = vrot.lane.b32.xlu0 %v1182, 126
        %v1219 = vpop.permute.xlu0 %1218
        %1220 = vrot.lane.b32.xlu0 %v1183, 126
        %v1221 = vpop.permute.xlu0 %1220
        %1222 = vrot.lane.b32.xlu0 %v1184, 126
        %v1223 = vpop.permute.xlu0 %1222
        %1224 = vrot.lane.b32.xlu0 %v1185, 126
        %v1225 = vpop.permute.xlu0 %1224
        %1226 = vrot.lane.b32.xlu0 %v1186, 126
        %v1227 = vpop.permute.xlu0 %1226
        %1228 = vrot.lane.b32.xlu0 %v1187, 126
        %v1229 = vpop.permute.xlu0 %1228
        %1230 = vrot.lane.b32.xlu0 %v1188, 126
        %v1231 = vpop.permute.xlu0 %1230
        %1232 = vrot.lane.b32.xlu0 %v1189, 126
        %v1233 = vpop.permute.xlu0 %1232
        %1234 = vrot.lane.b32.xlu0 %v1190, 126
        %v1235 = vpop.permute.xlu0 %1234
        %1236 = vrot.lane.b32.xlu0 %v1191, 126
        %v1237 = vpop.permute.xlu0 %1236
        %1238 = vrot.lane.b32.xlu0 %v1192, 126
        %v1239 = vpop.permute.xlu0 %1238
        %1240 = vrot.lane.b32.xlu0 %v1193, 126
        %v1241 = vpop.permute.xlu0 %1240
        %v1258 = vadd.f32 %v1081, %v1211
        %v1259 = vadd.f32 %v1082, %v1213
        %v1260 = vadd.f32 %v1083, %v1215
        %v1261 = vadd.f32 %v1084, %v1217
        %v1262 = vadd.f32 %v1085, %v1219
        %v1263 = vadd.f32 %v1086, %v1221
        %v1264 = vadd.f32 %v1087, %v1223
        %v1265 = vadd.f32 %v1088, %v1225
        %v1266 = vadd.f32 %v1089, %v1227
        %v1267 = vadd.f32 %v1090, %v1229
        %v1268 = vadd.f32 %v1091, %v1231
        %v1269 = vadd.f32 %v1092, %v1233
        %v1270 = vadd.f32 %v1093, %v1235
        %v1271 = vadd.f32 %v1094, %v1237
        %v1272 = vadd.f32 %v1095, %v1239
        %v1273 = vadd.f32 %v1096, %v1241
        %s1274 = scalar_lea.vmem %s1, 768
        %v1275 = vld [vmem:[%s1274] sm:$0xff]
        %v1276 = vld [vmem:[%s1274 + $0x8] sm:$0xff]
        %v1277 = vld [vmem:[%s1274 + $0x10] sm:$0xff]
        %v1278 = vld [vmem:[%s1274 + $0x18] sm:$0xff]
        %v1279 = vld [vmem:[%s1274 + $0x20] sm:$0xff]
        %v1280 = vld [vmem:[%s1274 + $0x28] sm:$0xff]
        %v1281 = vld [vmem:[%s1274 + $0x30] sm:$0xff]
        %v1282 = vld [vmem:[%s1274 + $0x38] sm:$0xff]
        %v1283 = vld [vmem:[%s1274 + $0x40] sm:$0xff]
        %v1284 = vld [vmem:[%s1274 + $0x48] sm:$0xff]
        %v1285 = vld [vmem:[%s1274 + $0x50] sm:$0xff]
        %v1286 = vld [vmem:[%s1274 + $0x58] sm:$0xff]
        %v1287 = vld [vmem:[%s1274 + $0x60] sm:$0xff]
        %v1288 = vld [vmem:[%s1274 + $0x68] sm:$0xff]
        %v1289 = vld [vmem:[%s1274 + $0x70] sm:$0xff]
        %v1290 = vld [vmem:[%s1274 + $0x78] sm:$0xff]
        %v1291 = vmul.f32 %v453, %v1275
        %v1292 = vmul.f32 %v454, %v1276
        %v1293 = vmul.f32 %v455, %v1277
        %v1294 = vmul.f32 %v456, %v1278
        %v1295 = vmul.f32 %v457, %v1279
        %v1296 = vmul.f32 %v458, %v1280
        %v1297 = vmul.f32 %v459, %v1281
        %v1298 = vmul.f32 %v460, %v1282
        %v1299 = vmul.f32 %v461, %v1283
        %v1300 = vmul.f32 %v462, %v1284
        %v1301 = vmul.f32 %v463, %v1285
        %v1302 = vmul.f32 %v464, %v1286
        %v1303 = vmul.f32 %v465, %v1287
        %v1304 = vmul.f32 %v466, %v1288
        %v1305 = vmul.f32 %v467, %v1289
        %v1306 = vmul.f32 %v468, %v1290
        %v1307 = vadd.f32 %v1258, %v1291
        %v1308 = vadd.f32 %v1259, %v1292
        %v1309 = vadd.f32 %v1260, %v1293
        %v1310 = vadd.f32 %v1261, %v1294
        %v1311 = vadd.f32 %v1262, %v1295
        %v1312 = vadd.f32 %v1263, %v1296
        %v1313 = vadd.f32 %v1264, %v1297
        %v1314 = vadd.f32 %v1265, %v1298
        %v1315 = vadd.f32 %v1266, %v1299
        %v1316 = vadd.f32 %v1267, %v1300
        %v1317 = vadd.f32 %v1268, %v1301
        %v1318 = vadd.f32 %v1269, %v1302
        %v1319 = vadd.f32 %v1270, %v1303
        %v1320 = vadd.f32 %v1271, %v1304
        %v1321 = vadd.f32 %v1272, %v1305
        %v1322 = vadd.f32 %v1273, %v1306
        %s1323 = scalar_lea.vmem %s1, 896
        %v1324 = vld [vmem:[%s1323] sm:$0xff]
        %v1325 = vld [vmem:[%s1323 + $0x8] sm:$0xff]
        %v1326 = vld [vmem:[%s1323 + $0x10] sm:$0xff]
        %v1327 = vld [vmem:[%s1323 + $0x18] sm:$0xff]
        %v1328 = vld [vmem:[%s1323 + $0x20] sm:$0xff]
        %v1329 = vld [vmem:[%s1323 + $0x28] sm:$0xff]
        %v1330 = vld [vmem:[%s1323 + $0x30] sm:$0xff]
        %v1331 = vld [vmem:[%s1323 + $0x38] sm:$0xff]
        %v1332 = vld [vmem:[%s1323 + $0x40] sm:$0xff]
        %v1333 = vld [vmem:[%s1323 + $0x48] sm:$0xff]
        %v1334 = vld [vmem:[%s1323 + $0x50] sm:$0xff]
        %v1335 = vld [vmem:[%s1323 + $0x58] sm:$0xff]
        %v1336 = vld [vmem:[%s1323 + $0x60] sm:$0xff]
        %v1337 = vld [vmem:[%s1323 + $0x68] sm:$0xff]
        %v1338 = vld [vmem:[%s1323 + $0x70] sm:$0xff]
        %v1339 = vld [vmem:[%s1323 + $0x78] sm:$0xff]
        %1356 = vrot.lane.b32.xlu0 %v1324, 1
        %v1357 = vpop.permute.xlu0 %1356
        %1358 = vrot.lane.b32.xlu0 %v1325, 1
        %v1359 = vpop.permute.xlu0 %1358
        %1360 = vrot.lane.b32.xlu0 %v1326, 1
        %v1361 = vpop.permute.xlu0 %1360
        %1362 = vrot.lane.b32.xlu0 %v1327, 1
        %v1363 = vpop.permute.xlu0 %1362
        %1364 = vrot.lane.b32.xlu0 %v1328, 1
        %v1365 = vpop.permute.xlu0 %1364
        %1366 = vrot.lane.b32.xlu0 %v1329, 1
        %v1367 = vpop.permute.xlu0 %1366
        %1368 = vrot.lane.b32.xlu0 %v1330, 1
        %v1369 = vpop.permute.xlu0 %1368
        %1370 = vrot.lane.b32.xlu0 %v1331, 1
        %v1371 = vpop.permute.xlu0 %1370
        %1372 = vrot.lane.b32.xlu0 %v1332, 1
        %v1373 = vpop.permute.xlu0 %1372
        %1374 = vrot.lane.b32.xlu0 %v1333, 1
        %v1375 = vpop.permute.xlu0 %1374
        %1376 = vrot.lane.b32.xlu0 %v1334, 1
        %v1377 = vpop.permute.xlu0 %1376
        %1378 = vrot.lane.b32.xlu0 %v1335, 1
        %v1379 = vpop.permute.xlu0 %1378
        %1380 = vrot.lane.b32.xlu0 %v1336, 1
        %v1381 = vpop.permute.xlu0 %1380
        %1382 = vrot.lane.b32.xlu0 %v1337, 1
        %v1383 = vpop.permute.xlu0 %1382
        %1384 = vrot.lane.b32.xlu0 %v1338, 1
        %v1385 = vpop.permute.xlu0 %1384
        %1386 = vrot.lane.b32.xlu0 %v1339, 1
        %v1387 = vpop.permute.xlu0 %1386
        %v1404 = vmul.f32 %v453, %v1357
        %v1405 = vmul.f32 %v454, %v1359
        %v1406 = vmul.f32 %v455, %v1361
        %v1407 = vmul.f32 %v456, %v1363
        %v1408 = vmul.f32 %v457, %v1365
        %v1409 = vmul.f32 %v458, %v1367
        %v1410 = vmul.f32 %v459, %v1369
        %v1411 = vmul.f32 %v460, %v1371
        %v1412 = vmul.f32 %v461, %v1373
        %v1413 = vmul.f32 %v462, %v1375
        %v1414 = vmul.f32 %v463, %v1377
        %v1415 = vmul.f32 %v464, %v1379
        %v1416 = vmul.f32 %v465, %v1381
        %v1417 = vmul.f32 %v466, %v1383
        %v1418 = vmul.f32 %v467, %v1385
        %v1419 = vmul.f32 %v468, %v1387
        %1436 = vrot.lane.b32.xlu0 %v1404, 127
        %v1437 = vpop.permute.xlu0 %1436
        %1438 = vrot.lane.b32.xlu0 %v1405, 127
        %v1439 = vpop.permute.xlu0 %1438
        %1440 = vrot.lane.b32.xlu0 %v1406, 127
        %v1441 = vpop.permute.xlu0 %1440
        %1442 = vrot.lane.b32.xlu0 %v1407, 127
        %v1443 = vpop.permute.xlu0 %1442
        %1444 = vrot.lane.b32.xlu0 %v1408, 127
        %v1445 = vpop.permute.xlu0 %1444
        %1446 = vrot.lane.b32.xlu0 %v1409, 127
        %v1447 = vpop.permute.xlu0 %1446
        %1448 = vrot.lane.b32.xlu0 %v1410, 127
        %v1449 = vpop.permute.xlu0 %1448
        %1450 = vrot.lane.b32.xlu0 %v1411, 127
        %v1451 = vpop.permute.xlu0 %1450
        %1452 = vrot.lane.b32.xlu0 %v1412, 127
        %v1453 = vpop.permute.xlu0 %1452
        %1454 = vrot.lane.b32.xlu0 %v1413, 127
        %v1455 = vpop.permute.xlu0 %1454
        %1456 = vrot.lane.b32.xlu0 %v1414, 127
        %v1457 = vpop.permute.xlu0 %1456
        %1458 = vrot.lane.b32.xlu0 %v1415, 127
        %v1459 = vpop.permute.xlu0 %1458
        %1460 = vrot.lane.b32.xlu0 %v1416, 127
        %v1461 = vpop.permute.xlu0 %1460
        %1462 = vrot.lane.b32.xlu0 %v1417, 127
        %v1463 = vpop.permute.xlu0 %1462
        %1464 = vrot.lane.b32.xlu0 %v1418, 127
        %v1465 = vpop.permute.xlu0 %1464
        %1466 = vrot.lane.b32.xlu0 %v1419, 127
        %v1467 = vpop.permute.xlu0 %1466
        %v1484 = vadd.f32 %v1307, %v1437
        %v1485 = vadd.f32 %v1308, %v1439
        %v1486 = vadd.f32 %v1309, %v1441
        %v1487 = vadd.f32 %v1310, %v1443
        %v1488 = vadd.f32 %v1311, %v1445
        %v1489 = vadd.f32 %v1312, %v1447
        %v1490 = vadd.f32 %v1313, %v1449
        %v1491 = vadd.f32 %v1314, %v1451
        %v1492 = vadd.f32 %v1315, %v1453
        %v1493 = vadd.f32 %v1316, %v1455
        %v1494 = vadd.f32 %v1317, %v1457
        %v1495 = vadd.f32 %v1318, %v1459
        %v1496 = vadd.f32 %v1319, %v1461
        %v1497 = vadd.f32 %v1320, %v1463
        %v1498 = vadd.f32 %v1321, %v1465
        %v1499 = vadd.f32 %v1322, %v1467
        %s1500 = scalar_lea.vmem %s1, 1024
        %v1501 = vld [vmem:[%s1500] sm:$0xff]
        %v1502 = vld [vmem:[%s1500 + $0x8] sm:$0xff]
        %v1503 = vld [vmem:[%s1500 + $0x10] sm:$0xff]
        %v1504 = vld [vmem:[%s1500 + $0x18] sm:$0xff]
        %v1505 = vld [vmem:[%s1500 + $0x20] sm:$0xff]
        %v1506 = vld [vmem:[%s1500 + $0x28] sm:$0xff]
        %v1507 = vld [vmem:[%s1500 + $0x30] sm:$0xff]
        %v1508 = vld [vmem:[%s1500 + $0x38] sm:$0xff]
        %v1509 = vld [vmem:[%s1500 + $0x40] sm:$0xff]
        %v1510 = vld [vmem:[%s1500 + $0x48] sm:$0xff]
        %v1511 = vld [vmem:[%s1500 + $0x50] sm:$0xff]
        %v1512 = vld [vmem:[%s1500 + $0x58] sm:$0xff]
        %v1513 = vld [vmem:[%s1500 + $0x60] sm:$0xff]
        %v1514 = vld [vmem:[%s1500 + $0x68] sm:$0xff]
        %v1515 = vld [vmem:[%s1500 + $0x70] sm:$0xff]
        %v1516 = vld [vmem:[%s1500 + $0x78] sm:$0xff]
        %1533 = vrot.lane.b32.xlu0 %v1501, 2
        %v1534 = vpop.permute.xlu0 %1533
        %1535 = vrot.lane.b32.xlu0 %v1502, 2
        %v1536 = vpop.permute.xlu0 %1535
        %1537 = vrot.lane.b32.xlu0 %v1503, 2
        %v1538 = vpop.permute.xlu0 %1537
        %1539 = vrot.lane.b32.xlu0 %v1504, 2
        %v1540 = vpop.permute.xlu0 %1539
        %1541 = vrot.lane.b32.xlu0 %v1505, 2
        %v1542 = vpop.permute.xlu0 %1541
        %1543 = vrot.lane.b32.xlu0 %v1506, 2
        %v1544 = vpop.permute.xlu0 %1543
        %1545 = vrot.lane.b32.xlu0 %v1507, 2
        %v1546 = vpop.permute.xlu0 %1545
        %1547 = vrot.lane.b32.xlu0 %v1508, 2
        %v1548 = vpop.permute.xlu0 %1547
        %1549 = vrot.lane.b32.xlu0 %v1509, 2
        %v1550 = vpop.permute.xlu0 %1549
        %1551 = vrot.lane.b32.xlu0 %v1510, 2
        %v1552 = vpop.permute.xlu0 %1551
        %1553 = vrot.lane.b32.xlu0 %v1511, 2
        %v1554 = vpop.permute.xlu0 %1553
        %1555 = vrot.lane.b32.xlu0 %v1512, 2
        %v1556 = vpop.permute.xlu0 %1555
        %1557 = vrot.lane.b32.xlu0 %v1513, 2
        %v1558 = vpop.permute.xlu0 %1557
        %1559 = vrot.lane.b32.xlu0 %v1514, 2
        %v1560 = vpop.permute.xlu0 %1559
        %1561 = vrot.lane.b32.xlu0 %v1515, 2
        %v1562 = vpop.permute.xlu0 %1561
        %1563 = vrot.lane.b32.xlu0 %v1516, 2
        %v1564 = vpop.permute.xlu0 %1563
        %v1581 = vmul.f32 %v453, %v1534
        %v1582 = vmul.f32 %v454, %v1536
        %v1583 = vmul.f32 %v455, %v1538
        %v1584 = vmul.f32 %v456, %v1540
        %v1585 = vmul.f32 %v457, %v1542
        %v1586 = vmul.f32 %v458, %v1544
        %v1587 = vmul.f32 %v459, %v1546
        %v1588 = vmul.f32 %v460, %v1548
        %v1589 = vmul.f32 %v461, %v1550
        %v1590 = vmul.f32 %v462, %v1552
        %v1591 = vmul.f32 %v463, %v1554
        %v1592 = vmul.f32 %v464, %v1556
        %v1593 = vmul.f32 %v465, %v1558
        %v1594 = vmul.f32 %v466, %v1560
        %v1595 = vmul.f32 %v467, %v1562
        %v1596 = vmul.f32 %v468, %v1564
        %1613 = vrot.lane.b32.xlu0 %v1581, 126
        %v1614 = vpop.permute.xlu0 %1613
        %1615 = vrot.lane.b32.xlu0 %v1582, 126
        %v1616 = vpop.permute.xlu0 %1615
        %1617 = vrot.lane.b32.xlu0 %v1583, 126
        %v1618 = vpop.permute.xlu0 %1617
        %1619 = vrot.lane.b32.xlu0 %v1584, 126
        %v1620 = vpop.permute.xlu0 %1619
        %1621 = vrot.lane.b32.xlu0 %v1585, 126
        %v1622 = vpop.permute.xlu0 %1621
        %1623 = vrot.lane.b32.xlu0 %v1586, 126
        %v1624 = vpop.permute.xlu0 %1623
        %1625 = vrot.lane.b32.xlu0 %v1587, 126
        %v1626 = vpop.permute.xlu0 %1625
        %1627 = vrot.lane.b32.xlu0 %v1588, 126
        %v1628 = vpop.permute.xlu0 %1627
        %1629 = vrot.lane.b32.xlu0 %v1589, 126
        %v1630 = vpop.permute.xlu0 %1629
        %1631 = vrot.lane.b32.xlu0 %v1590, 126
        %v1632 = vpop.permute.xlu0 %1631
        %1633 = vrot.lane.b32.xlu0 %v1591, 126
        %v1634 = vpop.permute.xlu0 %1633
        %1635 = vrot.lane.b32.xlu0 %v1592, 126
        %v1636 = vpop.permute.xlu0 %1635
        %1637 = vrot.lane.b32.xlu0 %v1593, 126
        %v1638 = vpop.permute.xlu0 %1637
        %1639 = vrot.lane.b32.xlu0 %v1594, 126
        %v1640 = vpop.permute.xlu0 %1639
        %1641 = vrot.lane.b32.xlu0 %v1595, 126
        %v1642 = vpop.permute.xlu0 %1641
        %1643 = vrot.lane.b32.xlu0 %v1596, 126
        %v1644 = vpop.permute.xlu0 %1643
        %v1661 = vadd.f32 %v1484, %v1614
        %v1662 = vadd.f32 %v1485, %v1616
        %v1663 = vadd.f32 %v1486, %v1618
        %v1664 = vadd.f32 %v1487, %v1620
        %v1665 = vadd.f32 %v1488, %v1622
        %v1666 = vadd.f32 %v1489, %v1624
        %v1667 = vadd.f32 %v1490, %v1626
        %v1668 = vadd.f32 %v1491, %v1628
        %v1669 = vadd.f32 %v1492, %v1630
        %v1670 = vadd.f32 %v1493, %v1632
        %v1671 = vadd.f32 %v1494, %v1634
        %v1672 = vadd.f32 %v1495, %v1636
        %v1673 = vadd.f32 %v1496, %v1638
        %v1674 = vadd.f32 %v1497, %v1640
        %v1675 = vadd.f32 %v1498, %v1642
        %v1676 = vadd.f32 %v1499, %v1644
        %vm1677 = vcmask 375808
        %v1678 = vsel %vm1677, %v1661, 0.0
        %v1679 = vsel %vm1677, %v1662, 0.0
        %v1680 = vadd.f32 %v1678, %v1679
        %v1681 = vsel %vm1677, %v1663, 0.0
        %v1682 = vadd.f32 %v1680, %v1681
        %v1683 = vsel %vm1677, %v1664, 0.0
        %v1684 = vadd.f32 %v1682, %v1683
        %v1685 = vsel %vm1677, %v1665, 0.0
        %v1686 = vadd.f32 %v1684, %v1685
        %v1687 = vsel %vm1677, %v1666, 0.0
        %v1688 = vadd.f32 %v1686, %v1687
        %v1689 = vsel %vm1677, %v1667, 0.0
        %v1690 = vadd.f32 %v1688, %v1689
        %v1691 = vsel %vm1677, %v1668, 0.0
        %v1692 = vadd.f32 %v1690, %v1691
        %v1693 = vsel %vm1677, %v1669, 0.0
        %v1694 = vadd.f32 %v1692, %v1693
        %v1695 = vsel %vm1677, %v1670, 0.0
        %v1696 = vadd.f32 %v1694, %v1695
        %v1697 = vsel %vm1677, %v1671, 0.0
        %v1698 = vadd.f32 %v1696, %v1697
        %v1699 = vsel %vm1677, %v1672, 0.0
        %v1700 = vadd.f32 %v1698, %v1699
        %v1701 = vsel %vm1677, %v1673, 0.0
        %v1702 = vadd.f32 %v1700, %v1701
        %v1703 = vsel %vm1677, %v1674, 0.0
        %v1704 = vadd.f32 %v1702, %v1703
        %v1705 = vsel %vm1677, %v1675, 0.0
        %v1706 = vadd.f32 %v1704, %v1705
        %v1707 = vsel %vm1677, %v1676, 0.0
        %v1708 = vadd.f32 %v1706, %v1707
        %v1709 = vrot.slane %v1708, 4
        %v1710 = vadd.f32 %v1708, %v1709
        %v1711 = vrot.slane %v1710, 2
        %v1712 = vadd.f32 %v1710, %v1711
        %v1713 = vrot.slane %v1712, 1
        %v1714 = vadd.f32 %v1712, %v1713
        %v1715 = vstv %s360
        %v1716 = vadd.f32 %v1714, %v1715
        %vm1717 = vcmp.gt.f32.partialorder %v1716, 0.0
        %v1718 = vstv %s359
        %v1719 = vmul.f32 %v1718, %v1716
        %v1720 = vsel %vm1717, %v1716, %v1719
        %s1721 = sadd.s32 %s369, 1
        %s1722 = smul.u32 %s1721, 16
        %s1723 = smul.addr %s1722, 4
        %s1724 = scalar_lea.vmem %s355, %s1723
        %v1725 = vld [vmem:[%s1724] sm:$0xf]
        %v1726 = vld [vmem:[%s1724 + $0x4] sm:$0xf]
        %v1727 = vld [vmem:[%s1724 + $0x8] sm:$0xf]
        %v1728 = vld [vmem:[%s1724 + $0xc] sm:$0xf]
        %v1729 = vld [vmem:[%s1724 + $0x10] sm:$0xf]
        %v1730 = vld [vmem:[%s1724 + $0x14] sm:$0xf]
        %v1731 = vld [vmem:[%s1724 + $0x18] sm:$0xf]
        %v1732 = vld [vmem:[%s1724 + $0x1c] sm:$0xf]
        %v1733 = vld [vmem:[%s1724 + $0x20] sm:$0xf]
        %v1734 = vld [vmem:[%s1724 + $0x24] sm:$0xf]
        %v1735 = vld [vmem:[%s1724 + $0x28] sm:$0xf]
        %v1736 = vld [vmem:[%s1724 + $0x2c] sm:$0xf]
        %v1737 = vld [vmem:[%s1724 + $0x30] sm:$0xf]
        %v1738 = vld [vmem:[%s1724 + $0x34] sm:$0xf]
        %v1739 = vld [vmem:[%s1724 + $0x38] sm:$0xf]
        %v1740 = vld [vmem:[%s1724 + $0x3c] sm:$0xf]
        %v1741 = vld [vmem:[%s1724 + $0x40] sm:$0xf]
        %v1742 = vld [vmem:[%s1724 + $0x44] sm:$0xf]
        %v1743 = vld [vmem:[%s1724 + $0x48] sm:$0xf]
        %v1744 = vld [vmem:[%s1724 + $0x4c] sm:$0xf]
        %v1745 = vld [vmem:[%s1724 + $0x50] sm:$0xf]
        %v1746 = vld [vmem:[%s1724 + $0x54] sm:$0xf]
        %v1747 = vld [vmem:[%s1724 + $0x58] sm:$0xf]
        %v1748 = vld [vmem:[%s1724 + $0x5c] sm:$0xf]
        %v1749 = vld [vmem:[%s1724 + $0x60] sm:$0xf]
        %v1750 = vld [vmem:[%s1724 + $0x64] sm:$0xf]
        %v1751 = vld [vmem:[%s1724 + $0x68] sm:$0xf]
        %v1752 = vld [vmem:[%s1724 + $0x6c] sm:$0xf]
        %v1753 = vld [vmem:[%s1724 + $0x70] sm:$0xf]
        %v1754 = vld [vmem:[%s1724 + $0x74] sm:$0xf]
        %v1755 = vld [vmem:[%s1724 + $0x78] sm:$0xf]
        %v1756 = vld [vmem:[%s1724 + $0x7c] sm:$0xf]
        %v1757 = vld [vmem:[%s1724 + $0x80] sm:$0xf]
        %v1758 = vld [vmem:[%s1724 + $0x84] sm:$0xf]
        %v1759 = vld [vmem:[%s1724 + $0x88] sm:$0xf]
        %v1760 = vld [vmem:[%s1724 + $0x8c] sm:$0xf]
        %v1761 = vld [vmem:[%s1724 + $0x90] sm:$0xf]
        %v1762 = vld [vmem:[%s1724 + $0x94] sm:$0xf]
        %v1763 = vld [vmem:[%s1724 + $0x98] sm:$0xf]
        %v1764 = vld [vmem:[%s1724 + $0x9c] sm:$0xf]
        %v1765 = vld [vmem:[%s1724 + $0xa0] sm:$0xf]
        %v1766 = vld [vmem:[%s1724 + $0xa4] sm:$0xf]
        %v1767 = vld [vmem:[%s1724 + $0xa8] sm:$0xf]
        %v1768 = vld [vmem:[%s1724 + $0xac] sm:$0xf]
        %v1769 = vld [vmem:[%s1724 + $0xb0] sm:$0xf]
        %v1770 = vld [vmem:[%s1724 + $0xb4] sm:$0xf]
        %v1771 = vld [vmem:[%s1724 + $0xb8] sm:$0xf]
        %v1772 = vld [vmem:[%s1724 + $0xbc] sm:$0xf]
        %v1773 = vunpack.c.l.bf16 %v1725
        %v1774 = vunpack.c.l.bf16 %v1726
        %v1775 = vunpack.c.l.bf16 %v1727
        %v1776 = vunpack.c.l.bf16 %v1728
        %v1777 = vunpack.c.l.bf16 %v1729
        %v1778 = vunpack.c.l.bf16 %v1730
        %v1779 = vunpack.c.l.bf16 %v1731
        %v1780 = vunpack.c.l.bf16 %v1732
        %v1781 = vunpack.c.l.bf16 %v1733
        %v1782 = vunpack.c.l.bf16 %v1734
        %v1783 = vunpack.c.l.bf16 %v1735
        %v1784 = vunpack.c.l.bf16 %v1736
        %v1785 = vunpack.c.l.bf16 %v1737
        %v1786 = vunpack.c.l.bf16 %v1738
        %v1787 = vunpack.c.l.bf16 %v1739
        %v1788 = vunpack.c.l.bf16 %v1740
        %v1789 = vunpack.c.l.bf16 %v1741
        %v1790 = vunpack.c.l.bf16 %v1742
        %v1791 = vunpack.c.l.bf16 %v1743
        %v1792 = vunpack.c.l.bf16 %v1744
        %v1793 = vunpack.c.l.bf16 %v1745
        %v1794 = vunpack.c.l.bf16 %v1746
        %v1795 = vunpack.c.l.bf16 %v1747
        %v1796 = vunpack.c.l.bf16 %v1748
        %v1797 = vunpack.c.l.bf16 %v1749
        %v1798 = vunpack.c.l.bf16 %v1750
        %v1799 = vunpack.c.l.bf16 %v1751
        %v1800 = vunpack.c.l.bf16 %v1752
        %v1801 = vunpack.c.l.bf16 %v1753
        %v1802 = vunpack.c.l.bf16 %v1754
        %v1803 = vunpack.c.l.bf16 %v1755
        %v1804 = vunpack.c.l.bf16 %v1756
        %v1805 = vunpack.c.l.bf16 %v1757
        %v1806 = vunpack.c.l.bf16 %v1758
        %v1807 = vunpack.c.l.bf16 %v1759
        %v1808 = vunpack.c.l.bf16 %v1760
        %v1809 = vunpack.c.l.bf16 %v1761
        %v1810 = vunpack.c.l.bf16 %v1762
        %v1811 = vunpack.c.l.bf16 %v1763
        %v1812 = vunpack.c.l.bf16 %v1764
        %v1813 = vunpack.c.l.bf16 %v1765
        %v1814 = vunpack.c.l.bf16 %v1766
        %v1815 = vunpack.c.l.bf16 %v1767
        %v1816 = vunpack.c.l.bf16 %v1768
        %v1817 = vunpack.c.l.bf16 %v1769
        %v1818 = vunpack.c.l.bf16 %v1770
        %v1819 = vunpack.c.l.bf16 %v1771
        %v1820 = vunpack.c.l.bf16 %v1772
        %v1821 = vmul.f32 %v1773, %v469
        %v1822 = vmul.f32 %v1774, %v470
        %v1823 = vmul.f32 %v1775, %v471
        %v1824 = vmul.f32 %v1776, %v472
        %v1825 = vmul.f32 %v1777, %v473
        %v1826 = vmul.f32 %v1778, %v474
        %v1827 = vmul.f32 %v1779, %v475
        %v1828 = vmul.f32 %v1780, %v476
        %v1829 = vmul.f32 %v1781, %v477
        %v1830 = vmul.f32 %v1782, %v478
        %v1831 = vmul.f32 %v1783, %v479
        %v1832 = vmul.f32 %v1784, %v480
        %v1833 = vmul.f32 %v1785, %v481
        %v1834 = vmul.f32 %v1786, %v482
        %v1835 = vmul.f32 %v1787, %v483
        %v1836 = vmul.f32 %v1788, %v484
        %v1837 = vadd.f32 %v1821, 0.0
        %v1838 = vadd.f32 %v1822, 0.0
        %v1839 = vadd.f32 %v1823, 0.0
        %v1840 = vadd.f32 %v1824, 0.0
        %v1841 = vadd.f32 %v1825, 0.0
        %v1842 = vadd.f32 %v1826, 0.0
        %v1843 = vadd.f32 %v1827, 0.0
        %v1844 = vadd.f32 %v1828, 0.0
        %v1845 = vadd.f32 %v1829, 0.0
        %v1846 = vadd.f32 %v1830, 0.0
        %v1847 = vadd.f32 %v1831, 0.0
        %v1848 = vadd.f32 %v1832, 0.0
        %v1849 = vadd.f32 %v1833, 0.0
        %v1850 = vadd.f32 %v1834, 0.0
        %v1851 = vadd.f32 %v1835, 0.0
        %v1852 = vadd.f32 %v1836, 0.0
        %v1853 = vmul.f32 %v1773, %v551
        %v1854 = vmul.f32 %v1774, %v553
        %v1855 = vmul.f32 %v1775, %v555
        %v1856 = vmul.f32 %v1776, %v557
        %v1857 = vmul.f32 %v1777, %v559
        %v1858 = vmul.f32 %v1778, %v561
        %v1859 = vmul.f32 %v1779, %v563
        %v1860 = vmul.f32 %v1780, %v565
        %v1861 = vmul.f32 %v1781, %v567
        %v1862 = vmul.f32 %v1782, %v569
        %v1863 = vmul.f32 %v1783, %v571
        %v1864 = vmul.f32 %v1784, %v573
        %v1865 = vmul.f32 %v1785, %v575
        %v1866 = vmul.f32 %v1786, %v577
        %v1867 = vmul.f32 %v1787, %v579
        %v1868 = vmul.f32 %v1788, %v581
        %1885 = vrot.lane.b32.xlu0 %v1853, 127
        %v1886 = vpop.permute.xlu0 %1885
        %1887 = vrot.lane.b32.xlu0 %v1854, 127
        %v1888 = vpop.permute.xlu0 %1887
        %1889 = vrot.lane.b32.xlu0 %v1855, 127
        %v1890 = vpop.permute.xlu0 %1889
        %1891 = vrot.lane.b32.xlu0 %v1856, 127
        %v1892 = vpop.permute.xlu0 %1891
        %1893 = vrot.lane.b32.xlu0 %v1857, 127
        %v1894 = vpop.permute.xlu0 %1893
        %1895 = vrot.lane.b32.xlu0 %v1858, 127
        %v1896 = vpop.permute.xlu0 %1895
        %1897 = vrot.lane.b32.xlu0 %v1859, 127
        %v1898 = vpop.permute.xlu0 %1897
        %1899 = vrot.lane.b32.xlu0 %v1860, 127
        %v1900 = vpop.permute.xlu0 %1899
        %1901 = vrot.lane.b32.xlu0 %v1861, 127
        %v1902 = vpop.permute.xlu0 %1901
        %1903 = vrot.lane.b32.xlu0 %v1862, 127
        %v1904 = vpop.permute.xlu0 %1903
        %1905 = vrot.lane.b32.xlu0 %v1863, 127
        %v1906 = vpop.permute.xlu0 %1905
        %1907 = vrot.lane.b32.xlu0 %v1864, 127
        %v1908 = vpop.permute.xlu0 %1907
        %1909 = vrot.lane.b32.xlu0 %v1865, 127
        %v1910 = vpop.permute.xlu0 %1909
        %1911 = vrot.lane.b32.xlu0 %v1866, 127
        %v1912 = vpop.permute.xlu0 %1911
        %1913 = vrot.lane.b32.xlu0 %v1867, 127
        %v1914 = vpop.permute.xlu0 %1913
        %1915 = vrot.lane.b32.xlu0 %v1868, 127
        %v1916 = vpop.permute.xlu0 %1915
        %v1933 = vadd.f32 %v1837, %v1886
        %v1934 = vadd.f32 %v1838, %v1888
        %v1935 = vadd.f32 %v1839, %v1890
        %v1936 = vadd.f32 %v1840, %v1892
        %v1937 = vadd.f32 %v1841, %v1894
        %v1938 = vadd.f32 %v1842, %v1896
        %v1939 = vadd.f32 %v1843, %v1898
        %v1940 = vadd.f32 %v1844, %v1900
        %v1941 = vadd.f32 %v1845, %v1902
        %v1942 = vadd.f32 %v1846, %v1904
        %v1943 = vadd.f32 %v1847, %v1906
        %v1944 = vadd.f32 %v1848, %v1908
        %v1945 = vadd.f32 %v1849, %v1910
        %v1946 = vadd.f32 %v1850, %v1912
        %v1947 = vadd.f32 %v1851, %v1914
        %v1948 = vadd.f32 %v1852, %v1916
        %v1949 = vmul.f32 %v1773, %v728
        %v1950 = vmul.f32 %v1774, %v730
        %v1951 = vmul.f32 %v1775, %v732
        %v1952 = vmul.f32 %v1776, %v734
        %v1953 = vmul.f32 %v1777, %v736
        %v1954 = vmul.f32 %v1778, %v738
        %v1955 = vmul.f32 %v1779, %v740
        %v1956 = vmul.f32 %v1780, %v742
        %v1957 = vmul.f32 %v1781, %v744
        %v1958 = vmul.f32 %v1782, %v746
        %v1959 = vmul.f32 %v1783, %v748
        %v1960 = vmul.f32 %v1784, %v750
        %v1961 = vmul.f32 %v1785, %v752
        %v1962 = vmul.f32 %v1786, %v754
        %v1963 = vmul.f32 %v1787, %v756
        %v1964 = vmul.f32 %v1788, %v758
        %1981 = vrot.lane.b32.xlu0 %v1949, 126
        %v1982 = vpop.permute.xlu0 %1981
        %1983 = vrot.lane.b32.xlu0 %v1950, 126
        %v1984 = vpop.permute.xlu0 %1983
        %1985 = vrot.lane.b32.xlu0 %v1951, 126
        %v1986 = vpop.permute.xlu0 %1985
        %1987 = vrot.lane.b32.xlu0 %v1952, 126
        %v1988 = vpop.permute.xlu0 %1987
        %1989 = vrot.lane.b32.xlu0 %v1953, 126
        %v1990 = vpop.permute.xlu0 %1989
        %1991 = vrot.lane.b32.xlu0 %v1954, 126
        %v1992 = vpop.permute.xlu0 %1991
        %1993 = vrot.lane.b32.xlu0 %v1955, 126
        %v1994 = vpop.permute.xlu0 %1993
        %1995 = vrot.lane.b32.xlu0 %v1956, 126
        %v1996 = vpop.permute.xlu0 %1995
        %1997 = vrot.lane.b32.xlu0 %v1957, 126
        %v1998 = vpop.permute.xlu0 %1997
        %1999 = vrot.lane.b32.xlu0 %v1958, 126
        %v2000 = vpop.permute.xlu0 %1999
        %2001 = vrot.lane.b32.xlu0 %v1959, 126
        %v2002 = vpop.permute.xlu0 %2001
        %2003 = vrot.lane.b32.xlu0 %v1960, 126
        %v2004 = vpop.permute.xlu0 %2003
        %2005 = vrot.lane.b32.xlu0 %v1961, 126
        %v2006 = vpop.permute.xlu0 %2005
        %2007 = vrot.lane.b32.xlu0 %v1962, 126
        %v2008 = vpop.permute.xlu0 %2007
        %2009 = vrot.lane.b32.xlu0 %v1963, 126
        %v2010 = vpop.permute.xlu0 %2009
        %2011 = vrot.lane.b32.xlu0 %v1964, 126
        %v2012 = vpop.permute.xlu0 %2011
        %v2029 = vadd.f32 %v1933, %v1982
        %v2030 = vadd.f32 %v1934, %v1984
        %v2031 = vadd.f32 %v1935, %v1986
        %v2032 = vadd.f32 %v1936, %v1988
        %v2033 = vadd.f32 %v1937, %v1990
        %v2034 = vadd.f32 %v1938, %v1992
        %v2035 = vadd.f32 %v1939, %v1994
        %v2036 = vadd.f32 %v1940, %v1996
        %v2037 = vadd.f32 %v1941, %v1998
        %v2038 = vadd.f32 %v1942, %v2000
        %v2039 = vadd.f32 %v1943, %v2002
        %v2040 = vadd.f32 %v1944, %v2004
        %v2041 = vadd.f32 %v1945, %v2006
        %v2042 = vadd.f32 %v1946, %v2008
        %v2043 = vadd.f32 %v1947, %v2010
        %v2044 = vadd.f32 %v1948, %v2012
        %v2045 = vmul.f32 %v1789, %v872
        %v2046 = vmul.f32 %v1790, %v873
        %v2047 = vmul.f32 %v1791, %v874
        %v2048 = vmul.f32 %v1792, %v875
        %v2049 = vmul.f32 %v1793, %v876
        %v2050 = vmul.f32 %v1794, %v877
        %v2051 = vmul.f32 %v1795, %v878
        %v2052 = vmul.f32 %v1796, %v879
        %v2053 = vmul.f32 %v1797, %v880
        %v2054 = vmul.f32 %v1798, %v881
        %v2055 = vmul.f32 %v1799, %v882
        %v2056 = vmul.f32 %v1800, %v883
        %v2057 = vmul.f32 %v1801, %v884
        %v2058 = vmul.f32 %v1802, %v885
        %v2059 = vmul.f32 %v1803, %v886
        %v2060 = vmul.f32 %v1804, %v887
        %v2061 = vadd.f32 %v2029, %v2045
        %v2062 = vadd.f32 %v2030, %v2046
        %v2063 = vadd.f32 %v2031, %v2047
        %v2064 = vadd.f32 %v2032, %v2048
        %v2065 = vadd.f32 %v2033, %v2049
        %v2066 = vadd.f32 %v2034, %v2050
        %v2067 = vadd.f32 %v2035, %v2051
        %v2068 = vadd.f32 %v2036, %v2052
        %v2069 = vadd.f32 %v2037, %v2053
        %v2070 = vadd.f32 %v2038, %v2054
        %v2071 = vadd.f32 %v2039, %v2055
        %v2072 = vadd.f32 %v2040, %v2056
        %v2073 = vadd.f32 %v2041, %v2057
        %v2074 = vadd.f32 %v2042, %v2058
        %v2075 = vadd.f32 %v2043, %v2059
        %v2076 = vadd.f32 %v2044, %v2060
        %v2077 = vmul.f32 %v1789, %v954
        %v2078 = vmul.f32 %v1790, %v956
        %v2079 = vmul.f32 %v1791, %v958
        %v2080 = vmul.f32 %v1792, %v960
        %v2081 = vmul.f32 %v1793, %v962
        %v2082 = vmul.f32 %v1794, %v964
        %v2083 = vmul.f32 %v1795, %v966
        %v2084 = vmul.f32 %v1796, %v968
        %v2085 = vmul.f32 %v1797, %v970
        %v2086 = vmul.f32 %v1798, %v972
        %v2087 = vmul.f32 %v1799, %v974
        %v2088 = vmul.f32 %v1800, %v976
        %v2089 = vmul.f32 %v1801, %v978
        %v2090 = vmul.f32 %v1802, %v980
        %v2091 = vmul.f32 %v1803, %v982
        %v2092 = vmul.f32 %v1804, %v984
        %2109 = vrot.lane.b32.xlu0 %v2077, 127
        %v2110 = vpop.permute.xlu0 %2109
        %2111 = vrot.lane.b32.xlu0 %v2078, 127
        %v2112 = vpop.permute.xlu0 %2111
        %2113 = vrot.lane.b32.xlu0 %v2079, 127
        %v2114 = vpop.permute.xlu0 %2113
        %2115 = vrot.lane.b32.xlu0 %v2080, 127
        %v2116 = vpop.permute.xlu0 %2115
        %2117 = vrot.lane.b32.xlu0 %v2081, 127
        %v2118 = vpop.permute.xlu0 %2117
        %2119 = vrot.lane.b32.xlu0 %v2082, 127
        %v2120 = vpop.permute.xlu0 %2119
        %2121 = vrot.lane.b32.xlu0 %v2083, 127
        %v2122 = vpop.permute.xlu0 %2121
        %2123 = vrot.lane.b32.xlu0 %v2084, 127
        %v2124 = vpop.permute.xlu0 %2123
        %2125 = vrot.lane.b32.xlu0 %v2085, 127
        %v2126 = vpop.permute.xlu0 %2125
        %2127 = vrot.lane.b32.xlu0 %v2086, 127
        %v2128 = vpop.permute.xlu0 %2127
        %2129 = vrot.lane.b32.xlu0 %v2087, 127
        %v2130 = vpop.permute.xlu0 %2129
        %2131 = vrot.lane.b32.xlu0 %v2088, 127
        %v2132 = vpop.permute.xlu0 %2131
        %2133 = vrot.lane.b32.xlu0 %v2089, 127
        %v2134 = vpop.permute.xlu0 %2133
        %2135 = vrot.lane.b32.xlu0 %v2090, 127
        %v2136 = vpop.permute.xlu0 %2135
        %2137 = vrot.lane.b32.xlu0 %v2091, 127
        %v2138 = vpop.permute.xlu0 %2137
        %2139 = vrot.lane.b32.xlu0 %v2092, 127
        %v2140 = vpop.permute.xlu0 %2139
        %v2157 = vadd.f32 %v2061, %v2110
        %v2158 = vadd.f32 %v2062, %v2112
        %v2159 = vadd.f32 %v2063, %v2114
        %v2160 = vadd.f32 %v2064, %v2116
        %v2161 = vadd.f32 %v2065, %v2118
        %v2162 = vadd.f32 %v2066, %v2120
        %v2163 = vadd.f32 %v2067, %v2122
        %v2164 = vadd.f32 %v2068, %v2124
        %v2165 = vadd.f32 %v2069, %v2126
        %v2166 = vadd.f32 %v2070, %v2128
        %v2167 = vadd.f32 %v2071, %v2130
        %v2168 = vadd.f32 %v2072, %v2132
        %v2169 = vadd.f32 %v2073, %v2134
        %v2170 = vadd.f32 %v2074, %v2136
        %v2171 = vadd.f32 %v2075, %v2138
        %v2172 = vadd.f32 %v2076, %v2140
        %v2173 = vmul.f32 %v1789, %v1131
        %v2174 = vmul.f32 %v1790, %v1133
        %v2175 = vmul.f32 %v1791, %v1135
        %v2176 = vmul.f32 %v1792, %v1137
        %v2177 = vmul.f32 %v1793, %v1139
        %v2178 = vmul.f32 %v1794, %v1141
        %v2179 = vmul.f32 %v1795, %v1143
        %v2180 = vmul.f32 %v1796, %v1145
        %v2181 = vmul.f32 %v1797, %v1147
        %v2182 = vmul.f32 %v1798, %v1149
        %v2183 = vmul.f32 %v1799, %v1151
        %v2184 = vmul.f32 %v1800, %v1153
        %v2185 = vmul.f32 %v1801, %v1155
        %v2186 = vmul.f32 %v1802, %v1157
        %v2187 = vmul.f32 %v1803, %v1159
        %v2188 = vmul.f32 %v1804, %v1161
        %2205 = vrot.lane.b32.xlu0 %v2173, 126
        %v2206 = vpop.permute.xlu0 %2205
        %2207 = vrot.lane.b32.xlu0 %v2174, 126
        %v2208 = vpop.permute.xlu0 %2207
        %2209 = vrot.lane.b32.xlu0 %v2175, 126
        %v2210 = vpop.permute.xlu0 %2209
        %2211 = vrot.lane.b32.xlu0 %v2176, 126
        %v2212 = vpop.permute.xlu0 %2211
        %2213 = vrot.lane.b32.xlu0 %v2177, 126
        %v2214 = vpop.permute.xlu0 %2213
        %2215 = vrot.lane.b32.xlu0 %v2178, 126
        %v2216 = vpop.permute.xlu0 %2215
        %2217 = vrot.lane.b32.xlu0 %v2179, 126
        %v2218 = vpop.permute.xlu0 %2217
        %2219 = vrot.lane.b32.xlu0 %v2180, 126
        %v2220 = vpop.permute.xlu0 %2219
        %2221 = vrot.lane.b32.xlu0 %v2181, 126
        %v2222 = vpop.permute.xlu0 %2221
        %2223 = vrot.lane.b32.xlu0 %v2182, 126
        %v2224 = vpop.permute.xlu0 %2223
        %2225 = vrot.lane.b32.xlu0 %v2183, 126
        %v2226 = vpop.permute.xlu0 %2225
        %2227 = vrot.lane.b32.xlu0 %v2184, 126
        %v2228 = vpop.permute.xlu0 %2227
        %2229 = vrot.lane.b32.xlu0 %v2185, 126
        %v2230 = vpop.permute.xlu0 %2229
        %2231 = vrot.lane.b32.xlu0 %v2186, 126
        %v2232 = vpop.permute.xlu0 %2231
        %2233 = vrot.lane.b32.xlu0 %v2187, 126
        %v2234 = vpop.permute.xlu0 %2233
        %2235 = vrot.lane.b32.xlu0 %v2188, 126
        %v2236 = vpop.permute.xlu0 %2235
        %v2253 = vadd.f32 %v2157, %v2206
        %v2254 = vadd.f32 %v2158, %v2208
        %v2255 = vadd.f32 %v2159, %v2210
        %v2256 = vadd.f32 %v2160, %v2212
        %v2257 = vadd.f32 %v2161, %v2214
        %v2258 = vadd.f32 %v2162, %v2216
        %v2259 = vadd.f32 %v2163, %v2218
        %v2260 = vadd.f32 %v2164, %v2220
        %v2261 = vadd.f32 %v2165, %v2222
        %v2262 = vadd.f32 %v2166, %v2224
        %v2263 = vadd.f32 %v2167, %v2226
        %v2264 = vadd.f32 %v2168, %v2228
        %v2265 = vadd.f32 %v2169, %v2230
        %v2266 = vadd.f32 %v2170, %v2232
        %v2267 = vadd.f32 %v2171, %v2234
        %v2268 = vadd.f32 %v2172, %v2236
        %v2269 = vmul.f32 %v1805, %v1275
        %v2270 = vmul.f32 %v1806, %v1276
        %v2271 = vmul.f32 %v1807, %v1277
        %v2272 = vmul.f32 %v1808, %v1278
        %v2273 = vmul.f32 %v1809, %v1279
        %v2274 = vmul.f32 %v1810, %v1280
        %v2275 = vmul.f32 %v1811, %v1281
        %v2276 = vmul.f32 %v1812, %v1282
        %v2277 = vmul.f32 %v1813, %v1283
        %v2278 = vmul.f32 %v1814, %v1284
        %v2279 = vmul.f32 %v1815, %v1285
        %v2280 = vmul.f32 %v1816, %v1286
        %v2281 = vmul.f32 %v1817, %v1287
        %v2282 = vmul.f32 %v1818, %v1288
        %v2283 = vmul.f32 %v1819, %v1289
        %v2284 = vmul.f32 %v1820, %v1290
        %v2285 = vadd.f32 %v2253, %v2269
        %v2286 = vadd.f32 %v2254, %v2270
        %v2287 = vadd.f32 %v2255, %v2271
        %v2288 = vadd.f32 %v2256, %v2272
        %v2289 = vadd.f32 %v2257, %v2273
        %v2290 = vadd.f32 %v2258, %v2274
        %v2291 = vadd.f32 %v2259, %v2275
        %v2292 = vadd.f32 %v2260, %v2276
        %v2293 = vadd.f32 %v2261, %v2277
        %v2294 = vadd.f32 %v2262, %v2278
        %v2295 = vadd.f32 %v2263, %v2279
        %v2296 = vadd.f32 %v2264, %v2280
        %v2297 = vadd.f32 %v2265, %v2281
        %v2298 = vadd.f32 %v2266, %v2282
        %v2299 = vadd.f32 %v2267, %v2283
        %v2300 = vadd.f32 %v2268, %v2284
        %v2301 = vmul.f32 %v1805, %v1357
        %v2302 = vmul.f32 %v1806, %v1359
        %v2303 = vmul.f32 %v1807, %v1361
        %v2304 = vmul.f32 %v1808, %v1363
        %v2305 = vmul.f32 %v1809, %v1365
        %v2306 = vmul.f32 %v1810, %v1367
        %v2307 = vmul.f32 %v1811, %v1369
        %v2308 = vmul.f32 %v1812, %v1371
        %v2309 = vmul.f32 %v1813, %v1373
        %v2310 = vmul.f32 %v1814, %v1375
        %v2311 = vmul.f32 %v1815, %v1377
        %v2312 = vmul.f32 %v1816, %v1379
        %v2313 = vmul.f32 %v1817, %v1381
        %v2314 = vmul.f32 %v1818, %v1383
        %v2315 = vmul.f32 %v1819, %v1385
        %v2316 = vmul.f32 %v1820, %v1387
        %2333 = vrot.lane.b32.xlu0 %v2301, 127
        %v2334 = vpop.permute.xlu0 %2333
        %2335 = vrot.lane.b32.xlu0 %v2302, 127
        %v2336 = vpop.permute.xlu0 %2335
        %2337 = vrot.lane.b32.xlu0 %v2303, 127
        %v2338 = vpop.permute.xlu0 %2337
        %2339 = vrot.lane.b32.xlu0 %v2304, 127
        %v2340 = vpop.permute.xlu0 %2339
        %2341 = vrot.lane.b32.xlu0 %v2305, 127
        %v2342 = vpop.permute.xlu0 %2341
        %2343 = vrot.lane.b32.xlu0 %v2306, 127
        %v2344 = vpop.permute.xlu0 %2343
        %2345 = vrot.lane.b32.xlu0 %v2307, 127
        %v2346 = vpop.permute.xlu0 %2345
        %2347 = vrot.lane.b32.xlu0 %v2308, 127
        %v2348 = vpop.permute.xlu0 %2347
        %2349 = vrot.lane.b32.xlu0 %v2309, 127
        %v2350 = vpop.permute.xlu0 %2349
        %2351 = vrot.lane.b32.xlu0 %v2310, 127
        %v2352 = vpop.permute.xlu0 %2351
        %2353 = vrot.lane.b32.xlu0 %v2311, 127
        %v2354 = vpop.permute.xlu0 %2353
        %2355 = vrot.lane.b32.xlu0 %v2312, 127
        %v2356 = vpop.permute.xlu0 %2355
        %2357 = vrot.lane.b32.xlu0 %v2313, 127
        %v2358 = vpop.permute.xlu0 %2357
        %2359 = vrot.lane.b32.xlu0 %v2314, 127
        %v2360 = vpop.permute.xlu0 %2359
        %2361 = vrot.lane.b32.xlu0 %v2315, 127
        %v2362 = vpop.permute.xlu0 %2361
        %2363 = vrot.lane.b32.xlu0 %v2316, 127
        %v2364 = vpop.permute.xlu0 %2363
        %v2381 = vadd.f32 %v2285, %v2334
        %v2382 = vadd.f32 %v2286, %v2336
        %v2383 = vadd.f32 %v2287, %v2338
        %v2384 = vadd.f32 %v2288, %v2340
        %v2385 = vadd.f32 %v2289, %v2342
        %v2386 = vadd.f32 %v2290, %v2344
        %v2387 = vadd.f32 %v2291, %v2346
        %v2388 = vadd.f32 %v2292, %v2348
        %v2389 = vadd.f32 %v2293, %v2350
        %v2390 = vadd.f32 %v2294, %v2352
        %v2391 = vadd.f32 %v2295, %v2354
        %v2392 = vadd.f32 %v2296, %v2356
        %v2393 = vadd.f32 %v2297, %v2358
        %v2394 = vadd.f32 %v2298, %v2360
        %v2395 = vadd.f32 %v2299, %v2362
        %v2396 = vadd.f32 %v2300, %v2364
        %v2397 = vmul.f32 %v1805, %v1534
        %v2398 = vmul.f32 %v1806, %v1536
        %v2399 = vmul.f32 %v1807, %v1538
        %v2400 = vmul.f32 %v1808, %v1540
        %v2401 = vmul.f32 %v1809, %v1542
        %v2402 = vmul.f32 %v1810, %v1544
        %v2403 = vmul.f32 %v1811, %v1546
        %v2404 = vmul.f32 %v1812, %v1548
        %v2405 = vmul.f32 %v1813, %v1550
        %v2406 = vmul.f32 %v1814, %v1552
        %v2407 = vmul.f32 %v1815, %v1554
        %v2408 = vmul.f32 %v1816, %v1556
        %v2409 = vmul.f32 %v1817, %v1558
        %v2410 = vmul.f32 %v1818, %v1560
        %v2411 = vmul.f32 %v1819, %v1562
        %v2412 = vmul.f32 %v1820, %v1564
        %2429 = vrot.lane.b32.xlu0 %v2397, 126
        %v2430 = vpop.permute.xlu0 %2429
        %2431 = vrot.lane.b32.xlu0 %v2398, 126
        %v2432 = vpop.permute.xlu0 %2431
        %2433 = vrot.lane.b32.xlu0 %v2399, 126
        %v2434 = vpop.permute.xlu0 %2433
        %2435 = vrot.lane.b32.xlu0 %v2400, 126
        %v2436 = vpop.permute.xlu0 %2435
        %2437 = vrot.lane.b32.xlu0 %v2401, 126
        %v2438 = vpop.permute.xlu0 %2437
        %2439 = vrot.lane.b32.xlu0 %v2402, 126
        %v2440 = vpop.permute.xlu0 %2439
        %2441 = vrot.lane.b32.xlu0 %v2403, 126
        %v2442 = vpop.permute.xlu0 %2441
        %2443 = vrot.lane.b32.xlu0 %v2404, 126
        %v2444 = vpop.permute.xlu0 %2443
        %2445 = vrot.lane.b32.xlu0 %v2405, 126
        %v2446 = vpop.permute.xlu0 %2445
        %2447 = vrot.lane.b32.xlu0 %v2406, 126
        %v2448 = vpop.permute.xlu0 %2447
        %2449 = vrot.lane.b32.xlu0 %v2407, 126
        %v2450 = vpop.permute.xlu0 %2449
        %2451 = vrot.lane.b32.xlu0 %v2408, 126
        %v2452 = vpop.permute.xlu0 %2451
        %2453 = vrot.lane.b32.xlu0 %v2409, 126
        %v2454 = vpop.permute.xlu0 %2453
        %2455 = vrot.lane.b32.xlu0 %v2410, 126
        %v2456 = vpop.permute.xlu0 %2455
        %2457 = vrot.lane.b32.xlu0 %v2411, 126
        %v2458 = vpop.permute.xlu0 %2457
        %2459 = vrot.lane.b32.xlu0 %v2412, 126
        %v2460 = vpop.permute.xlu0 %2459
        %v2477 = vadd.f32 %v2381, %v2430
        %v2478 = vadd.f32 %v2382, %v2432
        %v2479 = vadd.f32 %v2383, %v2434
        %v2480 = vadd.f32 %v2384, %v2436
        %v2481 = vadd.f32 %v2385, %v2438
        %v2482 = vadd.f32 %v2386, %v2440
        %v2483 = vadd.f32 %v2387, %v2442
        %v2484 = vadd.f32 %v2388, %v2444
        %v2485 = vadd.f32 %v2389, %v2446
        %v2486 = vadd.f32 %v2390, %v2448
        %v2487 = vadd.f32 %v2391, %v2450
        %v2488 = vadd.f32 %v2392, %v2452
        %v2489 = vadd.f32 %v2393, %v2454
        %v2490 = vadd.f32 %v2394, %v2456
        %v2491 = vadd.f32 %v2395, %v2458
        %v2492 = vadd.f32 %v2396, %v2460
        %v2493 = vsel %vm1677, %v2477, 0.0
        %v2494 = vsel %vm1677, %v2478, 0.0
        %v2495 = vadd.f32 %v2493, %v2494
        %v2496 = vsel %vm1677, %v2479, 0.0
        %v2497 = vadd.f32 %v2495, %v2496
        %v2498 = vsel %vm1677, %v2480, 0.0
        %v2499 = vadd.f32 %v2497, %v2498
        %v2500 = vsel %vm1677, %v2481, 0.0
        %v2501 = vadd.f32 %v2499, %v2500
        %v2502 = vsel %vm1677, %v2482, 0.0
        %v2503 = vadd.f32 %v2501, %v2502
        %v2504 = vsel %vm1677, %v2483, 0.0
        %v2505 = vadd.f32 %v2503, %v2504
        %v2506 = vsel %vm1677, %v2484, 0.0
        %v2507 = vadd.f32 %v2505, %v2506
        %v2508 = vsel %vm1677, %v2485, 0.0
        %v2509 = vadd.f32 %v2507, %v2508
        %v2510 = vsel %vm1677, %v2486, 0.0
        %v2511 = vadd.f32 %v2509, %v2510
        %v2512 = vsel %vm1677, %v2487, 0.0
        %v2513 = vadd.f32 %v2511, %v2512
        %v2514 = vsel %vm1677, %v2488, 0.0
        %v2515 = vadd.f32 %v2513, %v2514
        %v2516 = vsel %vm1677, %v2489, 0.0
        %v2517 = vadd.f32 %v2515, %v2516
        %v2518 = vsel %vm1677, %v2490, 0.0
        %v2519 = vadd.f32 %v2517, %v2518
        %v2520 = vsel %vm1677, %v2491, 0.0
        %v2521 = vadd.f32 %v2519, %v2520
        %v2522 = vsel %vm1677, %v2492, 0.0
        %v2523 = vadd.f32 %v2521, %v2522
        %v2524 = vrot.slane %v2523, 4
        %v2525 = vadd.f32 %v2523, %v2524
        %v2526 = vrot.slane %v2525, 2
        %v2527 = vadd.f32 %v2525, %v2526
        %v2528 = vrot.slane %v2527, 1
        %v2529 = vadd.f32 %v2527, %v2528
        %v2530 = vadd.f32 %v2529, %v1715
        %vm2531 = vcmp.gt.f32.partialorder %v2530, 0.0
        %v2532 = vmul.f32 %v1718, %v2530
        %v2533 = vsel %vm2531, %v2530, %v2532
        %v2534 = vmax.f32 %v1720, %v2533
        %2536 = vrot.lane.b32.xlu0 %v2534, 127
        %v2537 = vpop.permute.xlu0 %2536
        %v2539 = vmax.f32 %v2534, %v2537
        %s2540 = smul.u32 %s363, 48
        %s2541 = scalar_lea.vmem %s4, %s2540
        %v2542 = vld [vmem:[%s2541] sm:$0xff]
        %v2543 = vld [vmem:[%s2541 + $0x8] sm:$0xff]
        %v2544 = vld [vmem:[%s2541 + $0x10] sm:$0xff]
        %v2545 = vld [vmem:[%s2541 + $0x18] sm:$0xff]
        %v2546 = vld [vmem:[%s2541 + $0x20] sm:$0xff]
        %v2547 = vld [vmem:[%s2541 + $0x28] sm:$0x1f]
        %vm2548 = vcmask 367616
        %v2550 = vsel %vm2548, %v2539, 0
        %vm2552 = vcmask 1044480
        %v2554 = vsel %vm2552, %v2547, 0
        %2556 = vmatprep.subr.mxu0 0.0
        %2557 = vmatpush1.msra.mxu0 0.0
        %2558 = vmatprep.subr.mxu0 0.0
        %2559 = vmatpush1.msra.mxu0 0.0
        %2560 = vmatprep.subr.mxu0 0.0
        %2561 = vmatpush1.msra.mxu0 0.0
        %2562 = vmatprep.subr.mxu0 0.0
        %2563 = vmatpush1.msra.mxu0 0.0
        %2564 = vmatprep.subr.mxu0 0.0
        %2565 = vmatpush1.msra.mxu0 0.0
        %2566 = vmatprep.subr.mxu0 0.0
        %2567 = vmatpush1.msra.mxu0 0.0
        %2568 = vmatprep.subr.mxu0 0.0
        %2569 = vmatpush1.msra.mxu0 0.0
        %2570 = vmatprep.subr.mxu0 0.0
        %2571 = vmatpush1.msra.mxu0 0.0
        %2572 = vmatprep.subr.mxu0 0.0
        %2573 = vmatpush1.msra.mxu0 0.0
        %2574 = vmatprep.subr.mxu0 0.0
        %2575 = vmatpush1.msra.mxu0 0.0
        %2576 = vmatprep.subr.mxu0 0.0
        %2577 = vmatpush1.msra.mxu0 %v2554
        %2578 = vmatprep.subr.mxu0 0.0
        %2579 = vmatpush1.msra.mxu0 %v2546
        %2580 = vmatprep.subr.mxu0 0.0
        %2581 = vmatpush1.msra.mxu0 %v2545
        %2582 = vmatprep.subr.mxu0 0.0
        %2583 = vmatpush1.msra.mxu0 %v2544
        %2584 = vmatprep.subr.mxu0 0.0
        %2585 = vmatpush1.msra.mxu0 %v2543
        %2586 = vmatprep.subr.mxu0 0.0
        %2587 = vmatpush1.msra.mxu0 %v2542
        %2588 = vmatprep.subr.mxu0 0.0
        %2589 = vmatpush2.msra.mxu0 0.0
        %2590 = vmatprep.subr.mxu0 0.0
        %2591 = vmatpush2.msra.mxu0 0.0
        %2592 = vmatprep.subr.mxu0 0.0
        %2593 = vmatpush2.msra.mxu0 0.0
        %2594 = vmatprep.subr.mxu0 0.0
        %2595 = vmatpush2.msra.mxu0 0.0
        %2596 = vmatprep.subr.mxu0 0.0
        %2597 = vmatpush2.msra.mxu0 0.0
        %2598 = vmatprep.subr.mxu0 0.0
        %2599 = vmatpush2.msra.mxu0 0.0
        %2600 = vmatprep.subr.mxu0 0.0
        %2601 = vmatpush2.msra.mxu0 0.0
        %2602 = vmatprep.subr.mxu0 0.0
        %2603 = vmatpush2.msra.mxu0 0.0
        %2604 = vmatprep.subr.mxu0 0.0
        %2605 = vmatpush2.msra.mxu0 0.0
        %2606 = vmatprep.subr.mxu0 0.0
        %2607 = vmatpush2.msra.mxu0 0.0
        %2608 = vmatprep.subr.mxu0 0.0
        %2609 = vmatpush2.msra.mxu0 0.0
        %2610 = vmatprep.subr.mxu0 0.0
        %2611 = vmatpush2.msra.mxu0 0.0
        %2612 = vmatprep.subr.mxu0 0.0
        %2613 = vmatpush2.msra.mxu0 0.0
        %2614 = vmatprep.subr.mxu0 0.0
        %2615 = vmatpush2.msra.mxu0 0.0
        %2616 = vmatprep.subr.mxu0 0.0
        %2617 = vmatpush2.msra.mxu0 0.0
        %2618 = vmatprep.subr.mxu0 0.0
        %2619 = vmatpush2.msra.mxu0 0.0
        %2620 = vmatprep.mubr.f32.mxu0 0.0
        %2621 = vmatmul.mubr.f32.gmra.mxu0 %v2550
        %v2622 = vpop.f32.mrf.mxu0
        %v2623 = vadd.f32 0.0, %v2622
        %v2624 = vpop.f32.mrf.mxu0
        %2625 = vdwg.mxu0
        %v2626 = vadd.f32 %v368, %v2623
      $region65: #{conv_nn_forward.3} parent=59 // loop_footer
        %s367 = sadd.s32 1, %s363
      $region66: #{conv_nn_forward.3} parent=59 // loop_footer_branch
        %362 = sbr.rel target = $region62
      $region67: #{conv_nn_forward.3} parent=59 // loop_exit
        _
      %v2627 = vld [vmem:[%s6] sm:$0xff]
      %v2628 = vld [vmem:[%s6 + $0x8] sm:$0xff]
      %v2629 = vld [vmem:[%s6 + $0x10] sm:$0xff]
      %v2630 = vld [vmem:[%s6 + $0x18] sm:$0xff]
      %v2631 = vld [vmem:[%s6 + $0x20] sm:$0xff]
      %v2632 = vld [vmem:[%s6 + $0x28] sm:$0xff]
      %v2633 = vld [vmem:[%s6 + $0x30] sm:$0xff]
      %v2634 = vld [vmem:[%s6 + $0x38] sm:$0xff]
      %v2635 = vld [vmem:[%s6 + $0x40] sm:$0xff]
      %v2636 = vld [vmem:[%s6 + $0x48] sm:$0xff]
      %v2637 = vld [vmem:[%s6 + $0x50] sm:$0xff]
      %v2638 = vld [vmem:[%s6 + $0x58] sm:$0xff]
      %v2639 = vld [vmem:[%s6 + $0x60] sm:$0xff]
      %v2640 = vld [vmem:[%s6 + $0x68] sm:$0xff]
      %v2641 = vld [vmem:[%s6 + $0x70] sm:$0xff]
      %v2642 = vld [vmem:[%s6 + $0x78] sm:$0xff]
      %v2643 = vld [vmem:[%s7] sm:$0x1]
      %2644 = vmatprep.subr.mxu0 0.0
      %2645 = vmatpush1.msra.mxu0 %v2642
      %2646 = vmatprep.subr.mxu0 0.0
      %2647 = vmatpush1.msra.mxu0 %v2641
      %2648 = vmatprep.subr.mxu0 0.0
      %2649 = vmatpush1.msra.mxu0 %v2640
      %2650 = vmatprep.subr.mxu0 0.0
      %2651 = vmatpush1.msra.mxu0 %v2639
      %2652 = vmatprep.subr.mxu0 0.0
      %2653 = vmatpush1.msra.mxu0 %v2638
      %2654 = vmatprep.subr.mxu0 0.0
      %2655 = vmatpush1.msra.mxu0 %v2637
      %2656 = vmatprep.subr.mxu0 0.0
      %2657 = vmatpush1.msra.mxu0 %v2636
      %2658 = vmatprep.subr.mxu0 0.0
      %2659 = vmatpush1.msra.mxu0 %v2635
      %2660 = vmatprep.subr.mxu0 0.0
      %2661 = vmatpush1.msra.mxu0 %v2634
      %2662 = vmatprep.subr.mxu0 0.0
      %2663 = vmatpush1.msra.mxu0 %v2633
      %2664 = vmatprep.subr.mxu0 0.0
      %2665 = vmatpush1.msra.mxu0 %v2632
      %2666 = vmatprep.subr.mxu0 0.0
      %2667 = vmatpush1.msra.mxu0 %v2631
      %2668 = vmatprep.subr.mxu0 0.0
      %2669 = vmatpush1.msra.mxu0 %v2630
      %2670 = vmatprep.subr.mxu0 0.0
      %2671 = vmatpush1.msra.mxu0 %v2629
      %2672 = vmatprep.subr.mxu0 0.0
      %2673 = vmatpush1.msra.mxu0 %v2628
      %2674 = vmatprep.subr.mxu0 0.0
      %2675 = vmatpush1.msra.mxu0 %v2627
      %2676 = vmatprep.subr.mxu0 0.0
      %2677 = vmatpush2.msra.mxu0 0.0
      %2678 = vmatprep.subr.mxu0 0.0
      %2679 = vmatpush2.msra.mxu0 0.0
      %2680 = vmatprep.subr.mxu0 0.0
      %2681 = vmatpush2.msra.mxu0 0.0
      %2682 = vmatprep.subr.mxu0 0.0
      %2683 = vmatpush2.msra.mxu0 0.0
      %2684 = vmatprep.subr.mxu0 0.0
      %2685 = vmatpush2.msra.mxu0 0.0
      %2686 = vmatprep.subr.mxu0 0.0
      %2687 = vmatpush2.msra.mxu0 0.0
      %2688 = vmatprep.subr.mxu0 0.0
      %2689 = vmatpush2.msra.mxu0 0.0
      %2690 = vmatprep.subr.mxu0 0.0
      %2691 = vmatpush2.msra.mxu0 0.0
      %2692 = vmatprep.subr.mxu0 0.0
      %2693 = vmatpush2.msra.mxu0 0.0
      %2694 = vmatprep.subr.mxu0 0.0
      %2695 = vmatpush2.msra.mxu0 0.0
      %2696 = vmatprep.subr.mxu0 0.0
      %2697 = vmatpush2.msra.mxu0 0.0
      %2698 = vmatprep.subr.mxu0 0.0
      %2699 = vmatpush2.msra.mxu0 0.0
      %2700 = vmatprep.subr.mxu0 0.0
      %2701 = vmatpush2.msra.mxu0 0.0
      %2702 = vmatprep.subr.mxu0 0.0
      %2703 = vmatpush2.msra.mxu0 0.0
      %2704 = vmatprep.subr.mxu0 0.0
      %2705 = vmatpush2.msra.mxu0 0.0
      %2706 = vmatprep.subr.mxu0 0.0
      %2707 = vmatpush2.msra.mxu0 0.0
      %2708 = vmatprep.mubr.f32.mxu0 0.0
      %2709 = vmatmul.mubr.f32.gmra.mxu0 %v368
      %v2710 = vpop.f32.mrf.mxu0
      %v2711 = vadd.f32 %v2643, %v2710
      %v2712 = vpop.f32.mrf.mxu0
      %2713 = vdwg.mxu0
      %v2714 = vld [vmem:[%s8] sm:$0x1]
      %v2715 = vmul.f32 %v2711, %v2714
      %vm2716 = vcmask 253952
      %v2717 = vsel %vm2716, %v2715, 0.0
      %2718 = vadd.xlane.f32.xlu0 %v2717
      %v2719 = vpop.xlane.xlu0 %2718
      %v2720 = vrot.slane %v2719, 4
      %v2721 = vadd.f32 %v2719, %v2720
      %v2722 = vrot.slane %v2721, 2
      %v2723 = vadd.f32 %v2721, %v2722
      %v2724 = vrot.slane %v2723, 1
      %v2725 = vadd.f32 %v2723, %v2724
      %s2726 = vtos %v2725
      %s2727 = sld [smem:[#allocation4]]
      %s2728 = sadd.f32 %s2726, %s2727
      %v2729 = vstv %s2728
      %v2730 = vadd.f32 %v2729, 0.0
      %2731 = vst [vmem:[%s358] sm:$0x1] %v2730
      %p2732 = scmp.lt.s32.totalorder %s24, 1
      %s2733 = scalar_select %p2732, %s24, 1
      %s2734 = scalar_lea.vmem %s10, %s2733
      // Predicated region
      $region68: #{conv_nn_forward.3} parent=59 // pred_check
        %p2735 = pneg %p257
      $region69: #{conv_nn_forward.3} parent=59 // pred_check_branch
        %2737 = sbr.rel (%p2735) target = $region71
      $region70: #{conv_nn_forward.3} parent=59 // pred_region
        _
      $region71: #{conv_nn_forward.3} parent=59 // pred_fallthru
        _
    $region60: #{conv_nn_forward.3} parent=5 // pred_fallthru
      _
    %p2738 = scmp.le.s32.totalorder 2, %s19
    // Predicated region
    $region72: #{conv_nn_forward.3} parent=5 // pred_check
      %p2739 = pneg %p2738
    $region73: #{conv_nn_forward.3} parent=5 // pred_check_branch
      %2741 = sbr.rel (%p2739) target = $region75
    $region74: #{conv_nn_forward.3} parent=5 // pred_region
      %s2742 = ssub.s32 %s19, 2
      // Predicated region
      $region76: #{conv_nn_forward.3} parent=74 // pred_check
        %p2743 = pneg %p263
      $region77: #{conv_nn_forward.3} parent=74 // pred_check_branch
        %2745 = sbr.rel (%p2743) target = $region79
      $region78: #{conv_nn_forward.3} parent=74 // pred_region
        %p2746 = scmp.lt.s32.totalorder %s25, 1
        %s2747 = scalar_select %p2746, %s25, 1
        %s2748 = scalar_lea.vmem %s10, %s2747
      $region79: #{conv_nn_forward.3} parent=74 // pred_fallthru
        _
    $region75: #{conv_nn_forward.3} parent=5 // pred_fallthru
      _
  $region6: #{conv_nn_forward.3} parent=0 // loop_footer
    %s23 = sadd.s32 1, %s19
  $region7: #{conv_nn_forward.3} parent=0 // loop_footer_branch
    %18 = sbr.rel target = $region3
  $region8: #{conv_nn_forward.3} parent=0 // loop_exit
    _

// kernel: conv_nn_forward.2
$region0: #{conv_nn_forward.2}
  #allocation0 [shape = 'u32[]', space=smem, size = 0x4, offset = 0x4, fixed_abs, tag = 'smem constant byte address 0x4 - core index']
  #allocation1 [shape = 'u32[144,128]{1,0:T(1,128)}', space=vmem, size = 0x12000, scoped, tag = 'internal scratch']
  #allocation2 [shape = 'bf16[6272,98]{1,0:T(8,128)(2,1)}', space=vmem, size = 0x188000, scoped, tag = 'scratch operand']
  #allocation3 [shape = 'f32[1]{0:T(128)S(6)}', space=smem, size = 0x200, scoped, tag = 'scoped memory for conv_nn_forward.2']
  %s0 = inlined_call_operand.vmem [shape: f32[2,198,99], index: 0, kind: input, shape index: {}]
  %s1 = inlined_call_operand.vmem [shape: f32[2,198,99], index: 1, kind: input, shape index: {}]
  %s2 = inlined_call_operand.hbm [shape: f32[3,3,56,98], index: 2, kind: input, shape index: {}]
  %s3 = inlined_call_operand.vmem [shape: f32[56,1], index: 3, kind: input, shape index: {}]
  %s4 = inlined_call_operand.vmem [shape: bf16[3,128,192], index: 4, kind: input, shape index: {}]
  %s5 = inlined_call_operand.vmem [shape: f32[128,1], index: 5, kind: input, shape index: {}]
  %s6 = inlined_call_operand.vmem [shape: bf16[95,48], index: 6, kind: input, shape index: {}]
  %s7 = inlined_call_operand.<no memory space> [shape: f32[1], index: 7, kind: input, shape index: {}]
  %s8 = inlined_call_operand.vmem [shape: bf16[2,48,128,48], index: 8, kind: output, shape index: {}]
  %s9 = sld [smem:[#allocation0]]
  $region83: #{conv_nn_forward.2} parent=0
    _
  %s11 = ssub.s32 1, %s9
  %s12 = scalar_select 0, %s11, %s9
  %13 = sst [smem:[#allocation3]] %s7
  $region1: #{conv_nn_forward.2} parent=0
    #allocation4 [shape = 'u8[258048]{0}', space=vmem, size = 0x3f000, scoped, tag = 'input window, operand 2, single buffered']
    #allocation5 [shape = 's32[2]{0}', space=sflag, size = 0x8, scoped, tag = 'scoped memory for conv_nn_forward.2']
    %14 = vsyncpa [#allocation5], 0
    loop: start=0, step=1, limit=4
    $region2: #{conv_nn_forward.2} parent=1 // loop_pre_header
      _
    $region3: #{conv_nn_forward.2} parent=1 // loop_header
      %s16 = sphi 0, %s20
      %p17 = scmp.ge.s32.totalorder %s16, 4
      %s26 = sphi 0, %s28
      %s29 = sphi 0, %s26
      %s30 = sphi 0, %s29
      %s46 = sphi 0, %s30
      %s52 = sphi 0, %s54
      %s55 = sphi 0, %s52
      %s56 = sphi 0, %s55
      %s72 = sphi 0, %s56
      %s76 = sphi 0, %s76
      %s78 = sphi 0, %s76
      %s79 = sphi 0, %s78
      %s93 = sphi 0, %s79
      %s97 = sphi 0, %s97
      %s99 = sphi 0, %s97
      %s100 = sphi 0, %s99
      %s114 = sphi 0, %s100
      %s118 = sphi 0, %s118
      %s120 = sphi 0, %s118
      %s121 = sphi 0, %s120
      %s135 = sphi 0, %s121
      %s139 = sphi 0, %s139
      %s141 = sphi 0, %s139
      %s142 = sphi 0, %s141
      %s156 = sphi 0, %s142
      %s160 = sphi 0, %s160
      %s162 = sphi 0, %s160
      %s163 = sphi 0, %s162
      %s177 = sphi 0, %s163
      %s181 = sphi 0, %s181
      %s183 = sphi 0, %s181
      %s184 = sphi 0, %s183
      %s198 = sphi 0, %s184
      %s204 = sphi 0, %s206
      %s207 = sphi 0, %s204
      %s208 = sphi 0, %s207
      %s224 = sphi 0, %s208
    $region4: #{conv_nn_forward.2} parent=1 // loop_header_branch
      %19 = sbr.rel (%p17) target = $region8
    $region5: #{conv_nn_forward.2} parent=1 // loop_body
      %s21 = ssub.s32 %s16, 1
      %s22 = ssub.s32 %s16, 2
      %s23 = sadd.s32 %s16, 1
      %s24 = ssub.s32 %s16, %s23
      %p25 = scmp.eq.s32.totalorder %s24, 0
      %s27 = sadd.s32 %s26, 1
      %s28 = scalar_select %p25, %s26, %s27
      %p31 = pneg %p25
      %p32 = scmp.eq.s32.totalorder %s16, 1
      %p33 = por %p31, %p32
      %p34 = scmp.ne.s32.totalorder %s26, %s29
      %p35 = scmp.eq.s32.totalorder %s16, 0
      %p36 = por %p34, %p35
      %p37 = scmp.ne.s32.totalorder %s26, %s29
      %p38 = scmp.eq.s32.totalorder %s21, 1
      %p39 = por %p37, %p38
      %p40 = scmp.ne.s32.totalorder %s29, %s30
      %p41 = scmp.eq.s32.totalorder %s21, 0
      %p42 = por %p40, %p41
      %p43 = scmp.ne.s32.totalorder %s29, %s30
      %p44 = scmp.eq.s32.totalorder %s22, 1
      %p45 = por %p43, %p44
      %p47 = scmp.ne.s32.totalorder %s30, %s46
      %p48 = scmp.eq.s32.totalorder %s22, 0
      %p49 = por %p47, %p48
      %s50 = ssub.s32 %s16, %s23
      %p51 = scmp.eq.s32.totalorder %s50, 0
      %s53 = sadd.s32 %s52, 1
      %s54 = scalar_select %p51, %s52, %s53
      %p57 = pneg %p51
      %p58 = scmp.eq.s32.totalorder %s16, 1
      %p59 = por %p57, %p58
      %p60 = scmp.ne.s32.totalorder %s52, %s55
      %p61 = scmp.eq.s32.totalorder %s16, 0
      %p62 = por %p60, %p61
      %p63 = scmp.ne.s32.totalorder %s52, %s55
      %p64 = scmp.eq.s32.totalorder %s21, 1
      %p65 = por %p63, %p64
      %p66 = scmp.ne.s32.totalorder %s55, %s56
      %p67 = scmp.eq.s32.totalorder %s21, 0
      %p68 = por %p66, %p67
      %p69 = scmp.ne.s32.totalorder %s55, %s56
      %p70 = scmp.eq.s32.totalorder %s22, 1
      %p71 = por %p69, %p70
      %p73 = scmp.ne.s32.totalorder %s56, %s72
      %p74 = scmp.eq.s32.totalorder %s22, 0
      %p75 = por %p73, %p74
      %s77 = sadd.s32 %s76, 1
      %p80 = scmp.eq.s32.totalorder %s16, 1
      %p81 = scmp.ne.s32.totalorder %s76, %s78
      %p82 = scmp.eq.s32.totalorder %s16, 0
      %p83 = por %p81, %p82
      %p84 = scmp.ne.s32.totalorder %s76, %s78
      %p85 = scmp.eq.s32.totalorder %s21, 1
      %p86 = por %p84, %p85
      %p87 = scmp.ne.s32.totalorder %s78, %s79
      %p88 = scmp.eq.s32.totalorder %s21, 0
      %p89 = por %p87, %p88
      %p90 = scmp.ne.s32.totalorder %s78, %s79
      %p91 = scmp.eq.s32.totalorder %s22, 1
      %p92 = por %p90, %p91
      %p94 = scmp.ne.s32.totalorder %s79, %s93
      %p95 = scmp.eq.s32.totalorder %s22, 0
      %p96 = por %p94, %p95
      %s98 = sadd.s32 %s97, 1
      %p101 = scmp.eq.s32.totalorder %s16, 1
      %p102 = scmp.ne.s32.totalorder %s97, %s99
      %p103 = scmp.eq.s32.totalorder %s16, 0
      %p104 = por %p102, %p103
      %p105 = scmp.ne.s32.totalorder %s97, %s99
      %p106 = scmp.eq.s32.totalorder %s21, 1
      %p107 = por %p105, %p106
      %p108 = scmp.ne.s32.totalorder %s99, %s100
      %p109 = scmp.eq.s32.totalorder %s21, 0
      %p110 = por %p108, %p109
      %p111 = scmp.ne.s32.totalorder %s99, %s100
      %p112 = scmp.eq.s32.totalorder %s22, 1
      %p113 = por %p111, %p112
      %p115 = scmp.ne.s32.totalorder %s100, %s114
      %p116 = scmp.eq.s32.totalorder %s22, 0
      %p117 = por %p115, %p116
      %s119 = sadd.s32 %s118, 1
      %p122 = scmp.eq.s32.totalorder %s16, 1
      %p123 = scmp.ne.s32.totalorder %s118, %s120
      %p124 = scmp.eq.s32.totalorder %s16, 0
      %p125 = por %p123, %p124
      %p126 = scmp.ne.s32.totalorder %s118, %s120
      %p127 = scmp.eq.s32.totalorder %s21, 1
      %p128 = por %p126, %p127
      %p129 = scmp.ne.s32.totalorder %s120, %s121
      %p130 = scmp.eq.s32.totalorder %s21, 0
      %p131 = por %p129, %p130
      %p132 = scmp.ne.s32.totalorder %s120, %s121
      %p133 = scmp.eq.s32.totalorder %s22, 1
      %p134 = por %p132, %p133
      %p136 = scmp.ne.s32.totalorder %s121, %s135
      %p137 = scmp.eq.s32.totalorder %s22, 0
      %p138 = por %p136, %p137
      %s140 = sadd.s32 %s139, 1
      %p143 = scmp.eq.s32.totalorder %s16, 1
      %p144 = scmp.ne.s32.totalorder %s139, %s141
      %p145 = scmp.eq.s32.totalorder %s16, 0
      %p146 = por %p144, %p145
      %p147 = scmp.ne.s32.totalorder %s139, %s141
      %p148 = scmp.eq.s32.totalorder %s21, 1
      %p149 = por %p147, %p148
      %p150 = scmp.ne.s32.totalorder %s141, %s142
      %p151 = scmp.eq.s32.totalorder %s21, 0
      %p152 = por %p150, %p151
      %p153 = scmp.ne.s32.totalorder %s141, %s142
      %p154 = scmp.eq.s32.totalorder %s22, 1
      %p155 = por %p153, %p154
      %p157 = scmp.ne.s32.totalorder %s142, %s156
      %p158 = scmp.eq.s32.totalorder %s22, 0
      %p159 = por %p157, %p158
      %s161 = sadd.s32 %s160, 1
      %p164 = scmp.eq.s32.totalorder %s16, 1
      %p165 = scmp.ne.s32.totalorder %s160, %s162
      %p166 = scmp.eq.s32.totalorder %s16, 0
      %p167 = por %p165, %p166
      %p168 = scmp.ne.s32.totalorder %s160, %s162
      %p169 = scmp.eq.s32.totalorder %s21, 1
      %p170 = por %p168, %p169
      %p171 = scmp.ne.s32.totalorder %s162, %s163
      %p172 = scmp.eq.s32.totalorder %s21, 0
      %p173 = por %p171, %p172
      %p174 = scmp.ne.s32.totalorder %s162, %s163
      %p175 = scmp.eq.s32.totalorder %s22, 1
      %p176 = por %p174, %p175
      %p178 = scmp.ne.s32.totalorder %s163, %s177
      %p179 = scmp.eq.s32.totalorder %s22, 0
      %p180 = por %p178, %p179
      %s182 = sadd.s32 %s181, 1
      %p185 = scmp.eq.s32.totalorder %s16, 1
      %p186 = scmp.ne.s32.totalorder %s181, %s183
      %p187 = scmp.eq.s32.totalorder %s16, 0
      %p188 = por %p186, %p187
      %p189 = scmp.ne.s32.totalorder %s181, %s183
      %p190 = scmp.eq.s32.totalorder %s21, 1
      %p191 = por %p189, %p190
      %p192 = scmp.ne.s32.totalorder %s183, %s184
      %p193 = scmp.eq.s32.totalorder %s21, 0
      %p194 = por %p192, %p193
      %p195 = scmp.ne.s32.totalorder %s183, %s184
      %p196 = scmp.eq.s32.totalorder %s22, 1
      %p197 = por %p195, %p196
      %p199 = scmp.ne.s32.totalorder %s184, %s198
      %p200 = scmp.eq.s32.totalorder %s22, 0
      %p201 = por %p199, %p200
      %s202 = ssub.s32 %s16, %s23
      %p203 = scmp.eq.s32.totalorder %s202, 0
      %s205 = sadd.s32 %s204, 1
      %s206 = scalar_select %p203, %s204, %s205
      %p209 = pneg %p203
      %p210 = scmp.eq.s32.totalorder %s16, 1
      %p211 = por %p209, %p210
      %p212 = scmp.ne.s32.totalorder %s204, %s207
      %p213 = scmp.eq.s32.totalorder %s16, 0
      %p214 = por %p212, %p213
      %p215 = scmp.ne.s32.totalorder %s204, %s207
      %p216 = scmp.eq.s32.totalorder %s21, 1
      %p217 = por %p215, %p216
      %p218 = scmp.ne.s32.totalorder %s207, %s208
      %p219 = scmp.eq.s32.totalorder %s21, 0
      %p220 = por %p218, %p219
      %p221 = scmp.ne.s32.totalorder %s207, %s208
      %p222 = scmp.eq.s32.totalorder %s22, 1
      %p223 = por %p221, %p222
      %p225 = scmp.ne.s32.totalorder %s208, %s224
      %p226 = scmp.eq.s32.totalorder %s22, 0
      %p227 = por %p225, %p226
      %p228 = scmp.le.s32.totalorder 1, %s16
      %p229 = scmp.lt.s32.totalorder %s16, 3
      %p230 = pnand %p228, %p229
      %p231 = pneg %p230
      // Predicated region
      $region9: #{conv_nn_forward.2} parent=5 // pred_check
        _
      $region10: #{conv_nn_forward.2} parent=5 // pred_check_branch
        %233 = sbr.rel (%p230) target = $region12
      $region11: #{conv_nn_forward.2} parent=5 // pred_region
        %s234 = ssub.s32 %s16, 1
        // Predicated region
        $region13: #{conv_nn_forward.2} parent=11 // pred_check
          %p235 = pneg %p89
        $region14: #{conv_nn_forward.2} parent=11 // pred_check_branch
          %237 = sbr.rel (%p235) target = $region16
        $region15: #{conv_nn_forward.2} parent=11 // pred_region
          %s239 = ssub.s32 8064, 8064
          %240 = vsyncadd [#allocation5], %s239
          %s241 = sshll.u32 [#allocation4], 4
          %s242 = int_to_ptr.vmem [resolvable:$true] %s241
          %247 = dma.hbm_to_vmem [thread:$0]  %s2, 8064, %s242, [#allocation5], 128, 128, 8
        $region16: #{conv_nn_forward.2} parent=11 // pred_fallthru
          _
        // Predicated region
        $region17: #{conv_nn_forward.2} parent=11 // pred_check
          %p248 = pneg %p110
        $region18: #{conv_nn_forward.2} parent=11 // pred_check_branch
          %250 = sbr.rel (%p248) target = $region20
        $region19: #{conv_nn_forward.2} parent=11 // pred_region
          _
        $region20: #{conv_nn_forward.2} parent=11 // pred_fallthru
          _
        // Predicated region
        $region21: #{conv_nn_forward.2} parent=11 // pred_check
          %p251 = pneg %p131
        $region22: #{conv_nn_forward.2} parent=11 // pred_check_branch
          %253 = sbr.rel (%p251) target = $region24
        $region23: #{conv_nn_forward.2} parent=11 // pred_region
          _
        $region24: #{conv_nn_forward.2} parent=11 // pred_fallthru
          _
        // Predicated region
        $region25: #{conv_nn_forward.2} parent=11 // pred_check
          %p254 = pneg %p152
        $region26: #{conv_nn_forward.2} parent=11 // pred_check_branch
          %256 = sbr.rel (%p254) target = $region28
        $region27: #{conv_nn_forward.2} parent=11 // pred_region
          _
        $region28: #{conv_nn_forward.2} parent=11 // pred_fallthru
          _
        // Predicated region
        $region29: #{conv_nn_forward.2} parent=11 // pred_check
          %p257 = pneg %p173
        $region30: #{conv_nn_forward.2} parent=11 // pred_check_branch
          %259 = sbr.rel (%p257) target = $region32
        $region31: #{conv_nn_forward.2} parent=11 // pred_region
          _
        $region32: #{conv_nn_forward.2} parent=11 // pred_fallthru
          _
        // Predicated region
        $region33: #{conv_nn_forward.2} parent=11 // pred_check
          %p260 = pneg %p194
        $region34: #{conv_nn_forward.2} parent=11 // pred_check_branch
          %262 = sbr.rel (%p260) target = $region36
        $region35: #{conv_nn_forward.2} parent=11 // pred_region
          _
        $region36: #{conv_nn_forward.2} parent=11 // pred_fallthru
          _
      $region12: #{conv_nn_forward.2} parent=5 // pred_fallthru
        _
      %p263 = scmp.lt.s32.totalorder %s16, 2
      // Predicated region
      $region37: #{conv_nn_forward.2} parent=5 // pred_check
        %p264 = pneg %p263
      $region38: #{conv_nn_forward.2} parent=5 // pred_check_branch
        %266 = sbr.rel (%p264) target = $region40
      $region39: #{conv_nn_forward.2} parent=5 // pred_region
        // Predicated region
        $region41: #{conv_nn_forward.2} parent=39 // pred_check
          %p267 = pneg %p36
        $region42: #{conv_nn_forward.2} parent=39 // pred_check_branch
          %269 = sbr.rel (%p267) target = $region44
        $region43: #{conv_nn_forward.2} parent=39 // pred_region
          %p270 = scmp.lt.s32.totalorder %s16, 1
          %s271 = scalar_select %p270, %s16, 1
          %s272 = smul.addr %s271, 25
          %s273 = smul.addr %s272, 8
          %s274 = scalar_lea.vmem %s0, %s273
        $region44: #{conv_nn_forward.2} parent=39 // pred_fallthru
          _
        // Predicated region
        $region45: #{conv_nn_forward.2} parent=39 // pred_check
          %p275 = pneg %p62
        $region46: #{conv_nn_forward.2} parent=39 // pred_check_branch
          %277 = sbr.rel (%p275) target = $region48
        $region47: #{conv_nn_forward.2} parent=39 // pred_region
          %p278 = scmp.lt.s32.totalorder %s16, 1
          %s279 = scalar_select %p278, %s16, 1
          %s280 = smul.addr %s279, 25
          %s281 = smul.addr %s280, 8
          %s282 = scalar_lea.vmem %s1, %s281
        $region48: #{conv_nn_forward.2} parent=39 // pred_fallthru
          _
      $region40: #{conv_nn_forward.2} parent=5 // pred_fallthru
        _
      %p283 = scmp.le.s32.totalorder 1, %s16
      %p284 = scmp.lt.s32.totalorder %s16, 3
      %p285 = pnand %p283, %p284
      %p286 = pneg %p285
      // Predicated region
      $region49: #{conv_nn_forward.2} parent=5 // pred_check
        _
      $region50: #{conv_nn_forward.2} parent=5 // pred_check_branch
        %288 = sbr.rel (%p285) target = $region52
      $region51: #{conv_nn_forward.2} parent=5 // pred_region
        %s289 = ssub.s32 %s16, 1
        // Predicated region
        $region53: #{conv_nn_forward.2} parent=51 // pred_check
          %p290 = pneg %p89
        $region54: #{conv_nn_forward.2} parent=51 // pred_check_branch
          %292 = sbr.rel (%p290) target = $region56
        $region55: #{conv_nn_forward.2} parent=51 // pred_region
          %293 = dma.done [#allocation5], 8064
        $region56: #{conv_nn_forward.2} parent=51 // pred_fallthru
          _
        %p294 = scmp.lt.s32.totalorder %s21, 1
        %s295 = scalar_select %p294, %s21, 1
        %s296 = smul.addr %s295, 25
        %s297 = smul.addr %s296, 8
        %s298 = scalar_lea.vmem %s0, %s297
        %p299 = pneg %p42
        %p300 = pneg %p39
        %p301 = scmp.lt.s32.totalorder %s21, 1
        %s302 = scalar_select %p301, %s21, 1
        %s303 = smul.addr %s302, 25
        %s304 = smul.addr %s303, 8
        %s305 = scalar_lea.vmem %s1, %s304
        %p306 = pneg %p68
        %p307 = pneg %p65
        %p308 = pneg %p89
        %p309 = pneg %p86
        %p310 = pneg %p110
        %p311 = pneg %p107
        %p312 = pneg %p131
        %p313 = pneg %p128
        %p314 = pneg %p152
        %p315 = pneg %p149
        %p316 = pneg %p173
        %p317 = pneg %p170
        %p318 = pneg %p194
        %p319 = pneg %p191
        %p320 = pneg %p220
        %p321 = pneg %p217
        %p322 = scmp.lt.s32.totalorder %s21, 1
        %s323 = scalar_select %p322, %s21, 1
        %s324 = smul.addr %s323, 768
        %s325 = smul.addr %s324, 4
        %s326 = scalar_lea.vmem %s8, %s325
        %p327 = scmp.lt.s32.totalorder %s21, 1
        %s328 = scalar_select %p327, %s21, 1
        %s329 = smul.addr %s328, 25
        %s330 = smul.addr %s329, 8
        %s331 = scalar_lea.vmem %s0, %s330
        %p332 = scmp.lt.s32.totalorder %s21, 1
        %s333 = scalar_select %p332, %s21, 1
        %s334 = smul.addr %s333, 25
        %s335 = smul.addr %s334, 8
        %s336 = scalar_lea.vmem %s1, %s335
        %p337 = scmp.lt.s32.totalorder %s21, 1
        %s338 = scalar_select %p337, %s21, 1
        %s339 = smul.addr %s338, 768
        %s340 = smul.addr %s339, 4
        %s341 = scalar_lea.vmem %s8, %s340
        %s343 = sld [smem:[#allocation3]]
        %v344 = vld [vmem:[%s3] sm:$0xff]
        %v345 = vld [vmem:[%s3 + $0x8] sm:$0xff]
        %v346 = vld [vmem:[%s3 + $0x10] sm:$0xff]
        %v347 = vld [vmem:[%s3 + $0x18] sm:$0xff]
        %v348 = vld [vmem:[%s3 + $0x20] sm:$0xff]
        %v349 = vld [vmem:[%s3 + $0x28] sm:$0xff]
        %v350 = vld [vmem:[%s3 + $0x30] sm:$0xff]
        %v351 = vld [vmem:[%s5] sm:$0xff]
        %v352 = vld [vmem:[%s5 + $0x8] sm:$0xff]
        %v353 = vld [vmem:[%s5 + $0x10] sm:$0xff]
        %v354 = vld [vmem:[%s5 + $0x18] sm:$0xff]
        %v355 = vld [vmem:[%s5 + $0x20] sm:$0xff]
        %v356 = vld [vmem:[%s5 + $0x28] sm:$0xff]
        %v357 = vld [vmem:[%s5 + $0x30] sm:$0xff]
        %v358 = vld [vmem:[%s5 + $0x38] sm:$0xff]
        %v359 = vld [vmem:[%s5 + $0x40] sm:$0xff]
        %v360 = vld [vmem:[%s5 + $0x48] sm:$0xff]
        %v361 = vld [vmem:[%s5 + $0x50] sm:$0xff]
        %v362 = vld [vmem:[%s5 + $0x58] sm:$0xff]
        %v363 = vld [vmem:[%s5 + $0x60] sm:$0xff]
        %v364 = vld [vmem:[%s5 + $0x68] sm:$0xff]
        %v365 = vld [vmem:[%s5 + $0x70] sm:$0xff]
        %v366 = vld [vmem:[%s5 + $0x78] sm:$0xff]
        %v367 = vld [vmem:[%s6] sm:$0xf]
        %v368 = vld [vmem:[%s6 + $0x4] sm:$0xf]
        %v369 = vld [vmem:[%s6 + $0x8] sm:$0xf]
        %v370 = vld [vmem:[%s6 + $0xc] sm:$0xf]
        %v371 = vld [vmem:[%s6 + $0x10] sm:$0xf]
        %v372 = vld [vmem:[%s6 + $0x14] sm:$0xf]
        %v373 = vld [vmem:[%s6 + $0x18] sm:$0xf]
        %v374 = vld [vmem:[%s6 + $0x1c] sm:$0xf]
        %v375 = vld [vmem:[%s6 + $0x20] sm:$0xf]
        %v376 = vld [vmem:[%s6 + $0x24] sm:$0xf]
        %v377 = vld [vmem:[%s6 + $0x28] sm:$0xf]
        %v378 = vld [vmem:[%s6 + $0x2c] sm:$0xf]
        %vm379 = vcmask 797696
        %380 = vst.msk [vmem:[#allocation2] sm:$0xf] %vm379, 0
        %381 = vst.msk [vmem:[#allocation2 + $0x4] sm:$0xf] %vm379, 0
        %382 = vst.msk [vmem:[#allocation2 + $0x8] sm:$0xf] %vm379, 0
        %383 = vst.msk [vmem:[#allocation2 + $0xc] sm:$0xf] %vm379, 0
        %384 = vst.msk [vmem:[#allocation2 + $0x10] sm:$0xf] %vm379, 0
        %385 = vst.msk [vmem:[#allocation2 + $0x14] sm:$0xf] %vm379, 0
        %386 = vst.msk [vmem:[#allocation2 + $0x18] sm:$0xf] %vm379, 0
        %387 = vst.msk [vmem:[#allocation2 + $0x1c] sm:$0xf] %vm379, 0
        %388 = vst.msk [vmem:[#allocation2 + $0x20] sm:$0xf] %vm379, 0
        %389 = vst.msk [vmem:[#allocation2 + $0x24] sm:$0xf] %vm379, 0
        %390 = vst.msk [vmem:[#allocation2 + $0x28] sm:$0xf] %vm379, 0
        %391 = vst.msk [vmem:[#allocation2 + $0x2c] sm:$0xf] %vm379, 0
        %392 = vst.msk [vmem:[#allocation2 + $0x30] sm:$0xf] %vm379, 0
        %393 = vst.msk [vmem:[#allocation2 + $0x34] sm:$0xf] %vm379, 0
        %394 = vst.msk [vmem:[#allocation2 + $0x38] sm:$0xf] %vm379, 0
        %395 = vst.msk [vmem:[#allocation2 + $0x3c] sm:$0xf] %vm379, 0
        %396 = vst.msk [vmem:[#allocation2 + $0x40] sm:$0xf] %vm379, 0
        %397 = vst.msk [vmem:[#allocation2 + $0x44] sm:$0xf] %vm379, 0
        %398 = vst.msk [vmem:[#allocation2 + $0x48] sm:$0xf] %vm379, 0
        %399 = vst.msk [vmem:[#allocation2 + $0x4c] sm:$0xf] %vm379, 0
        %400 = vst.msk [vmem:[#allocation2 + $0x50] sm:$0xf] %vm379, 0
        %401 = vst.msk [vmem:[#allocation2 + $0x54] sm:$0xf] %vm379, 0
        %402 = vst.msk [vmem:[#allocation2 + $0x58] sm:$0xf] %vm379, 0
        %403 = vst.msk [vmem:[#allocation2 + $0x5c] sm:$0xf] %vm379, 0
        %404 = vst.msk [vmem:[#allocation2 + $0x60] sm:$0xf] %vm379, 0
        %405 = vst.msk [vmem:[#allocation2 + $0x64] sm:$0xf] %vm379, 0
        %406 = vst.msk [vmem:[#allocation2 + $0x68] sm:$0xf] %vm379, 0
        %407 = vst.msk [vmem:[#allocation2 + $0x6c] sm:$0xf] %vm379, 0
        %408 = vst.msk [vmem:[#allocation2 + $0x70] sm:$0xf] %vm379, 0
        %409 = vst.msk [vmem:[#allocation2 + $0x74] sm:$0xf] %vm379, 0
        %410 = vst.msk [vmem:[#allocation2 + $0x78] sm:$0xf] %vm379, 0
        %411 = vst.msk [vmem:[#allocation2 + $0x7c] sm:$0xf] %vm379, 0
        %412 = vst.msk [vmem:[#allocation2 + $0x80] sm:$0xf] %vm379, 0
        %413 = vst.msk [vmem:[#allocation2 + $0x84] sm:$0xf] %vm379, 0
        %414 = vst.msk [vmem:[#allocation2 + $0x88] sm:$0xf] %vm379, 0
        %415 = vst.msk [vmem:[#allocation2 + $0x8c] sm:$0xf] %vm379, 0
        %416 = vst.msk [vmem:[#allocation2 + $0x90] sm:$0xf] %vm379, 0
        %417 = vst.msk [vmem:[#allocation2 + $0x94] sm:$0xf] %vm379, 0
        %418 = vst.msk [vmem:[#allocation2 + $0x98] sm:$0xf] %vm379, 0
        %419 = vst.msk [vmem:[#allocation2 + $0x9c] sm:$0xf] %vm379, 0
        %420 = vst.msk [vmem:[#allocation2 + $0xa0] sm:$0xf] %vm379, 0
        %421 = vst.msk [vmem:[#allocation2 + $0xa4] sm:$0xf] %vm379, 0
        %422 = vst.msk [vmem:[#allocation2 + $0xa8] sm:$0xf] %vm379, 0
        %423 = vst.msk [vmem:[#allocation2 + $0xac] sm:$0xf] %vm379, 0
        %424 = vst.msk [vmem:[#allocation2 + $0xb0] sm:$0xf] %vm379, 0
        %425 = vst.msk [vmem:[#allocation2 + $0xb4] sm:$0xf] %vm379, 0
        %426 = vst.msk [vmem:[#allocation2 + $0xb8] sm:$0xf] %vm379, 0
        %427 = vst.msk [vmem:[#allocation2 + $0xbc] sm:$0xf] %vm379, 0
        %428 = vst.msk [vmem:[#allocation2 + $0xc0] sm:$0xf] %vm379, 0
        %429 = vst.msk [vmem:[#allocation2 + $0xc4] sm:$0xf] %vm379, 0
        %430 = vst.msk [vmem:[#allocation2 + $0xc8] sm:$0xf] %vm379, 0
        %431 = vst.msk [vmem:[#allocation2 + $0xcc] sm:$0xf] %vm379, 0
        %432 = vst.msk [vmem:[#allocation2 + $0xd0] sm:$0xf] %vm379, 0
        %433 = vst.msk [vmem:[#allocation2 + $0xd4] sm:$0xf] %vm379, 0
        %434 = vst.msk [vmem:[#allocation2 + $0xd8] sm:$0xf] %vm379, 0
        %435 = vst.msk [vmem:[#allocation2 + $0xdc] sm:$0xf] %vm379, 0
        %436 = vst.msk [vmem:[#allocation2 + $0xe0] sm:$0xf] %vm379, 0
        %437 = vst.msk [vmem:[#allocation2 + $0xe4] sm:$0xf] %vm379, 0
        %438 = vst.msk [vmem:[#allocation2 + $0xe8] sm:$0xf] %vm379, 0
        %439 = vst.msk [vmem:[#allocation2 + $0xec] sm:$0xf] %vm379, 0
        %440 = vst.msk [vmem:[#allocation2 + $0xf0] sm:$0xf] %vm379, 0
        %441 = vst.msk [vmem:[#allocation2 + $0xf4] sm:$0xf] %vm379, 0
        %442 = vst.msk [vmem:[#allocation2 + $0xf8] sm:$0xf] %vm379, 0
        %443 = vst.msk [vmem:[#allocation2 + $0xfc] sm:$0xf] %vm379, 0
        %444 = vst.msk [vmem:[#allocation2 + $0x100] sm:$0xf] %vm379, 0
        %445 = vst.msk [vmem:[#allocation2 + $0x104] sm:$0xf] %vm379, 0
        %446 = vst.msk [vmem:[#allocation2 + $0x108] sm:$0xf] %vm379, 0
        %447 = vst.msk [vmem:[#allocation2 + $0x10c] sm:$0xf] %vm379, 0
        %448 = vst.msk [vmem:[#allocation2 + $0x110] sm:$0xf] %vm379, 0
        %449 = vst.msk [vmem:[#allocation2 + $0x114] sm:$0xf] %vm379, 0
        %450 = vst.msk [vmem:[#allocation2 + $0x118] sm:$0xf] %vm379, 0
        %451 = vst.msk [vmem:[#allocation2 + $0x11c] sm:$0xf] %vm379, 0
        %452 = vst.msk [vmem:[#allocation2 + $0x120] sm:$0xf] %vm379, 0
        %453 = vst.msk [vmem:[#allocation2 + $0x124] sm:$0xf] %vm379, 0
        %454 = vst.msk [vmem:[#allocation2 + $0x128] sm:$0xf] %vm379, 0
        %455 = vst.msk [vmem:[#allocation2 + $0x12c] sm:$0xf] %vm379, 0
        %456 = vst.msk [vmem:[#allocation2 + $0x130] sm:$0xf] %vm379, 0
        %457 = vst.msk [vmem:[#allocation2 + $0x134] sm:$0xf] %vm379, 0
        %458 = vst.msk [vmem:[#allocation2 + $0x138] sm:$0xf] %vm379, 0
        %459 = vst.msk [vmem:[#allocation2 + $0x13c] sm:$0xf] %vm379, 0
        %460 = vst.msk [vmem:[#allocation2 + $0x140] sm:$0xf] %vm379, 0
        %461 = vst.msk [vmem:[#allocation2 + $0x144] sm:$0xf] %vm379, 0
        %462 = vst.msk [vmem:[#allocation2 + $0x148] sm:$0xf] %vm379, 0
        %463 = vst.msk [vmem:[#allocation2 + $0x14c] sm:$0xf] %vm379, 0
        %464 = vst.msk [vmem:[#allocation2 + $0x150] sm:$0xf] %vm379, 0
        %465 = vst.msk [vmem:[#allocation2 + $0x154] sm:$0xf] %vm379, 0
        %466 = vst.msk [vmem:[#allocation2 + $0x158] sm:$0xf] %vm379, 0
        %467 = vst.msk [vmem:[#allocation2 + $0x15c] sm:$0xf] %vm379, 0
        %468 = vst.msk [vmem:[#allocation2 + $0x160] sm:$0xf] %vm379, 0
        %469 = vst.msk [vmem:[#allocation2 + $0x164] sm:$0xf] %vm379, 0
        %470 = vst.msk [vmem:[#allocation2 + $0x168] sm:$0xf] %vm379, 0
        %471 = vst.msk [vmem:[#allocation2 + $0x16c] sm:$0xf] %vm379, 0
        %472 = vst.msk [vmem:[#allocation2 + $0x170] sm:$0xf] %vm379, 0
        %473 = vst.msk [vmem:[#allocation2 + $0x174] sm:$0xf] %vm379, 0
        %474 = vst.msk [vmem:[#allocation2 + $0x178] sm:$0xf] %vm379, 0
        %475 = vst.msk [vmem:[#allocation2 + $0x17c] sm:$0xf] %vm379, 0
        %476 = vst.msk [vmem:[#allocation2 + $0x180] sm:$0xf] %vm379, 0
        %477 = vst.msk [vmem:[#allocation2 + $0x184] sm:$0xf] %vm379, 0
        %478 = vst.msk [vmem:[#allocation2 + $0x188] sm:$0xf] %vm379, 0
        %479 = vst.msk [vmem:[#allocation2 + $0x18c] sm:$0xf] %vm379, 0
        %480 = vst.msk [vmem:[#allocation2 + $0x190] sm:$0xf] %vm379, 0
        %481 = vst.msk [vmem:[#allocation2 + $0x194] sm:$0xf] %vm379, 0
        %482 = vst.msk [vmem:[#allocation2 + $0x198] sm:$0xf] %vm379, 0
        %483 = vst.msk [vmem:[#allocation2 + $0x19c] sm:$0xf] %vm379, 0
        %484 = vst.msk [vmem:[#allocation2 + $0x1a0] sm:$0xf] %vm379, 0
        %485 = vst.msk [vmem:[#allocation2 + $0x1a4] sm:$0xf] %vm379, 0
        %486 = vst.msk [vmem:[#allocation2 + $0x1a8] sm:$0xf] %vm379, 0
        %487 = vst.msk [vmem:[#allocation2 + $0x1ac] sm:$0xf] %vm379, 0
        %488 = vst.msk [vmem:[#allocation2 + $0x1b0] sm:$0xf] %vm379, 0
        %489 = vst.msk [vmem:[#allocation2 + $0x1b4] sm:$0xf] %vm379, 0
        %490 = vst.msk [vmem:[#allocation2 + $0x1b8] sm:$0xf] %vm379, 0
        %491 = vst.msk [vmem:[#allocation2 + $0x1bc] sm:$0xf] %vm379, 0
        %492 = vst.msk [vmem:[#allocation2 + $0x1c0] sm:$0xf] %vm379, 0
        %493 = vst.msk [vmem:[#allocation2 + $0x1c4] sm:$0xf] %vm379, 0
        %494 = vst.msk [vmem:[#allocation2 + $0x1c8] sm:$0xf] %vm379, 0
        %495 = vst.msk [vmem:[#allocation2 + $0x1cc] sm:$0xf] %vm379, 0
        %496 = vst.msk [vmem:[#allocation2 + $0x1d0] sm:$0xf] %vm379, 0
        %497 = vst.msk [vmem:[#allocation2 + $0x1d4] sm:$0xf] %vm379, 0
        %498 = vst.msk [vmem:[#allocation2 + $0x1d8] sm:$0xf] %vm379, 0
        %499 = vst.msk [vmem:[#allocation2 + $0x1dc] sm:$0xf] %vm379, 0
        %500 = vst.msk [vmem:[#allocation2 + $0x1e0] sm:$0xf] %vm379, 0
        %501 = vst.msk [vmem:[#allocation2 + $0x1e4] sm:$0xf] %vm379, 0
        %502 = vst.msk [vmem:[#allocation2 + $0x1e8] sm:$0xf] %vm379, 0
        %503 = vst.msk [vmem:[#allocation2 + $0x1ec] sm:$0xf] %vm379, 0
        %504 = vst.msk [vmem:[#allocation2 + $0x1f0] sm:$0xf] %vm379, 0
        %505 = vst.msk [vmem:[#allocation2 + $0x1f4] sm:$0xf] %vm379, 0
        %506 = vst.msk [vmem:[#allocation2 + $0x1f8] sm:$0xf] %vm379, 0
        %507 = vst.msk [vmem:[#allocation2 + $0x1fc] sm:$0xf] %vm379, 0
        %508 = vst.msk [vmem:[#allocation2 + $0x200] sm:$0xf] %vm379, 0
        %509 = vst.msk [vmem:[#allocation2 + $0x204] sm:$0xf] %vm379, 0
        %510 = vst.msk [vmem:[#allocation2 + $0x208] sm:$0xf] %vm379, 0
        %511 = vst.msk [vmem:[#allocation2 + $0x20c] sm:$0xf] %vm379, 0
        %512 = vst.msk [vmem:[#allocation2 + $0x210] sm:$0xf] %vm379, 0
        %513 = vst.msk [vmem:[#allocation2 + $0x214] sm:$0xf] %vm379, 0
        %514 = vst.msk [vmem:[#allocation2 + $0x218] sm:$0xf] %vm379, 0
        %515 = vst.msk [vmem:[#allocation2 + $0x21c] sm:$0xf] %vm379, 0
        %516 = vst.msk [vmem:[#allocation2 + $0x220] sm:$0xf] %vm379, 0
        %517 = vst.msk [vmem:[#allocation2 + $0x224] sm:$0xf] %vm379, 0
        %518 = vst.msk [vmem:[#allocation2 + $0x228] sm:$0xf] %vm379, 0
        %519 = vst.msk [vmem:[#allocation2 + $0x22c] sm:$0xf] %vm379, 0
        %520 = vst.msk [vmem:[#allocation2 + $0x230] sm:$0xf] %vm379, 0
        %521 = vst.msk [vmem:[#allocation2 + $0x234] sm:$0xf] %vm379, 0
        %522 = vst.msk [vmem:[#allocation2 + $0x238] sm:$0xf] %vm379, 0
        %523 = vst.msk [vmem:[#allocation2 + $0x23c] sm:$0xf] %vm379, 0
        %524 = vst.msk [vmem:[#allocation2 + $0x240] sm:$0xf] %vm379, 0
        %525 = vst.msk [vmem:[#allocation2 + $0x244] sm:$0xf] %vm379, 0
        %526 = vst.msk [vmem:[#allocation2 + $0x248] sm:$0xf] %vm379, 0
        %527 = vst.msk [vmem:[#allocation2 + $0x24c] sm:$0xf] %vm379, 0
        %528 = vst.msk [vmem:[#allocation2 + $0x250] sm:$0xf] %vm379, 0
        %529 = vst.msk [vmem:[#allocation2 + $0x254] sm:$0xf] %vm379, 0
        %530 = vst.msk [vmem:[#allocation2 + $0x258] sm:$0xf] %vm379, 0
        %531 = vst.msk [vmem:[#allocation2 + $0x25c] sm:$0xf] %vm379, 0
        %532 = vst.msk [vmem:[#allocation2 + $0x260] sm:$0xf] %vm379, 0
        %533 = vst.msk [vmem:[#allocation2 + $0x264] sm:$0xf] %vm379, 0
        %534 = vst.msk [vmem:[#allocation2 + $0x268] sm:$0xf] %vm379, 0
        %535 = vst.msk [vmem:[#allocation2 + $0x26c] sm:$0xf] %vm379, 0
        %536 = vst.msk [vmem:[#allocation2 + $0x270] sm:$0xf] %vm379, 0
        %537 = vst.msk [vmem:[#allocation2 + $0x274] sm:$0xf] %vm379, 0
        %538 = vst.msk [vmem:[#allocation2 + $0x278] sm:$0xf] %vm379, 0
        %539 = vst.msk [vmem:[#allocation2 + $0x27c] sm:$0xf] %vm379, 0
        %540 = vst.msk [vmem:[#allocation2 + $0x280] sm:$0xf] %vm379, 0
        %541 = vst.msk [vmem:[#allocation2 + $0x284] sm:$0xf] %vm379, 0
        %542 = vst.msk [vmem:[#allocation2 + $0x288] sm:$0xf] %vm379, 0
        %543 = vst.msk [vmem:[#allocation2 + $0x28c] sm:$0xf] %vm379, 0
        %544 = vst.msk [vmem:[#allocation2 + $0x290] sm:$0xf] %vm379, 0
        %545 = vst.msk [vmem:[#allocation2 + $0x294] sm:$0xf] %vm379, 0
        %546 = vst.msk [vmem:[#allocation2 + $0x298] sm:$0xf] %vm379, 0
        %547 = vst.msk [vmem:[#allocation2 + $0x29c] sm:$0xf] %vm379, 0
        %548 = vst.msk [vmem:[#allocation2 + $0x2a0] sm:$0xf] %vm379, 0
        %549 = vst.msk [vmem:[#allocation2 + $0x2a4] sm:$0xf] %vm379, 0
        %550 = vst.msk [vmem:[#allocation2 + $0x2a8] sm:$0xf] %vm379, 0
        %551 = vst.msk [vmem:[#allocation2 + $0x2ac] sm:$0xf] %vm379, 0
        %552 = vst.msk [vmem:[#allocation2 + $0x2b0] sm:$0xf] %vm379, 0
        %553 = vst.msk [vmem:[#allocation2 + $0x2b4] sm:$0xf] %vm379, 0
        %554 = vst.msk [vmem:[#allocation2 + $0x2b8] sm:$0xf] %vm379, 0
        %555 = vst.msk [vmem:[#allocation2 + $0x2bc] sm:$0xf] %vm379, 0
        %556 = vst.msk [vmem:[#allocation2 + $0x2c0] sm:$0xf] %vm379, 0
        %557 = vst.msk [vmem:[#allocation2 + $0x2c4] sm:$0xf] %vm379, 0
        %558 = vst.msk [vmem:[#allocation2 + $0x2c8] sm:$0xf] %vm379, 0
        %559 = vst.msk [vmem:[#allocation2 + $0x2cc] sm:$0xf] %vm379, 0
        %560 = vst.msk [vmem:[#allocation2 + $0x2d0] sm:$0xf] %vm379, 0
        %561 = vst.msk [vmem:[#allocation2 + $0x2d4] sm:$0xf] %vm379, 0
        %562 = vst.msk [vmem:[#allocation2 + $0x2d8] sm:$0xf] %vm379, 0
        %563 = vst.msk [vmem:[#allocation2 + $0x2dc] sm:$0xf] %vm379, 0
        %564 = vst.msk [vmem:[#allocation2 + $0x2e0] sm:$0xf] %vm379, 0
        %565 = vst.msk [vmem:[#allocation2 + $0x2e4] sm:$0xf] %vm379, 0
        %566 = vst.msk [vmem:[#allocation2 + $0x2e8] sm:$0xf] %vm379, 0
        %567 = vst.msk [vmem:[#allocation2 + $0x2ec] sm:$0xf] %vm379, 0
        %568 = vst.msk [vmem:[#allocation2 + $0x2f0] sm:$0xf] %vm379, 0
        %569 = vst.msk [vmem:[#allocation2 + $0x2f4] sm:$0xf] %vm379, 0
        %570 = vst.msk [vmem:[#allocation2 + $0x2f8] sm:$0xf] %vm379, 0
        %571 = vst.msk [vmem:[#allocation2 + $0x2fc] sm:$0xf] %vm379, 0
        %572 = vst.msk [vmem:[#allocation2 + $0x300] sm:$0xf] %vm379, 0
        %573 = vst.msk [vmem:[#allocation2 + $0x304] sm:$0xf] %vm379, 0
        %574 = vst.msk [vmem:[#allocation2 + $0x308] sm:$0xf] %vm379, 0
        %575 = vst.msk [vmem:[#allocation2 + $0x30c] sm:$0xf] %vm379, 0
        %576 = vst.msk [vmem:[#allocation2 + $0x310] sm:$0xf] %vm379, 0
        %577 = vst.msk [vmem:[#allocation2 + $0x314] sm:$0xf] %vm379, 0
        %578 = vst.msk [vmem:[#allocation2 + $0x318] sm:$0xf] %vm379, 0
        %579 = vst.msk [vmem:[#allocation2 + $0x31c] sm:$0xf] %vm379, 0
        %580 = vst.msk [vmem:[#allocation2 + $0x320] sm:$0xf] %vm379, 0
        %581 = vst.msk [vmem:[#allocation2 + $0x324] sm:$0xf] %vm379, 0
        %582 = vst.msk [vmem:[#allocation2 + $0x328] sm:$0xf] %vm379, 0
        %583 = vst.msk [vmem:[#allocation2 + $0x32c] sm:$0xf] %vm379, 0
        %584 = vst.msk [vmem:[#allocation2 + $0x330] sm:$0xf] %vm379, 0
        %585 = vst.msk [vmem:[#allocation2 + $0x334] sm:$0xf] %vm379, 0
        %586 = vst.msk [vmem:[#allocation2 + $0x338] sm:$0xf] %vm379, 0
        %587 = vst.msk [vmem:[#allocation2 + $0x33c] sm:$0xf] %vm379, 0
        %588 = vst.msk [vmem:[#allocation2 + $0x340] sm:$0xf] %vm379, 0
        %589 = vst.msk [vmem:[#allocation2 + $0x344] sm:$0xf] %vm379, 0
        %590 = vst.msk [vmem:[#allocation2 + $0x348] sm:$0xf] %vm379, 0
        %591 = vst.msk [vmem:[#allocation2 + $0x34c] sm:$0xf] %vm379, 0
        %592 = vst.msk [vmem:[#allocation2 + $0x350] sm:$0xf] %vm379, 0
        %593 = vst.msk [vmem:[#allocation2 + $0x354] sm:$0xf] %vm379, 0
        %594 = vst.msk [vmem:[#allocation2 + $0x358] sm:$0xf] %vm379, 0
        %595 = vst.msk [vmem:[#allocation2 + $0x35c] sm:$0xf] %vm379, 0
        %596 = vst.msk [vmem:[#allocation2 + $0x360] sm:$0xf] %vm379, 0
        %597 = vst.msk [vmem:[#allocation2 + $0x364] sm:$0xf] %vm379, 0
        %598 = vst.msk [vmem:[#allocation2 + $0x368] sm:$0xf] %vm379, 0
        %599 = vst.msk [vmem:[#allocation2 + $0x36c] sm:$0xf] %vm379, 0
        %600 = vst.msk [vmem:[#allocation2 + $0x370] sm:$0xf] %vm379, 0
        %601 = vst.msk [vmem:[#allocation2 + $0x374] sm:$0xf] %vm379, 0
        %602 = vst.msk [vmem:[#allocation2 + $0x378] sm:$0xf] %vm379, 0
        %603 = vst.msk [vmem:[#allocation2 + $0x37c] sm:$0xf] %vm379, 0
        %604 = vst.msk [vmem:[#allocation2 + $0x380] sm:$0xf] %vm379, 0
        %605 = vst.msk [vmem:[#allocation2 + $0x384] sm:$0xf] %vm379, 0
        %606 = vst.msk [vmem:[#allocation2 + $0x388] sm:$0xf] %vm379, 0
        %607 = vst.msk [vmem:[#allocation2 + $0x38c] sm:$0xf] %vm379, 0
        %608 = vst.msk [vmem:[#allocation2 + $0x390] sm:$0xf] %vm379, 0
        %609 = vst.msk [vmem:[#allocation2 + $0x394] sm:$0xf] %vm379, 0
        %610 = vst.msk [vmem:[#allocation2 + $0x398] sm:$0xf] %vm379, 0
        %611 = vst.msk [vmem:[#allocation2 + $0x39c] sm:$0xf] %vm379, 0
        %612 = vst.msk [vmem:[#allocation2 + $0x3a0] sm:$0xf] %vm379, 0
        %613 = vst.msk [vmem:[#allocation2 + $0x3a4] sm:$0xf] %vm379, 0
        %614 = vst.msk [vmem:[#allocation2 + $0x3a8] sm:$0xf] %vm379, 0
        %615 = vst.msk [vmem:[#allocation2 + $0x3ac] sm:$0xf] %vm379, 0
        %616 = vst.msk [vmem:[#allocation2 + $0x3b0] sm:$0xf] %vm379, 0
        %617 = vst.msk [vmem:[#allocation2 + $0x3b4] sm:$0xf] %vm379, 0
        %618 = vst.msk [vmem:[#allocation2 + $0x3b8] sm:$0xf] %vm379, 0
        %619 = vst.msk [vmem:[#allocation2 + $0x3bc] sm:$0xf] %vm379, 0
        %620 = vst.msk [vmem:[#allocation2 + $0x3c0] sm:$0xf] %vm379, 0
        %621 = vst.msk [vmem:[#allocation2 + $0x3c4] sm:$0xf] %vm379, 0
        %622 = vst.msk [vmem:[#allocation2 + $0x3c8] sm:$0xf] %vm379, 0
        %623 = vst.msk [vmem:[#allocation2 + $0x3cc] sm:$0xf] %vm379, 0
        %624 = vst.msk [vmem:[#allocation2 + $0x3d0] sm:$0xf] %vm379, 0
        %625 = vst.msk [vmem:[#allocation2 + $0x3d4] sm:$0xf] %vm379, 0
        %626 = vst.msk [vmem:[#allocation2 + $0x3d8] sm:$0xf] %vm379, 0
        %627 = vst.msk [vmem:[#allocation2 + $0x3dc] sm:$0xf] %vm379, 0
        %628 = vst.msk [vmem:[#allocation2 + $0x3e0] sm:$0xf] %vm379, 0
        %629 = vst.msk [vmem:[#allocation2 + $0x3e4] sm:$0xf] %vm379, 0
        %630 = vst.msk [vmem:[#allocation2 + $0x3e8] sm:$0xf] %vm379, 0
        %631 = vst.msk [vmem:[#allocation2 + $0x3ec] sm:$0xf] %vm379, 0
        %632 = vst.msk [vmem:[#allocation2 + $0x3f0] sm:$0xf] %vm379, 0
        %633 = vst.msk [vmem:[#allocation2 + $0x3f4] sm:$0xf] %vm379, 0
        %634 = vst.msk [vmem:[#allocation2 + $0x3f8] sm:$0xf] %vm379, 0
        %635 = vst.msk [vmem:[#allocation2 + $0x3fc] sm:$0xf] %vm379, 0
        %636 = vst.msk [vmem:[#allocation2 + $0x400] sm:$0xf] %vm379, 0
        %637 = vst.msk [vmem:[#allocation2 + $0x404] sm:$0xf] %vm379, 0
        %638 = vst.msk [vmem:[#allocation2 + $0x408] sm:$0xf] %vm379, 0
        %639 = vst.msk [vmem:[#allocation2 + $0x40c] sm:$0xf] %vm379, 0
        %640 = vst.msk [vmem:[#allocation2 + $0x410] sm:$0xf] %vm379, 0
        %641 = vst.msk [vmem:[#allocation2 + $0x414] sm:$0xf] %vm379, 0
        %642 = vst.msk [vmem:[#allocation2 + $0x418] sm:$0xf] %vm379, 0
        %643 = vst.msk [vmem:[#allocation2 + $0x41c] sm:$0xf] %vm379, 0
        %644 = vst.msk [vmem:[#allocation2 + $0x420] sm:$0xf] %vm379, 0
        %645 = vst.msk [vmem:[#allocation2 + $0x424] sm:$0xf] %vm379, 0
        %646 = vst.msk [vmem:[#allocation2 + $0x428] sm:$0xf] %vm379, 0
        %647 = vst.msk [vmem:[#allocation2 + $0x42c] sm:$0xf] %vm379, 0
        %648 = vst.msk [vmem:[#allocation2 + $0x430] sm:$0xf] %vm379, 0
        %649 = vst.msk [vmem:[#allocation2 + $0x434] sm:$0xf] %vm379, 0
        %650 = vst.msk [vmem:[#allocation2 + $0x438] sm:$0xf] %vm379, 0
        %651 = vst.msk [vmem:[#allocation2 + $0x43c] sm:$0xf] %vm379, 0
        %652 = vst.msk [vmem:[#allocation2 + $0x440] sm:$0xf] %vm379, 0
        %653 = vst.msk [vmem:[#allocation2 + $0x444] sm:$0xf] %vm379, 0
        %654 = vst.msk [vmem:[#allocation2 + $0x448] sm:$0xf] %vm379, 0
        %655 = vst.msk [vmem:[#allocation2 + $0x44c] sm:$0xf] %vm379, 0
        %656 = vst.msk [vmem:[#allocation2 + $0x450] sm:$0xf] %vm379, 0
        %657 = vst.msk [vmem:[#allocation2 + $0x454] sm:$0xf] %vm379, 0
        %658 = vst.msk [vmem:[#allocation2 + $0x458] sm:$0xf] %vm379, 0
        %659 = vst.msk [vmem:[#allocation2 + $0x45c] sm:$0xf] %vm379, 0
        %660 = vst.msk [vmem:[#allocation2 + $0x460] sm:$0xf] %vm379, 0
        %661 = vst.msk [vmem:[#allocation2 + $0x464] sm:$0xf] %vm379, 0
        %662 = vst.msk [vmem:[#allocation2 + $0x468] sm:$0xf] %vm379, 0
        %663 = vst.msk [vmem:[#allocation2 + $0x46c] sm:$0xf] %vm379, 0
        %664 = vst.msk [vmem:[#allocation2 + $0x470] sm:$0xf] %vm379, 0
        %665 = vst.msk [vmem:[#allocation2 + $0x474] sm:$0xf] %vm379, 0
        %666 = vst.msk [vmem:[#allocation2 + $0x478] sm:$0xf] %vm379, 0
        %667 = vst.msk [vmem:[#allocation2 + $0x47c] sm:$0xf] %vm379, 0
        %668 = vst.msk [vmem:[#allocation2 + $0x480] sm:$0xf] %vm379, 0
        %669 = vst.msk [vmem:[#allocation2 + $0x484] sm:$0xf] %vm379, 0
        %670 = vst.msk [vmem:[#allocation2 + $0x488] sm:$0xf] %vm379, 0
        %671 = vst.msk [vmem:[#allocation2 + $0x48c] sm:$0xf] %vm379, 0
        %672 = vst.msk [vmem:[#allocation2 + $0x490] sm:$0xf] %vm379, 0
        %673 = vst.msk [vmem:[#allocation2 + $0x494] sm:$0xf] %vm379, 0
        %674 = vst.msk [vmem:[#allocation2 + $0x498] sm:$0xf] %vm379, 0
        %675 = vst.msk [vmem:[#allocation2 + $0x49c] sm:$0xf] %vm379, 0
        %676 = vst.msk [vmem:[#allocation2 + $0x4a0] sm:$0xf] %vm379, 0
        %677 = vst.msk [vmem:[#allocation2 + $0x4a4] sm:$0xf] %vm379, 0
        %678 = vst.msk [vmem:[#allocation2 + $0x4a8] sm:$0xf] %vm379, 0
        %679 = vst.msk [vmem:[#allocation2 + $0x4ac] sm:$0xf] %vm379, 0
        %680 = vst.msk [vmem:[#allocation2 + $0x4b0] sm:$0xf] %vm379, 0
        %681 = vst.msk [vmem:[#allocation2 + $0x4b4] sm:$0xf] %vm379, 0
        %682 = vst.msk [vmem:[#allocation2 + $0x4b8] sm:$0xf] %vm379, 0
        %683 = vst.msk [vmem:[#allocation2 + $0x4bc] sm:$0xf] %vm379, 0
        %684 = vst.msk [vmem:[#allocation2 + $0x4c0] sm:$0xf] %vm379, 0
        %685 = vst.msk [vmem:[#allocation2 + $0x4c4] sm:$0xf] %vm379, 0
        %686 = vst.msk [vmem:[#allocation2 + $0x4c8] sm:$0xf] %vm379, 0
        %687 = vst.msk [vmem:[#allocation2 + $0x4cc] sm:$0xf] %vm379, 0
        %688 = vst.msk [vmem:[#allocation2 + $0x4d0] sm:$0xf] %vm379, 0
        %689 = vst.msk [vmem:[#allocation2 + $0x4d4] sm:$0xf] %vm379, 0
        %690 = vst.msk [vmem:[#allocation2 + $0x4d8] sm:$0xf] %vm379, 0
        %691 = vst.msk [vmem:[#allocation2 + $0x4dc] sm:$0xf] %vm379, 0
        %692 = vst.msk [vmem:[#allocation2 + $0x4e0] sm:$0xf] %vm379, 0
        %693 = vst.msk [vmem:[#allocation2 + $0x4e4] sm:$0xf] %vm379, 0
        %694 = vst.msk [vmem:[#allocation2 + $0x4e8] sm:$0xf] %vm379, 0
        %695 = vst.msk [vmem:[#allocation2 + $0x4ec] sm:$0xf] %vm379, 0
        %696 = vst.msk [vmem:[#allocation2 + $0x4f0] sm:$0xf] %vm379, 0
        %697 = vst.msk [vmem:[#allocation2 + $0x4f4] sm:$0xf] %vm379, 0
        %698 = vst.msk [vmem:[#allocation2 + $0x4f8] sm:$0xf] %vm379, 0
        %699 = vst.msk [vmem:[#allocation2 + $0x4fc] sm:$0xf] %vm379, 0
        %700 = vst.msk [vmem:[#allocation2 + $0x500] sm:$0xf] %vm379, 0
        %701 = vst.msk [vmem:[#allocation2 + $0x504] sm:$0xf] %vm379, 0
        %702 = vst.msk [vmem:[#allocation2 + $0x508] sm:$0xf] %vm379, 0
        %703 = vst.msk [vmem:[#allocation2 + $0x50c] sm:$0xf] %vm379, 0
        %704 = vst.msk [vmem:[#allocation2 + $0x510] sm:$0xf] %vm379, 0
        %705 = vst.msk [vmem:[#allocation2 + $0x514] sm:$0xf] %vm379, 0
        %706 = vst.msk [vmem:[#allocation2 + $0x518] sm:$0xf] %vm379, 0
        %707 = vst.msk [vmem:[#allocation2 + $0x51c] sm:$0xf] %vm379, 0
        %708 = vst.msk [vmem:[#allocation2 + $0x520] sm:$0xf] %vm379, 0
        %709 = vst.msk [vmem:[#allocation2 + $0x524] sm:$0xf] %vm379, 0
        %710 = vst.msk [vmem:[#allocation2 + $0x528] sm:$0xf] %vm379, 0
        %711 = vst.msk [vmem:[#allocation2 + $0x52c] sm:$0xf] %vm379, 0
        %712 = vst.msk [vmem:[#allocation2 + $0x530] sm:$0xf] %vm379, 0
        %713 = vst.msk [vmem:[#allocation2 + $0x534] sm:$0xf] %vm379, 0
        %714 = vst.msk [vmem:[#allocation2 + $0x538] sm:$0xf] %vm379, 0
        %715 = vst.msk [vmem:[#allocation2 + $0x53c] sm:$0xf] %vm379, 0
        %716 = vst.msk [vmem:[#allocation2 + $0x540] sm:$0xf] %vm379, 0
        %717 = vst.msk [vmem:[#allocation2 + $0x544] sm:$0xf] %vm379, 0
        %718 = vst.msk [vmem:[#allocation2 + $0x548] sm:$0xf] %vm379, 0
        %719 = vst.msk [vmem:[#allocation2 + $0x54c] sm:$0xf] %vm379, 0
        %720 = vst.msk [vmem:[#allocation2 + $0x550] sm:$0xf] %vm379, 0
        %721 = vst.msk [vmem:[#allocation2 + $0x554] sm:$0xf] %vm379, 0
        %722 = vst.msk [vmem:[#allocation2 + $0x558] sm:$0xf] %vm379, 0
        %723 = vst.msk [vmem:[#allocation2 + $0x55c] sm:$0xf] %vm379, 0
        %724 = vst.msk [vmem:[#allocation2 + $0x560] sm:$0xf] %vm379, 0
        %725 = vst.msk [vmem:[#allocation2 + $0x564] sm:$0xf] %vm379, 0
        %726 = vst.msk [vmem:[#allocation2 + $0x568] sm:$0xf] %vm379, 0
        %727 = vst.msk [vmem:[#allocation2 + $0x56c] sm:$0xf] %vm379, 0
        %728 = vst.msk [vmem:[#allocation2 + $0x570] sm:$0xf] %vm379, 0
        %729 = vst.msk [vmem:[#allocation2 + $0x574] sm:$0xf] %vm379, 0
        %730 = vst.msk [vmem:[#allocation2 + $0x578] sm:$0xf] %vm379, 0
        %731 = vst.msk [vmem:[#allocation2 + $0x57c] sm:$0xf] %vm379, 0
        %732 = vst.msk [vmem:[#allocation2 + $0x580] sm:$0xf] %vm379, 0
        %733 = vst.msk [vmem:[#allocation2 + $0x584] sm:$0xf] %vm379, 0
        %734 = vst.msk [vmem:[#allocation2 + $0x588] sm:$0xf] %vm379, 0
        %735 = vst.msk [vmem:[#allocation2 + $0x58c] sm:$0xf] %vm379, 0
        %736 = vst.msk [vmem:[#allocation2 + $0x590] sm:$0xf] %vm379, 0
        %737 = vst.msk [vmem:[#allocation2 + $0x594] sm:$0xf] %vm379, 0
        %738 = vst.msk [vmem:[#allocation2 + $0x598] sm:$0xf] %vm379, 0
        %739 = vst.msk [vmem:[#allocation2 + $0x59c] sm:$0xf] %vm379, 0
        %740 = vst.msk [vmem:[#allocation2 + $0x5a0] sm:$0xf] %vm379, 0
        %741 = vst.msk [vmem:[#allocation2 + $0x5a4] sm:$0xf] %vm379, 0
        %742 = vst.msk [vmem:[#allocation2 + $0x5a8] sm:$0xf] %vm379, 0
        %743 = vst.msk [vmem:[#allocation2 + $0x5ac] sm:$0xf] %vm379, 0
        %744 = vst.msk [vmem:[#allocation2 + $0x5b0] sm:$0xf] %vm379, 0
        %745 = vst.msk [vmem:[#allocation2 + $0x5b4] sm:$0xf] %vm379, 0
        %746 = vst.msk [vmem:[#allocation2 + $0x5b8] sm:$0xf] %vm379, 0
        %747 = vst.msk [vmem:[#allocation2 + $0x5bc] sm:$0xf] %vm379, 0
        %748 = vst.msk [vmem:[#allocation2 + $0x5c0] sm:$0xf] %vm379, 0
        %749 = vst.msk [vmem:[#allocation2 + $0x5c4] sm:$0xf] %vm379, 0
        %750 = vst.msk [vmem:[#allocation2 + $0x5c8] sm:$0xf] %vm379, 0
        %751 = vst.msk [vmem:[#allocation2 + $0x5cc] sm:$0xf] %vm379, 0
        %752 = vst.msk [vmem:[#allocation2 + $0x5d0] sm:$0xf] %vm379, 0
        %753 = vst.msk [vmem:[#allocation2 + $0x5d4] sm:$0xf] %vm379, 0
        %754 = vst.msk [vmem:[#allocation2 + $0x5d8] sm:$0xf] %vm379, 0
        %755 = vst.msk [vmem:[#allocation2 + $0x5dc] sm:$0xf] %vm379, 0
        %756 = vst.msk [vmem:[#allocation2 + $0x5e0] sm:$0xf] %vm379, 0
        %757 = vst.msk [vmem:[#allocation2 + $0x5e4] sm:$0xf] %vm379, 0
        %758 = vst.msk [vmem:[#allocation2 + $0x5e8] sm:$0xf] %vm379, 0
        %759 = vst.msk [vmem:[#allocation2 + $0x5ec] sm:$0xf] %vm379, 0
        %760 = vst.msk [vmem:[#allocation2 + $0x5f0] sm:$0xf] %vm379, 0
        %761 = vst.msk [vmem:[#allocation2 + $0x5f4] sm:$0xf] %vm379, 0
        %762 = vst.msk [vmem:[#allocation2 + $0x5f8] sm:$0xf] %vm379, 0
        %763 = vst.msk [vmem:[#allocation2 + $0x5fc] sm:$0xf] %vm379, 0
        %764 = vst.msk [vmem:[#allocation2 + $0x600] sm:$0xf] %vm379, 0
        %765 = vst.msk [vmem:[#allocation2 + $0x604] sm:$0xf] %vm379, 0
        %766 = vst.msk [vmem:[#allocation2 + $0x608] sm:$0xf] %vm379, 0
        %767 = vst.msk [vmem:[#allocation2 + $0x60c] sm:$0xf] %vm379, 0
        %768 = vst.msk [vmem:[#allocation2 + $0x610] sm:$0xf] %vm379, 0
        %769 = vst.msk [vmem:[#allocation2 + $0x614] sm:$0xf] %vm379, 0
        %770 = vst.msk [vmem:[#allocation2 + $0x618] sm:$0xf] %vm379, 0
        %771 = vst.msk [vmem:[#allocation2 + $0x61c] sm:$0xf] %vm379, 0
        %772 = vst.msk [vmem:[#allocation2 + $0x620] sm:$0xf] %vm379, 0
        %773 = vst.msk [vmem:[#allocation2 + $0x624] sm:$0xf] %vm379, 0
        %774 = vst.msk [vmem:[#allocation2 + $0x628] sm:$0xf] %vm379, 0
        %775 = vst.msk [vmem:[#allocation2 + $0x62c] sm:$0xf] %vm379, 0
        %776 = vst.msk [vmem:[#allocation2 + $0x630] sm:$0xf] %vm379, 0
        %777 = vst.msk [vmem:[#allocation2 + $0x634] sm:$0xf] %vm379, 0
        %778 = vst.msk [vmem:[#allocation2 + $0x638] sm:$0xf] %vm379, 0
        %779 = vst.msk [vmem:[#allocation2 + $0x63c] sm:$0xf] %vm379, 0
        %780 = vst.msk [vmem:[#allocation2 + $0x640] sm:$0xf] %vm379, 0
        %781 = vst.msk [vmem:[#allocation2 + $0x644] sm:$0xf] %vm379, 0
        %782 = vst.msk [vmem:[#allocation2 + $0x648] sm:$0xf] %vm379, 0
        %783 = vst.msk [vmem:[#allocation2 + $0x64c] sm:$0xf] %vm379, 0
        %784 = vst.msk [vmem:[#allocation2 + $0x650] sm:$0xf] %vm379, 0
        %785 = vst.msk [vmem:[#allocation2 + $0x654] sm:$0xf] %vm379, 0
        %786 = vst.msk [vmem:[#allocation2 + $0x658] sm:$0xf] %vm379, 0
        %787 = vst.msk [vmem:[#allocation2 + $0x65c] sm:$0xf] %vm379, 0
        %788 = vst.msk [vmem:[#allocation2 + $0x660] sm:$0xf] %vm379, 0
        %789 = vst.msk [vmem:[#allocation2 + $0x664] sm:$0xf] %vm379, 0
        %790 = vst.msk [vmem:[#allocation2 + $0x668] sm:$0xf] %vm379, 0
        %791 = vst.msk [vmem:[#allocation2 + $0x66c] sm:$0xf] %vm379, 0
        %792 = vst.msk [vmem:[#allocation2 + $0x670] sm:$0xf] %vm379, 0
        %793 = vst.msk [vmem:[#allocation2 + $0x674] sm:$0xf] %vm379, 0
        %794 = vst.msk [vmem:[#allocation2 + $0x678] sm:$0xf] %vm379, 0
        %795 = vst.msk [vmem:[#allocation2 + $0x67c] sm:$0xf] %vm379, 0
        %796 = vst.msk [vmem:[#allocation2 + $0x680] sm:$0xf] %vm379, 0
        %797 = vst.msk [vmem:[#allocation2 + $0x684] sm:$0xf] %vm379, 0
        %798 = vst.msk [vmem:[#allocation2 + $0x688] sm:$0xf] %vm379, 0
        %799 = vst.msk [vmem:[#allocation2 + $0x68c] sm:$0xf] %vm379, 0
        %800 = vst.msk [vmem:[#allocation2 + $0x690] sm:$0xf] %vm379, 0
        %801 = vst.msk [vmem:[#allocation2 + $0x694] sm:$0xf] %vm379, 0
        %802 = vst.msk [vmem:[#allocation2 + $0x698] sm:$0xf] %vm379, 0
        %803 = vst.msk [vmem:[#allocation2 + $0x69c] sm:$0xf] %vm379, 0
        %804 = vst.msk [vmem:[#allocation2 + $0x6a0] sm:$0xf] %vm379, 0
        %805 = vst.msk [vmem:[#allocation2 + $0x6a4] sm:$0xf] %vm379, 0
        %806 = vst.msk [vmem:[#allocation2 + $0x6a8] sm:$0xf] %vm379, 0
        %807 = vst.msk [vmem:[#allocation2 + $0x6ac] sm:$0xf] %vm379, 0
        %808 = vst.msk [vmem:[#allocation2 + $0x6b0] sm:$0xf] %vm379, 0
        %809 = vst.msk [vmem:[#allocation2 + $0x6b4] sm:$0xf] %vm379, 0
        %810 = vst.msk [vmem:[#allocation2 + $0x6b8] sm:$0xf] %vm379, 0
        %811 = vst.msk [vmem:[#allocation2 + $0x6bc] sm:$0xf] %vm379, 0
        %812 = vst.msk [vmem:[#allocation2 + $0x6c0] sm:$0xf] %vm379, 0
        %813 = vst.msk [vmem:[#allocation2 + $0x6c4] sm:$0xf] %vm379, 0
        %814 = vst.msk [vmem:[#allocation2 + $0x6c8] sm:$0xf] %vm379, 0
        %815 = vst.msk [vmem:[#allocation2 + $0x6cc] sm:$0xf] %vm379, 0
        %816 = vst.msk [vmem:[#allocation2 + $0x6d0] sm:$0xf] %vm379, 0
        %817 = vst.msk [vmem:[#allocation2 + $0x6d4] sm:$0xf] %vm379, 0
        %818 = vst.msk [vmem:[#allocation2 + $0x6d8] sm:$0xf] %vm379, 0
        %819 = vst.msk [vmem:[#allocation2 + $0x6dc] sm:$0xf] %vm379, 0
        %820 = vst.msk [vmem:[#allocation2 + $0x6e0] sm:$0xf] %vm379, 0
        %821 = vst.msk [vmem:[#allocation2 + $0x6e4] sm:$0xf] %vm379, 0
        %822 = vst.msk [vmem:[#allocation2 + $0x6e8] sm:$0xf] %vm379, 0
        %823 = vst.msk [vmem:[#allocation2 + $0x6ec] sm:$0xf] %vm379, 0
        %824 = vst.msk [vmem:[#allocation2 + $0x6f0] sm:$0xf] %vm379, 0
        %825 = vst.msk [vmem:[#allocation2 + $0x6f4] sm:$0xf] %vm379, 0
        %826 = vst.msk [vmem:[#allocation2 + $0x6f8] sm:$0xf] %vm379, 0
        %827 = vst.msk [vmem:[#allocation2 + $0x6fc] sm:$0xf] %vm379, 0
        %828 = vst.msk [vmem:[#allocation2 + $0x700] sm:$0xf] %vm379, 0
        %829 = vst.msk [vmem:[#allocation2 + $0x704] sm:$0xf] %vm379, 0
        %830 = vst.msk [vmem:[#allocation2 + $0x708] sm:$0xf] %vm379, 0
        %831 = vst.msk [vmem:[#allocation2 + $0x70c] sm:$0xf] %vm379, 0
        %832 = vst.msk [vmem:[#allocation2 + $0x710] sm:$0xf] %vm379, 0
        %833 = vst.msk [vmem:[#allocation2 + $0x714] sm:$0xf] %vm379, 0
        %834 = vst.msk [vmem:[#allocation2 + $0x718] sm:$0xf] %vm379, 0
        %835 = vst.msk [vmem:[#allocation2 + $0x71c] sm:$0xf] %vm379, 0
        %836 = vst.msk [vmem:[#allocation2 + $0x720] sm:$0xf] %vm379, 0
        %837 = vst.msk [vmem:[#allocation2 + $0x724] sm:$0xf] %vm379, 0
        %838 = vst.msk [vmem:[#allocation2 + $0x728] sm:$0xf] %vm379, 0
        %839 = vst.msk [vmem:[#allocation2 + $0x72c] sm:$0xf] %vm379, 0
        %840 = vst.msk [vmem:[#allocation2 + $0x730] sm:$0xf] %vm379, 0
        %841 = vst.msk [vmem:[#allocation2 + $0x734] sm:$0xf] %vm379, 0
        %842 = vst.msk [vmem:[#allocation2 + $0x738] sm:$0xf] %vm379, 0
        %843 = vst.msk [vmem:[#allocation2 + $0x73c] sm:$0xf] %vm379, 0
        %844 = vst.msk [vmem:[#allocation2 + $0x740] sm:$0xf] %vm379, 0
        %845 = vst.msk [vmem:[#allocation2 + $0x744] sm:$0xf] %vm379, 0
        %846 = vst.msk [vmem:[#allocation2 + $0x748] sm:$0xf] %vm379, 0
        %847 = vst.msk [vmem:[#allocation2 + $0x74c] sm:$0xf] %vm379, 0
        %848 = vst.msk [vmem:[#allocation2 + $0x750] sm:$0xf] %vm379, 0
        %849 = vst.msk [vmem:[#allocation2 + $0x754] sm:$0xf] %vm379, 0
        %850 = vst.msk [vmem:[#allocation2 + $0x758] sm:$0xf] %vm379, 0
        %851 = vst.msk [vmem:[#allocation2 + $0x75c] sm:$0xf] %vm379, 0
        %852 = vst.msk [vmem:[#allocation2 + $0x760] sm:$0xf] %vm379, 0
        %853 = vst.msk [vmem:[#allocation2 + $0x764] sm:$0xf] %vm379, 0
        %854 = vst.msk [vmem:[#allocation2 + $0x768] sm:$0xf] %vm379, 0
        %855 = vst.msk [vmem:[#allocation2 + $0x76c] sm:$0xf] %vm379, 0
        %856 = vst.msk [vmem:[#allocation2 + $0x770] sm:$0xf] %vm379, 0
        %857 = vst.msk [vmem:[#allocation2 + $0x774] sm:$0xf] %vm379, 0
        %858 = vst.msk [vmem:[#allocation2 + $0x778] sm:$0xf] %vm379, 0
        %859 = vst.msk [vmem:[#allocation2 + $0x77c] sm:$0xf] %vm379, 0
        %860 = vst.msk [vmem:[#allocation2 + $0x780] sm:$0xf] %vm379, 0
        %861 = vst.msk [vmem:[#allocation2 + $0x784] sm:$0xf] %vm379, 0
        %862 = vst.msk [vmem:[#allocation2 + $0x788] sm:$0xf] %vm379, 0
        %863 = vst.msk [vmem:[#allocation2 + $0x78c] sm:$0xf] %vm379, 0
        %864 = vst.msk [vmem:[#allocation2 + $0x790] sm:$0xf] %vm379, 0
        %865 = vst.msk [vmem:[#allocation2 + $0x794] sm:$0xf] %vm379, 0
        %866 = vst.msk [vmem:[#allocation2 + $0x798] sm:$0xf] %vm379, 0
        %867 = vst.msk [vmem:[#allocation2 + $0x79c] sm:$0xf] %vm379, 0
        %868 = vst.msk [vmem:[#allocation2 + $0x7a0] sm:$0xf] %vm379, 0
        %869 = vst.msk [vmem:[#allocation2 + $0x7a4] sm:$0xf] %vm379, 0
        %870 = vst.msk [vmem:[#allocation2 + $0x7a8] sm:$0xf] %vm379, 0
        %871 = vst.msk [vmem:[#allocation2 + $0x7ac] sm:$0xf] %vm379, 0
        %872 = vst.msk [vmem:[#allocation2 + $0x7b0] sm:$0xf] %vm379, 0
        %873 = vst.msk [vmem:[#allocation2 + $0x7b4] sm:$0xf] %vm379, 0
        %874 = vst.msk [vmem:[#allocation2 + $0x7b8] sm:$0xf] %vm379, 0
        %875 = vst.msk [vmem:[#allocation2 + $0x7bc] sm:$0xf] %vm379, 0
        %876 = vst.msk [vmem:[#allocation2 + $0x7c0] sm:$0xf] %vm379, 0
        %877 = vst.msk [vmem:[#allocation2 + $0x7c4] sm:$0xf] %vm379, 0
        %878 = vst.msk [vmem:[#allocation2 + $0x7c8] sm:$0xf] %vm379, 0
        %879 = vst.msk [vmem:[#allocation2 + $0x7cc] sm:$0xf] %vm379, 0
        %880 = vst.msk [vmem:[#allocation2 + $0x7d0] sm:$0xf] %vm379, 0
        %881 = vst.msk [vmem:[#allocation2 + $0x7d4] sm:$0xf] %vm379, 0
        %882 = vst.msk [vmem:[#allocation2 + $0x7d8] sm:$0xf] %vm379, 0
        %883 = vst.msk [vmem:[#allocation2 + $0x7dc] sm:$0xf] %vm379, 0
        %884 = vst.msk [vmem:[#allocation2 + $0x7e0] sm:$0xf] %vm379, 0
        %885 = vst.msk [vmem:[#allocation2 + $0x7e4] sm:$0xf] %vm379, 0
        %886 = vst.msk [vmem:[#allocation2 + $0x7e8] sm:$0xf] %vm379, 0
        %887 = vst.msk [vmem:[#allocation2 + $0x7ec] sm:$0xf] %vm379, 0
        %888 = vst.msk [vmem:[#allocation2 + $0x7f0] sm:$0xf] %vm379, 0
        %889 = vst.msk [vmem:[#allocation2 + $0x7f4] sm:$0xf] %vm379, 0
        %890 = vst.msk [vmem:[#allocation2 + $0x7f8] sm:$0xf] %vm379, 0
        %891 = vst.msk [vmem:[#allocation2 + $0x7fc] sm:$0xf] %vm379, 0
        %892 = vst.msk [vmem:[#allocation2 + $0x800] sm:$0xf] %vm379, 0
        %893 = vst.msk [vmem:[#allocation2 + $0x804] sm:$0xf] %vm379, 0
        %894 = vst.msk [vmem:[#allocation2 + $0x808] sm:$0xf] %vm379, 0
        %895 = vst.msk [vmem:[#allocation2 + $0x80c] sm:$0xf] %vm379, 0
        %896 = vst.msk [vmem:[#allocation2 + $0x810] sm:$0xf] %vm379, 0
        %897 = vst.msk [vmem:[#allocation2 + $0x814] sm:$0xf] %vm379, 0
        %898 = vst.msk [vmem:[#allocation2 + $0x818] sm:$0xf] %vm379, 0
        %899 = vst.msk [vmem:[#allocation2 + $0x81c] sm:$0xf] %vm379, 0
        %900 = vst.msk [vmem:[#allocation2 + $0x820] sm:$0xf] %vm379, 0
        %901 = vst.msk [vmem:[#allocation2 + $0x824] sm:$0xf] %vm379, 0
        %902 = vst.msk [vmem:[#allocation2 + $0x828] sm:$0xf] %vm379, 0
        %903 = vst.msk [vmem:[#allocation2 + $0x82c] sm:$0xf] %vm379, 0
        %904 = vst.msk [vmem:[#allocation2 + $0x830] sm:$0xf] %vm379, 0
        %905 = vst.msk [vmem:[#allocation2 + $0x834] sm:$0xf] %vm379, 0
        %906 = vst.msk [vmem:[#allocation2 + $0x838] sm:$0xf] %vm379, 0
        %907 = vst.msk [vmem:[#allocation2 + $0x83c] sm:$0xf] %vm379, 0
        %908 = vst.msk [vmem:[#allocation2 + $0x840] sm:$0xf] %vm379, 0
        %909 = vst.msk [vmem:[#allocation2 + $0x844] sm:$0xf] %vm379, 0
        %910 = vst.msk [vmem:[#allocation2 + $0x848] sm:$0xf] %vm379, 0
        %911 = vst.msk [vmem:[#allocation2 + $0x84c] sm:$0xf] %vm379, 0
        %912 = vst.msk [vmem:[#allocation2 + $0x850] sm:$0xf] %vm379, 0
        %913 = vst.msk [vmem:[#allocation2 + $0x854] sm:$0xf] %vm379, 0
        %914 = vst.msk [vmem:[#allocation2 + $0x858] sm:$0xf] %vm379, 0
        %915 = vst.msk [vmem:[#allocation2 + $0x85c] sm:$0xf] %vm379, 0
        %916 = vst.msk [vmem:[#allocation2 + $0x860] sm:$0xf] %vm379, 0
        %917 = vst.msk [vmem:[#allocation2 + $0x864] sm:$0xf] %vm379, 0
        %918 = vst.msk [vmem:[#allocation2 + $0x868] sm:$0xf] %vm379, 0
        %919 = vst.msk [vmem:[#allocation2 + $0x86c] sm:$0xf] %vm379, 0
        %920 = vst.msk [vmem:[#allocation2 + $0x870] sm:$0xf] %vm379, 0
        %921 = vst.msk [vmem:[#allocation2 + $0x874] sm:$0xf] %vm379, 0
        %922 = vst.msk [vmem:[#allocation2 + $0x878] sm:$0xf] %vm379, 0
        %923 = vst.msk [vmem:[#allocation2 + $0x87c] sm:$0xf] %vm379, 0
        %924 = vst.msk [vmem:[#allocation2 + $0x880] sm:$0xf] %vm379, 0
        %925 = vst.msk [vmem:[#allocation2 + $0x884] sm:$0xf] %vm379, 0
        %926 = vst.msk [vmem:[#allocation2 + $0x888] sm:$0xf] %vm379, 0
        %927 = vst.msk [vmem:[#allocation2 + $0x88c] sm:$0xf] %vm379, 0
        %928 = vst.msk [vmem:[#allocation2 + $0x890] sm:$0xf] %vm379, 0
        %929 = vst.msk [vmem:[#allocation2 + $0x894] sm:$0xf] %vm379, 0
        %930 = vst.msk [vmem:[#allocation2 + $0x898] sm:$0xf] %vm379, 0
        %931 = vst.msk [vmem:[#allocation2 + $0x89c] sm:$0xf] %vm379, 0
        %932 = vst.msk [vmem:[#allocation2 + $0x8a0] sm:$0xf] %vm379, 0
        %933 = vst.msk [vmem:[#allocation2 + $0x8a4] sm:$0xf] %vm379, 0
        %934 = vst.msk [vmem:[#allocation2 + $0x8a8] sm:$0xf] %vm379, 0
        %935 = vst.msk [vmem:[#allocation2 + $0x8ac] sm:$0xf] %vm379, 0
        %936 = vst.msk [vmem:[#allocation2 + $0x8b0] sm:$0xf] %vm379, 0
        %937 = vst.msk [vmem:[#allocation2 + $0x8b4] sm:$0xf] %vm379, 0
        %938 = vst.msk [vmem:[#allocation2 + $0x8b8] sm:$0xf] %vm379, 0
        %939 = vst.msk [vmem:[#allocation2 + $0x8bc] sm:$0xf] %vm379, 0
        %940 = vst.msk [vmem:[#allocation2 + $0x8c0] sm:$0xf] %vm379, 0
        %941 = vst.msk [vmem:[#allocation2 + $0x8c4] sm:$0xf] %vm379, 0
        %942 = vst.msk [vmem:[#allocation2 + $0x8c8] sm:$0xf] %vm379, 0
        %943 = vst.msk [vmem:[#allocation2 + $0x8cc] sm:$0xf] %vm379, 0
        %944 = vst.msk [vmem:[#allocation2 + $0x8d0] sm:$0xf] %vm379, 0
        %945 = vst.msk [vmem:[#allocation2 + $0x8d4] sm:$0xf] %vm379, 0
        %946 = vst.msk [vmem:[#allocation2 + $0x8d8] sm:$0xf] %vm379, 0
        %947 = vst.msk [vmem:[#allocation2 + $0x8dc] sm:$0xf] %vm379, 0
        %948 = vst.msk [vmem:[#allocation2 + $0x8e0] sm:$0xf] %vm379, 0
        %949 = vst.msk [vmem:[#allocation2 + $0x8e4] sm:$0xf] %vm379, 0
        %950 = vst.msk [vmem:[#allocation2 + $0x8e8] sm:$0xf] %vm379, 0
        %951 = vst.msk [vmem:[#allocation2 + $0x8ec] sm:$0xf] %vm379, 0
        %952 = vst.msk [vmem:[#allocation2 + $0x8f0] sm:$0xf] %vm379, 0
        %953 = vst.msk [vmem:[#allocation2 + $0x8f4] sm:$0xf] %vm379, 0
        %954 = vst.msk [vmem:[#allocation2 + $0x8f8] sm:$0xf] %vm379, 0
        %955 = vst.msk [vmem:[#allocation2 + $0x8fc] sm:$0xf] %vm379, 0
        %956 = vst.msk [vmem:[#allocation2 + $0x900] sm:$0xf] %vm379, 0
        %957 = vst.msk [vmem:[#allocation2 + $0x904] sm:$0xf] %vm379, 0
        %958 = vst.msk [vmem:[#allocation2 + $0x908] sm:$0xf] %vm379, 0
        %959 = vst.msk [vmem:[#allocation2 + $0x90c] sm:$0xf] %vm379, 0
        %960 = vst.msk [vmem:[#allocation2 + $0x910] sm:$0xf] %vm379, 0
        %961 = vst.msk [vmem:[#allocation2 + $0x914] sm:$0xf] %vm379, 0
        %962 = vst.msk [vmem:[#allocation2 + $0x918] sm:$0xf] %vm379, 0
        %963 = vst.msk [vmem:[#allocation2 + $0x91c] sm:$0xf] %vm379, 0
        %964 = vst.msk [vmem:[#allocation2 + $0x920] sm:$0xf] %vm379, 0
        %965 = vst.msk [vmem:[#allocation2 + $0x924] sm:$0xf] %vm379, 0
        %966 = vst.msk [vmem:[#allocation2 + $0x928] sm:$0xf] %vm379, 0
        %967 = vst.msk [vmem:[#allocation2 + $0x92c] sm:$0xf] %vm379, 0
        %968 = vst.msk [vmem:[#allocation2 + $0x930] sm:$0xf] %vm379, 0
        %969 = vst.msk [vmem:[#allocation2 + $0x934] sm:$0xf] %vm379, 0
        %970 = vst.msk [vmem:[#allocation2 + $0x938] sm:$0xf] %vm379, 0
        %971 = vst.msk [vmem:[#allocation2 + $0x93c] sm:$0xf] %vm379, 0
        %972 = vst.msk [vmem:[#allocation2 + $0x940] sm:$0xf] %vm379, 0
        %973 = vst.msk [vmem:[#allocation2 + $0x944] sm:$0xf] %vm379, 0
        %974 = vst.msk [vmem:[#allocation2 + $0x948] sm:$0xf] %vm379, 0
        %975 = vst.msk [vmem:[#allocation2 + $0x94c] sm:$0xf] %vm379, 0
        %976 = vst.msk [vmem:[#allocation2 + $0x950] sm:$0xf] %vm379, 0
        %977 = vst.msk [vmem:[#allocation2 + $0x954] sm:$0xf] %vm379, 0
        %978 = vst.msk [vmem:[#allocation2 + $0x958] sm:$0xf] %vm379, 0
        %979 = vst.msk [vmem:[#allocation2 + $0x95c] sm:$0xf] %vm379, 0
        %980 = vst.msk [vmem:[#allocation2 + $0x960] sm:$0xf] %vm379, 0
        %981 = vst.msk [vmem:[#allocation2 + $0x964] sm:$0xf] %vm379, 0
        %982 = vst.msk [vmem:[#allocation2 + $0x968] sm:$0xf] %vm379, 0
        %983 = vst.msk [vmem:[#allocation2 + $0x96c] sm:$0xf] %vm379, 0
        %984 = vst.msk [vmem:[#allocation2 + $0x970] sm:$0xf] %vm379, 0
        %985 = vst.msk [vmem:[#allocation2 + $0x974] sm:$0xf] %vm379, 0
        %986 = vst.msk [vmem:[#allocation2 + $0x978] sm:$0xf] %vm379, 0
        %987 = vst.msk [vmem:[#allocation2 + $0x97c] sm:$0xf] %vm379, 0
        %988 = vst.msk [vmem:[#allocation2 + $0x980] sm:$0xf] %vm379, 0
        %989 = vst.msk [vmem:[#allocation2 + $0x984] sm:$0xf] %vm379, 0
        %990 = vst.msk [vmem:[#allocation2 + $0x988] sm:$0xf] %vm379, 0
        %991 = vst.msk [vmem:[#allocation2 + $0x98c] sm:$0xf] %vm379, 0
        %992 = vst.msk [vmem:[#allocation2 + $0x990] sm:$0xf] %vm379, 0
        %993 = vst.msk [vmem:[#allocation2 + $0x994] sm:$0xf] %vm379, 0
        %994 = vst.msk [vmem:[#allocation2 + $0x998] sm:$0xf] %vm379, 0
        %995 = vst.msk [vmem:[#allocation2 + $0x99c] sm:$0xf] %vm379, 0
        %996 = vst.msk [vmem:[#allocation2 + $0x9a0] sm:$0xf] %vm379, 0
        %997 = vst.msk [vmem:[#allocation2 + $0x9a4] sm:$0xf] %vm379, 0
        %998 = vst.msk [vmem:[#allocation2 + $0x9a8] sm:$0xf] %vm379, 0
        %999 = vst.msk [vmem:[#allocation2 + $0x9ac] sm:$0xf] %vm379, 0
        %1000 = vst.msk [vmem:[#allocation2 + $0x9b0] sm:$0xf] %vm379, 0
        %1001 = vst.msk [vmem:[#allocation2 + $0x9b4] sm:$0xf] %vm379, 0
        %1002 = vst.msk [vmem:[#allocation2 + $0x9b8] sm:$0xf] %vm379, 0
        %1003 = vst.msk [vmem:[#allocation2 + $0x9bc] sm:$0xf] %vm379, 0
        %1004 = vst.msk [vmem:[#allocation2 + $0x9c0] sm:$0xf] %vm379, 0
        %1005 = vst.msk [vmem:[#allocation2 + $0x9c4] sm:$0xf] %vm379, 0
        %1006 = vst.msk [vmem:[#allocation2 + $0x9c8] sm:$0xf] %vm379, 0
        %1007 = vst.msk [vmem:[#allocation2 + $0x9cc] sm:$0xf] %vm379, 0
        %1008 = vst.msk [vmem:[#allocation2 + $0x9d0] sm:$0xf] %vm379, 0
        %1009 = vst.msk [vmem:[#allocation2 + $0x9d4] sm:$0xf] %vm379, 0
        %1010 = vst.msk [vmem:[#allocation2 + $0x9d8] sm:$0xf] %vm379, 0
        %1011 = vst.msk [vmem:[#allocation2 + $0x9dc] sm:$0xf] %vm379, 0
        %1012 = vst.msk [vmem:[#allocation2 + $0x9e0] sm:$0xf] %vm379, 0
        %1013 = vst.msk [vmem:[#allocation2 + $0x9e4] sm:$0xf] %vm379, 0
        %1014 = vst.msk [vmem:[#allocation2 + $0x9e8] sm:$0xf] %vm379, 0
        %1015 = vst.msk [vmem:[#allocation2 + $0x9ec] sm:$0xf] %vm379, 0
        %1016 = vst.msk [vmem:[#allocation2 + $0x9f0] sm:$0xf] %vm379, 0
        %1017 = vst.msk [vmem:[#allocation2 + $0x9f4] sm:$0xf] %vm379, 0
        %1018 = vst.msk [vmem:[#allocation2 + $0x9f8] sm:$0xf] %vm379, 0
        %1019 = vst.msk [vmem:[#allocation2 + $0x9fc] sm:$0xf] %vm379, 0
        %1020 = vst.msk [vmem:[#allocation2 + $0xa00] sm:$0xf] %vm379, 0
        %1021 = vst.msk [vmem:[#allocation2 + $0xa04] sm:$0xf] %vm379, 0
        %1022 = vst.msk [vmem:[#allocation2 + $0xa08] sm:$0xf] %vm379, 0
        %1023 = vst.msk [vmem:[#allocation2 + $0xa0c] sm:$0xf] %vm379, 0
        %1024 = vst.msk [vmem:[#allocation2 + $0xa10] sm:$0xf] %vm379, 0
        %1025 = vst.msk [vmem:[#allocation2 + $0xa14] sm:$0xf] %vm379, 0
        %1026 = vst.msk [vmem:[#allocation2 + $0xa18] sm:$0xf] %vm379, 0
        %1027 = vst.msk [vmem:[#allocation2 + $0xa1c] sm:$0xf] %vm379, 0
        %1028 = vst.msk [vmem:[#allocation2 + $0xa20] sm:$0xf] %vm379, 0
        %1029 = vst.msk [vmem:[#allocation2 + $0xa24] sm:$0xf] %vm379, 0
        %1030 = vst.msk [vmem:[#allocation2 + $0xa28] sm:$0xf] %vm379, 0
        %1031 = vst.msk [vmem:[#allocation2 + $0xa2c] sm:$0xf] %vm379, 0
        %1032 = vst.msk [vmem:[#allocation2 + $0xa30] sm:$0xf] %vm379, 0
        %1033 = vst.msk [vmem:[#allocation2 + $0xa34] sm:$0xf] %vm379, 0
        %1034 = vst.msk [vmem:[#allocation2 + $0xa38] sm:$0xf] %vm379, 0
        %1035 = vst.msk [vmem:[#allocation2 + $0xa3c] sm:$0xf] %vm379, 0
        %1036 = vst.msk [vmem:[#allocation2 + $0xa40] sm:$0xf] %vm379, 0
        %1037 = vst.msk [vmem:[#allocation2 + $0xa44] sm:$0xf] %vm379, 0
        %1038 = vst.msk [vmem:[#allocation2 + $0xa48] sm:$0xf] %vm379, 0
        %1039 = vst.msk [vmem:[#allocation2 + $0xa4c] sm:$0xf] %vm379, 0
        %1040 = vst.msk [vmem:[#allocation2 + $0xa50] sm:$0xf] %vm379, 0
        %1041 = vst.msk [vmem:[#allocation2 + $0xa54] sm:$0xf] %vm379, 0
        %1042 = vst.msk [vmem:[#allocation2 + $0xa58] sm:$0xf] %vm379, 0
        %1043 = vst.msk [vmem:[#allocation2 + $0xa5c] sm:$0xf] %vm379, 0
        %1044 = vst.msk [vmem:[#allocation2 + $0xa60] sm:$0xf] %vm379, 0
        %1045 = vst.msk [vmem:[#allocation2 + $0xa64] sm:$0xf] %vm379, 0
        %1046 = vst.msk [vmem:[#allocation2 + $0xa68] sm:$0xf] %vm379, 0
        %1047 = vst.msk [vmem:[#allocation2 + $0xa6c] sm:$0xf] %vm379, 0
        %1048 = vst.msk [vmem:[#allocation2 + $0xa70] sm:$0xf] %vm379, 0
        %1049 = vst.msk [vmem:[#allocation2 + $0xa74] sm:$0xf] %vm379, 0
        %1050 = vst.msk [vmem:[#allocation2 + $0xa78] sm:$0xf] %vm379, 0
        %1051 = vst.msk [vmem:[#allocation2 + $0xa7c] sm:$0xf] %vm379, 0
        %1052 = vst.msk [vmem:[#allocation2 + $0xa80] sm:$0xf] %vm379, 0
        %1053 = vst.msk [vmem:[#allocation2 + $0xa84] sm:$0xf] %vm379, 0
        %1054 = vst.msk [vmem:[#allocation2 + $0xa88] sm:$0xf] %vm379, 0
        %1055 = vst.msk [vmem:[#allocation2 + $0xa8c] sm:$0xf] %vm379, 0
        %1056 = vst.msk [vmem:[#allocation2 + $0xa90] sm:$0xf] %vm379, 0
        %1057 = vst.msk [vmem:[#allocation2 + $0xa94] sm:$0xf] %vm379, 0
        %1058 = vst.msk [vmem:[#allocation2 + $0xa98] sm:$0xf] %vm379, 0
        %1059 = vst.msk [vmem:[#allocation2 + $0xa9c] sm:$0xf] %vm379, 0
        %1060 = vst.msk [vmem:[#allocation2 + $0xaa0] sm:$0xf] %vm379, 0
        %1061 = vst.msk [vmem:[#allocation2 + $0xaa4] sm:$0xf] %vm379, 0
        %1062 = vst.msk [vmem:[#allocation2 + $0xaa8] sm:$0xf] %vm379, 0
        %1063 = vst.msk [vmem:[#allocation2 + $0xaac] sm:$0xf] %vm379, 0
        %1064 = vst.msk [vmem:[#allocation2 + $0xab0] sm:$0xf] %vm379, 0
        %1065 = vst.msk [vmem:[#allocation2 + $0xab4] sm:$0xf] %vm379, 0
        %1066 = vst.msk [vmem:[#allocation2 + $0xab8] sm:$0xf] %vm379, 0
        %1067 = vst.msk [vmem:[#allocation2 + $0xabc] sm:$0xf] %vm379, 0
        %1068 = vst.msk [vmem:[#allocation2 + $0xac0] sm:$0xf] %vm379, 0
        %1069 = vst.msk [vmem:[#allocation2 + $0xac4] sm:$0xf] %vm379, 0
        %1070 = vst.msk [vmem:[#allocation2 + $0xac8] sm:$0xf] %vm379, 0
        %1071 = vst.msk [vmem:[#allocation2 + $0xacc] sm:$0xf] %vm379, 0
        %1072 = vst.msk [vmem:[#allocation2 + $0xad0] sm:$0xf] %vm379, 0
        %1073 = vst.msk [vmem:[#allocation2 + $0xad4] sm:$0xf] %vm379, 0
        %1074 = vst.msk [vmem:[#allocation2 + $0xad8] sm:$0xf] %vm379, 0
        %1075 = vst.msk [vmem:[#allocation2 + $0xadc] sm:$0xf] %vm379, 0
        %1076 = vst.msk [vmem:[#allocation2 + $0xae0] sm:$0xf] %vm379, 0
        %1077 = vst.msk [vmem:[#allocation2 + $0xae4] sm:$0xf] %vm379, 0
        %1078 = vst.msk [vmem:[#allocation2 + $0xae8] sm:$0xf] %vm379, 0
        %1079 = vst.msk [vmem:[#allocation2 + $0xaec] sm:$0xf] %vm379, 0
        %1080 = vst.msk [vmem:[#allocation2 + $0xaf0] sm:$0xf] %vm379, 0
        %1081 = vst.msk [vmem:[#allocation2 + $0xaf4] sm:$0xf] %vm379, 0
        %1082 = vst.msk [vmem:[#allocation2 + $0xaf8] sm:$0xf] %vm379, 0
        %1083 = vst.msk [vmem:[#allocation2 + $0xafc] sm:$0xf] %vm379, 0
        %1084 = vst.msk [vmem:[#allocation2 + $0xb00] sm:$0xf] %vm379, 0
        %1085 = vst.msk [vmem:[#allocation2 + $0xb04] sm:$0xf] %vm379, 0
        %1086 = vst.msk [vmem:[#allocation2 + $0xb08] sm:$0xf] %vm379, 0
        %1087 = vst.msk [vmem:[#allocation2 + $0xb0c] sm:$0xf] %vm379, 0
        %1088 = vst.msk [vmem:[#allocation2 + $0xb10] sm:$0xf] %vm379, 0
        %1089 = vst.msk [vmem:[#allocation2 + $0xb14] sm:$0xf] %vm379, 0
        %1090 = vst.msk [vmem:[#allocation2 + $0xb18] sm:$0xf] %vm379, 0
        %1091 = vst.msk [vmem:[#allocation2 + $0xb1c] sm:$0xf] %vm379, 0
        %1092 = vst.msk [vmem:[#allocation2 + $0xb20] sm:$0xf] %vm379, 0
        %1093 = vst.msk [vmem:[#allocation2 + $0xb24] sm:$0xf] %vm379, 0
        %1094 = vst.msk [vmem:[#allocation2 + $0xb28] sm:$0xf] %vm379, 0
        %1095 = vst.msk [vmem:[#allocation2 + $0xb2c] sm:$0xf] %vm379, 0
        %1096 = vst.msk [vmem:[#allocation2 + $0xb30] sm:$0xf] %vm379, 0
        %1097 = vst.msk [vmem:[#allocation2 + $0xb34] sm:$0xf] %vm379, 0
        %1098 = vst.msk [vmem:[#allocation2 + $0xb38] sm:$0xf] %vm379, 0
        %1099 = vst.msk [vmem:[#allocation2 + $0xb3c] sm:$0xf] %vm379, 0
        %1100 = vst.msk [vmem:[#allocation2 + $0xb40] sm:$0xf] %vm379, 0
        %1101 = vst.msk [vmem:[#allocation2 + $0xb44] sm:$0xf] %vm379, 0
        %1102 = vst.msk [vmem:[#allocation2 + $0xb48] sm:$0xf] %vm379, 0
        %1103 = vst.msk [vmem:[#allocation2 + $0xb4c] sm:$0xf] %vm379, 0
        %1104 = vst.msk [vmem:[#allocation2 + $0xb50] sm:$0xf] %vm379, 0
        %1105 = vst.msk [vmem:[#allocation2 + $0xb54] sm:$0xf] %vm379, 0
        %1106 = vst.msk [vmem:[#allocation2 + $0xb58] sm:$0xf] %vm379, 0
        %1107 = vst.msk [vmem:[#allocation2 + $0xb5c] sm:$0xf] %vm379, 0
        %1108 = vst.msk [vmem:[#allocation2 + $0xb60] sm:$0xf] %vm379, 0
        %1109 = vst.msk [vmem:[#allocation2 + $0xb64] sm:$0xf] %vm379, 0
        %1110 = vst.msk [vmem:[#allocation2 + $0xb68] sm:$0xf] %vm379, 0
        %1111 = vst.msk [vmem:[#allocation2 + $0xb6c] sm:$0xf] %vm379, 0
        %1112 = vst.msk [vmem:[#allocation2 + $0xb70] sm:$0xf] %vm379, 0
        %1113 = vst.msk [vmem:[#allocation2 + $0xb74] sm:$0xf] %vm379, 0
        %1114 = vst.msk [vmem:[#allocation2 + $0xb78] sm:$0xf] %vm379, 0
        %1115 = vst.msk [vmem:[#allocation2 + $0xb7c] sm:$0xf] %vm379, 0
        %1116 = vst.msk [vmem:[#allocation2 + $0xb80] sm:$0xf] %vm379, 0
        %1117 = vst.msk [vmem:[#allocation2 + $0xb84] sm:$0xf] %vm379, 0
        %1118 = vst.msk [vmem:[#allocation2 + $0xb88] sm:$0xf] %vm379, 0
        %1119 = vst.msk [vmem:[#allocation2 + $0xb8c] sm:$0xf] %vm379, 0
        %1120 = vst.msk [vmem:[#allocation2 + $0xb90] sm:$0xf] %vm379, 0
        %1121 = vst.msk [vmem:[#allocation2 + $0xb94] sm:$0xf] %vm379, 0
        %1122 = vst.msk [vmem:[#allocation2 + $0xb98] sm:$0xf] %vm379, 0
        %1123 = vst.msk [vmem:[#allocation2 + $0xb9c] sm:$0xf] %vm379, 0
        %1124 = vst.msk [vmem:[#allocation2 + $0xba0] sm:$0xf] %vm379, 0
        %1125 = vst.msk [vmem:[#allocation2 + $0xba4] sm:$0xf] %vm379, 0
        %1126 = vst.msk [vmem:[#allocation2 + $0xba8] sm:$0xf] %vm379, 0
        %1127 = vst.msk [vmem:[#allocation2 + $0xbac] sm:$0xf] %vm379, 0
        %1128 = vst.msk [vmem:[#allocation2 + $0xbb0] sm:$0xf] %vm379, 0
        %1129 = vst.msk [vmem:[#allocation2 + $0xbb4] sm:$0xf] %vm379, 0
        %1130 = vst.msk [vmem:[#allocation2 + $0xbb8] sm:$0xf] %vm379, 0
        %1131 = vst.msk [vmem:[#allocation2 + $0xbbc] sm:$0xf] %vm379, 0
        %1132 = vst.msk [vmem:[#allocation2 + $0xbc0] sm:$0xf] %vm379, 0
        %1133 = vst.msk [vmem:[#allocation2 + $0xbc4] sm:$0xf] %vm379, 0
        %1134 = vst.msk [vmem:[#allocation2 + $0xbc8] sm:$0xf] %vm379, 0
        %1135 = vst.msk [vmem:[#allocation2 + $0xbcc] sm:$0xf] %vm379, 0
        %1136 = vst.msk [vmem:[#allocation2 + $0xbd0] sm:$0xf] %vm379, 0
        %1137 = vst.msk [vmem:[#allocation2 + $0xbd4] sm:$0xf] %vm379, 0
        %1138 = vst.msk [vmem:[#allocation2 + $0xbd8] sm:$0xf] %vm379, 0
        %1139 = vst.msk [vmem:[#allocation2 + $0xbdc] sm:$0xf] %vm379, 0
        %1140 = vst.msk [vmem:[#allocation2 + $0xbe0] sm:$0xf] %vm379, 0
        %1141 = vst.msk [vmem:[#allocation2 + $0xbe4] sm:$0xf] %vm379, 0
        %1142 = vst.msk [vmem:[#allocation2 + $0xbe8] sm:$0xf] %vm379, 0
        %1143 = vst.msk [vmem:[#allocation2 + $0xbec] sm:$0xf] %vm379, 0
        %1144 = vst.msk [vmem:[#allocation2 + $0xbf0] sm:$0xf] %vm379, 0
        %1145 = vst.msk [vmem:[#allocation2 + $0xbf4] sm:$0xf] %vm379, 0
        %1146 = vst.msk [vmem:[#allocation2 + $0xbf8] sm:$0xf] %vm379, 0
        %1147 = vst.msk [vmem:[#allocation2 + $0xbfc] sm:$0xf] %vm379, 0
        %1148 = vst.msk [vmem:[#allocation2 + $0xc00] sm:$0xf] %vm379, 0
        %1149 = vst.msk [vmem:[#allocation2 + $0xc04] sm:$0xf] %vm379, 0
        %1150 = vst.msk [vmem:[#allocation2 + $0xc08] sm:$0xf] %vm379, 0
        %1151 = vst.msk [vmem:[#allocation2 + $0xc0c] sm:$0xf] %vm379, 0
        %1152 = vst.msk [vmem:[#allocation2 + $0xc10] sm:$0xf] %vm379, 0
        %1153 = vst.msk [vmem:[#allocation2 + $0xc14] sm:$0xf] %vm379, 0
        %1154 = vst.msk [vmem:[#allocation2 + $0xc18] sm:$0xf] %vm379, 0
        %1155 = vst.msk [vmem:[#allocation2 + $0xc1c] sm:$0xf] %vm379, 0
        %1156 = vst.msk [vmem:[#allocation2 + $0xc20] sm:$0xf] %vm379, 0
        %1157 = vst.msk [vmem:[#allocation2 + $0xc24] sm:$0xf] %vm379, 0
        %1158 = vst.msk [vmem:[#allocation2 + $0xc28] sm:$0xf] %vm379, 0
        %1159 = vst.msk [vmem:[#allocation2 + $0xc2c] sm:$0xf] %vm379, 0
        %1160 = vst.msk [vmem:[#allocation2 + $0xc30] sm:$0xf] %vm379, 0
        %1161 = vst.msk [vmem:[#allocation2 + $0xc34] sm:$0xf] %vm379, 0
        %1162 = vst.msk [vmem:[#allocation2 + $0xc38] sm:$0xf] %vm379, 0
        %1163 = vst.msk [vmem:[#allocation2 + $0xc3c] sm:$0xf] %vm379, 0
        loop: start=0, step=1, limit=98
        $region57: #{conv_nn_forward.2} parent=51 // loop_pre_header
          _
        $region58: #{conv_nn_forward.2} parent=51 // loop_header
          %s1165 = sphi 0, %s1169
          %p1166 = scmp.ge.s32.totalorder %s1165, 98
        $region59: #{conv_nn_forward.2} parent=51 // loop_header_branch
          %1168 = sbr.rel (%p1166) target = $region63
        $region60: #{conv_nn_forward.2} parent=51 // loop_body
          %s1170 = smul.u32 %s1165, 2
          %s1171 = scalar_lea.vmem %s331, %s1170
          %v1172 = vld [vmem:[%s1171] sm:$0xf]
          %s1173 = scalar_lea.vmem %s336, %s1170
          %v1174 = vld [vmem:[%s1173] sm:$0xf]
          %v1175 = vld [vmem:[#allocation4] sm:$0xff]
          %v1176 = vld [vmem:[#allocation4 + $0x8] sm:$0xff]
          %v1177 = vld [vmem:[#allocation4 + $0x10] sm:$0xff]
          %v1178 = vld [vmem:[#allocation4 + $0x18] sm:$0xff]
          %v1179 = vld [vmem:[#allocation4 + $0x20] sm:$0xff]
          %v1180 = vld [vmem:[#allocation4 + $0x28] sm:$0xff]
          %v1181 = vld [vmem:[#allocation4 + $0x30] sm:$0xff]
          %s1182 = scalar_lea.vmem [#allocation4], 56
          %v1183 = vld [vmem:[%s1182] sm:$0xff]
          %v1184 = vld [vmem:[%s1182 + $0x8] sm:$0xff]
          %v1185 = vld [vmem:[%s1182 + $0x10] sm:$0xff]
          %v1186 = vld [vmem:[%s1182 + $0x18] sm:$0xff]
          %v1187 = vld [vmem:[%s1182 + $0x20] sm:$0xff]
          %v1188 = vld [vmem:[%s1182 + $0x28] sm:$0xff]
          %v1189 = vld [vmem:[%s1182 + $0x30] sm:$0xff]
          %s1190 = scalar_lea.vmem [#allocation4], 112
          %v1191 = vld [vmem:[%s1190] sm:$0xff]
          %v1192 = vld [vmem:[%s1190 + $0x8] sm:$0xff]
          %v1193 = vld [vmem:[%s1190 + $0x10] sm:$0xff]
          %v1194 = vld [vmem:[%s1190 + $0x18] sm:$0xff]
          %v1195 = vld [vmem:[%s1190 + $0x20] sm:$0xff]
          %v1196 = vld [vmem:[%s1190 + $0x28] sm:$0xff]
          %v1197 = vld [vmem:[%s1190 + $0x30] sm:$0xff]
          %v1198 = vlaneseq
          %v1199 = vshrl.u32 %v1198, 7
          %v1200 = vsub.s32 0, %v1199
          %v1201 = vrot.slane %v1172, %v1200
          %v1202 = vmul.f32 %v1175, %v1201
          %v1203 = vmul.f32 %v1176, %v1201
          %v1204 = vmul.f32 %v1177, %v1201
          %v1205 = vmul.f32 %v1178, %v1201
          %v1206 = vmul.f32 %v1179, %v1201
          %v1207 = vmul.f32 %v1180, %v1201
          %v1208 = vmul.f32 %v1181, %v1201
          %v1209 = vadd.f32 %v1202, 0.0
          %v1210 = vadd.f32 %v1203, 0.0
          %v1211 = vadd.f32 %v1204, 0.0
          %v1212 = vadd.f32 %v1205, 0.0
          %v1213 = vadd.f32 %v1206, 0.0
          %v1214 = vadd.f32 %v1207, 0.0
          %v1215 = vadd.f32 %v1208, 0.0
          %v1216 = vlaneseq
          %v1217 = vshrl.u32 %v1216, 7
          %v1218 = vsub.s32 0, %v1217
          %v1219 = vrot.slane %v1174, %v1218
          %v1220 = vmul.f32 %v1183, %v1219
          %v1221 = vmul.f32 %v1184, %v1219
          %v1222 = vmul.f32 %v1185, %v1219
          %v1223 = vmul.f32 %v1186, %v1219
          %v1224 = vmul.f32 %v1187, %v1219
          %v1225 = vmul.f32 %v1188, %v1219
          %v1226 = vmul.f32 %v1189, %v1219
          %v1227 = vadd.f32 %v1209, %v1220
          %v1228 = vadd.f32 %v1210, %v1221
          %v1229 = vadd.f32 %v1211, %v1222
          %v1230 = vadd.f32 %v1212, %v1223
          %v1231 = vadd.f32 %v1213, %v1224
          %v1232 = vadd.f32 %v1214, %v1225
          %v1233 = vadd.f32 %v1215, %v1226
          %1235 = vrot.lane.b32.xlu0 %v1201, 127
          %v1236 = vpop.permute.xlu0 %1235
          %v1238 = vmul.f32 %v1191, %v1236
          %v1239 = vmul.f32 %v1192, %v1236
          %v1240 = vmul.f32 %v1193, %v1236
          %v1241 = vmul.f32 %v1194, %v1236
          %v1242 = vmul.f32 %v1195, %v1236
          %v1243 = vmul.f32 %v1196, %v1236
          %v1244 = vmul.f32 %v1197, %v1236
          %v1245 = vadd.f32 %v1227, %v1238
          %v1246 = vadd.f32 %v1228, %v1239
          %v1247 = vadd.f32 %v1229, %v1240
          %v1248 = vadd.f32 %v1230, %v1241
          %v1249 = vadd.f32 %v1231, %v1242
          %v1250 = vadd.f32 %v1232, %v1243
          %v1251 = vadd.f32 %v1233, %v1244
          %v1252 = vmul.f32 %v1175, %v1219
          %v1253 = vmul.f32 %v1176, %v1219
          %v1254 = vmul.f32 %v1177, %v1219
          %v1255 = vmul.f32 %v1178, %v1219
          %v1256 = vmul.f32 %v1179, %v1219
          %v1257 = vmul.f32 %v1180, %v1219
          %v1258 = vmul.f32 %v1181, %v1219
          %v1259 = vadd.f32 %v1252, 0.0
          %v1260 = vadd.f32 %v1253, 0.0
          %v1261 = vadd.f32 %v1254, 0.0
          %v1262 = vadd.f32 %v1255, 0.0
          %v1263 = vadd.f32 %v1256, 0.0
          %v1264 = vadd.f32 %v1257, 0.0
          %v1265 = vadd.f32 %v1258, 0.0
          %v1266 = vmul.f32 %v1183, %v1236
          %v1267 = vmul.f32 %v1184, %v1236
          %v1268 = vmul.f32 %v1185, %v1236
          %v1269 = vmul.f32 %v1186, %v1236
          %v1270 = vmul.f32 %v1187, %v1236
          %v1271 = vmul.f32 %v1188, %v1236
          %v1272 = vmul.f32 %v1189, %v1236
          %v1273 = vadd.f32 %v1259, %v1266
          %v1274 = vadd.f32 %v1260, %v1267
          %v1275 = vadd.f32 %v1261, %v1268
          %v1276 = vadd.f32 %v1262, %v1269
          %v1277 = vadd.f32 %v1263, %v1270
          %v1278 = vadd.f32 %v1264, %v1271
          %v1279 = vadd.f32 %v1265, %v1272
          %1281 = vrot.lane.b32.xlu0 %v1219, 127
          %v1282 = vpop.permute.xlu0 %1281
          %v1284 = vmul.f32 %v1191, %v1282
          %v1285 = vmul.f32 %v1192, %v1282
          %v1286 = vmul.f32 %v1193, %v1282
          %v1287 = vmul.f32 %v1194, %v1282
          %v1288 = vmul.f32 %v1195, %v1282
          %v1289 = vmul.f32 %v1196, %v1282
          %v1290 = vmul.f32 %v1197, %v1282
          %v1291 = vadd.f32 %v1273, %v1284
          %v1292 = vadd.f32 %v1274, %v1285
          %v1293 = vadd.f32 %v1275, %v1286
          %v1294 = vadd.f32 %v1276, %v1287
          %v1295 = vadd.f32 %v1277, %v1288
          %v1296 = vadd.f32 %v1278, %v1289
          %v1297 = vadd.f32 %v1279, %v1290
          %v1298 = vlaneseq
          %v1299 = vshrl.u32 %v1298, 7
          %v1300 = vsub.s32 1, %v1299
          %v1301 = vrot.slane %v1172, %v1300
          %v1302 = vmul.f32 %v1175, %v1301
          %v1303 = vmul.f32 %v1176, %v1301
          %v1304 = vmul.f32 %v1177, %v1301
          %v1305 = vmul.f32 %v1178, %v1301
          %v1306 = vmul.f32 %v1179, %v1301
          %v1307 = vmul.f32 %v1180, %v1301
          %v1308 = vmul.f32 %v1181, %v1301
          %v1309 = vadd.f32 %v1302, 0.0
          %v1310 = vadd.f32 %v1303, 0.0
          %v1311 = vadd.f32 %v1304, 0.0
          %v1312 = vadd.f32 %v1305, 0.0
          %v1313 = vadd.f32 %v1306, 0.0
          %v1314 = vadd.f32 %v1307, 0.0
          %v1315 = vadd.f32 %v1308, 0.0
          %v1316 = vlaneseq
          %v1317 = vshrl.u32 %v1316, 7
          %v1318 = vsub.s32 1, %v1317
          %v1319 = vrot.slane %v1174, %v1318
          %v1320 = vmul.f32 %v1183, %v1319
          %v1321 = vmul.f32 %v1184, %v1319
          %v1322 = vmul.f32 %v1185, %v1319
          %v1323 = vmul.f32 %v1186, %v1319
          %v1324 = vmul.f32 %v1187, %v1319
          %v1325 = vmul.f32 %v1188, %v1319
          %v1326 = vmul.f32 %v1189, %v1319
          %v1327 = vadd.f32 %v1309, %v1320
          %v1328 = vadd.f32 %v1310, %v1321
          %v1329 = vadd.f32 %v1311, %v1322
          %v1330 = vadd.f32 %v1312, %v1323
          %v1331 = vadd.f32 %v1313, %v1324
          %v1332 = vadd.f32 %v1314, %v1325
          %v1333 = vadd.f32 %v1315, %v1326
          %1335 = vrot.lane.b32.xlu0 %v1301, 127
          %v1336 = vpop.permute.xlu0 %1335
          %v1338 = vmul.f32 %v1191, %v1336
          %v1339 = vmul.f32 %v1192, %v1336
          %v1340 = vmul.f32 %v1193, %v1336
          %v1341 = vmul.f32 %v1194, %v1336
          %v1342 = vmul.f32 %v1195, %v1336
          %v1343 = vmul.f32 %v1196, %v1336
          %v1344 = vmul.f32 %v1197, %v1336
          %v1345 = vadd.f32 %v1327, %v1338
          %v1346 = vadd.f32 %v1328, %v1339
          %v1347 = vadd.f32 %v1329, %v1340
          %v1348 = vadd.f32 %v1330, %v1341
          %v1349 = vadd.f32 %v1331, %v1342
          %v1350 = vadd.f32 %v1332, %v1343
          %v1351 = vadd.f32 %v1333, %v1344
          %v1352 = vmul.f32 %v1175, %v1319
          %v1353 = vmul.f32 %v1176, %v1319
          %v1354 = vmul.f32 %v1177, %v1319
          %v1355 = vmul.f32 %v1178, %v1319
          %v1356 = vmul.f32 %v1179, %v1319
          %v1357 = vmul.f32 %v1180, %v1319
          %v1358 = vmul.f32 %v1181, %v1319
          %v1359 = vadd.f32 %v1352, 0.0
          %v1360 = vadd.f32 %v1353, 0.0
          %v1361 = vadd.f32 %v1354, 0.0
          %v1362 = vadd.f32 %v1355, 0.0
          %v1363 = vadd.f32 %v1356, 0.0
          %v1364 = vadd.f32 %v1357, 0.0
          %v1365 = vadd.f32 %v1358, 0.0
          %v1366 = vmul.f32 %v1183, %v1336
          %v1367 = vmul.f32 %v1184, %v1336
          %v1368 = vmul.f32 %v1185, %v1336
          %v1369 = vmul.f32 %v1186, %v1336
          %v1370 = vmul.f32 %v1187, %v1336
          %v1371 = vmul.f32 %v1188, %v1336
          %v1372 = vmul.f32 %v1189, %v1336
          %v1373 = vadd.f32 %v1359, %v1366
          %v1374 = vadd.f32 %v1360, %v1367
          %v1375 = vadd.f32 %v1361, %v1368
          %v1376 = vadd.f32 %v1362, %v1369
          %v1377 = vadd.f32 %v1363, %v1370
          %v1378 = vadd.f32 %v1364, %v1371
          %v1379 = vadd.f32 %v1365, %v1372
          %1381 = vrot.lane.b32.xlu0 %v1319, 127
          %v1382 = vpop.permute.xlu0 %1381
          %v1384 = vmul.f32 %v1191, %v1382
          %v1385 = vmul.f32 %v1192, %v1382
          %v1386 = vmul.f32 %v1193, %v1382
          %v1387 = vmul.f32 %v1194, %v1382
          %v1388 = vmul.f32 %v1195, %v1382
          %v1389 = vmul.f32 %v1196, %v1382
          %v1390 = vmul.f32 %v1197, %v1382
          %v1391 = vadd.f32 %v1373, %v1384
          %v1392 = vadd.f32 %v1374, %v1385
          %v1393 = vadd.f32 %v1375, %v1386
          %v1394 = vadd.f32 %v1376, %v1387
          %v1395 = vadd.f32 %v1377, %v1388
          %v1396 = vadd.f32 %v1378, %v1389
          %v1397 = vadd.f32 %v1379, %v1390
          %s1398 = scalar_lea.vmem [#allocation4], 168
          %v1399 = vld [vmem:[%s1398] sm:$0xff]
          %v1400 = vld [vmem:[%s1398 + $0x8] sm:$0xff]
          %v1401 = vld [vmem:[%s1398 + $0x10] sm:$0xff]
          %v1402 = vld [vmem:[%s1398 + $0x18] sm:$0xff]
          %v1403 = vld [vmem:[%s1398 + $0x20] sm:$0xff]
          %v1404 = vld [vmem:[%s1398 + $0x28] sm:$0xff]
          %v1405 = vld [vmem:[%s1398 + $0x30] sm:$0xff]
          %s1406 = scalar_lea.vmem [#allocation4], 224
          %v1407 = vld [vmem:[%s1406] sm:$0xff]
          %v1408 = vld [vmem:[%s1406 + $0x8] sm:$0xff]
          %v1409 = vld [vmem:[%s1406 + $0x10] sm:$0xff]
          %v1410 = vld [vmem:[%s1406 + $0x18] sm:$0xff]
          %v1411 = vld [vmem:[%s1406 + $0x20] sm:$0xff]
          %v1412 = vld [vmem:[%s1406 + $0x28] sm:$0xff]
          %v1413 = vld [vmem:[%s1406 + $0x30] sm:$0xff]
          %s1414 = scalar_lea.vmem [#allocation4], 280
          %v1415 = vld [vmem:[%s1414] sm:$0xff]
          %v1416 = vld [vmem:[%s1414 + $0x8] sm:$0xff]
          %v1417 = vld [vmem:[%s1414 + $0x10] sm:$0xff]
          %v1418 = vld [vmem:[%s1414 + $0x18] sm:$0xff]
          %v1419 = vld [vmem:[%s1414 + $0x20] sm:$0xff]
          %v1420 = vld [vmem:[%s1414 + $0x28] sm:$0xff]
          %v1421 = vld [vmem:[%s1414 + $0x30] sm:$0xff]
          %v1422 = vmul.f32 %v1399, %v1301
          %v1423 = vmul.f32 %v1400, %v1301
          %v1424 = vmul.f32 %v1401, %v1301
          %v1425 = vmul.f32 %v1402, %v1301
          %v1426 = vmul.f32 %v1403, %v1301
          %v1427 = vmul.f32 %v1404, %v1301
          %v1428 = vmul.f32 %v1405, %v1301
          %v1429 = vadd.f32 %v1245, %v1422
          %v1430 = vadd.f32 %v1246, %v1423
          %v1431 = vadd.f32 %v1247, %v1424
          %v1432 = vadd.f32 %v1248, %v1425
          %v1433 = vadd.f32 %v1249, %v1426
          %v1434 = vadd.f32 %v1250, %v1427
          %v1435 = vadd.f32 %v1251, %v1428
          %v1436 = vmul.f32 %v1407, %v1319
          %v1437 = vmul.f32 %v1408, %v1319
          %v1438 = vmul.f32 %v1409, %v1319
          %v1439 = vmul.f32 %v1410, %v1319
          %v1440 = vmul.f32 %v1411, %v1319
          %v1441 = vmul.f32 %v1412, %v1319
          %v1442 = vmul.f32 %v1413, %v1319
          %v1443 = vadd.f32 %v1429, %v1436
          %v1444 = vadd.f32 %v1430, %v1437
          %v1445 = vadd.f32 %v1431, %v1438
          %v1446 = vadd.f32 %v1432, %v1439
          %v1447 = vadd.f32 %v1433, %v1440
          %v1448 = vadd.f32 %v1434, %v1441
          %v1449 = vadd.f32 %v1435, %v1442
          %v1450 = vmul.f32 %v1415, %v1336
          %v1451 = vmul.f32 %v1416, %v1336
          %v1452 = vmul.f32 %v1417, %v1336
          %v1453 = vmul.f32 %v1418, %v1336
          %v1454 = vmul.f32 %v1419, %v1336
          %v1455 = vmul.f32 %v1420, %v1336
          %v1456 = vmul.f32 %v1421, %v1336
          %v1457 = vadd.f32 %v1443, %v1450
          %v1458 = vadd.f32 %v1444, %v1451
          %v1459 = vadd.f32 %v1445, %v1452
          %v1460 = vadd.f32 %v1446, %v1453
          %v1461 = vadd.f32 %v1447, %v1454
          %v1462 = vadd.f32 %v1448, %v1455
          %v1463 = vadd.f32 %v1449, %v1456
          %v1464 = vmul.f32 %v1399, %v1319
          %v1465 = vmul.f32 %v1400, %v1319
          %v1466 = vmul.f32 %v1401, %v1319
          %v1467 = vmul.f32 %v1402, %v1319
          %v1468 = vmul.f32 %v1403, %v1319
          %v1469 = vmul.f32 %v1404, %v1319
          %v1470 = vmul.f32 %v1405, %v1319
          %v1471 = vadd.f32 %v1291, %v1464
          %v1472 = vadd.f32 %v1292, %v1465
          %v1473 = vadd.f32 %v1293, %v1466
          %v1474 = vadd.f32 %v1294, %v1467
          %v1475 = vadd.f32 %v1295, %v1468
          %v1476 = vadd.f32 %v1296, %v1469
          %v1477 = vadd.f32 %v1297, %v1470
          %v1478 = vmul.f32 %v1407, %v1336
          %v1479 = vmul.f32 %v1408, %v1336
          %v1480 = vmul.f32 %v1409, %v1336
          %v1481 = vmul.f32 %v1410, %v1336
          %v1482 = vmul.f32 %v1411, %v1336
          %v1483 = vmul.f32 %v1412, %v1336
          %v1484 = vmul.f32 %v1413, %v1336
          %v1485 = vadd.f32 %v1471, %v1478
          %v1486 = vadd.f32 %v1472, %v1479
          %v1487 = vadd.f32 %v1473, %v1480
          %v1488 = vadd.f32 %v1474, %v1481
          %v1489 = vadd.f32 %v1475, %v1482
          %v1490 = vadd.f32 %v1476, %v1483
          %v1491 = vadd.f32 %v1477, %v1484
          %v1492 = vmul.f32 %v1415, %v1382
          %v1493 = vmul.f32 %v1416, %v1382
          %v1494 = vmul.f32 %v1417, %v1382
          %v1495 = vmul.f32 %v1418, %v1382
          %v1496 = vmul.f32 %v1419, %v1382
          %v1497 = vmul.f32 %v1420, %v1382
          %v1498 = vmul.f32 %v1421, %v1382
          %v1499 = vadd.f32 %v1485, %v1492
          %v1500 = vadd.f32 %v1486, %v1493
          %v1501 = vadd.f32 %v1487, %v1494
          %v1502 = vadd.f32 %v1488, %v1495
          %v1503 = vadd.f32 %v1489, %v1496
          %v1504 = vadd.f32 %v1490, %v1497
          %v1505 = vadd.f32 %v1491, %v1498
          %v1506 = vlaneseq
          %v1507 = vshrl.u32 %v1506, 7
          %v1508 = vsub.s32 2, %v1507
          %v1509 = vrot.slane %v1172, %v1508
          %v1510 = vmul.f32 %v1399, %v1509
          %v1511 = vmul.f32 %v1400, %v1509
          %v1512 = vmul.f32 %v1401, %v1509
          %v1513 = vmul.f32 %v1402, %v1509
          %v1514 = vmul.f32 %v1403, %v1509
          %v1515 = vmul.f32 %v1404, %v1509
          %v1516 = vmul.f32 %v1405, %v1509
          %v1517 = vadd.f32 %v1345, %v1510
          %v1518 = vadd.f32 %v1346, %v1511
          %v1519 = vadd.f32 %v1347, %v1512
          %v1520 = vadd.f32 %v1348, %v1513
          %v1521 = vadd.f32 %v1349, %v1514
          %v1522 = vadd.f32 %v1350, %v1515
          %v1523 = vadd.f32 %v1351, %v1516
          %v1524 = vlaneseq
          %v1525 = vshrl.u32 %v1524, 7
          %v1526 = vsub.s32 2, %v1525
          %v1527 = vrot.slane %v1174, %v1526
          %v1528 = vmul.f32 %v1407, %v1527
          %v1529 = vmul.f32 %v1408, %v1527
          %v1530 = vmul.f32 %v1409, %v1527
          %v1531 = vmul.f32 %v1410, %v1527
          %v1532 = vmul.f32 %v1411, %v1527
          %v1533 = vmul.f32 %v1412, %v1527
          %v1534 = vmul.f32 %v1413, %v1527
          %v1535 = vadd.f32 %v1517, %v1528
          %v1536 = vadd.f32 %v1518, %v1529
          %v1537 = vadd.f32 %v1519, %v1530
          %v1538 = vadd.f32 %v1520, %v1531
          %v1539 = vadd.f32 %v1521, %v1532
          %v1540 = vadd.f32 %v1522, %v1533
          %v1541 = vadd.f32 %v1523, %v1534
          %1543 = vrot.lane.b32.xlu0 %v1509, 127
          %v1544 = vpop.permute.xlu0 %1543
          %v1546 = vmul.f32 %v1415, %v1544
          %v1547 = vmul.f32 %v1416, %v1544
          %v1548 = vmul.f32 %v1417, %v1544
          %v1549 = vmul.f32 %v1418, %v1544
          %v1550 = vmul.f32 %v1419, %v1544
          %v1551 = vmul.f32 %v1420, %v1544
          %v1552 = vmul.f32 %v1421, %v1544
          %v1553 = vadd.f32 %v1535, %v1546
          %v1554 = vadd.f32 %v1536, %v1547
          %v1555 = vadd.f32 %v1537, %v1548
          %v1556 = vadd.f32 %v1538, %v1549
          %v1557 = vadd.f32 %v1539, %v1550
          %v1558 = vadd.f32 %v1540, %v1551
          %v1559 = vadd.f32 %v1541, %v1552
          %v1560 = vmul.f32 %v1399, %v1527
          %v1561 = vmul.f32 %v1400, %v1527
          %v1562 = vmul.f32 %v1401, %v1527
          %v1563 = vmul.f32 %v1402, %v1527
          %v1564 = vmul.f32 %v1403, %v1527
          %v1565 = vmul.f32 %v1404, %v1527
          %v1566 = vmul.f32 %v1405, %v1527
          %v1567 = vadd.f32 %v1391, %v1560
          %v1568 = vadd.f32 %v1392, %v1561
          %v1569 = vadd.f32 %v1393, %v1562
          %v1570 = vadd.f32 %v1394, %v1563
          %v1571 = vadd.f32 %v1395, %v1564
          %v1572 = vadd.f32 %v1396, %v1565
          %v1573 = vadd.f32 %v1397, %v1566
          %v1574 = vmul.f32 %v1407, %v1544
          %v1575 = vmul.f32 %v1408, %v1544
          %v1576 = vmul.f32 %v1409, %v1544
          %v1577 = vmul.f32 %v1410, %v1544
          %v1578 = vmul.f32 %v1411, %v1544
          %v1579 = vmul.f32 %v1412, %v1544
          %v1580 = vmul.f32 %v1413, %v1544
          %v1581 = vadd.f32 %v1567, %v1574
          %v1582 = vadd.f32 %v1568, %v1575
          %v1583 = vadd.f32 %v1569, %v1576
          %v1584 = vadd.f32 %v1570, %v1577
          %v1585 = vadd.f32 %v1571, %v1578
          %v1586 = vadd.f32 %v1572, %v1579
          %v1587 = vadd.f32 %v1573, %v1580
          %1589 = vrot.lane.b32.xlu0 %v1527, 127
          %v1590 = vpop.permute.xlu0 %1589
          %v1592 = vmul.f32 %v1415, %v1590
          %v1593 = vmul.f32 %v1416, %v1590
          %v1594 = vmul.f32 %v1417, %v1590
          %v1595 = vmul.f32 %v1418, %v1590
          %v1596 = vmul.f32 %v1419, %v1590
          %v1597 = vmul.f32 %v1420, %v1590
          %v1598 = vmul.f32 %v1421, %v1590
          %v1599 = vadd.f32 %v1581, %v1592
          %v1600 = vadd.f32 %v1582, %v1593
          %v1601 = vadd.f32 %v1583, %v1594
          %v1602 = vadd.f32 %v1584, %v1595
          %v1603 = vadd.f32 %v1585, %v1596
          %v1604 = vadd.f32 %v1586, %v1597
          %v1605 = vadd.f32 %v1587, %v1598
          %s1606 = scalar_lea.vmem [#allocation4], 336
          %v1607 = vld [vmem:[%s1606] sm:$0xff]
          %v1608 = vld [vmem:[%s1606 + $0x8] sm:$0xff]
          %v1609 = vld [vmem:[%s1606 + $0x10] sm:$0xff]
          %v1610 = vld [vmem:[%s1606 + $0x18] sm:$0xff]
          %v1611 = vld [vmem:[%s1606 + $0x20] sm:$0xff]
          %v1612 = vld [vmem:[%s1606 + $0x28] sm:$0xff]
          %v1613 = vld [vmem:[%s1606 + $0x30] sm:$0xff]
          %s1614 = scalar_lea.vmem [#allocation4], 392
          %v1615 = vld [vmem:[%s1614] sm:$0xff]
          %v1616 = vld [vmem:[%s1614 + $0x8] sm:$0xff]
          %v1617 = vld [vmem:[%s1614 + $0x10] sm:$0xff]
          %v1618 = vld [vmem:[%s1614 + $0x18] sm:$0xff]
          %v1619 = vld [vmem:[%s1614 + $0x20] sm:$0xff]
          %v1620 = vld [vmem:[%s1614 + $0x28] sm:$0xff]
          %v1621 = vld [vmem:[%s1614 + $0x30] sm:$0xff]
          %s1622 = scalar_lea.vmem [#allocation4], 448
          %v1623 = vld [vmem:[%s1622] sm:$0xff]
          %v1624 = vld [vmem:[%s1622 + $0x8] sm:$0xff]
          %v1625 = vld [vmem:[%s1622 + $0x10] sm:$0xff]
          %v1626 = vld [vmem:[%s1622 + $0x18] sm:$0xff]
          %v1627 = vld [vmem:[%s1622 + $0x20] sm:$0xff]
          %v1628 = vld [vmem:[%s1622 + $0x28] sm:$0xff]
          %v1629 = vld [vmem:[%s1622 + $0x30] sm:$0xff]
          %v1630 = vmul.f32 %v1607, %v1509
          %v1631 = vmul.f32 %v1608, %v1509
          %v1632 = vmul.f32 %v1609, %v1509
          %v1633 = vmul.f32 %v1610, %v1509
          %v1634 = vmul.f32 %v1611, %v1509
          %v1635 = vmul.f32 %v1612, %v1509
          %v1636 = vmul.f32 %v1613, %v1509
          %v1637 = vadd.f32 %v1457, %v1630
          %v1638 = vadd.f32 %v1458, %v1631
          %v1639 = vadd.f32 %v1459, %v1632
          %v1640 = vadd.f32 %v1460, %v1633
          %v1641 = vadd.f32 %v1461, %v1634
          %v1642 = vadd.f32 %v1462, %v1635
          %v1643 = vadd.f32 %v1463, %v1636
          %v1644 = vmul.f32 %v1615, %v1527
          %v1645 = vmul.f32 %v1616, %v1527
          %v1646 = vmul.f32 %v1617, %v1527
          %v1647 = vmul.f32 %v1618, %v1527
          %v1648 = vmul.f32 %v1619, %v1527
          %v1649 = vmul.f32 %v1620, %v1527
          %v1650 = vmul.f32 %v1621, %v1527
          %v1651 = vadd.f32 %v1637, %v1644
          %v1652 = vadd.f32 %v1638, %v1645
          %v1653 = vadd.f32 %v1639, %v1646
          %v1654 = vadd.f32 %v1640, %v1647
          %v1655 = vadd.f32 %v1641, %v1648
          %v1656 = vadd.f32 %v1642, %v1649
          %v1657 = vadd.f32 %v1643, %v1650
          %v1658 = vmul.f32 %v1623, %v1544
          %v1659 = vmul.f32 %v1624, %v1544
          %v1660 = vmul.f32 %v1625, %v1544
          %v1661 = vmul.f32 %v1626, %v1544
          %v1662 = vmul.f32 %v1627, %v1544
          %v1663 = vmul.f32 %v1628, %v1544
          %v1664 = vmul.f32 %v1629, %v1544
          %v1665 = vadd.f32 %v1651, %v1658
          %v1666 = vadd.f32 %v1652, %v1659
          %v1667 = vadd.f32 %v1653, %v1660
          %v1668 = vadd.f32 %v1654, %v1661
          %v1669 = vadd.f32 %v1655, %v1662
          %v1670 = vadd.f32 %v1656, %v1663
          %v1671 = vadd.f32 %v1657, %v1664
          %v1672 = vmul.f32 %v1607, %v1527
          %v1673 = vmul.f32 %v1608, %v1527
          %v1674 = vmul.f32 %v1609, %v1527
          %v1675 = vmul.f32 %v1610, %v1527
          %v1676 = vmul.f32 %v1611, %v1527
          %v1677 = vmul.f32 %v1612, %v1527
          %v1678 = vmul.f32 %v1613, %v1527
          %v1679 = vadd.f32 %v1499, %v1672
          %v1680 = vadd.f32 %v1500, %v1673
          %v1681 = vadd.f32 %v1501, %v1674
          %v1682 = vadd.f32 %v1502, %v1675
          %v1683 = vadd.f32 %v1503, %v1676
          %v1684 = vadd.f32 %v1504, %v1677
          %v1685 = vadd.f32 %v1505, %v1678
          %v1686 = vmul.f32 %v1615, %v1544
          %v1687 = vmul.f32 %v1616, %v1544
          %v1688 = vmul.f32 %v1617, %v1544
          %v1689 = vmul.f32 %v1618, %v1544
          %v1690 = vmul.f32 %v1619, %v1544
          %v1691 = vmul.f32 %v1620, %v1544
          %v1692 = vmul.f32 %v1621, %v1544
          %v1693 = vadd.f32 %v1679, %v1686
          %v1694 = vadd.f32 %v1680, %v1687
          %v1695 = vadd.f32 %v1681, %v1688
          %v1696 = vadd.f32 %v1682, %v1689
          %v1697 = vadd.f32 %v1683, %v1690
          %v1698 = vadd.f32 %v1684, %v1691
          %v1699 = vadd.f32 %v1685, %v1692
          %v1700 = vmul.f32 %v1623, %v1590
          %v1701 = vmul.f32 %v1624, %v1590
          %v1702 = vmul.f32 %v1625, %v1590
          %v1703 = vmul.f32 %v1626, %v1590
          %v1704 = vmul.f32 %v1627, %v1590
          %v1705 = vmul.f32 %v1628, %v1590
          %v1706 = vmul.f32 %v1629, %v1590
          %v1707 = vadd.f32 %v1693, %v1700
          %v1708 = vadd.f32 %v1694, %v1701
          %v1709 = vadd.f32 %v1695, %v1702
          %v1710 = vadd.f32 %v1696, %v1703
          %v1711 = vadd.f32 %v1697, %v1704
          %v1712 = vadd.f32 %v1698, %v1705
          %v1713 = vadd.f32 %v1699, %v1706
          %v1714 = vlaneseq
          %v1715 = vshrl.u32 %v1714, 7
          %v1716 = vsub.s32 3, %v1715
          %v1717 = vrot.slane %v1172, %v1716
          %v1718 = vmul.f32 %v1607, %v1717
          %v1719 = vmul.f32 %v1608, %v1717
          %v1720 = vmul.f32 %v1609, %v1717
          %v1721 = vmul.f32 %v1610, %v1717
          %v1722 = vmul.f32 %v1611, %v1717
          %v1723 = vmul.f32 %v1612, %v1717
          %v1724 = vmul.f32 %v1613, %v1717
          %v1725 = vadd.f32 %v1553, %v1718
          %v1726 = vadd.f32 %v1554, %v1719
          %v1727 = vadd.f32 %v1555, %v1720
          %v1728 = vadd.f32 %v1556, %v1721
          %v1729 = vadd.f32 %v1557, %v1722
          %v1730 = vadd.f32 %v1558, %v1723
          %v1731 = vadd.f32 %v1559, %v1724
          %v1732 = vlaneseq
          %v1733 = vshrl.u32 %v1732, 7
          %v1734 = vsub.s32 3, %v1733
          %v1735 = vrot.slane %v1174, %v1734
          %v1736 = vmul.f32 %v1615, %v1735
          %v1737 = vmul.f32 %v1616, %v1735
          %v1738 = vmul.f32 %v1617, %v1735
          %v1739 = vmul.f32 %v1618, %v1735
          %v1740 = vmul.f32 %v1619, %v1735
          %v1741 = vmul.f32 %v1620, %v1735
          %v1742 = vmul.f32 %v1621, %v1735
          %v1743 = vadd.f32 %v1725, %v1736
          %v1744 = vadd.f32 %v1726, %v1737
          %v1745 = vadd.f32 %v1727, %v1738
          %v1746 = vadd.f32 %v1728, %v1739
          %v1747 = vadd.f32 %v1729, %v1740
          %v1748 = vadd.f32 %v1730, %v1741
          %v1749 = vadd.f32 %v1731, %v1742
          %1751 = vrot.lane.b32.xlu0 %v1717, 127
          %v1752 = vpop.permute.xlu0 %1751
          %v1754 = vmul.f32 %v1623, %v1752
          %v1755 = vmul.f32 %v1624, %v1752
          %v1756 = vmul.f32 %v1625, %v1752
          %v1757 = vmul.f32 %v1626, %v1752
          %v1758 = vmul.f32 %v1627, %v1752
          %v1759 = vmul.f32 %v1628, %v1752
          %v1760 = vmul.f32 %v1629, %v1752
          %v1761 = vadd.f32 %v1743, %v1754
          %v1762 = vadd.f32 %v1744, %v1755
          %v1763 = vadd.f32 %v1745, %v1756
          %v1764 = vadd.f32 %v1746, %v1757
          %v1765 = vadd.f32 %v1747, %v1758
          %v1766 = vadd.f32 %v1748, %v1759
          %v1767 = vadd.f32 %v1749, %v1760
          %v1768 = vmul.f32 %v1607, %v1735
          %v1769 = vmul.f32 %v1608, %v1735
          %v1770 = vmul.f32 %v1609, %v1735
          %v1771 = vmul.f32 %v1610, %v1735
          %v1772 = vmul.f32 %v1611, %v1735
          %v1773 = vmul.f32 %v1612, %v1735
          %v1774 = vmul.f32 %v1613, %v1735
          %v1775 = vadd.f32 %v1599, %v1768
          %v1776 = vadd.f32 %v1600, %v1769
          %v1777 = vadd.f32 %v1601, %v1770
          %v1778 = vadd.f32 %v1602, %v1771
          %v1779 = vadd.f32 %v1603, %v1772
          %v1780 = vadd.f32 %v1604, %v1773
          %v1781 = vadd.f32 %v1605, %v1774
          %v1782 = vmul.f32 %v1615, %v1752
          %v1783 = vmul.f32 %v1616, %v1752
          %v1784 = vmul.f32 %v1617, %v1752
          %v1785 = vmul.f32 %v1618, %v1752
          %v1786 = vmul.f32 %v1619, %v1752
          %v1787 = vmul.f32 %v1620, %v1752
          %v1788 = vmul.f32 %v1621, %v1752
          %v1789 = vadd.f32 %v1775, %v1782
          %v1790 = vadd.f32 %v1776, %v1783
          %v1791 = vadd.f32 %v1777, %v1784
          %v1792 = vadd.f32 %v1778, %v1785
          %v1793 = vadd.f32 %v1779, %v1786
          %v1794 = vadd.f32 %v1780, %v1787
          %v1795 = vadd.f32 %v1781, %v1788
          %1797 = vrot.lane.b32.xlu0 %v1735, 127
          %v1798 = vpop.permute.xlu0 %1797
          %v1800 = vmul.f32 %v1623, %v1798
          %v1801 = vmul.f32 %v1624, %v1798
          %v1802 = vmul.f32 %v1625, %v1798
          %v1803 = vmul.f32 %v1626, %v1798
          %v1804 = vmul.f32 %v1627, %v1798
          %v1805 = vmul.f32 %v1628, %v1798
          %v1806 = vmul.f32 %v1629, %v1798
          %v1807 = vadd.f32 %v1789, %v1800
          %v1808 = vadd.f32 %v1790, %v1801
          %v1809 = vadd.f32 %v1791, %v1802
          %v1810 = vadd.f32 %v1792, %v1803
          %v1811 = vadd.f32 %v1793, %v1804
          %v1812 = vadd.f32 %v1794, %v1805
          %v1813 = vadd.f32 %v1795, %v1806
          %1815 = vset.pattern.permute.xlu0 0
          %1816 = vperm.xlu0 %1815, %v344
          %v1817 = vpop.permute.xlu0 %1816
          %1820 = vset.pattern.permute.xlu0 0
          %1821 = vperm.xlu0 %1820, %v345
          %v1822 = vpop.permute.xlu0 %1821
          %1825 = vset.pattern.permute.xlu0 0
          %1826 = vperm.xlu0 %1825, %v346
          %v1827 = vpop.permute.xlu0 %1826
          %1830 = vset.pattern.permute.xlu0 0
          %1831 = vperm.xlu0 %1830, %v347
          %v1832 = vpop.permute.xlu0 %1831
          %1835 = vset.pattern.permute.xlu0 0
          %1836 = vperm.xlu0 %1835, %v348
          %v1837 = vpop.permute.xlu0 %1836
          %1840 = vset.pattern.permute.xlu0 0
          %1841 = vperm.xlu0 %1840, %v349
          %v1842 = vpop.permute.xlu0 %1841
          %1845 = vset.pattern.permute.xlu0 0
          %1846 = vperm.xlu0 %1845, %v350
          %v1847 = vpop.permute.xlu0 %1846
          %v1849 = vadd.f32 %v1665, %v1817
          %v1850 = vadd.f32 %v1666, %v1822
          %v1851 = vadd.f32 %v1667, %v1827
          %v1852 = vadd.f32 %v1668, %v1832
          %v1853 = vadd.f32 %v1669, %v1837
          %v1854 = vadd.f32 %v1670, %v1842
          %v1855 = vadd.f32 %v1671, %v1847
          %vm1856 = vcmp.gt.f32.partialorder %v1849, 0.0
          %vm1857 = vcmp.gt.f32.partialorder %v1850, 0.0
          %vm1858 = vcmp.gt.f32.partialorder %v1851, 0.0
          %vm1859 = vcmp.gt.f32.partialorder %v1852, 0.0
          %vm1860 = vcmp.gt.f32.partialorder %v1853, 0.0
          %vm1861 = vcmp.gt.f32.partialorder %v1854, 0.0
          %vm1862 = vcmp.gt.f32.partialorder %v1855, 0.0
          %v1863 = vstv %s343
          %v1864 = vmul.f32 %v1863, %v1849
          %v1865 = vmul.f32 %v1863, %v1850
          %v1866 = vmul.f32 %v1863, %v1851
          %v1867 = vmul.f32 %v1863, %v1852
          %v1868 = vmul.f32 %v1863, %v1853
          %v1869 = vmul.f32 %v1863, %v1854
          %v1870 = vmul.f32 %v1863, %v1855
          %v1871 = vsel %vm1856, %v1849, %v1864
          %v1872 = vsel %vm1857, %v1850, %v1865
          %v1873 = vsel %vm1858, %v1851, %v1866
          %v1874 = vsel %vm1859, %v1852, %v1867
          %v1875 = vsel %vm1860, %v1853, %v1868
          %v1876 = vsel %vm1861, %v1854, %v1869
          %v1877 = vsel %vm1862, %v1855, %v1870
          %v1878 = vadd.f32 %v1707, %v1817
          %v1879 = vadd.f32 %v1708, %v1822
          %v1880 = vadd.f32 %v1709, %v1827
          %v1881 = vadd.f32 %v1710, %v1832
          %v1882 = vadd.f32 %v1711, %v1837
          %v1883 = vadd.f32 %v1712, %v1842
          %v1884 = vadd.f32 %v1713, %v1847
          %vm1885 = vcmp.gt.f32.partialorder %v1878, 0.0
          %vm1886 = vcmp.gt.f32.partialorder %v1879, 0.0
          %vm1887 = vcmp.gt.f32.partialorder %v1880, 0.0
          %vm1888 = vcmp.gt.f32.partialorder %v1881, 0.0
          %vm1889 = vcmp.gt.f32.partialorder %v1882, 0.0
          %vm1890 = vcmp.gt.f32.partialorder %v1883, 0.0
          %vm1891 = vcmp.gt.f32.partialorder %v1884, 0.0
          %v1892 = vmul.f32 %v1863, %v1878
          %v1893 = vmul.f32 %v1863, %v1879
          %v1894 = vmul.f32 %v1863, %v1880
          %v1895 = vmul.f32 %v1863, %v1881
          %v1896 = vmul.f32 %v1863, %v1882
          %v1897 = vmul.f32 %v1863, %v1883
          %v1898 = vmul.f32 %v1863, %v1884
          %v1899 = vsel %vm1885, %v1878, %v1892
          %v1900 = vsel %vm1886, %v1879, %v1893
          %v1901 = vsel %vm1887, %v1880, %v1894
          %v1902 = vsel %vm1888, %v1881, %v1895
          %v1903 = vsel %vm1889, %v1882, %v1896
          %v1904 = vsel %vm1890, %v1883, %v1897
          %v1905 = vsel %vm1891, %v1884, %v1898
          %v1906 = vmax.f32 %v1871, %v1899
          %v1907 = vmax.f32 %v1872, %v1900
          %v1908 = vmax.f32 %v1873, %v1901
          %v1909 = vmax.f32 %v1874, %v1902
          %v1910 = vmax.f32 %v1875, %v1903
          %v1911 = vmax.f32 %v1876, %v1904
          %v1912 = vmax.f32 %v1877, %v1905
          %v1913 = vadd.f32 %v1761, %v1817
          %v1914 = vadd.f32 %v1762, %v1822
          %v1915 = vadd.f32 %v1763, %v1827
          %v1916 = vadd.f32 %v1764, %v1832
          %v1917 = vadd.f32 %v1765, %v1837
          %v1918 = vadd.f32 %v1766, %v1842
          %v1919 = vadd.f32 %v1767, %v1847
          %vm1920 = vcmp.gt.f32.partialorder %v1913, 0.0
          %vm1921 = vcmp.gt.f32.partialorder %v1914, 0.0
          %vm1922 = vcmp.gt.f32.partialorder %v1915, 0.0
          %vm1923 = vcmp.gt.f32.partialorder %v1916, 0.0
          %vm1924 = vcmp.gt.f32.partialorder %v1917, 0.0
          %vm1925 = vcmp.gt.f32.partialorder %v1918, 0.0
          %vm1926 = vcmp.gt.f32.partialorder %v1919, 0.0
          %v1927 = vmul.f32 %v1863, %v1913
          %v1928 = vmul.f32 %v1863, %v1914
          %v1929 = vmul.f32 %v1863, %v1915
          %v1930 = vmul.f32 %v1863, %v1916
          %v1931 = vmul.f32 %v1863, %v1917
          %v1932 = vmul.f32 %v1863, %v1918
          %v1933 = vmul.f32 %v1863, %v1919
          %v1934 = vsel %vm1920, %v1913, %v1927
          %v1935 = vsel %vm1921, %v1914, %v1928
          %v1936 = vsel %vm1922, %v1915, %v1929
          %v1937 = vsel %vm1923, %v1916, %v1930
          %v1938 = vsel %vm1924, %v1917, %v1931
          %v1939 = vsel %vm1925, %v1918, %v1932
          %v1940 = vsel %vm1926, %v1919, %v1933
          %v1941 = vadd.f32 %v1807, %v1817
          %v1942 = vadd.f32 %v1808, %v1822
          %v1943 = vadd.f32 %v1809, %v1827
          %v1944 = vadd.f32 %v1810, %v1832
          %v1945 = vadd.f32 %v1811, %v1837
          %v1946 = vadd.f32 %v1812, %v1842
          %v1947 = vadd.f32 %v1813, %v1847
          %vm1948 = vcmp.gt.f32.partialorder %v1941, 0.0
          %vm1949 = vcmp.gt.f32.partialorder %v1942, 0.0
          %vm1950 = vcmp.gt.f32.partialorder %v1943, 0.0
          %vm1951 = vcmp.gt.f32.partialorder %v1944, 0.0
          %vm1952 = vcmp.gt.f32.partialorder %v1945, 0.0
          %vm1953 = vcmp.gt.f32.partialorder %v1946, 0.0
          %vm1954 = vcmp.gt.f32.partialorder %v1947, 0.0
          %v1955 = vmul.f32 %v1863, %v1941
          %v1956 = vmul.f32 %v1863, %v1942
          %v1957 = vmul.f32 %v1863, %v1943
          %v1958 = vmul.f32 %v1863, %v1944
          %v1959 = vmul.f32 %v1863, %v1945
          %v1960 = vmul.f32 %v1863, %v1946
          %v1961 = vmul.f32 %v1863, %v1947
          %v1962 = vsel %vm1948, %v1941, %v1955
          %v1963 = vsel %vm1949, %v1942, %v1956
          %v1964 = vsel %vm1950, %v1943, %v1957
          %v1965 = vsel %vm1951, %v1944, %v1958
          %v1966 = vsel %vm1952, %v1945, %v1959
          %v1967 = vsel %vm1953, %v1946, %v1960
          %v1968 = vsel %vm1954, %v1947, %v1961
          %v1969 = vmax.f32 %v1934, %v1962
          %v1970 = vmax.f32 %v1935, %v1963
          %v1971 = vmax.f32 %v1936, %v1964
          %v1972 = vmax.f32 %v1937, %v1965
          %v1973 = vmax.f32 %v1938, %v1966
          %v1974 = vmax.f32 %v1939, %v1967
          %v1975 = vmax.f32 %v1940, %v1968
          %v1976 = vmax.f32 %v1906, %v1969
          %v1977 = vmax.f32 %v1907, %v1970
          %v1978 = vmax.f32 %v1908, %v1971
          %v1979 = vmax.f32 %v1909, %v1972
          %v1980 = vmax.f32 %v1910, %v1973
          %v1981 = vmax.f32 %v1911, %v1974
          %v1982 = vmax.f32 %v1912, %v1975
          %s1983 = smul.u32 %s1165, 64
          %v1984 = vpack.c.bf16 %v1977, %v1976
          %v1985 = vpack.c.bf16 %v1979, %v1978
          %v1986 = vpack.c.bf16 %v1981, %v1980
          %v1987 = vpack.c.bf16 %v1982, %v1982
          %v1992 = vunpack.c.l.b16 %v1984
          %v1993 = vunpack.c.h.b16 %v1984
          %v1994 = vunpack.c.l.b16 %v1985
          %v1995 = vunpack.c.h.b16 %v1985
          %v1996 = vunpack.c.l.b16 %v1986
          %v1997 = vunpack.c.h.b16 %v1986
          %v1998 = vunpack.c.l.b16 %v1987
          %v1999 = vpack.c.b16 %v1992, %v1992
          %v2000 = vpack.c.b16 %v1993, %v1993
          %v2001 = vpack.c.b16 %v1994, %v1994
          %v2002 = vpack.c.b16 %v1995, %v1995
          %v2003 = vpack.c.b16 %v1996, %v1996
          %v2004 = vpack.c.b16 %v1997, %v1997
          %v2005 = vpack.c.b16 %v1998, %v1998
          %s2013 = sshra.s32 %s1983, 3
          %s2014 = sand.u32 %s1983, 7
          %s2015 = smul.addr %s2013, 4
          %s2016 = scalar_lea.vmem [#allocation2], %s2015
          %2017 = vst.msk [vmem:[%s2016] sm:$0xf] %vm379, %v1999
          %2018 = vst.msk [vmem:[%s2016 + $0x4] sm:$0xf] %vm379, %v2000
          %2019 = vst.msk [vmem:[%s2016 + $0x8] sm:$0xf] %vm379, %v2001
          %2020 = vst.msk [vmem:[%s2016 + $0xc] sm:$0xf] %vm379, %v2002
          %2021 = vst.msk [vmem:[%s2016 + $0x10] sm:$0xf] %vm379, %v2003
          %2022 = vst.msk [vmem:[%s2016 + $0x14] sm:$0xf] %vm379, %v2004
          %2023 = vst.msk [vmem:[%s2016 + $0x18] sm:$0xf] %vm379, %v2005
        $region61: #{conv_nn_forward.2} parent=51 // loop_footer
          %s1169 = sadd.s32 1, %s1165
        $region62: #{conv_nn_forward.2} parent=51 // loop_footer_branch
          %1164 = sbr.rel target = $region58
        $region63: #{conv_nn_forward.2} parent=51 // loop_exit
          _
        loop: start=0, step=1, limit=48
        $region64: #{conv_nn_forward.2} parent=51 // loop_pre_header
          _
        $region65: #{conv_nn_forward.2} parent=51 // loop_header
          %s2025 = sphi 0, %s2029
          %p2026 = scmp.ge.s32.totalorder %s2025, 48
        $region66: #{conv_nn_forward.2} parent=51 // loop_header_branch
          %2028 = sbr.rel (%p2026) target = $region70
        $region67: #{conv_nn_forward.2} parent=51 // loop_body
          %s2030 = smul.u32 %s2025, 128
          %s2031 = sshra.s32 %s2030, 3
          %s2032 = sand.u32 %s2030, 7
          %s2033 = smul.addr %s2031, 4
          %s2034 = scalar_lea.vmem [#allocation2], %s2033
          %v2035 = vld [vmem:[%s2034] sm:$0xf]
          %v2036 = vld [vmem:[%s2034 + $0x4] sm:$0xf]
          %v2037 = vld [vmem:[%s2034 + $0x8] sm:$0xf]
          %v2038 = vld [vmem:[%s2034 + $0xc] sm:$0xf]
          %v2039 = vld [vmem:[%s2034 + $0x10] sm:$0xf]
          %v2040 = vld [vmem:[%s2034 + $0x14] sm:$0xf]
          %v2041 = vld [vmem:[%s2034 + $0x18] sm:$0xf]
          %v2042 = vld [vmem:[%s2034 + $0x1c] sm:$0xf]
          %v2043 = vld [vmem:[%s2034 + $0x20] sm:$0xf]
          %v2044 = vld [vmem:[%s2034 + $0x24] sm:$0xf]
          %v2045 = vld [vmem:[%s2034 + $0x28] sm:$0xf]
          %v2046 = vld [vmem:[%s2034 + $0x2c] sm:$0xf]
          %v2047 = vld [vmem:[%s2034 + $0x30] sm:$0xf]
          %v2048 = vld [vmem:[%s2034 + $0x34] sm:$0xf]
          %v2049 = vld [vmem:[%s2034 + $0x38] sm:$0xf]
          %v2050 = vld [vmem:[%s2034 + $0x3c] sm:$0xf]
          %v2051 = vld [vmem:[%s2034 + $0x40] sm:$0xf]
          %v2052 = vld [vmem:[%s2034 + $0x44] sm:$0xf]
          %v2053 = vld [vmem:[%s2034 + $0x48] sm:$0xf]
          %v2054 = vld [vmem:[%s2034 + $0x4c] sm:$0xf]
          %v2055 = vld [vmem:[%s2034 + $0x50] sm:$0xf]
          %v2056 = vld [vmem:[%s2034 + $0x54] sm:$0xf]
          %v2057 = vld [vmem:[%s2034 + $0x58] sm:$0xf]
          %v2058 = vld [vmem:[%s2034 + $0x5c] sm:$0xf]
          %v2059 = vld [vmem:[%s4] sm:$0xff]
          %v2060 = vld [vmem:[%s4 + $0x8] sm:$0xff]
          %v2061 = vld [vmem:[%s4 + $0x10] sm:$0xff]
          %v2062 = vld [vmem:[%s4 + $0x18] sm:$0xff]
          %v2063 = vld [vmem:[%s4 + $0x20] sm:$0xff]
          %v2064 = vld [vmem:[%s4 + $0x28] sm:$0xff]
          %v2065 = vld [vmem:[%s4 + $0x30] sm:$0xff]
          %v2066 = vld [vmem:[%s4 + $0x38] sm:$0xff]
          %v2067 = vld [vmem:[%s4 + $0x40] sm:$0xff]
          %v2068 = vld [vmem:[%s4 + $0x48] sm:$0xff]
          %v2069 = vld [vmem:[%s4 + $0x50] sm:$0xff]
          %v2070 = vld [vmem:[%s4 + $0x58] sm:$0xff]
          %v2071 = vld [vmem:[%s4 + $0x60] sm:$0xff]
          %v2072 = vld [vmem:[%s4 + $0x68] sm:$0xff]
          %v2073 = vld [vmem:[%s4 + $0x70] sm:$0xff]
          %v2074 = vld [vmem:[%s4 + $0x78] sm:$0xff]
          %s2075 = scalar_lea.vmem %s4, 128
          %v2076 = vld [vmem:[%s2075] sm:$0xff]
          %v2077 = vld [vmem:[%s2075 + $0x8] sm:$0xff]
          %v2078 = vld [vmem:[%s2075 + $0x10] sm:$0xff]
          %v2079 = vld [vmem:[%s2075 + $0x18] sm:$0xff]
          %v2080 = vld [vmem:[%s2075 + $0x20] sm:$0xff]
          %v2081 = vld [vmem:[%s2075 + $0x28] sm:$0xff]
          %v2082 = vld [vmem:[%s2075 + $0x30] sm:$0xff]
          %v2083 = vld [vmem:[%s2075 + $0x38] sm:$0xff]
          %v2084 = vld [vmem:[%s2075 + $0x40] sm:$0xff]
          %v2085 = vld [vmem:[%s2075 + $0x48] sm:$0xff]
          %v2086 = vld [vmem:[%s2075 + $0x50] sm:$0xff]
          %v2087 = vld [vmem:[%s2075 + $0x58] sm:$0xff]
          %v2088 = vld [vmem:[%s2075 + $0x60] sm:$0xff]
          %v2089 = vld [vmem:[%s2075 + $0x68] sm:$0xff]
          %v2090 = vld [vmem:[%s2075 + $0x70] sm:$0xff]
          %v2091 = vld [vmem:[%s2075 + $0x78] sm:$0xff]
          %v2108 = vunpack.c.l.b16 %v2076
          %v2109 = vunpack.c.h.b16 %v2076
          %v2110 = vunpack.c.l.b16 %v2077
          %v2111 = vunpack.c.h.b16 %v2077
          %v2112 = vunpack.c.l.b16 %v2078
          %v2113 = vunpack.c.h.b16 %v2078
          %v2114 = vunpack.c.l.b16 %v2079
          %v2115 = vunpack.c.h.b16 %v2079
          %v2116 = vunpack.c.l.b16 %v2080
          %v2117 = vunpack.c.h.b16 %v2080
          %v2118 = vunpack.c.l.b16 %v2081
          %v2119 = vunpack.c.h.b16 %v2081
          %v2120 = vunpack.c.l.b16 %v2082
          %v2121 = vunpack.c.h.b16 %v2082
          %v2122 = vunpack.c.l.b16 %v2083
          %v2123 = vunpack.c.h.b16 %v2083
          %v2124 = vunpack.c.l.b16 %v2084
          %v2125 = vunpack.c.h.b16 %v2084
          %v2126 = vunpack.c.l.b16 %v2085
          %v2127 = vunpack.c.h.b16 %v2085
          %v2128 = vunpack.c.l.b16 %v2086
          %v2129 = vunpack.c.h.b16 %v2086
          %v2130 = vunpack.c.l.b16 %v2087
          %v2131 = vunpack.c.h.b16 %v2087
          %v2132 = vunpack.c.l.b16 %v2088
          %v2133 = vunpack.c.h.b16 %v2088
          %v2134 = vunpack.c.l.b16 %v2089
          %v2135 = vunpack.c.h.b16 %v2089
          %v2136 = vunpack.c.l.b16 %v2090
          %v2137 = vunpack.c.h.b16 %v2090
          %v2138 = vunpack.c.l.b16 %v2091
          %v2139 = vunpack.c.h.b16 %v2091
          %v2140 = vpack.c.b16 %v2110, %v2108
          %v2141 = vpack.c.b16 %v2111, %v2109
          %v2142 = vpack.c.b16 %v2114, %v2112
          %v2143 = vpack.c.b16 %v2115, %v2113
          %v2144 = vpack.c.b16 %v2118, %v2116
          %v2145 = vpack.c.b16 %v2119, %v2117
          %v2146 = vpack.c.b16 %v2122, %v2120
          %v2147 = vpack.c.b16 %v2123, %v2121
          %v2148 = vpack.c.b16 %v2126, %v2124
          %v2149 = vpack.c.b16 %v2127, %v2125
          %v2150 = vpack.c.b16 %v2130, %v2128
          %v2151 = vpack.c.b16 %v2131, %v2129
          %v2152 = vpack.c.b16 %v2134, %v2132
          %v2153 = vpack.c.b16 %v2135, %v2133
          %v2154 = vpack.c.b16 %v2138, %v2136
          %v2155 = vpack.c.b16 %v2139, %v2137
          %v2188 = vunpack.c.l.b16 %v2035
          %v2189 = vunpack.c.l.b16 %v2036
          %v2190 = vunpack.c.l.b16 %v2037
          %v2191 = vunpack.c.l.b16 %v2038
          %v2192 = vunpack.c.l.b16 %v2039
          %v2193 = vunpack.c.l.b16 %v2040
          %v2194 = vunpack.c.l.b16 %v2041
          %v2195 = vunpack.c.l.b16 %v2042
          %v2196 = vunpack.c.l.b16 %v2043
          %v2197 = vunpack.c.l.b16 %v2044
          %v2198 = vunpack.c.l.b16 %v2045
          %v2199 = vunpack.c.l.b16 %v2046
          %v2200 = vunpack.c.l.b16 %v2047
          %v2201 = vunpack.c.l.b16 %v2048
          %v2202 = vunpack.c.l.b16 %v2049
          %v2203 = vunpack.c.l.b16 %v2050
          %v2204 = vunpack.c.l.b16 %v2051
          %v2205 = vunpack.c.l.b16 %v2052
          %v2206 = vunpack.c.l.b16 %v2053
          %v2207 = vunpack.c.l.b16 %v2054
          %v2208 = vunpack.c.l.b16 %v2055
          %v2209 = vunpack.c.l.b16 %v2056
          %v2210 = vunpack.c.l.b16 %v2057
          %v2211 = vunpack.c.l.b16 %v2058
          %v2212 = vpack.c.b16 %v2189, %v2188
          %v2213 = vpack.c.b16 %v2191, %v2190
          %v2214 = vpack.c.b16 %v2193, %v2192
          %v2215 = vpack.c.b16 %v2195, %v2194
          %v2216 = vpack.c.b16 %v2197, %v2196
          %v2217 = vpack.c.b16 %v2199, %v2198
          %v2218 = vpack.c.b16 %v2201, %v2200
          %v2219 = vpack.c.b16 %v2203, %v2202
          %v2220 = vpack.c.b16 %v2205, %v2204
          %v2221 = vpack.c.b16 %v2207, %v2206
          %v2222 = vpack.c.b16 %v2209, %v2208
          %v2223 = vpack.c.b16 %v2211, %v2210
          %2224 = vrot.lane.b32.xlu0 %v2212, 127
          %v2225 = vpop.permute.xlu0 %2224
          %2226 = vrot.lane.b32.xlu0 %v2213, 127
          %v2227 = vpop.permute.xlu0 %2226
          %2228 = vrot.lane.b32.xlu0 %v2214, 127
          %v2229 = vpop.permute.xlu0 %2228
          %2230 = vrot.lane.b32.xlu0 %v2215, 127
          %v2231 = vpop.permute.xlu0 %2230
          %2232 = vrot.lane.b32.xlu0 %v2216, 127
          %v2233 = vpop.permute.xlu0 %2232
          %2234 = vrot.lane.b32.xlu0 %v2217, 127
          %v2235 = vpop.permute.xlu0 %2234
          %2236 = vrot.lane.b32.xlu0 %v2218, 127
          %v2237 = vpop.permute.xlu0 %2236
          %2238 = vrot.lane.b32.xlu0 %v2219, 127
          %v2239 = vpop.permute.xlu0 %2238
          %2240 = vrot.lane.b32.xlu0 %v2220, 127
          %v2241 = vpop.permute.xlu0 %2240
          %2242 = vrot.lane.b32.xlu0 %v2221, 127
          %v2243 = vpop.permute.xlu0 %2242
          %2244 = vrot.lane.b32.xlu0 %v2222, 127
          %v2245 = vpop.permute.xlu0 %2244
          %2246 = vrot.lane.b32.xlu0 %v2223, 127
          %v2247 = vpop.permute.xlu0 %2246
          %vm2260 = vcmask 523264
          %v2262 = vsel %vm2260, %v2141, 0
          %v2265 = vsel %vm2260, %v2143, 0
          %v2268 = vsel %vm2260, %v2145, 0
          %v2271 = vsel %vm2260, %v2147, 0
          %v2274 = vsel %vm2260, %v2149, 0
          %v2277 = vsel %vm2260, %v2151, 0
          %v2280 = vsel %vm2260, %v2153, 0
          %v2283 = vsel %vm2260, %v2155, 0
          %2285 = vmatprep.subr.bf16.mxu0 0
          %2286 = vmatpush1.bf16.msra.mxu0 %v2239
          %2287 = vmatprep.subr.bf16.mxu0 0
          %2288 = vmatpush1.bf16.msra.mxu0 %v2237
          %2289 = vmatprep.subr.bf16.mxu0 0
          %2290 = vmatpush1.bf16.msra.mxu0 %v2235
          %2291 = vmatprep.subr.bf16.mxu0 0
          %2292 = vmatpush1.bf16.msra.mxu0 %v2233
          %2293 = vmatprep.subr.bf16.mxu0 0
          %2294 = vmatpush1.bf16.msra.mxu0 %v2231
          %2295 = vmatprep.subr.bf16.mxu0 0
          %2296 = vmatpush1.bf16.msra.mxu0 %v2229
          %2297 = vmatprep.subr.bf16.mxu0 0
          %2298 = vmatpush1.bf16.msra.mxu0 %v2227
          %2299 = vmatprep.subr.bf16.mxu0 0
          %2300 = vmatpush1.bf16.msra.mxu0 %v2225
          %2301 = vmatprep.subr.bf16.mxu0 0
          %2302 = vmatpush2.bf16.msra.mxu0 0
          %2303 = vmatprep.subr.bf16.mxu0 0
          %2304 = vmatpush2.bf16.msra.mxu0 0
          %2305 = vmatprep.subr.bf16.mxu0 0
          %2306 = vmatpush2.bf16.msra.mxu0 0
          %2307 = vmatprep.subr.bf16.mxu0 0
          %2308 = vmatpush2.bf16.msra.mxu0 0
          %2309 = vmatprep.subr.bf16.mxu0 0
          %2310 = vmatpush2.bf16.msra.mxu0 %v2247
          %2311 = vmatprep.subr.bf16.mxu0 0
          %2312 = vmatpush2.bf16.msra.mxu0 %v2245
          %2313 = vmatprep.subr.bf16.mxu0 0
          %2314 = vmatpush2.bf16.msra.mxu0 %v2243
          %2315 = vmatprep.subr.bf16.mxu0 0
          %2316 = vmatpush2.bf16.msra.mxu0 %v2241
          %2317 = vmatprep.mubr.bf16.mxu0 %v2262
          %2318 = vmatmul.mubr.bf16.gmra.mxu0 %v2140
          %v2319 = vpop.f32.mrf.mxu0
          %v2320 = vadd.f32 0.0, %v2319
          %v2321 = vpop.f32.mrf.mxu0
          %v2322 = vpop.f32.mrf.mxu0
          %v2323 = vadd.f32 0.0, %v2322
          %v2324 = vpop.f32.mrf.mxu0
          %2325 = vmatprep.mubr.bf16.mxu0 %v2265
          %2326 = vmatmul.mubr.bf16.gmra.mxu0 %v2142
          %v2327 = vpop.f32.mrf.mxu0
          %v2328 = vadd.f32 0.0, %v2327
          %v2329 = vpop.f32.mrf.mxu0
          %v2330 = vpop.f32.mrf.mxu0
          %v2331 = vadd.f32 0.0, %v2330
          %v2332 = vpop.f32.mrf.mxu0
          %2333 = vmatprep.mubr.bf16.mxu0 %v2268
          %2334 = vmatmul.mubr.bf16.gmra.mxu0 %v2144
          %v2335 = vpop.f32.mrf.mxu0
          %v2336 = vadd.f32 0.0, %v2335
          %v2337 = vpop.f32.mrf.mxu0
          %v2338 = vpop.f32.mrf.mxu0
          %v2339 = vadd.f32 0.0, %v2338
          %v2340 = vpop.f32.mrf.mxu0
          %2341 = vmatprep.mubr.bf16.mxu0 %v2271
          %2342 = vmatmul.mubr.bf16.gmra.mxu0 %v2146
          %v2343 = vpop.f32.mrf.mxu0
          %v2344 = vadd.f32 0.0, %v2343
          %v2345 = vpop.f32.mrf.mxu0
          %v2346 = vpop.f32.mrf.mxu0
          %v2347 = vadd.f32 0.0, %v2346
          %v2348 = vpop.f32.mrf.mxu0
          %2349 = vmatprep.mubr.bf16.mxu0 %v2274
          %2350 = vmatmul.mubr.bf16.gmra.mxu0 %v2148
          %v2351 = vpop.f32.mrf.mxu0
          %v2352 = vadd.f32 0.0, %v2351
          %v2353 = vpop.f32.mrf.mxu0
          %v2354 = vpop.f32.mrf.mxu0
          %v2355 = vadd.f32 0.0, %v2354
          %v2356 = vpop.f32.mrf.mxu0
          %2357 = vmatprep.mubr.bf16.mxu0 %v2277
          %2358 = vmatmul.mubr.bf16.gmra.mxu0 %v2150
          %v2359 = vpop.f32.mrf.mxu0
          %v2360 = vadd.f32 0.0, %v2359
          %v2361 = vpop.f32.mrf.mxu0
          %v2362 = vpop.f32.mrf.mxu0
          %v2363 = vadd.f32 0.0, %v2362
          %v2364 = vpop.f32.mrf.mxu0
          %2365 = vmatprep.mubr.bf16.mxu0 %v2280
          %2366 = vmatmul.mubr.bf16.gmra.mxu0 %v2152
          %v2367 = vpop.f32.mrf.mxu0
          %v2368 = vadd.f32 0.0, %v2367
          %v2369 = vpop.f32.mrf.mxu0
          %v2370 = vpop.f32.mrf.mxu0
          %v2371 = vadd.f32 0.0, %v2370
          %v2372 = vpop.f32.mrf.mxu0
          %2373 = vmatprep.mubr.bf16.mxu0 %v2283
          %2374 = vmatmul.mubr.bf16.gmra.mxu0 %v2154
          %v2375 = vpop.f32.mrf.mxu0
          %v2376 = vadd.f32 0.0, %v2375
          %v2377 = vpop.f32.mrf.mxu0
          %v2378 = vpop.f32.mrf.mxu0
          %v2379 = vadd.f32 0.0, %v2378
          %v2380 = vpop.f32.mrf.mxu0
          %2381 = vdwg.mxu0
          %v2398 = vunpack.c.l.b16 %v2059
          %v2399 = vunpack.c.h.b16 %v2059
          %v2400 = vunpack.c.l.b16 %v2060
          %v2401 = vunpack.c.h.b16 %v2060
          %v2402 = vunpack.c.l.b16 %v2061
          %v2403 = vunpack.c.h.b16 %v2061
          %v2404 = vunpack.c.l.b16 %v2062
          %v2405 = vunpack.c.h.b16 %v2062
          %v2406 = vunpack.c.l.b16 %v2063
          %v2407 = vunpack.c.h.b16 %v2063
          %v2408 = vunpack.c.l.b16 %v2064
          %v2409 = vunpack.c.h.b16 %v2064
          %v2410 = vunpack.c.l.b16 %v2065
          %v2411 = vunpack.c.h.b16 %v2065
          %v2412 = vunpack.c.l.b16 %v2066
          %v2413 = vunpack.c.h.b16 %v2066
          %v2414 = vunpack.c.l.b16 %v2067
          %v2415 = vunpack.c.h.b16 %v2067
          %v2416 = vunpack.c.l.b16 %v2068
          %v2417 = vunpack.c.h.b16 %v2068
          %v2418 = vunpack.c.l.b16 %v2069
          %v2419 = vunpack.c.h.b16 %v2069
          %v2420 = vunpack.c.l.b16 %v2070
          %v2421 = vunpack.c.h.b16 %v2070
          %v2422 = vunpack.c.l.b16 %v2071
          %v2423 = vunpack.c.h.b16 %v2071
          %v2424 = vunpack.c.l.b16 %v2072
          %v2425 = vunpack.c.h.b16 %v2072
          %v2426 = vunpack.c.l.b16 %v2073
          %v2427 = vunpack.c.h.b16 %v2073
          %v2428 = vunpack.c.l.b16 %v2074
          %v2429 = vunpack.c.h.b16 %v2074
          %v2430 = vpack.c.b16 %v2400, %v2398
          %v2431 = vpack.c.b16 %v2401, %v2399
          %v2432 = vpack.c.b16 %v2404, %v2402
          %v2433 = vpack.c.b16 %v2405, %v2403
          %v2434 = vpack.c.b16 %v2408, %v2406
          %v2435 = vpack.c.b16 %v2409, %v2407
          %v2436 = vpack.c.b16 %v2412, %v2410
          %v2437 = vpack.c.b16 %v2413, %v2411
          %v2438 = vpack.c.b16 %v2416, %v2414
          %v2439 = vpack.c.b16 %v2417, %v2415
          %v2440 = vpack.c.b16 %v2420, %v2418
          %v2441 = vpack.c.b16 %v2421, %v2419
          %v2442 = vpack.c.b16 %v2424, %v2422
          %v2443 = vpack.c.b16 %v2425, %v2423
          %v2444 = vpack.c.b16 %v2428, %v2426
          %v2445 = vpack.c.b16 %v2429, %v2427
          %v2467 = vsel %vm2260, %v2431, 0
          %v2470 = vsel %vm2260, %v2433, 0
          %v2473 = vsel %vm2260, %v2435, 0
          %v2476 = vsel %vm2260, %v2437, 0
          %v2479 = vsel %vm2260, %v2439, 0
          %v2482 = vsel %vm2260, %v2441, 0
          %v2485 = vsel %vm2260, %v2443, 0
          %v2488 = vsel %vm2260, %v2445, 0
          %2490 = vmatprep.subr.bf16.mxu0 0
          %2491 = vmatpush1.bf16.msra.mxu0 %v2219
          %2492 = vmatprep.subr.bf16.mxu0 0
          %2493 = vmatpush1.bf16.msra.mxu0 %v2218
          %2494 = vmatprep.subr.bf16.mxu0 0
          %2495 = vmatpush1.bf16.msra.mxu0 %v2217
          %2496 = vmatprep.subr.bf16.mxu0 0
          %2497 = vmatpush1.bf16.msra.mxu0 %v2216
          %2498 = vmatprep.subr.bf16.mxu0 0
          %2499 = vmatpush1.bf16.msra.mxu0 %v2215
          %2500 = vmatprep.subr.bf16.mxu0 0
          %2501 = vmatpush1.bf16.msra.mxu0 %v2214
          %2502 = vmatprep.subr.bf16.mxu0 0
          %2503 = vmatpush1.bf16.msra.mxu0 %v2213
          %2504 = vmatprep.subr.bf16.mxu0 0
          %2505 = vmatpush1.bf16.msra.mxu0 %v2212
          %2506 = vmatprep.subr.bf16.mxu0 0
          %2507 = vmatpush2.bf16.msra.mxu0 0
          %2508 = vmatprep.subr.bf16.mxu0 0
          %2509 = vmatpush2.bf16.msra.mxu0 0
          %2510 = vmatprep.subr.bf16.mxu0 0
          %2511 = vmatpush2.bf16.msra.mxu0 0
          %2512 = vmatprep.subr.bf16.mxu0 0
          %2513 = vmatpush2.bf16.msra.mxu0 0
          %2514 = vmatprep.subr.bf16.mxu0 0
          %2515 = vmatpush2.bf16.msra.mxu0 %v2223
          %2516 = vmatprep.subr.bf16.mxu0 0
          %2517 = vmatpush2.bf16.msra.mxu0 %v2222
          %2518 = vmatprep.subr.bf16.mxu0 0
          %2519 = vmatpush2.bf16.msra.mxu0 %v2221
          %2520 = vmatprep.subr.bf16.mxu0 0
          %2521 = vmatpush2.bf16.msra.mxu0 %v2220
          %2522 = vmatprep.mubr.bf16.mxu0 %v2467
          %2523 = vmatmul.mubr.bf16.gmra.mxu0 %v2430
          %v2524 = vpop.f32.mrf.mxu0
          %v2525 = vadd.f32 %v2320, %v2524
          %v2526 = vpop.f32.mrf.mxu0
          %v2527 = vpop.f32.mrf.mxu0
          %v2528 = vadd.f32 %v2323, %v2527
          %v2529 = vpop.f32.mrf.mxu0
          %2530 = vmatprep.mubr.bf16.mxu0 %v2470
          %2531 = vmatmul.mubr.bf16.gmra.mxu0 %v2432
          %v2532 = vpop.f32.mrf.mxu0
          %v2533 = vadd.f32 %v2328, %v2532
          %v2534 = vpop.f32.mrf.mxu0
          %v2535 = vpop.f32.mrf.mxu0
          %v2536 = vadd.f32 %v2331, %v2535
          %v2537 = vpop.f32.mrf.mxu0
          %2538 = vmatprep.mubr.bf16.mxu0 %v2473
          %2539 = vmatmul.mubr.bf16.gmra.mxu0 %v2434
          %v2540 = vpop.f32.mrf.mxu0
          %v2541 = vadd.f32 %v2336, %v2540
          %v2542 = vpop.f32.mrf.mxu0
          %v2543 = vpop.f32.mrf.mxu0
          %v2544 = vadd.f32 %v2339, %v2543
          %v2545 = vpop.f32.mrf.mxu0
          %2546 = vmatprep.mubr.bf16.mxu0 %v2476
          %2547 = vmatmul.mubr.bf16.gmra.mxu0 %v2436
          %v2548 = vpop.f32.mrf.mxu0
          %v2549 = vadd.f32 %v2344, %v2548
          %v2550 = vpop.f32.mrf.mxu0
          %v2551 = vpop.f32.mrf.mxu0
          %v2552 = vadd.f32 %v2347, %v2551
          %v2553 = vpop.f32.mrf.mxu0
          %2554 = vmatprep.mubr.bf16.mxu0 %v2479
          %2555 = vmatmul.mubr.bf16.gmra.mxu0 %v2438
          %v2556 = vpop.f32.mrf.mxu0
          %v2557 = vadd.f32 %v2352, %v2556
          %v2558 = vpop.f32.mrf.mxu0
          %v2559 = vpop.f32.mrf.mxu0
          %v2560 = vadd.f32 %v2355, %v2559
          %v2561 = vpop.f32.mrf.mxu0
          %2562 = vmatprep.mubr.bf16.mxu0 %v2482
          %2563 = vmatmul.mubr.bf16.gmra.mxu0 %v2440
          %v2564 = vpop.f32.mrf.mxu0
          %v2565 = vadd.f32 %v2360, %v2564
          %v2566 = vpop.f32.mrf.mxu0
          %v2567 = vpop.f32.mrf.mxu0
          %v2568 = vadd.f32 %v2363, %v2567
          %v2569 = vpop.f32.mrf.mxu0
          %2570 = vmatprep.mubr.bf16.mxu0 %v2485
          %2571 = vmatmul.mubr.bf16.gmra.mxu0 %v2442
          %v2572 = vpop.f32.mrf.mxu0
          %v2573 = vadd.f32 %v2368, %v2572
          %v2574 = vpop.f32.mrf.mxu0
          %v2575 = vpop.f32.mrf.mxu0
          %v2576 = vadd.f32 %v2371, %v2575
          %v2577 = vpop.f32.mrf.mxu0
          %2578 = vmatprep.mubr.bf16.mxu0 %v2488
          %2579 = vmatmul.mubr.bf16.gmra.mxu0 %v2444
          %v2580 = vpop.f32.mrf.mxu0
          %v2581 = vadd.f32 %v2376, %v2580
          %v2582 = vpop.f32.mrf.mxu0
          %v2583 = vpop.f32.mrf.mxu0
          %v2584 = vadd.f32 %v2379, %v2583
          %v2585 = vpop.f32.mrf.mxu0
          %2586 = vdwg.mxu0
          %s2587 = scalar_lea.vmem %s4, 256
          %v2588 = vld [vmem:[%s2587] sm:$0xff]
          %v2589 = vld [vmem:[%s2587 + $0x8] sm:$0xff]
          %v2590 = vld [vmem:[%s2587 + $0x10] sm:$0xff]
          %v2591 = vld [vmem:[%s2587 + $0x18] sm:$0xff]
          %v2592 = vld [vmem:[%s2587 + $0x20] sm:$0xff]
          %v2593 = vld [vmem:[%s2587 + $0x28] sm:$0xff]
          %v2594 = vld [vmem:[%s2587 + $0x30] sm:$0xff]
          %v2595 = vld [vmem:[%s2587 + $0x38] sm:$0xff]
          %v2596 = vld [vmem:[%s2587 + $0x40] sm:$0xff]
          %v2597 = vld [vmem:[%s2587 + $0x48] sm:$0xff]
          %v2598 = vld [vmem:[%s2587 + $0x50] sm:$0xff]
          %v2599 = vld [vmem:[%s2587 + $0x58] sm:$0xff]
          %v2600 = vld [vmem:[%s2587 + $0x60] sm:$0xff]
          %v2601 = vld [vmem:[%s2587 + $0x68] sm:$0xff]
          %v2602 = vld [vmem:[%s2587 + $0x70] sm:$0xff]
          %v2603 = vld [vmem:[%s2587 + $0x78] sm:$0xff]
          %v2620 = vunpack.c.l.b16 %v2588
          %v2621 = vunpack.c.h.b16 %v2588
          %v2622 = vunpack.c.l.b16 %v2589
          %v2623 = vunpack.c.h.b16 %v2589
          %v2624 = vunpack.c.l.b16 %v2590
          %v2625 = vunpack.c.h.b16 %v2590
          %v2626 = vunpack.c.l.b16 %v2591
          %v2627 = vunpack.c.h.b16 %v2591
          %v2628 = vunpack.c.l.b16 %v2592
          %v2629 = vunpack.c.h.b16 %v2592
          %v2630 = vunpack.c.l.b16 %v2593
          %v2631 = vunpack.c.h.b16 %v2593
          %v2632 = vunpack.c.l.b16 %v2594
          %v2633 = vunpack.c.h.b16 %v2594
          %v2634 = vunpack.c.l.b16 %v2595
          %v2635 = vunpack.c.h.b16 %v2595
          %v2636 = vunpack.c.l.b16 %v2596
          %v2637 = vunpack.c.h.b16 %v2596
          %v2638 = vunpack.c.l.b16 %v2597
          %v2639 = vunpack.c.h.b16 %v2597
          %v2640 = vunpack.c.l.b16 %v2598
          %v2641 = vunpack.c.h.b16 %v2598
          %v2642 = vunpack.c.l.b16 %v2599
          %v2643 = vunpack.c.h.b16 %v2599
          %v2644 = vunpack.c.l.b16 %v2600
          %v2645 = vunpack.c.h.b16 %v2600
          %v2646 = vunpack.c.l.b16 %v2601
          %v2647 = vunpack.c.h.b16 %v2601
          %v2648 = vunpack.c.l.b16 %v2602
          %v2649 = vunpack.c.h.b16 %v2602
          %v2650 = vunpack.c.l.b16 %v2603
          %v2651 = vunpack.c.h.b16 %v2603
          %v2652 = vpack.c.b16 %v2622, %v2620
          %v2653 = vpack.c.b16 %v2623, %v2621
          %v2654 = vpack.c.b16 %v2626, %v2624
          %v2655 = vpack.c.b16 %v2627, %v2625
          %v2656 = vpack.c.b16 %v2630, %v2628
          %v2657 = vpack.c.b16 %v2631, %v2629
          %v2658 = vpack.c.b16 %v2634, %v2632
          %v2659 = vpack.c.b16 %v2635, %v2633
          %v2660 = vpack.c.b16 %v2638, %v2636
          %v2661 = vpack.c.b16 %v2639, %v2637
          %v2662 = vpack.c.b16 %v2642, %v2640
          %v2663 = vpack.c.b16 %v2643, %v2641
          %v2664 = vpack.c.b16 %v2646, %v2644
          %v2665 = vpack.c.b16 %v2647, %v2645
          %v2666 = vpack.c.b16 %v2650, %v2648
          %v2667 = vpack.c.b16 %v2651, %v2649
          %2676 = vrot.lane.b32.xlu0 %v2212, 126
          %v2677 = vpop.permute.xlu0 %2676
          %2678 = vrot.lane.b32.xlu0 %v2213, 126
          %v2679 = vpop.permute.xlu0 %2678
          %2680 = vrot.lane.b32.xlu0 %v2214, 126
          %v2681 = vpop.permute.xlu0 %2680
          %2682 = vrot.lane.b32.xlu0 %v2215, 126
          %v2683 = vpop.permute.xlu0 %2682
          %2684 = vrot.lane.b32.xlu0 %v2216, 126
          %v2685 = vpop.permute.xlu0 %2684
          %2686 = vrot.lane.b32.xlu0 %v2217, 126
          %v2687 = vpop.permute.xlu0 %2686
          %2688 = vrot.lane.b32.xlu0 %v2218, 126
          %v2689 = vpop.permute.xlu0 %2688
          %2690 = vrot.lane.b32.xlu0 %v2219, 126
          %v2691 = vpop.permute.xlu0 %2690
          %2692 = vrot.lane.b32.xlu0 %v2220, 126
          %v2693 = vpop.permute.xlu0 %2692
          %2694 = vrot.lane.b32.xlu0 %v2221, 126
          %v2695 = vpop.permute.xlu0 %2694
          %2696 = vrot.lane.b32.xlu0 %v2222, 126
          %v2697 = vpop.permute.xlu0 %2696
          %2698 = vrot.lane.b32.xlu0 %v2223, 126
          %v2699 = vpop.permute.xlu0 %2698
          %v2713 = vsel %vm2260, %v2653, 0
          %v2716 = vsel %vm2260, %v2655, 0
          %v2719 = vsel %vm2260, %v2657, 0
          %v2722 = vsel %vm2260, %v2659, 0
          %v2725 = vsel %vm2260, %v2661, 0
          %v2728 = vsel %vm2260, %v2663, 0
          %v2731 = vsel %vm2260, %v2665, 0
          %v2734 = vsel %vm2260, %v2667, 0
          %2736 = vmatprep.subr.bf16.mxu0 0
          %2737 = vmatpush1.bf16.msra.mxu0 %v2691
          %2738 = vmatprep.subr.bf16.mxu0 0
          %2739 = vmatpush1.bf16.msra.mxu0 %v2689
          %2740 = vmatprep.subr.bf16.mxu0 0
          %2741 = vmatpush1.bf16.msra.mxu0 %v2687
          %2742 = vmatprep.subr.bf16.mxu0 0
          %2743 = vmatpush1.bf16.msra.mxu0 %v2685
          %2744 = vmatprep.subr.bf16.mxu0 0
          %2745 = vmatpush1.bf16.msra.mxu0 %v2683
          %2746 = vmatprep.subr.bf16.mxu0 0
          %2747 = vmatpush1.bf16.msra.mxu0 %v2681
          %2748 = vmatprep.subr.bf16.mxu0 0
          %2749 = vmatpush1.bf16.msra.mxu0 %v2679
          %2750 = vmatprep.subr.bf16.mxu0 0
          %2751 = vmatpush1.bf16.msra.mxu0 %v2677
          %2752 = vmatprep.subr.bf16.mxu0 0
          %2753 = vmatpush2.bf16.msra.mxu0 0
          %2754 = vmatprep.subr.bf16.mxu0 0
          %2755 = vmatpush2.bf16.msra.mxu0 0
          %2756 = vmatprep.subr.bf16.mxu0 0
          %2757 = vmatpush2.bf16.msra.mxu0 0
          %2758 = vmatprep.subr.bf16.mxu0 0
          %2759 = vmatpush2.bf16.msra.mxu0 0
          %2760 = vmatprep.subr.bf16.mxu0 0
          %2761 = vmatpush2.bf16.msra.mxu0 %v2699
          %2762 = vmatprep.subr.bf16.mxu0 0
          %2763 = vmatpush2.bf16.msra.mxu0 %v2697
          %2764 = vmatprep.subr.bf16.mxu0 0
          %2765 = vmatpush2.bf16.msra.mxu0 %v2695
          %2766 = vmatprep.subr.bf16.mxu0 0
          %2767 = vmatpush2.bf16.msra.mxu0 %v2693
          %2768 = vmatprep.mubr.bf16.mxu0 %v2713
          %2769 = vmatmul.mubr.bf16.gmra.mxu0 %v2652
          %v2770 = vpop.f32.mrf.mxu0
          %v2771 = vadd.f32 0.0, %v2770
          %v2772 = vpop.f32.mrf.mxu0
          %v2773 = vpop.f32.mrf.mxu0
          %v2774 = vadd.f32 0.0, %v2773
          %v2775 = vpop.f32.mrf.mxu0
          %2776 = vmatprep.mubr.bf16.mxu0 %v2716
          %2777 = vmatmul.mubr.bf16.gmra.mxu0 %v2654
          %v2778 = vpop.f32.mrf.mxu0
          %v2779 = vadd.f32 0.0, %v2778
          %v2780 = vpop.f32.mrf.mxu0
          %v2781 = vpop.f32.mrf.mxu0
          %v2782 = vadd.f32 0.0, %v2781
          %v2783 = vpop.f32.mrf.mxu0
          %2784 = vmatprep.mubr.bf16.mxu0 %v2719
          %2785 = vmatmul.mubr.bf16.gmra.mxu0 %v2656
          %v2786 = vpop.f32.mrf.mxu0
          %v2787 = vadd.f32 0.0, %v2786
          %v2788 = vpop.f32.mrf.mxu0
          %v2789 = vpop.f32.mrf.mxu0
          %v2790 = vadd.f32 0.0, %v2789
          %v2791 = vpop.f32.mrf.mxu0
          %2792 = vmatprep.mubr.bf16.mxu0 %v2722
          %2793 = vmatmul.mubr.bf16.gmra.mxu0 %v2658
          %v2794 = vpop.f32.mrf.mxu0
          %v2795 = vadd.f32 0.0, %v2794
          %v2796 = vpop.f32.mrf.mxu0
          %v2797 = vpop.f32.mrf.mxu0
          %v2798 = vadd.f32 0.0, %v2797
          %v2799 = vpop.f32.mrf.mxu0
          %2800 = vmatprep.mubr.bf16.mxu0 %v2725
          %2801 = vmatmul.mubr.bf16.gmra.mxu0 %v2660
          %v2802 = vpop.f32.mrf.mxu0
          %v2803 = vadd.f32 0.0, %v2802
          %v2804 = vpop.f32.mrf.mxu0
          %v2805 = vpop.f32.mrf.mxu0
          %v2806 = vadd.f32 0.0, %v2805
          %v2807 = vpop.f32.mrf.mxu0
          %2808 = vmatprep.mubr.bf16.mxu0 %v2728
          %2809 = vmatmul.mubr.bf16.gmra.mxu0 %v2662
          %v2810 = vpop.f32.mrf.mxu0
          %v2811 = vadd.f32 0.0, %v2810
          %v2812 = vpop.f32.mrf.mxu0
          %v2813 = vpop.f32.mrf.mxu0
          %v2814 = vadd.f32 0.0, %v2813
          %v2815 = vpop.f32.mrf.mxu0
          %2816 = vmatprep.mubr.bf16.mxu0 %v2731
          %2817 = vmatmul.mubr.bf16.gmra.mxu0 %v2664
          %v2818 = vpop.f32.mrf.mxu0
          %v2819 = vadd.f32 0.0, %v2818
          %v2820 = vpop.f32.mrf.mxu0
          %v2821 = vpop.f32.mrf.mxu0
          %v2822 = vadd.f32 0.0, %v2821
          %v2823 = vpop.f32.mrf.mxu0
          %2824 = vmatprep.mubr.bf16.mxu0 %v2734
          %2825 = vmatmul.mubr.bf16.gmra.mxu0 %v2666
          %v2826 = vpop.f32.mrf.mxu0
          %v2827 = vadd.f32 0.0, %v2826
          %v2828 = vpop.f32.mrf.mxu0
          %v2829 = vpop.f32.mrf.mxu0
          %v2830 = vadd.f32 0.0, %v2829
          %v2831 = vpop.f32.mrf.mxu0
          %2832 = vdwg.mxu0
          %v2833 = vadd.f32 %v2525, %v2771
          %v2834 = vadd.f32 %v2528, %v2774
          %v2835 = vadd.f32 %v2533, %v2779
          %v2836 = vadd.f32 %v2536, %v2782
          %v2837 = vadd.f32 %v2541, %v2787
          %v2838 = vadd.f32 %v2544, %v2790
          %v2839 = vadd.f32 %v2549, %v2795
          %v2840 = vadd.f32 %v2552, %v2798
          %v2841 = vadd.f32 %v2557, %v2803
          %v2842 = vadd.f32 %v2560, %v2806
          %v2843 = vadd.f32 %v2565, %v2811
          %v2844 = vadd.f32 %v2568, %v2814
          %v2845 = vadd.f32 %v2573, %v2819
          %v2846 = vadd.f32 %v2576, %v2822
          %v2847 = vadd.f32 %v2581, %v2827
          %v2848 = vadd.f32 %v2584, %v2830
          %2850 = vset.pattern.permute.xlu0 0
          %2851 = vperm.xlu0 %2850, %v351
          %v2852 = vpop.permute.xlu0 %2851
          %2855 = vset.pattern.permute.xlu0 0
          %2856 = vperm.xlu0 %2855, %v352
          %v2857 = vpop.permute.xlu0 %2856
          %2860 = vset.pattern.permute.xlu0 0
          %2861 = vperm.xlu0 %2860, %v353
          %v2862 = vpop.permute.xlu0 %2861
          %2865 = vset.pattern.permute.xlu0 0
          %2866 = vperm.xlu0 %2865, %v354
          %v2867 = vpop.permute.xlu0 %2866
          %2870 = vset.pattern.permute.xlu0 0
          %2871 = vperm.xlu0 %2870, %v355
          %v2872 = vpop.permute.xlu0 %2871
          %2875 = vset.pattern.permute.xlu0 0
          %2876 = vperm.xlu0 %2875, %v356
          %v2877 = vpop.permute.xlu0 %2876
          %2880 = vset.pattern.permute.xlu0 0
          %2881 = vperm.xlu0 %2880, %v357
          %v2882 = vpop.permute.xlu0 %2881
          %2885 = vset.pattern.permute.xlu0 0
          %2886 = vperm.xlu0 %2885, %v358
          %v2887 = vpop.permute.xlu0 %2886
          %2890 = vset.pattern.permute.xlu0 0
          %2891 = vperm.xlu0 %2890, %v359
          %v2892 = vpop.permute.xlu0 %2891
          %2895 = vset.pattern.permute.xlu0 0
          %2896 = vperm.xlu0 %2895, %v360
          %v2897 = vpop.permute.xlu0 %2896
          %2900 = vset.pattern.permute.xlu0 0
          %2901 = vperm.xlu0 %2900, %v361
          %v2902 = vpop.permute.xlu0 %2901
          %2905 = vset.pattern.permute.xlu0 0
          %2906 = vperm.xlu0 %2905, %v362
          %v2907 = vpop.permute.xlu0 %2906
          %2910 = vset.pattern.permute.xlu0 0
          %2911 = vperm.xlu0 %2910, %v363
          %v2912 = vpop.permute.xlu0 %2911
          %2915 = vset.pattern.permute.xlu0 0
          %2916 = vperm.xlu0 %2915, %v364
          %v2917 = vpop.permute.xlu0 %2916
          %2920 = vset.pattern.permute.xlu0 0
          %2921 = vperm.xlu0 %2920, %v365
          %v2922 = vpop.permute.xlu0 %2921
          %2925 = vset.pattern.permute.xlu0 0
          %2926 = vperm.xlu0 %2925, %v366
          %v2927 = vpop.permute.xlu0 %2926
          %v2929 = vadd.f32 %v2833, %v2852
          %v2930 = vadd.f32 %v2834, %v2857
          %v2931 = vadd.f32 %v2835, %v2862
          %v2932 = vadd.f32 %v2836, %v2867
          %v2933 = vadd.f32 %v2837, %v2872
          %v2934 = vadd.f32 %v2838, %v2877
          %v2935 = vadd.f32 %v2839, %v2882
          %v2936 = vadd.f32 %v2840, %v2887
          %v2937 = vadd.f32 %v2841, %v2892
          %v2938 = vadd.f32 %v2842, %v2897
          %v2939 = vadd.f32 %v2843, %v2902
          %v2940 = vadd.f32 %v2844, %v2907
          %v2941 = vadd.f32 %v2845, %v2912
          %v2942 = vadd.f32 %v2846, %v2917
          %v2943 = vadd.f32 %v2847, %v2922
          %v2944 = vadd.f32 %v2848, %v2927
          %vm2945 = vcmp.gt.f32.partialorder %v2929, 0.0
          %vm2946 = vcmp.gt.f32.partialorder %v2930, 0.0
          %vm2947 = vcmp.gt.f32.partialorder %v2931, 0.0
          %vm2948 = vcmp.gt.f32.partialorder %v2932, 0.0
          %vm2949 = vcmp.gt.f32.partialorder %v2933, 0.0
          %vm2950 = vcmp.gt.f32.partialorder %v2934, 0.0
          %vm2951 = vcmp.gt.f32.partialorder %v2935, 0.0
          %vm2952 = vcmp.gt.f32.partialorder %v2936, 0.0
          %vm2953 = vcmp.gt.f32.partialorder %v2937, 0.0
          %vm2954 = vcmp.gt.f32.partialorder %v2938, 0.0
          %vm2955 = vcmp.gt.f32.partialorder %v2939, 0.0
          %vm2956 = vcmp.gt.f32.partialorder %v2940, 0.0
          %vm2957 = vcmp.gt.f32.partialorder %v2941, 0.0
          %vm2958 = vcmp.gt.f32.partialorder %v2942, 0.0
          %vm2959 = vcmp.gt.f32.partialorder %v2943, 0.0
          %vm2960 = vcmp.gt.f32.partialorder %v2944, 0.0
          %v2961 = vstv %s343
          %v2962 = vmul.f32 %v2961, %v2929
          %v2963 = vmul.f32 %v2961, %v2930
          %v2964 = vmul.f32 %v2961, %v2931
          %v2965 = vmul.f32 %v2961, %v2932
          %v2966 = vmul.f32 %v2961, %v2933
          %v2967 = vmul.f32 %v2961, %v2934
          %v2968 = vmul.f32 %v2961, %v2935
          %v2969 = vmul.f32 %v2961, %v2936
          %v2970 = vmul.f32 %v2961, %v2937
          %v2971 = vmul.f32 %v2961, %v2938
          %v2972 = vmul.f32 %v2961, %v2939
          %v2973 = vmul.f32 %v2961, %v2940
          %v2974 = vmul.f32 %v2961, %v2941
          %v2975 = vmul.f32 %v2961, %v2942
          %v2976 = vmul.f32 %v2961, %v2943
          %v2977 = vmul.f32 %v2961, %v2944
          %v2978 = vsel %vm2945, %v2929, %v2962
          %v2979 = vsel %vm2946, %v2930, %v2963
          %v2980 = vsel %vm2947, %v2931, %v2964
          %v2981 = vsel %vm2948, %v2932, %v2965
          %v2982 = vsel %vm2949, %v2933, %v2966
          %v2983 = vsel %vm2950, %v2934, %v2967
          %v2984 = vsel %vm2951, %v2935, %v2968
          %v2985 = vsel %vm2952, %v2936, %v2969
          %v2986 = vsel %vm2953, %v2937, %v2970
          %v2987 = vsel %vm2954, %v2938, %v2971
          %v2988 = vsel %vm2955, %v2939, %v2972
          %v2989 = vsel %vm2956, %v2940, %v2973
          %v2990 = vsel %vm2957, %v2941, %v2974
          %v2991 = vsel %vm2958, %v2942, %v2975
          %v2992 = vsel %vm2959, %v2943, %v2976
          %v2993 = vsel %vm2960, %v2944, %v2977
          %s2994 = smul.u32 %s2025, 2
          %s2995 = sadd.s32 %s2994, 1
          %s2996 = smul.u32 %s2995, 64
          %s2997 = sshra.s32 %s2996, 3
          %s2998 = sand.u32 %s2996, 7
          %s2999 = smul.addr %s2997, 4
          %s3000 = scalar_lea.vmem [#allocation2], %s2999
          %v3001 = vld [vmem:[%s3000] sm:$0xf]
          %v3002 = vld [vmem:[%s3000 + $0x4] sm:$0xf]
          %v3003 = vld [vmem:[%s3000 + $0x8] sm:$0xf]
          %v3004 = vld [vmem:[%s3000 + $0xc] sm:$0xf]
          %v3005 = vld [vmem:[%s3000 + $0x10] sm:$0xf]
          %v3006 = vld [vmem:[%s3000 + $0x14] sm:$0xf]
          %v3007 = vld [vmem:[%s3000 + $0x18] sm:$0xf]
          %v3008 = vld [vmem:[%s3000 + $0x1c] sm:$0xf]
          %v3009 = vld [vmem:[%s3000 + $0x20] sm:$0xf]
          %v3010 = vld [vmem:[%s3000 + $0x24] sm:$0xf]
          %v3011 = vld [vmem:[%s3000 + $0x28] sm:$0xf]
          %v3012 = vld [vmem:[%s3000 + $0x2c] sm:$0xf]
          %v3013 = vld [vmem:[%s3000 + $0x30] sm:$0xf]
          %v3014 = vld [vmem:[%s3000 + $0x34] sm:$0xf]
          %v3015 = vld [vmem:[%s3000 + $0x38] sm:$0xf]
          %v3016 = vld [vmem:[%s3000 + $0x3c] sm:$0xf]
          %v3017 = vld [vmem:[%s3000 + $0x40] sm:$0xf]
          %v3018 = vld [vmem:[%s3000 + $0x44] sm:$0xf]
          %v3019 = vld [vmem:[%s3000 + $0x48] sm:$0xf]
          %v3020 = vld [vmem:[%s3000 + $0x4c] sm:$0xf]
          %v3021 = vld [vmem:[%s3000 + $0x50] sm:$0xf]
          %v3022 = vld [vmem:[%s3000 + $0x54] sm:$0xf]
          %v3023 = vld [vmem:[%s3000 + $0x58] sm:$0xf]
          %v3024 = vld [vmem:[%s3000 + $0x5c] sm:$0xf]
          %v3049 = vunpack.c.l.b16 %v3001
          %v3050 = vunpack.c.l.b16 %v3002
          %v3051 = vunpack.c.l.b16 %v3003
          %v3052 = vunpack.c.l.b16 %v3004
          %v3053 = vunpack.c.l.b16 %v3005
          %v3054 = vunpack.c.l.b16 %v3006
          %v3055 = vunpack.c.l.b16 %v3007
          %v3056 = vunpack.c.l.b16 %v3008
          %v3057 = vunpack.c.l.b16 %v3009
          %v3058 = vunpack.c.l.b16 %v3010
          %v3059 = vunpack.c.l.b16 %v3011
          %v3060 = vunpack.c.l.b16 %v3012
          %v3061 = vunpack.c.l.b16 %v3013
          %v3062 = vunpack.c.l.b16 %v3014
          %v3063 = vunpack.c.l.b16 %v3015
          %v3064 = vunpack.c.l.b16 %v3016
          %v3065 = vunpack.c.l.b16 %v3017
          %v3066 = vunpack.c.l.b16 %v3018
          %v3067 = vunpack.c.l.b16 %v3019
          %v3068 = vunpack.c.l.b16 %v3020
          %v3069 = vunpack.c.l.b16 %v3021
          %v3070 = vunpack.c.l.b16 %v3022
          %v3071 = vunpack.c.l.b16 %v3023
          %v3072 = vunpack.c.l.b16 %v3024
          %v3073 = vpack.c.b16 %v3050, %v3049
          %v3074 = vpack.c.b16 %v3052, %v3051
          %v3075 = vpack.c.b16 %v3054, %v3053
          %v3076 = vpack.c.b16 %v3056, %v3055
          %v3077 = vpack.c.b16 %v3058, %v3057
          %v3078 = vpack.c.b16 %v3060, %v3059
          %v3079 = vpack.c.b16 %v3062, %v3061
          %v3080 = vpack.c.b16 %v3064, %v3063
          %v3081 = vpack.c.b16 %v3066, %v3065
          %v3082 = vpack.c.b16 %v3068, %v3067
          %v3083 = vpack.c.b16 %v3070, %v3069
          %v3084 = vpack.c.b16 %v3072, %v3071
          %3085 = vrot.lane.b32.xlu0 %v3073, 127
          %v3086 = vpop.permute.xlu0 %3085
          %3087 = vrot.lane.b32.xlu0 %v3074, 127
          %v3088 = vpop.permute.xlu0 %3087
          %3089 = vrot.lane.b32.xlu0 %v3075, 127
          %v3090 = vpop.permute.xlu0 %3089
          %3091 = vrot.lane.b32.xlu0 %v3076, 127
          %v3092 = vpop.permute.xlu0 %3091
          %3093 = vrot.lane.b32.xlu0 %v3077, 127
          %v3094 = vpop.permute.xlu0 %3093
          %3095 = vrot.lane.b32.xlu0 %v3078, 127
          %v3096 = vpop.permute.xlu0 %3095
          %3097 = vrot.lane.b32.xlu0 %v3079, 127
          %v3098 = vpop.permute.xlu0 %3097
          %3099 = vrot.lane.b32.xlu0 %v3080, 127
          %v3100 = vpop.permute.xlu0 %3099
          %3101 = vrot.lane.b32.xlu0 %v3081, 127
          %v3102 = vpop.permute.xlu0 %3101
          %3103 = vrot.lane.b32.xlu0 %v3082, 127
          %v3104 = vpop.permute.xlu0 %3103
          %3105 = vrot.lane.b32.xlu0 %v3083, 127
          %v3106 = vpop.permute.xlu0 %3105
          %3107 = vrot.lane.b32.xlu0 %v3084, 127
          %v3108 = vpop.permute.xlu0 %3107
          %3121 = vmatprep.subr.bf16.mxu0 0
          %3122 = vmatpush1.bf16.msra.mxu0 %v3100
          %3123 = vmatprep.subr.bf16.mxu0 0
          %3124 = vmatpush1.bf16.msra.mxu0 %v3098
          %3125 = vmatprep.subr.bf16.mxu0 0
          %3126 = vmatpush1.bf16.msra.mxu0 %v3096
          %3127 = vmatprep.subr.bf16.mxu0 0
          %3128 = vmatpush1.bf16.msra.mxu0 %v3094
          %3129 = vmatprep.subr.bf16.mxu0 0
          %3130 = vmatpush1.bf16.msra.mxu0 %v3092
          %3131 = vmatprep.subr.bf16.mxu0 0
          %3132 = vmatpush1.bf16.msra.mxu0 %v3090
          %3133 = vmatprep.subr.bf16.mxu0 0
          %3134 = vmatpush1.bf16.msra.mxu0 %v3088
          %3135 = vmatprep.subr.bf16.mxu0 0
          %3136 = vmatpush1.bf16.msra.mxu0 %v3086
          %3137 = vmatprep.subr.bf16.mxu0 0
          %3138 = vmatpush2.bf16.msra.mxu0 0
          %3139 = vmatprep.subr.bf16.mxu0 0
          %3140 = vmatpush2.bf16.msra.mxu0 0
          %3141 = vmatprep.subr.bf16.mxu0 0
          %3142 = vmatpush2.bf16.msra.mxu0 0
          %3143 = vmatprep.subr.bf16.mxu0 0
          %3144 = vmatpush2.bf16.msra.mxu0 0
          %3145 = vmatprep.subr.bf16.mxu0 0
          %3146 = vmatpush2.bf16.msra.mxu0 %v3108
          %3147 = vmatprep.subr.bf16.mxu0 0
          %3148 = vmatpush2.bf16.msra.mxu0 %v3106
          %3149 = vmatprep.subr.bf16.mxu0 0
          %3150 = vmatpush2.bf16.msra.mxu0 %v3104
          %3151 = vmatprep.subr.bf16.mxu0 0
          %3152 = vmatpush2.bf16.msra.mxu0 %v3102
          %3153 = vmatprep.mubr.bf16.mxu0 %v2262
          %3154 = vmatmul.mubr.bf16.gmra.mxu0 %v2140
          %v3155 = vpop.f32.mrf.mxu0
          %v3156 = vadd.f32 0.0, %v3155
          %v3157 = vpop.f32.mrf.mxu0
          %v3158 = vpop.f32.mrf.mxu0
          %v3159 = vadd.f32 0.0, %v3158
          %v3160 = vpop.f32.mrf.mxu0
          %3161 = vmatprep.mubr.bf16.mxu0 %v2265
          %3162 = vmatmul.mubr.bf16.gmra.mxu0 %v2142
          %v3163 = vpop.f32.mrf.mxu0
          %v3164 = vadd.f32 0.0, %v3163
          %v3165 = vpop.f32.mrf.mxu0
          %v3166 = vpop.f32.mrf.mxu0
          %v3167 = vadd.f32 0.0, %v3166
          %v3168 = vpop.f32.mrf.mxu0
          %3169 = vmatprep.mubr.bf16.mxu0 %v2268
          %3170 = vmatmul.mubr.bf16.gmra.mxu0 %v2144
          %v3171 = vpop.f32.mrf.mxu0
          %v3172 = vadd.f32 0.0, %v3171
          %v3173 = vpop.f32.mrf.mxu0
          %v3174 = vpop.f32.mrf.mxu0
          %v3175 = vadd.f32 0.0, %v3174
          %v3176 = vpop.f32.mrf.mxu0
          %3177 = vmatprep.mubr.bf16.mxu0 %v2271
          %3178 = vmatmul.mubr.bf16.gmra.mxu0 %v2146
          %v3179 = vpop.f32.mrf.mxu0
          %v3180 = vadd.f32 0.0, %v3179
          %v3181 = vpop.f32.mrf.mxu0
          %v3182 = vpop.f32.mrf.mxu0
          %v3183 = vadd.f32 0.0, %v3182
          %v3184 = vpop.f32.mrf.mxu0
          %3185 = vmatprep.mubr.bf16.mxu0 %v2274
          %3186 = vmatmul.mubr.bf16.gmra.mxu0 %v2148
          %v3187 = vpop.f32.mrf.mxu0
          %v3188 = vadd.f32 0.0, %v3187
          %v3189 = vpop.f32.mrf.mxu0
          %v3190 = vpop.f32.mrf.mxu0
          %v3191 = vadd.f32 0.0, %v3190
          %v3192 = vpop.f32.mrf.mxu0
          %3193 = vmatprep.mubr.bf16.mxu0 %v2277
          %3194 = vmatmul.mubr.bf16.gmra.mxu0 %v2150
          %v3195 = vpop.f32.mrf.mxu0
          %v3196 = vadd.f32 0.0, %v3195
          %v3197 = vpop.f32.mrf.mxu0
          %v3198 = vpop.f32.mrf.mxu0
          %v3199 = vadd.f32 0.0, %v3198
          %v3200 = vpop.f32.mrf.mxu0
          %3201 = vmatprep.mubr.bf16.mxu0 %v2280
          %3202 = vmatmul.mubr.bf16.gmra.mxu0 %v2152
          %v3203 = vpop.f32.mrf.mxu0
          %v3204 = vadd.f32 0.0, %v3203
          %v3205 = vpop.f32.mrf.mxu0
          %v3206 = vpop.f32.mrf.mxu0
          %v3207 = vadd.f32 0.0, %v3206
          %v3208 = vpop.f32.mrf.mxu0
          %3209 = vmatprep.mubr.bf16.mxu0 %v2283
          %3210 = vmatmul.mubr.bf16.gmra.mxu0 %v2154
          %v3211 = vpop.f32.mrf.mxu0
          %v3212 = vadd.f32 0.0, %v3211
          %v3213 = vpop.f32.mrf.mxu0
          %v3214 = vpop.f32.mrf.mxu0
          %v3215 = vadd.f32 0.0, %v3214
          %v3216 = vpop.f32.mrf.mxu0
          %3217 = vdwg.mxu0
          %3230 = vmatprep.subr.bf16.mxu0 0
          %3231 = vmatpush1.bf16.msra.mxu0 %v3080
          %3232 = vmatprep.subr.bf16.mxu0 0
          %3233 = vmatpush1.bf16.msra.mxu0 %v3079
          %3234 = vmatprep.subr.bf16.mxu0 0
          %3235 = vmatpush1.bf16.msra.mxu0 %v3078
          %3236 = vmatprep.subr.bf16.mxu0 0
          %3237 = vmatpush1.bf16.msra.mxu0 %v3077
          %3238 = vmatprep.subr.bf16.mxu0 0
          %3239 = vmatpush1.bf16.msra.mxu0 %v3076
          %3240 = vmatprep.subr.bf16.mxu0 0
          %3241 = vmatpush1.bf16.msra.mxu0 %v3075
          %3242 = vmatprep.subr.bf16.mxu0 0
          %3243 = vmatpush1.bf16.msra.mxu0 %v3074
          %3244 = vmatprep.subr.bf16.mxu0 0
          %3245 = vmatpush1.bf16.msra.mxu0 %v3073
          %3246 = vmatprep.subr.bf16.mxu0 0
          %3247 = vmatpush2.bf16.msra.mxu0 0
          %3248 = vmatprep.subr.bf16.mxu0 0
          %3249 = vmatpush2.bf16.msra.mxu0 0
          %3250 = vmatprep.subr.bf16.mxu0 0
          %3251 = vmatpush2.bf16.msra.mxu0 0
          %3252 = vmatprep.subr.bf16.mxu0 0
          %3253 = vmatpush2.bf16.msra.mxu0 0
          %3254 = vmatprep.subr.bf16.mxu0 0
          %3255 = vmatpush2.bf16.msra.mxu0 %v3084
          %3256 = vmatprep.subr.bf16.mxu0 0
          %3257 = vmatpush2.bf16.msra.mxu0 %v3083
          %3258 = vmatprep.subr.bf16.mxu0 0
          %3259 = vmatpush2.bf16.msra.mxu0 %v3082
          %3260 = vmatprep.subr.bf16.mxu0 0
          %3261 = vmatpush2.bf16.msra.mxu0 %v3081
          %3262 = vmatprep.mubr.bf16.mxu0 %v2467
          %3263 = vmatmul.mubr.bf16.gmra.mxu0 %v2430
          %v3264 = vpop.f32.mrf.mxu0
          %v3265 = vadd.f32 %v3156, %v3264
          %v3266 = vpop.f32.mrf.mxu0
          %v3267 = vpop.f32.mrf.mxu0
          %v3268 = vadd.f32 %v3159, %v3267
          %v3269 = vpop.f32.mrf.mxu0
          %3270 = vmatprep.mubr.bf16.mxu0 %v2470
          %3271 = vmatmul.mubr.bf16.gmra.mxu0 %v2432
          %v3272 = vpop.f32.mrf.mxu0
          %v3273 = vadd.f32 %v3164, %v3272
          %v3274 = vpop.f32.mrf.mxu0
          %v3275 = vpop.f32.mrf.mxu0
          %v3276 = vadd.f32 %v3167, %v3275
          %v3277 = vpop.f32.mrf.mxu0
          %3278 = vmatprep.mubr.bf16.mxu0 %v2473
          %3279 = vmatmul.mubr.bf16.gmra.mxu0 %v2434
          %v3280 = vpop.f32.mrf.mxu0
          %v3281 = vadd.f32 %v3172, %v3280
          %v3282 = vpop.f32.mrf.mxu0
          %v3283 = vpop.f32.mrf.mxu0
          %v3284 = vadd.f32 %v3175, %v3283
          %v3285 = vpop.f32.mrf.mxu0
          %3286 = vmatprep.mubr.bf16.mxu0 %v2476
          %3287 = vmatmul.mubr.bf16.gmra.mxu0 %v2436
          %v3288 = vpop.f32.mrf.mxu0
          %v3289 = vadd.f32 %v3180, %v3288
          %v3290 = vpop.f32.mrf.mxu0
          %v3291 = vpop.f32.mrf.mxu0
          %v3292 = vadd.f32 %v3183, %v3291
          %v3293 = vpop.f32.mrf.mxu0
          %3294 = vmatprep.mubr.bf16.mxu0 %v2479
          %3295 = vmatmul.mubr.bf16.gmra.mxu0 %v2438
          %v3296 = vpop.f32.mrf.mxu0
          %v3297 = vadd.f32 %v3188, %v3296
          %v3298 = vpop.f32.mrf.mxu0
          %v3299 = vpop.f32.mrf.mxu0
          %v3300 = vadd.f32 %v3191, %v3299
          %v3301 = vpop.f32.mrf.mxu0
          %3302 = vmatprep.mubr.bf16.mxu0 %v2482
          %3303 = vmatmul.mubr.bf16.gmra.mxu0 %v2440
          %v3304 = vpop.f32.mrf.mxu0
          %v3305 = vadd.f32 %v3196, %v3304
          %v3306 = vpop.f32.mrf.mxu0
          %v3307 = vpop.f32.mrf.mxu0
          %v3308 = vadd.f32 %v3199, %v3307
          %v3309 = vpop.f32.mrf.mxu0
          %3310 = vmatprep.mubr.bf16.mxu0 %v2485
          %3311 = vmatmul.mubr.bf16.gmra.mxu0 %v2442
          %v3312 = vpop.f32.mrf.mxu0
          %v3313 = vadd.f32 %v3204, %v3312
          %v3314 = vpop.f32.mrf.mxu0
          %v3315 = vpop.f32.mrf.mxu0
          %v3316 = vadd.f32 %v3207, %v3315
          %v3317 = vpop.f32.mrf.mxu0
          %3318 = vmatprep.mubr.bf16.mxu0 %v2488
          %3319 = vmatmul.mubr.bf16.gmra.mxu0 %v2444
          %v3320 = vpop.f32.mrf.mxu0
          %v3321 = vadd.f32 %v3212, %v3320
          %v3322 = vpop.f32.mrf.mxu0
          %v3323 = vpop.f32.mrf.mxu0
          %v3324 = vadd.f32 %v3215, %v3323
          %v3325 = vpop.f32.mrf.mxu0
          %3326 = vdwg.mxu0
          %3327 = vrot.lane.b32.xlu0 %v3073, 126
          %v3328 = vpop.permute.xlu0 %3327
          %3329 = vrot.lane.b32.xlu0 %v3074, 126
          %v3330 = vpop.permute.xlu0 %3329
          %3331 = vrot.lane.b32.xlu0 %v3075, 126
          %v3332 = vpop.permute.xlu0 %3331
          %3333 = vrot.lane.b32.xlu0 %v3076, 126
          %v3334 = vpop.permute.xlu0 %3333
          %3335 = vrot.lane.b32.xlu0 %v3077, 126
          %v3336 = vpop.permute.xlu0 %3335
          %3337 = vrot.lane.b32.xlu0 %v3078, 126
          %v3338 = vpop.permute.xlu0 %3337
          %3339 = vrot.lane.b32.xlu0 %v3079, 126
          %v3340 = vpop.permute.xlu0 %3339
          %3341 = vrot.lane.b32.xlu0 %v3080, 126
          %v3342 = vpop.permute.xlu0 %3341
          %3343 = vrot.lane.b32.xlu0 %v3081, 126
          %v3344 = vpop.permute.xlu0 %3343
          %3345 = vrot.lane.b32.xlu0 %v3082, 126
          %v3346 = vpop.permute.xlu0 %3345
          %3347 = vrot.lane.b32.xlu0 %v3083, 126
          %v3348 = vpop.permute.xlu0 %3347
          %3349 = vrot.lane.b32.xlu0 %v3084, 126
          %v3350 = vpop.permute.xlu0 %3349
          %3363 = vmatprep.subr.bf16.mxu0 0
          %3364 = vmatpush1.bf16.msra.mxu0 %v3342
          %3365 = vmatprep.subr.bf16.mxu0 0
          %3366 = vmatpush1.bf16.msra.mxu0 %v3340
          %3367 = vmatprep.subr.bf16.mxu0 0
          %3368 = vmatpush1.bf16.msra.mxu0 %v3338
          %3369 = vmatprep.subr.bf16.mxu0 0
          %3370 = vmatpush1.bf16.msra.mxu0 %v3336
          %3371 = vmatprep.subr.bf16.mxu0 0
          %3372 = vmatpush1.bf16.msra.mxu0 %v3334
          %3373 = vmatprep.subr.bf16.mxu0 0
          %3374 = vmatpush1.bf16.msra.mxu0 %v3332
          %3375 = vmatprep.subr.bf16.mxu0 0
          %3376 = vmatpush1.bf16.msra.mxu0 %v3330
          %3377 = vmatprep.subr.bf16.mxu0 0
          %3378 = vmatpush1.bf16.msra.mxu0 %v3328
          %3379 = vmatprep.subr.bf16.mxu0 0
          %3380 = vmatpush2.bf16.msra.mxu0 0
          %3381 = vmatprep.subr.bf16.mxu0 0
          %3382 = vmatpush2.bf16.msra.mxu0 0
          %3383 = vmatprep.subr.bf16.mxu0 0
          %3384 = vmatpush2.bf16.msra.mxu0 0
          %3385 = vmatprep.subr.bf16.mxu0 0
          %3386 = vmatpush2.bf16.msra.mxu0 0
          %3387 = vmatprep.subr.bf16.mxu0 0
          %3388 = vmatpush2.bf16.msra.mxu0 %v3350
          %3389 = vmatprep.subr.bf16.mxu0 0
          %3390 = vmatpush2.bf16.msra.mxu0 %v3348
          %3391 = vmatprep.subr.bf16.mxu0 0
          %3392 = vmatpush2.bf16.msra.mxu0 %v3346
          %3393 = vmatprep.subr.bf16.mxu0 0
          %3394 = vmatpush2.bf16.msra.mxu0 %v3344
          %3395 = vmatprep.mubr.bf16.mxu0 %v2713
          %3396 = vmatmul.mubr.bf16.gmra.mxu0 %v2652
          %v3397 = vpop.f32.mrf.mxu0
          %v3398 = vadd.f32 0.0, %v3397
          %v3399 = vpop.f32.mrf.mxu0
          %v3400 = vpop.f32.mrf.mxu0
          %v3401 = vadd.f32 0.0, %v3400
          %v3402 = vpop.f32.mrf.mxu0
          %3403 = vmatprep.mubr.bf16.mxu0 %v2716
          %3404 = vmatmul.mubr.bf16.gmra.mxu0 %v2654
          %v3405 = vpop.f32.mrf.mxu0
          %v3406 = vadd.f32 0.0, %v3405
          %v3407 = vpop.f32.mrf.mxu0
          %v3408 = vpop.f32.mrf.mxu0
          %v3409 = vadd.f32 0.0, %v3408
          %v3410 = vpop.f32.mrf.mxu0
          %3411 = vmatprep.mubr.bf16.mxu0 %v2719
          %3412 = vmatmul.mubr.bf16.gmra.mxu0 %v2656
          %v3413 = vpop.f32.mrf.mxu0
          %v3414 = vadd.f32 0.0, %v3413
          %v3415 = vpop.f32.mrf.mxu0
          %v3416 = vpop.f32.mrf.mxu0
          %v3417 = vadd.f32 0.0, %v3416
          %v3418 = vpop.f32.mrf.mxu0
          %3419 = vmatprep.mubr.bf16.mxu0 %v2722
          %3420 = vmatmul.mubr.bf16.gmra.mxu0 %v2658
          %v3421 = vpop.f32.mrf.mxu0
          %v3422 = vadd.f32 0.0, %v3421
          %v3423 = vpop.f32.mrf.mxu0
          %v3424 = vpop.f32.mrf.mxu0
          %v3425 = vadd.f32 0.0, %v3424
          %v3426 = vpop.f32.mrf.mxu0
          %3427 = vmatprep.mubr.bf16.mxu0 %v2725
          %3428 = vmatmul.mubr.bf16.gmra.mxu0 %v2660
          %v3429 = vpop.f32.mrf.mxu0
          %v3430 = vadd.f32 0.0, %v3429
          %v3431 = vpop.f32.mrf.mxu0
          %v3432 = vpop.f32.mrf.mxu0
          %v3433 = vadd.f32 0.0, %v3432
          %v3434 = vpop.f32.mrf.mxu0
          %3435 = vmatprep.mubr.bf16.mxu0 %v2728
          %3436 = vmatmul.mubr.bf16.gmra.mxu0 %v2662
          %v3437 = vpop.f32.mrf.mxu0
          %v3438 = vadd.f32 0.0, %v3437
          %v3439 = vpop.f32.mrf.mxu0
          %v3440 = vpop.f32.mrf.mxu0
          %v3441 = vadd.f32 0.0, %v3440
          %v3442 = vpop.f32.mrf.mxu0
          %3443 = vmatprep.mubr.bf16.mxu0 %v2731
          %3444 = vmatmul.mubr.bf16.gmra.mxu0 %v2664
          %v3445 = vpop.f32.mrf.mxu0
          %v3446 = vadd.f32 0.0, %v3445
          %v3447 = vpop.f32.mrf.mxu0
          %v3448 = vpop.f32.mrf.mxu0
          %v3449 = vadd.f32 0.0, %v3448
          %v3450 = vpop.f32.mrf.mxu0
          %3451 = vmatprep.mubr.bf16.mxu0 %v2734
          %3452 = vmatmul.mubr.bf16.gmra.mxu0 %v2666
          %v3453 = vpop.f32.mrf.mxu0
          %v3454 = vadd.f32 0.0, %v3453
          %v3455 = vpop.f32.mrf.mxu0
          %v3456 = vpop.f32.mrf.mxu0
          %v3457 = vadd.f32 0.0, %v3456
          %v3458 = vpop.f32.mrf.mxu0
          %3459 = vdwg.mxu0
          %v3460 = vadd.f32 %v3265, %v3398
          %v3461 = vadd.f32 %v3268, %v3401
          %v3462 = vadd.f32 %v3273, %v3406
          %v3463 = vadd.f32 %v3276, %v3409
          %v3464 = vadd.f32 %v3281, %v3414
          %v3465 = vadd.f32 %v3284, %v3417
          %v3466 = vadd.f32 %v3289, %v3422
          %v3467 = vadd.f32 %v3292, %v3425
          %v3468 = vadd.f32 %v3297, %v3430
          %v3469 = vadd.f32 %v3300, %v3433
          %v3470 = vadd.f32 %v3305, %v3438
          %v3471 = vadd.f32 %v3308, %v3441
          %v3472 = vadd.f32 %v3313, %v3446
          %v3473 = vadd.f32 %v3316, %v3449
          %v3474 = vadd.f32 %v3321, %v3454
          %v3475 = vadd.f32 %v3324, %v3457
          %v3476 = vadd.f32 %v3460, %v2852
          %v3477 = vadd.f32 %v3461, %v2857
          %v3478 = vadd.f32 %v3462, %v2862
          %v3479 = vadd.f32 %v3463, %v2867
          %v3480 = vadd.f32 %v3464, %v2872
          %v3481 = vadd.f32 %v3465, %v2877
          %v3482 = vadd.f32 %v3466, %v2882
          %v3483 = vadd.f32 %v3467, %v2887
          %v3484 = vadd.f32 %v3468, %v2892
          %v3485 = vadd.f32 %v3469, %v2897
          %v3486 = vadd.f32 %v3470, %v2902
          %v3487 = vadd.f32 %v3471, %v2907
          %v3488 = vadd.f32 %v3472, %v2912
          %v3489 = vadd.f32 %v3473, %v2917
          %v3490 = vadd.f32 %v3474, %v2922
          %v3491 = vadd.f32 %v3475, %v2927
          %vm3492 = vcmp.gt.f32.partialorder %v3476, 0.0
          %vm3493 = vcmp.gt.f32.partialorder %v3477, 0.0
          %vm3494 = vcmp.gt.f32.partialorder %v3478, 0.0
          %vm3495 = vcmp.gt.f32.partialorder %v3479, 0.0
          %vm3496 = vcmp.gt.f32.partialorder %v3480, 0.0
          %vm3497 = vcmp.gt.f32.partialorder %v3481, 0.0
          %vm3498 = vcmp.gt.f32.partialorder %v3482, 0.0
          %vm3499 = vcmp.gt.f32.partialorder %v3483, 0.0
          %vm3500 = vcmp.gt.f32.partialorder %v3484, 0.0
          %vm3501 = vcmp.gt.f32.partialorder %v3485, 0.0
          %vm3502 = vcmp.gt.f32.partialorder %v3486, 0.0
          %vm3503 = vcmp.gt.f32.partialorder %v3487, 0.0
          %vm3504 = vcmp.gt.f32.partialorder %v3488, 0.0
          %vm3505 = vcmp.gt.f32.partialorder %v3489, 0.0
          %vm3506 = vcmp.gt.f32.partialorder %v3490, 0.0
          %vm3507 = vcmp.gt.f32.partialorder %v3491, 0.0
          %v3508 = vmul.f32 %v2961, %v3476
          %v3509 = vmul.f32 %v2961, %v3477
          %v3510 = vmul.f32 %v2961, %v3478
          %v3511 = vmul.f32 %v2961, %v3479
          %v3512 = vmul.f32 %v2961, %v3480
          %v3513 = vmul.f32 %v2961, %v3481
          %v3514 = vmul.f32 %v2961, %v3482
          %v3515 = vmul.f32 %v2961, %v3483
          %v3516 = vmul.f32 %v2961, %v3484
          %v3517 = vmul.f32 %v2961, %v3485
          %v3518 = vmul.f32 %v2961, %v3486
          %v3519 = vmul.f32 %v2961, %v3487
          %v3520 = vmul.f32 %v2961, %v3488
          %v3521 = vmul.f32 %v2961, %v3489
          %v3522 = vmul.f32 %v2961, %v3490
          %v3523 = vmul.f32 %v2961, %v3491
          %v3524 = vsel %vm3492, %v3476, %v3508
          %v3525 = vsel %vm3493, %v3477, %v3509
          %v3526 = vsel %vm3494, %v3478, %v3510
          %v3527 = vsel %vm3495, %v3479, %v3511
          %v3528 = vsel %vm3496, %v3480, %v3512
          %v3529 = vsel %vm3497, %v3481, %v3513
          %v3530 = vsel %vm3498, %v3482, %v3514
          %v3531 = vsel %vm3499, %v3483, %v3515
          %v3532 = vsel %vm3500, %v3484, %v3516
          %v3533 = vsel %vm3501, %v3485, %v3517
          %v3534 = vsel %vm3502, %v3486, %v3518
          %v3535 = vsel %vm3503, %v3487, %v3519
          %v3536 = vsel %vm3504, %v3488, %v3520
          %v3537 = vsel %vm3505, %v3489, %v3521
          %v3538 = vsel %vm3506, %v3490, %v3522
          %v3539 = vsel %vm3507, %v3491, %v3523
          %v3540 = vmax.f32 %v2978, %v3524
          %v3541 = vmax.f32 %v2979, %v3525
          %v3542 = vmax.f32 %v2980, %v3526
          %v3543 = vmax.f32 %v2981, %v3527
          %v3544 = vmax.f32 %v2982, %v3528
          %v3545 = vmax.f32 %v2983, %v3529
          %v3546 = vmax.f32 %v2984, %v3530
          %v3547 = vmax.f32 %v2985, %v3531
          %v3548 = vmax.f32 %v2986, %v3532
          %v3549 = vmax.f32 %v2987, %v3533
          %v3550 = vmax.f32 %v2988, %v3534
          %v3551 = vmax.f32 %v2989, %v3535
          %v3552 = vmax.f32 %v2990, %v3536
          %v3553 = vmax.f32 %v2991, %v3537
          %v3554 = vmax.f32 %v2992, %v3538
          %v3555 = vmax.f32 %v2993, %v3539
          %3572 = vrot.lane.b32.xlu0 %v3540, 127
          %v3573 = vpop.permute.xlu0 %3572
          %3574 = vrot.lane.b32.xlu0 %v3541, 127
          %v3575 = vpop.permute.xlu0 %3574
          %3576 = vrot.lane.b32.xlu0 %v3542, 127
          %v3577 = vpop.permute.xlu0 %3576
          %3578 = vrot.lane.b32.xlu0 %v3543, 127
          %v3579 = vpop.permute.xlu0 %3578
          %3580 = vrot.lane.b32.xlu0 %v3544, 127
          %v3581 = vpop.permute.xlu0 %3580
          %3582 = vrot.lane.b32.xlu0 %v3545, 127
          %v3583 = vpop.permute.xlu0 %3582
          %3584 = vrot.lane.b32.xlu0 %v3546, 127
          %v3585 = vpop.permute.xlu0 %3584
          %3586 = vrot.lane.b32.xlu0 %v3547, 127
          %v3587 = vpop.permute.xlu0 %3586
          %3588 = vrot.lane.b32.xlu0 %v3548, 127
          %v3589 = vpop.permute.xlu0 %3588
          %3590 = vrot.lane.b32.xlu0 %v3549, 127
          %v3591 = vpop.permute.xlu0 %3590
          %3592 = vrot.lane.b32.xlu0 %v3550, 127
          %v3593 = vpop.permute.xlu0 %3592
          %3594 = vrot.lane.b32.xlu0 %v3551, 127
          %v3595 = vpop.permute.xlu0 %3594
          %3596 = vrot.lane.b32.xlu0 %v3552, 127
          %v3597 = vpop.permute.xlu0 %3596
          %3598 = vrot.lane.b32.xlu0 %v3553, 127
          %v3599 = vpop.permute.xlu0 %3598
          %3600 = vrot.lane.b32.xlu0 %v3554, 127
          %v3601 = vpop.permute.xlu0 %3600
          %3602 = vrot.lane.b32.xlu0 %v3555, 127
          %v3603 = vpop.permute.xlu0 %3602
          %v3620 = vmax.f32 %v3540, %v3573
          %v3621 = vmax.f32 %v3541, %v3575
          %v3622 = vmax.f32 %v3542, %v3577
          %v3623 = vmax.f32 %v3543, %v3579
          %v3624 = vmax.f32 %v3544, %v3581
          %v3625 = vmax.f32 %v3545, %v3583
          %v3626 = vmax.f32 %v3546, %v3585
          %v3627 = vmax.f32 %v3547, %v3587
          %v3628 = vmax.f32 %v3548, %v3589
          %v3629 = vmax.f32 %v3549, %v3591
          %v3630 = vmax.f32 %v3550, %v3593
          %v3631 = vmax.f32 %v3551, %v3595
          %v3632 = vmax.f32 %v3552, %v3597
          %v3633 = vmax.f32 %v3553, %v3599
          %v3634 = vmax.f32 %v3554, %v3601
          %v3635 = vmax.f32 %v3555, %v3603
          %v3636 = vpack.c.bf16 %v3621, %v3620
          %v3637 = vpack.c.bf16 %v3623, %v3622
          %v3638 = vpack.c.bf16 %v3625, %v3624
          %v3639 = vpack.c.bf16 %v3627, %v3626
          %v3640 = vpack.c.bf16 %v3629, %v3628
          %v3641 = vpack.c.bf16 %v3631, %v3630
          %v3642 = vpack.c.bf16 %v3633, %v3632
          %v3643 = vpack.c.bf16 %v3635, %v3634
          %v3656 = vunpack.c.l.b16 %v367
          %v3657 = vunpack.c.l.b16 %v368
          %v3658 = vunpack.c.l.b16 %v369
          %v3659 = vunpack.c.l.b16 %v370
          %v3660 = vunpack.c.l.b16 %v371
          %v3661 = vunpack.c.l.b16 %v372
          %v3662 = vunpack.c.l.b16 %v373
          %v3663 = vunpack.c.l.b16 %v374
          %v3664 = vunpack.c.l.b16 %v375
          %v3665 = vunpack.c.l.b16 %v376
          %v3666 = vunpack.c.l.b16 %v377
          %v3667 = vunpack.c.l.b16 %v378
          %v3668 = vpack.c.b16 %v3657, %v3656
          %v3669 = vpack.c.b16 %v3659, %v3658
          %v3670 = vpack.c.b16 %v3661, %v3660
          %v3671 = vpack.c.b16 %v3663, %v3662
          %v3672 = vpack.c.b16 %v3665, %v3664
          %v3673 = vpack.c.b16 %v3667, %v3666
          %vm3679 = vcmask 777216
          %v3681 = vsel %vm3679, %v3636, 0
          %v3684 = vsel %vm3679, %v3637, 0
          %v3687 = vsel %vm3679, %v3638, 0
          %v3690 = vsel %vm3679, %v3639, 0
          %v3693 = vsel %vm3679, %v3640, 0
          %v3696 = vsel %vm3679, %v3641, 0
          %v3699 = vsel %vm3679, %v3642, 0
          %v3702 = vsel %vm3679, %v3643, 0
          %vm3704 = vcmask 1046528
          %vm3705 = vcmask 1047552
          %v3706 = vsel %vm3704, 4294967295, 65535
          %v3707 = vsel %vm3705, %v3706, 0
          %v3709 = vand.u32 %v3673, %v3707
          %3711 = vmatprep.subr.bf16.mxu0 0
          %3712 = vmatpush1.bf16.msra.mxu0 0
          %3713 = vmatprep.subr.bf16.mxu0 0
          %3714 = vmatpush1.bf16.msra.mxu0 0
          %3715 = vmatprep.subr.bf16.mxu0 0
          %3716 = vmatpush1.bf16.msra.mxu0 %v3709
          %3717 = vmatprep.subr.bf16.mxu0 0
          %3718 = vmatpush1.bf16.msra.mxu0 %v3672
          %3719 = vmatprep.subr.bf16.mxu0 0
          %3720 = vmatpush1.bf16.msra.mxu0 %v3671
          %3721 = vmatprep.subr.bf16.mxu0 0
          %3722 = vmatpush1.bf16.msra.mxu0 %v3670
          %3723 = vmatprep.subr.bf16.mxu0 0
          %3724 = vmatpush1.bf16.msra.mxu0 %v3669
          %3725 = vmatprep.subr.bf16.mxu0 0
          %3726 = vmatpush1.bf16.msra.mxu0 %v3668
          %3727 = vmatprep.subr.bf16.mxu0 0
          %3728 = vmatpush2.bf16.msra.mxu0 0
          %3729 = vmatprep.subr.bf16.mxu0 0
          %3730 = vmatpush2.bf16.msra.mxu0 0
          %3731 = vmatprep.subr.bf16.mxu0 0
          %3732 = vmatpush2.bf16.msra.mxu0 0
          %3733 = vmatprep.subr.bf16.mxu0 0
          %3734 = vmatpush2.bf16.msra.mxu0 0
          %3735 = vmatprep.subr.bf16.mxu0 0
          %3736 = vmatpush2.bf16.msra.mxu0 0
          %3737 = vmatprep.subr.bf16.mxu0 0
          %3738 = vmatpush2.bf16.msra.mxu0 0
          %3739 = vmatprep.subr.bf16.mxu0 0
          %3740 = vmatpush2.bf16.msra.mxu0 0
          %3741 = vmatprep.subr.bf16.mxu0 0
          %3742 = vmatpush2.bf16.msra.mxu0 0
          %3743 = vmatprep.mubr.bf16.mxu0 0
          %3744 = vmatmul.mubr.bf16.gmra.mxu0 %v3681
          %v3745 = vpop.f32.mrf.mxu0
          %v3746 = vadd.f32 0.0, %v3745
          %v3747 = vpop.f32.mrf.mxu0
          %v3748 = vpop.f32.mrf.mxu0
          %v3749 = vadd.f32 0.0, %v3748
          %v3750 = vpop.f32.mrf.mxu0
          %3751 = vmatprep.mubr.bf16.mxu0 0
          %3752 = vmatmul.mubr.bf16.gmra.mxu0 %v3684
          %v3753 = vpop.f32.mrf.mxu0
          %v3754 = vadd.f32 0.0, %v3753
          %v3755 = vpop.f32.mrf.mxu0
          %v3756 = vpop.f32.mrf.mxu0
          %v3757 = vadd.f32 0.0, %v3756
          %v3758 = vpop.f32.mrf.mxu0
          %3759 = vmatprep.mubr.bf16.mxu0 0
          %3760 = vmatmul.mubr.bf16.gmra.mxu0 %v3687
          %v3761 = vpop.f32.mrf.mxu0
          %v3762 = vadd.f32 0.0, %v3761
          %v3763 = vpop.f32.mrf.mxu0
          %v3764 = vpop.f32.mrf.mxu0
          %v3765 = vadd.f32 0.0, %v3764
          %v3766 = vpop.f32.mrf.mxu0
          %3767 = vmatprep.mubr.bf16.mxu0 0
          %3768 = vmatmul.mubr.bf16.gmra.mxu0 %v3690
          %v3769 = vpop.f32.mrf.mxu0
          %v3770 = vadd.f32 0.0, %v3769
          %v3771 = vpop.f32.mrf.mxu0
          %v3772 = vpop.f32.mrf.mxu0
          %v3773 = vadd.f32 0.0, %v3772
          %v3774 = vpop.f32.mrf.mxu0
          %3775 = vmatprep.mubr.bf16.mxu0 0
          %3776 = vmatmul.mubr.bf16.gmra.mxu0 %v3693
          %v3777 = vpop.f32.mrf.mxu0
          %v3778 = vadd.f32 0.0, %v3777
          %v3779 = vpop.f32.mrf.mxu0
          %v3780 = vpop.f32.mrf.mxu0
          %v3781 = vadd.f32 0.0, %v3780
          %v3782 = vpop.f32.mrf.mxu0
          %3783 = vmatprep.mubr.bf16.mxu0 0
          %3784 = vmatmul.mubr.bf16.gmra.mxu0 %v3696
          %v3785 = vpop.f32.mrf.mxu0
          %v3786 = vadd.f32 0.0, %v3785
          %v3787 = vpop.f32.mrf.mxu0
          %v3788 = vpop.f32.mrf.mxu0
          %v3789 = vadd.f32 0.0, %v3788
          %v3790 = vpop.f32.mrf.mxu0
          %3791 = vmatprep.mubr.bf16.mxu0 0
          %3792 = vmatmul.mubr.bf16.gmra.mxu0 %v3699
          %v3793 = vpop.f32.mrf.mxu0
          %v3794 = vadd.f32 0.0, %v3793
          %v3795 = vpop.f32.mrf.mxu0
          %v3796 = vpop.f32.mrf.mxu0
          %v3797 = vadd.f32 0.0, %v3796
          %v3798 = vpop.f32.mrf.mxu0
          %3799 = vmatprep.mubr.bf16.mxu0 0
          %3800 = vmatmul.mubr.bf16.gmra.mxu0 %v3702
          %v3801 = vpop.f32.mrf.mxu0
          %v3802 = vadd.f32 0.0, %v3801
          %v3803 = vpop.f32.mrf.mxu0
          %v3804 = vpop.f32.mrf.mxu0
          %v3805 = vadd.f32 0.0, %v3804
          %v3806 = vpop.f32.mrf.mxu0
          %3807 = vdwg.mxu0
          %v3808 = vpack.c.bf16 %v3749, %v3746
          %v3809 = vpack.c.bf16 %v3757, %v3754
          %v3810 = vpack.c.bf16 %v3765, %v3762
          %v3811 = vpack.c.bf16 %v3773, %v3770
          %v3812 = vpack.c.bf16 %v3781, %v3778
          %v3813 = vpack.c.bf16 %v3789, %v3786
          %v3814 = vpack.c.bf16 %v3797, %v3794
          %v3815 = vpack.c.bf16 %v3805, %v3802
          %v3824 = vunpack.c.l.b16 %v3808
          %v3825 = vunpack.c.h.b16 %v3808
          %v3826 = vunpack.c.l.b16 %v3809
          %v3827 = vunpack.c.h.b16 %v3809
          %v3828 = vunpack.c.l.b16 %v3810
          %v3829 = vunpack.c.h.b16 %v3810
          %v3830 = vunpack.c.l.b16 %v3811
          %v3831 = vunpack.c.h.b16 %v3811
          %v3832 = vunpack.c.l.b16 %v3812
          %v3833 = vunpack.c.h.b16 %v3812
          %v3834 = vunpack.c.l.b16 %v3813
          %v3835 = vunpack.c.h.b16 %v3813
          %v3836 = vunpack.c.l.b16 %v3814
          %v3837 = vunpack.c.h.b16 %v3814
          %v3838 = vunpack.c.l.b16 %v3815
          %v3839 = vunpack.c.h.b16 %v3815
          %v3840 = vpack.c.b16 %v3824, %v3824
          %v3841 = vpack.c.b16 %v3825, %v3825
          %v3842 = vpack.c.b16 %v3826, %v3826
          %v3843 = vpack.c.b16 %v3827, %v3827
          %v3844 = vpack.c.b16 %v3828, %v3828
          %v3845 = vpack.c.b16 %v3829, %v3829
          %v3846 = vpack.c.b16 %v3830, %v3830
          %v3847 = vpack.c.b16 %v3831, %v3831
          %v3848 = vpack.c.b16 %v3832, %v3832
          %v3849 = vpack.c.b16 %v3833, %v3833
          %v3850 = vpack.c.b16 %v3834, %v3834
          %v3851 = vpack.c.b16 %v3835, %v3835
          %v3852 = vpack.c.b16 %v3836, %v3836
          %v3853 = vpack.c.b16 %v3837, %v3837
          %v3854 = vpack.c.b16 %v3838, %v3838
          %v3855 = vpack.c.b16 %v3839, %v3839
          %s3872 = smul.u32 %s2025, 16
          %s3873 = smul.addr %s3872, 4
          %s3874 = scalar_lea.vmem %s341, %s3873
          %vm3875 = vcmask 388096
          %3876 = vst.msk [vmem:[%s3874] sm:$0xf] %vm3875, %v3840
          %3877 = vst.msk [vmem:[%s3874 + $0x4] sm:$0xf] %vm3875, %v3841
          %3878 = vst.msk [vmem:[%s3874 + $0x8] sm:$0xf] %vm3875, %v3842
          %3879 = vst.msk [vmem:[%s3874 + $0xc] sm:$0xf] %vm3875, %v3843
          %3880 = vst.msk [vmem:[%s3874 + $0x10] sm:$0xf] %vm3875, %v3844
          %3881 = vst.msk [vmem:[%s3874 + $0x14] sm:$0xf] %vm3875, %v3845
          %3882 = vst.msk [vmem:[%s3874 + $0x18] sm:$0xf] %vm3875, %v3846
          %3883 = vst.msk [vmem:[%s3874 + $0x1c] sm:$0xf] %vm3875, %v3847
          %3884 = vst.msk [vmem:[%s3874 + $0x20] sm:$0xf] %vm3875, %v3848
          %3885 = vst.msk [vmem:[%s3874 + $0x24] sm:$0xf] %vm3875, %v3849
          %3886 = vst.msk [vmem:[%s3874 + $0x28] sm:$0xf] %vm3875, %v3850
          %3887 = vst.msk [vmem:[%s3874 + $0x2c] sm:$0xf] %vm3875, %v3851
          %3888 = vst.msk [vmem:[%s3874 + $0x30] sm:$0xf] %vm3875, %v3852
          %3889 = vst.msk [vmem:[%s3874 + $0x34] sm:$0xf] %vm3875, %v3853
          %3890 = vst.msk [vmem:[%s3874 + $0x38] sm:$0xf] %vm3875, %v3854
          %3891 = vst.msk [vmem:[%s3874 + $0x3c] sm:$0xf] %vm3875, %v3855
        $region68: #{conv_nn_forward.2} parent=51 // loop_footer
          %s2029 = sadd.s32 1, %s2025
        $region69: #{conv_nn_forward.2} parent=51 // loop_footer_branch
          %2024 = sbr.rel target = $region65
        $region70: #{conv_nn_forward.2} parent=51 // loop_exit
          _
        %p3892 = scmp.lt.s32.totalorder %s21, 1
        %s3893 = scalar_select %p3892, %s21, 1
        %s3894 = smul.addr %s3893, 768
        %s3895 = smul.addr %s3894, 4
        %s3896 = scalar_lea.vmem %s8, %s3895
        // Predicated region
        $region71: #{conv_nn_forward.2} parent=51 // pred_check
          %p3897 = pneg %p217
        $region72: #{conv_nn_forward.2} parent=51 // pred_check_branch
          %3899 = sbr.rel (%p3897) target = $region74
        $region73: #{conv_nn_forward.2} parent=51 // pred_region
          _
        $region74: #{conv_nn_forward.2} parent=51 // pred_fallthru
          _
      $region52: #{conv_nn_forward.2} parent=5 // pred_fallthru
        _
      %p3900 = scmp.le.s32.totalorder 2, %s16
      // Predicated region
      $region75: #{conv_nn_forward.2} parent=5 // pred_check
        %p3901 = pneg %p3900
      $region76: #{conv_nn_forward.2} parent=5 // pred_check_branch
        %3903 = sbr.rel (%p3901) target = $region78
      $region77: #{conv_nn_forward.2} parent=5 // pred_region
        %s3904 = ssub.s32 %s16, 2
        // Predicated region
        $region79: #{conv_nn_forward.2} parent=77 // pred_check
          %p3905 = pneg %p223
        $region80: #{conv_nn_forward.2} parent=77 // pred_check_branch
          %3907 = sbr.rel (%p3905) target = $region82
        $region81: #{conv_nn_forward.2} parent=77 // pred_region
          %p3908 = scmp.lt.s32.totalorder %s22, 1
          %s3909 = scalar_select %p3908, %s22, 1
          %s3910 = smul.addr %s3909, 768
          %s3911 = smul.addr %s3910, 4
          %s3912 = scalar_lea.vmem %s8, %s3911
        $region82: #{conv_nn_forward.2} parent=77 // pred_fallthru
          _
      $region78: #{conv_nn_forward.2} parent=5 // pred_fallthru
        _
    $region6: #{conv_nn_forward.2} parent=1 // loop_footer
      %s20 = sadd.s32 1, %s16
    $region7: #{conv_nn_forward.2} parent=1 // loop_footer_branch
      %15 = sbr.rel target = $region3
    $region8: #{conv_nn_forward.2} parent=1 // loop_exit
      _
    %3913 = vsyncpa [#allocation5], 1
    %s3914 = scalar_lea.sflag [#allocation5], 1
    %3915 = vsyncpa %s3914, 1

</llo_original>
